<compile_context>
chip_gen: v7x
topology: tpu7x:2x2x1
jax: 0.10.0
libtpu: 0.0.40
codegen_flags: <defaults>
</compile_context>

<pallas_src>
import functools

import jax
import jax.numpy as jnp
from jax.experimental import pallas as pl
from jax.experimental.pallas import tpu as pltpu


# Tile / alignment constants.
TILE_M = 1024            # max rows per tile (sweep 2048 on 128-MiB v5e/v6e parts)
MIN_SPLIT_ROWS = 256     # below this, a single full-array tile (avoid step overhead)
LANE = 128               # lane width: K and Cout padded to multiples of this
ROW_ALIGN = 16           # bf16 sublane packing: row tiles are multiples of 16
CH_ALIGN = 8             # activations kept at channel counts that are multiples of 8


def _round_up(x, m):
    return (x + m - 1) // m * m


@functools.lru_cache(maxsize=None)
def _vmem_limit_bytes():
    """Scoped-VMEM limit: 3/4 of physical (v5e/v6e 128 MiB, v7x 64 MiB), capped."""
    try:
        cap = int(pltpu.get_tpu_info().vmem_capacity_bytes)
        if cap >= 32 * 1024 * 1024:
            return int(min(cap * 3 // 4, 96 * 1024 * 1024))
    except Exception:
        pass
    return 48 * 1024 * 1024   # safe everywhere (under v7x's 64 MiB physical)


def _max_tm_for_budget(k_pad, cout_pad, out_bytes, vmem_limit):
    """Largest row-tile that keeps (2x in + 2x out + resident weight) under budget."""
    weight = k_pad * cout_pad * 2                       # resident bf16 weight
    per_row = 2 * (k_pad * 2 + cout_pad * out_bytes)    # double-buffered in + out
    budget = max(vmem_limit - weight - (1 << 20), per_row)
    tm = budget // per_row
    return max(ROW_ALIGN, (tm // ROW_ALIGN) * ROW_ALIGN)


def _row_tiling(rows, tile_cap):
    """Pick (tm, rows_pad): prefer exact division (no pad) and grid_m >= 2."""
    if rows <= MIN_SPLIT_ROWS:
        return rows, rows                               # single full-array tile
    cap = min(tile_cap, rows // 2)                      # keep both v7x TCs busy
    cap = max(ROW_ALIGN, (cap // ROW_ALIGN) * ROW_ALIGN)
    for tm in range(cap, ROW_ALIGN - 1, -ROW_ALIGN):
        if rows % tm == 0:
            return tm, rows
    return cap, _round_up(rows, cap)                    # fallback: pad rows


# ----------------------------------------------------------------------------
# Pallas kernels
# ----------------------------------------------------------------------------
def _make_conv_matmul_kernel(lrelu, want_stats):
    """Tiled conv-as-matmul: bf16 x bf16 -> f32 accumulate, bf16 store.

    Optional fused LeakyReLU(0.2) epilogue and optional per-tile BatchNorm
    partial statistics (sum / sum-of-squares of the pre-activation output).
    """

    def kernel(p_ref, w_ref, *out_refs):
        if want_stats:
            o_ref, stats_ref = out_refs
        else:
            (o_ref,) = out_refs

        # Hot path: MXU matmul, bf16 operands, f32 accumulation.
        y = jnp.dot(p_ref[...], w_ref[...], preferred_element_type=jnp.float32)

        if want_stats:
            # Per-tile BN partials on the pre-activation output.  Zero-padded
            # patch rows contribute exactly 0.  Single (8, Cout_pad) store.
            s1 = jnp.sum(y, axis=0, keepdims=True)
            s2 = jnp.sum(y * y, axis=0, keepdims=True)
            ridx = jax.lax.broadcasted_iota(jnp.int32, (8, y.shape[1]), 0)
            stats_ref[...] = jnp.where(ridx == 0, s1,
                                       jnp.where(ridx == 1, s2, 0.0))

        if lrelu:
            y = jnp.where(y > 0, y, 0.2 * y)
        o_ref[...] = y.astype(o_ref.dtype)

    return kernel


def _bn_lrelu_apply_kernel(x_ref, scale_ref, shift_ref, o_ref):
    """Precomputed per-channel BN scale/shift + LeakyReLU(0.2), bf16 in/out."""
    y = x_ref[...].astype(jnp.float32) * scale_ref[...] + shift_ref[...]
    o_ref[...] = jnp.where(y > 0, y, 0.2 * y).astype(o_ref.dtype)


def _head_kernel(p_ref, scale_ref, shift_ref, w_ref, o_ref):
    """Fused sigmoid head: BN scale/shift + LReLU + 4x4/s1/p0 conv (as one
    matmul over the flattened 4x4 map) + sigmoid."""
    x = p_ref[...].astype(jnp.float32) * scale_ref[...] + shift_ref[...]
    x = jnp.where(x > 0, x, 0.2 * x)
    y = jnp.dot(x.astype(jnp.bfloat16), w_ref[...],
                preferred_element_type=jnp.float32)
    o_ref[...] = jax.nn.sigmoid(y)


# ----------------------------------------------------------------------------
# Pallas wrappers
# ----------------------------------------------------------------------------
def pallas_conv_matmul(patches, w_mat, *, lrelu=False, want_stats=False):
    """(rows, K) bf16 patches @ (K, Cout_pad) bf16 weight -> bf16 (rows_pad, Cout_pad).

    Optionally also returns a (grid_m * 8, Cout_pad) f32 array whose rows
    0::8 / 1::8 hold per-tile partial sums / sums-of-squares for BatchNorm.
    """
    rows, k_raw = patches.shape
    k_pad, cout_pad = w_mat.shape

    vmem_limit = _vmem_limit_bytes()
    tile_cap = min(TILE_M, _max_tm_for_budget(k_pad, cout_pad, 2, vmem_limit))
    tm, rows_pad = _row_tiling(rows, tile_cap)
    grid_m = rows_pad // tm

    p = patches
    if k_raw != k_pad or rows_pad != rows:
        # Fallback only: with channel-pre-padded activations and divisor row
        # tiles this never triggers, so the expanded patch matrix is not copied.
        p = jnp.pad(p, ((0, rows_pad - rows), (0, k_pad - k_raw)))

    in_specs = [
        pl.BlockSpec((tm, k_pad), lambda i: (i, 0)),       # streamed row tiles
        pl.BlockSpec((k_pad, cout_pad), lambda i: (0, 0)),  # weight stays resident
    ]
    compiler_params = pltpu.CompilerParams(
        dimension_semantics=("parallel",),
        vmem_limit_bytes=vmem_limit,
    )

    if want_stats:
        out_shape = (
            jax.ShapeDtypeStruct((rows_pad, cout_pad), jnp.bfloat16),
            jax.ShapeDtypeStruct((grid_m * 8, cout_pad), jnp.float32),
        )
        out_specs = (
            pl.BlockSpec((tm, cout_pad), lambda i: (i, 0)),
            pl.BlockSpec((8, cout_pad), lambda i: (i, 0)),
        )
    else:
        out_shape = jax.ShapeDtypeStruct((rows_pad, cout_pad), jnp.bfloat16)
        out_specs = pl.BlockSpec((tm, cout_pad), lambda i: (i, 0))

    return pl.pallas_call(
        _make_conv_matmul_kernel(lrelu, want_stats),
        grid=(grid_m,),
        in_specs=in_specs,
        out_shape=out_shape,
        out_specs=out_specs,
        compiler_params=compiler_params,
    )(p, w_mat)


def pallas_bn_lrelu_apply(y, scale, shift):
    """y: (rows_pad, Cout_pad) bf16; scale/shift: (Cout,) f32 -> bf16 output."""
    rows_in, cout_pad = y.shape
    cout = scale.shape[0]
    tm, rows_pad = _row_tiling(rows_in, TILE_M)
    if rows_pad != rows_in:
        y = jnp.pad(y, ((0, rows_pad - rows_in), (0, 0)))
    grid_m = rows_pad // tm

    scale_p = jnp.zeros((1, cout_pad), jnp.float32).at[0, :cout].set(scale)
    shift_p = jnp.zeros((1, cout_pad), jnp.float32).at[0, :cout].set(shift)

    return pl.pallas_call(
        _bn_lrelu_apply_kernel,
        grid=(grid_m,),
        in_specs=[
            pl.BlockSpec((tm, cout_pad), lambda i: (i, 0)),
            pl.BlockSpec((1, cout_pad), lambda i: (0, 0)),
            pl.BlockSpec((1, cout_pad), lambda i: (0, 0)),
        ],
        out_shape=jax.ShapeDtypeStruct((rows_pad, cout_pad), jnp.bfloat16),
        out_specs=pl.BlockSpec((tm, cout_pad), lambda i: (i, 0)),
        compiler_params=pltpu.CompilerParams(
            dimension_semantics=("parallel",),
            vmem_limit_bytes=_vmem_limit_bytes(),
        ),
    )(y, scale_p, shift_p)


def pallas_head(p, scale_k, shift_k, w_mat):
    """Fused BN + LReLU + final 4x4 conv + sigmoid on the tiny head tensors."""
    n_pad, k = p.shape
    cout_pad = w_mat.shape[1]
    return pl.pallas_call(
        _head_kernel,
        grid=(1,),
        in_specs=[
            pl.BlockSpec((n_pad, k), lambda i: (0, 0)),
            pl.BlockSpec((1, k), lambda i: (0, 0)),
            pl.BlockSpec((1, k), lambda i: (0, 0)),
            pl.BlockSpec((k, cout_pad), lambda i: (0, 0)),
        ],
        out_shape=jax.ShapeDtypeStruct((n_pad, cout_pad), jnp.float32),
        out_specs=pl.BlockSpec((n_pad, cout_pad), lambda i: (0, 0)),
        compiler_params=pltpu.CompilerParams(
            vmem_limit_bytes=_vmem_limit_bytes()),
    )(p, scale_k, shift_k, w_mat)


# ----------------------------------------------------------------------------
# Plain-JAX glue: channel padding, im2col, weight packing, BN finalization
# ----------------------------------------------------------------------------
def _pad_channels(x, align=CH_ALIGN):
    c = x.shape[-1]
    cp = _round_up(c, align)
    if cp != c:
        x = jnp.pad(x, ((0, 0),) * (x.ndim - 1) + ((0, cp - c),))
    return x


def conv_im2col(x_nhwc, k, stride, pad):
    """Extract (kh, kw, cin)-ordered patches -> (N*OH*OW, k*k*Cin), same dtype."""
    if pad:
        x_nhwc = jnp.pad(x_nhwc, ((0, 0), (pad, pad), (pad, pad), (0, 0)))
    n, h, w, c = x_nhwc.shape
    oh = (h - k) // stride + 1
    ow = (w - k) // stride + 1
    cols = []
    for kh in range(k):
        for kw in range(k):
            cols.append(
                x_nhwc[:,
                       kh:kh + stride * (oh - 1) + 1:stride,
                       kw:kw + stride * (ow - 1) + 1:stride, :])
    p = jnp.stack(cols, axis=3)            # (N, OH, OW, k*k, Cin)
    return p.reshape(n * oh * ow, k * k * c), (n, oh, ow)


def conv_weight_to_mat(w_oihw, cin_pad=None):
    """PyTorch (Cout, Cin, KH, KW) -> zero-padded bf16 (K_pad, Cout_pad) matrix.

    Cin is padded to `cin_pad` (default: multiple of 8) *before* flattening so
    it matches the channel-padded activations fed to im2col.
    """
    co, ci, kh, kw = w_oihw.shape
    if cin_pad is None:
        cin_pad = _round_up(ci, CH_ALIGN)
    m = jnp.transpose(w_oihw, (2, 3, 1, 0))                 # (kh, kw, ci, co)
    m = jnp.pad(m, ((0, 0), (0, 0), (0, cin_pad - ci), (0, 0)))
    m = m.reshape(kh * kw * cin_pad, co)
    k_pad = _round_up(m.shape[0], LANE)
    c_pad = _round_up(co, LANE)
    m = jnp.pad(m, ((0, k_pad - m.shape[0]), (0, c_pad - co)))
    return m.astype(jnp.bfloat16)


def _finalize_bn(stats, rows, cout, gamma, beta, eps=1e-5):
    """Reduce per-tile partials -> per-channel (scale, shift), training-mode BN."""
    ch_sum = jnp.sum(stats[0::8, :cout], axis=0)
    ch_sq = jnp.sum(stats[1::8, :cout], axis=0)
    mean = ch_sum / rows
    var = jnp.maximum(ch_sq / rows - mean * mean, 0.0)   # biased var, as in PyTorch fwd
    scale = gamma * jax.lax.rsqrt(var + eps)
    shift = beta - mean * scale
    return scale, shift


# ----------------------------------------------------------------------------
# Discriminator forward
# ----------------------------------------------------------------------------
def make_params(key, nc, ndf):
    ks = jax.random.split(key, 5)
    std = 0.02
    c4_pad = _round_up(ndf * 8, LANE)
    return {
        "w1": conv_weight_to_mat(std * jax.random.normal(ks[0], (ndf, nc, 4, 4), jnp.float32)),
        "w2": conv_weight_to_mat(std * jax.random.normal(ks[1], (ndf * 2, ndf, 4, 4), jnp.float32)),
        "w3": conv_weight_to_mat(std * jax.random.normal(ks[2], (ndf * 4, ndf * 2, 4, 4), jnp.float32)),
        "w4": conv_weight_to_mat(std * jax.random.normal(ks[3], (ndf * 8, ndf * 4, 4, 4), jnp.float32)),
        # Head weight packed against the *padded* channel count of the w4 output
        # so the flattened 4x4 activation feeds the fused head kernel directly.
        "w5": conv_weight_to_mat(std * jax.random.normal(ks[4], (1, ndf * 8, 4, 4), jnp.float32),
                                 cin_pad=c4_pad),
        # BatchNorm affine params (PyTorch default init: gamma=1, beta=0)
        "g2": jnp.ones((ndf * 2,), jnp.float32), "b2": jnp.zeros((ndf * 2,), jnp.float32),
        "g3": jnp.ones((ndf * 4,), jnp.float32), "b3": jnp.zeros((ndf * 4,), jnp.float32),
        "g5": jnp.ones((ndf * 8,), jnp.float32), "b5": jnp.zeros((ndf * 8,), jnp.float32),
    }


def _conv_bn_lrelu_block(x, w_mat, gamma, beta):
    """Conv(4,2,1, no bias) -> BatchNorm(batch stats) -> LeakyReLU(0.2)."""
    p, (n, oh, ow) = conv_im2col(x, 4, 2, 1)
    rows = n * oh * ow
    cout = gamma.shape[0]
    cout_keep = _round_up(cout, CH_ALIGN)        # padded channels stay exactly 0
    y, stats = pallas_conv_matmul(p, w_mat, want_stats=True)
    scale, shift = _finalize_bn(stats, rows, cout, gamma, beta)
    y = pallas_bn_lrelu_apply(y, scale, shift)
    return y[:rows, :cout_keep].reshape(n, oh, ow, cout_keep)


@functools.partial(jax.jit, static_argnames=("ndf", "mode"))
def discriminator_forward(x_nchw, params, ndf, mode=""):
    ndf_al = _round_up(ndf, CH_ALIGN)
    x = jnp.transpose(x_nchw, (0, 2, 3, 1)).astype(jnp.bfloat16)   # NCHW -> NHWC bf16
    x = _pad_channels(x)                                            # nc -> multiple of 8

    # main[0:2]: Conv(nc -> ndf) + LeakyReLU (fused epilogue)
    p, (n, oh, ow) = conv_im2col(x, 4, 2, 1)
    y = pallas_conv_matmul(p, params["w1"], lrelu=True)
    x = y[:n * oh * ow, :ndf_al].reshape(n, oh, ow, ndf_al)

    # main[2:5]: Conv(ndf -> 2ndf) + BN + LeakyReLU
    x = _conv_bn_lrelu_block(x, params["w2"], params["g2"], params["b2"])
    # main[5:8]: Conv(2ndf -> 4ndf) + BN + LeakyReLU
    x = _conv_bn_lrelu_block(x, params["w3"], params["g3"], params["b3"])

    # l_layer: Conv(4ndf -> 8ndf)
    p, (n, oh, ow) = conv_im2col(x, 4, 2, 1)
    rows = n * oh * ow
    c4 = ndf * 8
    c4_pad = params["w4"].shape[1]

    if mode == "tilde":
        y = pallas_conv_matmul(p, params["w4"])
        feat = y[:rows, :c4].reshape(n, oh, ow, c4).astype(jnp.float32)
        # match PyTorch output.view(len(output), -1) on NCHW: flatten (C, H, W)
        return jnp.transpose(feat, (0, 3, 1, 2)).reshape(n, -1)

    # sigmoid_output: BN(8ndf) -> LReLU -> Conv(8ndf -> 1, 4, 1, 0) -> Sigmoid,
    # fused into a single Pallas kernel on the tiny head tensors.
    y, stats = pallas_conv_matmul(p, params["w4"], want_stats=True)
    scale, shift = _finalize_bn(stats, rows, c4, params["g5"], params["b5"])
    # Per-K-column scale/shift: padded channels get (0, 0) so they stay 0.
    scale_k = jnp.tile(jnp.pad(scale, (0, c4_pad - c4)), oh * ow)[None, :]
    shift_k = jnp.tile(jnp.pad(shift, (0, c4_pad - c4)), oh * ow)[None, :]
    # 4x4/s1/p0 conv on the 4x4 map == flatten of the NHWC activation.
    p_head = y[:rows].reshape(n, oh * ow * c4_pad)
    n_pad = _round_up(max(n, ROW_ALIGN), ROW_ALIGN)
    if n_pad != n:
        p_head = jnp.pad(p_head, ((0, n_pad - n), (0, 0)))
    out = pallas_head(p_head, scale_k, shift_k, params["w5"])
    return out[:n, 0]                                     # .view(-1, 1).squeeze(1)


if __name__ == "__main__":
    # Shapes consistent with the module: the final 4x4/s1/p0 conv requires
    # imageSize = 64 (64 -> 32 -> 16 -> 8 -> 4 -> 1). Small nc/ndf/batch.
    imageSize, nc, ndf, nz = 64, 3, 8, 100   # nz unused in forward
    batch = 2

    key = jax.random.PRNGKey(0)
    k_x, k_w = jax.random.split(key)
    x = jax.random.normal(k_x, (batch, nc, imageSize, imageSize), jnp.float32)
    params = make_params(k_w, nc, ndf)

    out = discriminator_forward(x, params, ndf=ndf, mode="")
    out = jax.block_until_ready(out)
    assert out.shape == (batch,), out.shape

    out_tilde = discriminator_forward(x, params, ndf=ndf, mode="tilde")
    out_tilde = jax.block_until_ready(out_tilde)
    assert out_tilde.shape == (batch, ndf * 8 * 4 * 4), out_tilde.shape

    print("KERNEL_OK")
</pallas_src>

<mosaic_0001>
module attributes {stable_mosaic.version = 11 : i64} {
  func.func @kernel(%arg0: i32, %arg1: memref<1024x128xbf16, #tpu.memory_space<vmem>>, %arg2: memref<128x128xbf16, #tpu.memory_space<vmem>>, %arg3: memref<1024x128xbf16, #tpu.memory_space<vmem>>) attributes {dimension_semantics = [#tpu.dimension_semantics<parallel>], iteration_bounds = array<i64: 2>, scalar_prefetch = 0 : i64, scratch_operands = 0 : i64, tpu.core_type = #tpu.core_type<tc>, window_params = [{transform_indices = @transform_0, window_bounds = array<i64: 1024, 128>}, {pipeline_mode = #tpu.pipeline_mode<synchronous>, transform_indices = @transform_1, window_bounds = array<i64: 128, 128>}, {transform_indices = @transform_2, window_bounds = array<i64: 1024, 128>}]} {
    %c0 = arith.constant 0 : index
    %c0_0 = arith.constant 0 : index
    %0 = vector.load %arg1[%c0, %c0_0] : memref<1024x128xbf16, #tpu.memory_space<vmem>>, vector<1024x128xbf16>
    %c0_1 = arith.constant 0 : index
    %c0_2 = arith.constant 0 : index
    %1 = vector.load %arg2[%c0_1, %c0_2] : memref<128x128xbf16, #tpu.memory_space<vmem>>, vector<128x128xbf16>
    %cst = arith.constant dense<0.000000e+00> : vector<1024x128xf32>
    %2 = tpu.matmul %0, %1, %cst {dimension_numbers = #tpu.dot_dimension_numbers<[1], [0], [0], [1], [0, 0, 1, 1], [], []>} : vector<1024x128xbf16>, vector<128x128xbf16>, vector<1024x128xf32> -> vector<1024x128xf32>
    %cst_3 = arith.constant 0.000000e+00 : f32
    %3 = vector.broadcast %cst_3 : f32 to vector<1024x128xf32>
    %4 = arith.cmpf ogt, %2, %3 : vector<1024x128xf32>
    %cst_4 = arith.constant 2.000000e-01 : f32
    %5 = vector.broadcast %cst_4 : f32 to vector<1024x128xf32>
    %6 = arith.mulf %5, %2 : vector<1024x128xf32>
    %7 = arith.select %4, %2, %6 : vector<1024x128xi1>, vector<1024x128xf32>
    %8 = arith.truncf %7 : vector<1024x128xf32> to vector<1024x128xbf16>
    %c0_5 = arith.constant 0 : index
    %c0_6 = arith.constant 0 : index
    %9 = vector.load %arg3[%c0_5, %c0_6] : memref<1024x128xbf16, #tpu.memory_space<vmem>>, vector<1024x128xbf16>
    tpu.vector_store %arg3[%c0_5, %c0_6], %8 {strides = array<i32>} : memref<1024x128xbf16, #tpu.memory_space<vmem>>, vector<1024x128xbf16>,
    return
  }
  func.func @transform_0(%arg0: i32) -> (i32, i32) {
    %c0_i32 = arith.constant 0 : i32
    %c0_i32_0 = arith.constant 0 : i32
    return %arg0, %c0_i32 : i32, i32
  }
  func.func @transform_1(%arg0: i32) -> (i32, i32) {
    %c0_i32 = arith.constant 0 : i32
    %c0_i32_0 = arith.constant 0 : i32
    %c0_i32_1 = arith.constant 0 : i32
    return %c0_i32, %c0_i32_0 : i32, i32
  }
  func.func @transform_2(%arg0: i32) -> (i32, i32) {
    %c0_i32 = arith.constant 0 : i32
    %c0_i32_0 = arith.constant 0 : i32
    return %arg0, %c0_i32 : i32, i32
  }
}

module attributes {stable_mosaic.version = 11 : i64} {
  func.func @kernel(%arg0: i32, %arg1: memref<256x128xbf16, #tpu.memory_space<vmem>>, %arg2: memref<128x128xbf16, #tpu.memory_space<vmem>>, %arg3: memref<256x128xbf16, #tpu.memory_space<vmem>>, %arg4: memref<8x128xf32, #tpu.memory_space<vmem>>) attributes {dimension_semantics = [#tpu.dimension_semantics<parallel>], iteration_bounds = array<i64: 2>, scalar_prefetch = 0 : i64, scratch_operands = 0 : i64, tpu.core_type = #tpu.core_type<tc>, window_params = [{transform_indices = @transform_0, window_bounds = array<i64: 256, 128>}, {pipeline_mode = #tpu.pipeline_mode<synchronous>, transform_indices = @transform_1, window_bounds = array<i64: 128, 128>}, {transform_indices = @transform_2, window_bounds = array<i64: 256, 128>}, {transform_indices = @transform_3, window_bounds = array<i64: 8, 128>}]} {
    %c0 = arith.constant 0 : index
    %c0_0 = arith.constant 0 : index
    %0 = vector.load %arg1[%c0, %c0_0] : memref<256x128xbf16, #tpu.memory_space<vmem>>, vector<256x128xbf16>
    %c0_1 = arith.constant 0 : index
    %c0_2 = arith.constant 0 : index
    %1 = vector.load %arg2[%c0_1, %c0_2] : memref<128x128xbf16, #tpu.memory_space<vmem>>, vector<128x128xbf16>
    %cst = arith.constant dense<0.000000e+00> : vector<256x128xf32>
    %2 = tpu.matmul %0, %1, %cst {dimension_numbers = #tpu.dot_dimension_numbers<[1], [0], [0], [1], [0, 0, 1, 1], [], []>} : vector<256x128xbf16>, vector<128x128xbf16>, vector<256x128xf32> -> vector<256x128xf32>
    %cst_3 = arith.constant dense<0.000000e+00> : vector<128xf32>
    %3 = vector.multi_reduction <add>, %2, %cst_3 [0] : vector<256x128xf32> to vector<128xf32>
    %4 = vector.shape_cast %3 : vector<128xf32> to vector<1x128xf32>
    %5 = arith.mulf %2, %2 : vector<256x128xf32>
    %cst_4 = arith.constant dense<0.000000e+00> : vector<128xf32>
    %6 = vector.multi_reduction <add>, %5, %cst_4 [0] : vector<256x128xf32> to vector<128xf32>
    %7 = vector.shape_cast %6 : vector<128xf32> to vector<1x128xf32>
    %8 = tpu.iota {dimensions = array<i32: 0>} : vector<8x128xi32>
    %c0_i32 = arith.constant 0 : i32
    %9 = vector.broadcast %c0_i32 : i32 to vector<8x128xi32>
    %10 = arith.cmpi eq, %8, %9 : vector<8x128xi32>
    %c1_i32 = arith.constant 1 : i32
    %11 = vector.broadcast %c1_i32 : i32 to vector<8x128xi32>
    %12 = arith.cmpi eq, %8, %11 : vector<8x128xi32>
    %cst_5 = arith.constant 0.000000e+00 : f32
    %13 = vector.shape_cast %7 : vector<1x128xf32> to vector<1x128xf32>
    %14 = vector.broadcast %13 : vector<1x128xf32> to vector<8x128xf32>
    %15 = vector.broadcast %cst_5 : f32 to vector<8x128xf32>
    %16 = arith.select %12, %14, %15 : vector<8x128xi1>, vector<8x128xf32>
    %17 = vector.shape_cast %4 : vector<1x128xf32> to vector<1x128xf32>
    %18 = vector.broadcast %17 : vector<1x128xf32> to vector<8x128xf32>
    %19 = arith.select %10, %18, %16 : vector<8x128xi1>, vector<8x128xf32>
    %c0_6 = arith.constant 0 : index
    %c0_7 = arith.constant 0 : index
    %20 = vector.load %arg4[%c0_6, %c0_7] : memref<8x128xf32, #tpu.memory_space<vmem>>, vector<8x128xf32>
    tpu.vector_store %arg4[%c0_6, %c0_7], %19 {strides = array<i32>} : memref<8x128xf32, #tpu.memory_space<vmem>>, vector<8x128xf32>,
    %21 = arith.truncf %2 : vector<256x128xf32> to vector<256x128xbf16>
    %c0_8 = arith.constant 0 : index
    %c0_9 = arith.constant 0 : index
    %22 = vector.load %arg3[%c0_8, %c0_9] : memref<256x128xbf16, #tpu.memory_space<vmem>>, vector<256x128xbf16>
    tpu.vector_store %arg3[%c0_8, %c0_9], %21 {strides = array<i32>} : memref<256x128xbf16, #tpu.memory_space<vmem>>, vector<256x128xbf16>,
    return
  }
  func.func @transform_0(%arg0: i32) -> (i32, i32) {
    %c0_i32 = arith.constant 0 : i32
    %c0_i32_0 = arith.constant 0 : i32
    return %arg0, %c0_i32 : i32, i32
  }
  func.func @transform_1(%arg0: i32) -> (i32, i32) {
    %c0_i32 = arith.constant 0 : i32
    %c0_i32_0 = arith.constant 0 : i32
    %c0_i32_1 = arith.constant 0 : i32
    return %c0_i32, %c0_i32_0 : i32, i32
  }
  func.func @transform_2(%arg0: i32) -> (i32, i32) {
    %c0_i32 = arith.constant 0 : i32
    %c0_i32_0 = arith.constant 0 : i32
    return %arg0, %c0_i32 : i32, i32
  }
  func.func @transform_3(%arg0: i32) -> (i32, i32) {
    %c0_i32 = arith.constant 0 : i32
    %c0_i32_0 = arith.constant 0 : i32
    return %arg0, %c0_i32 : i32, i32
  }
}

module attributes {stable_mosaic.version = 11 : i64} {
  func.func @_bn_lrelu_apply_kernel(%arg0: i32, %arg1: memref<256x128xbf16, #tpu.memory_space<vmem>>, %arg2: memref<1x128xf32, #tpu.memory_space<vmem>>, %arg3: memref<1x128xf32, #tpu.memory_space<vmem>>, %arg4: memref<256x128xbf16, #tpu.memory_space<vmem>>) attributes {dimension_semantics = [#tpu.dimension_semantics<parallel>], iteration_bounds = array<i64: 2>, scalar_prefetch = 0 : i64, scratch_operands = 0 : i64, tpu.core_type = #tpu.core_type<tc>, window_params = [{transform_indices = @transform_0, window_bounds = array<i64: 256, 128>}, {pipeline_mode = #tpu.pipeline_mode<synchronous>, transform_indices = @transform_1, window_bounds = array<i64: 1, 128>}, {pipeline_mode = #tpu.pipeline_mode<synchronous>, transform_indices = @transform_2, window_bounds = array<i64: 1, 128>}, {transform_indices = @transform_3, window_bounds = array<i64: 256, 128>}]} {
    %c0 = arith.constant 0 : index
    %c0_0 = arith.constant 0 : index
    %0 = vector.load %arg1[%c0, %c0_0] : memref<256x128xbf16, #tpu.memory_space<vmem>>, vector<256x128xbf16>
    %1 = arith.extf %0 : vector<256x128xbf16> to vector<256x128xf32>
    %c0_1 = arith.constant 0 : index
    %c0_2 = arith.constant 0 : index
    %2 = vector.load %arg2[%c0_1, %c0_2] : memref<1x128xf32, #tpu.memory_space<vmem>>, vector<1x128xf32>
    %3 = vector.broadcast %2 : vector<1x128xf32> to vector<256x128xf32>
    %4 = arith.mulf %1, %3 : vector<256x128xf32>
    %c0_3 = arith.constant 0 : index
    %c0_4 = arith.constant 0 : index
    %5 = vector.load %arg3[%c0_3, %c0_4] : memref<1x128xf32, #tpu.memory_space<vmem>>, vector<1x128xf32>
    %6 = vector.broadcast %5 : vector<1x128xf32> to vector<256x128xf32>
    %7 = arith.addf %4, %6 : vector<256x128xf32>
    %cst = arith.constant 0.000000e+00 : f32
    %8 = vector.broadcast %cst : f32 to vector<256x128xf32>
    %9 = arith.cmpf ogt, %7, %8 : vector<256x128xf32>
    %cst_5 = arith.constant 2.000000e-01 : f32
    %10 = vector.broadcast %cst_5 : f32 to vector<256x128xf32>
    %11 = arith.mulf %10, %7 : vector<256x128xf32>
    %12 = arith.select %9, %7, %11 : vector<256x128xi1>, vector<256x128xf32>
    %13 = arith.truncf %12 : vector<256x128xf32> to vector<256x128xbf16>
    %c0_6 = arith.constant 0 : index
    %c0_7 = arith.constant 0 : index
    %14 = vector.load %arg4[%c0_6, %c0_7] : memref<256x128xbf16, #tpu.memory_space<vmem>>, vector<256x128xbf16>
    tpu.vector_store %arg4[%c0_6, %c0_7], %13 {strides = array<i32>} : memref<256x128xbf16, #tpu.memory_space<vmem>>, vector<256x128xbf16>,
    return
  }
  func.func @transform_0(%arg0: i32) -> (i32, i32) {
    %c0_i32 = arith.constant 0 : i32
    %c0_i32_0 = arith.constant 0 : i32
    return %arg0, %c0_i32 : i32, i32
  }
  func.func @transform_1(%arg0: i32) -> (i32, i32) {
    %c0_i32 = arith.constant 0 : i32
    %c0_i32_0 = arith.constant 0 : i32
    %c0_i32_1 = arith.constant 0 : i32
    return %c0_i32, %c0_i32_0 : i32, i32
  }
  func.func @transform_2(%arg0: i32) -> (i32, i32) {
    %c0_i32 = arith.constant 0 : i32
    %c0_i32_0 = arith.constant 0 : i32
    %c0_i32_1 = arith.constant 0 : i32
    return %c0_i32, %c0_i32_0 : i32, i32
  }
  func.func @transform_3(%arg0: i32) -> (i32, i32) {
    %c0_i32 = arith.constant 0 : i32
    %c0_i32_0 = arith.constant 0 : i32
    return %arg0, %c0_i32 : i32, i32
  }
}

module attributes {stable_mosaic.version = 11 : i64} {
  func.func @kernel(%arg0: i32, %arg1: memref<128x256xbf16, #tpu.memory_space<vmem>>, %arg2: memref<256x128xbf16, #tpu.memory_space<vmem>>, %arg3: memref<128x128xbf16, #tpu.memory_space<vmem>>, %arg4: memref<8x128xf32, #tpu.memory_space<vmem>>) attributes {dimension_semantics = [#tpu.dimension_semantics<parallel>], iteration_bounds = array<i64: 1>, scalar_prefetch = 0 : i64, scratch_operands = 0 : i64, tpu.core_type = #tpu.core_type<tc>, window_params = [{transform_indices = @transform_0, window_bounds = array<i64: 128, 256>}, {pipeline_mode = #tpu.pipeline_mode<synchronous>, transform_indices = @transform_1, window_bounds = array<i64: 256, 128>}, {transform_indices = @transform_2, window_bounds = array<i64: 128, 128>}, {transform_indices = @transform_3, window_bounds = array<i64: 8, 128>}]} {
    %c0 = arith.constant 0 : index
    %c0_0 = arith.constant 0 : index
    %0 = vector.load %arg1[%c0, %c0_0] : memref<128x256xbf16, #tpu.memory_space<vmem>>, vector<128x256xbf16>
    %c0_1 = arith.constant 0 : index
    %c0_2 = arith.constant 0 : index
    %1 = vector.load %arg2[%c0_1, %c0_2] : memref<256x128xbf16, #tpu.memory_space<vmem>>, vector<256x128xbf16>
    %cst = arith.constant dense<0.000000e+00> : vector<128x128xf32>
    %2 = tpu.matmul %0, %1, %cst {dimension_numbers = #tpu.dot_dimension_numbers<[1], [0], [0], [1], [0, 0, 1, 1], [], []>} : vector<128x256xbf16>, vector<256x128xbf16>, vector<128x128xf32> -> vector<128x128xf32>
    %cst_3 = arith.constant dense<0.000000e+00> : vector<128xf32>
    %3 = vector.multi_reduction <add>, %2, %cst_3 [0] : vector<128x128xf32> to vector<128xf32>
    %4 = vector.shape_cast %3 : vector<128xf32> to vector<1x128xf32>
    %5 = arith.mulf %2, %2 : vector<128x128xf32>
    %cst_4 = arith.constant dense<0.000000e+00> : vector<128xf32>
    %6 = vector.multi_reduction <add>, %5, %cst_4 [0] : vector<128x128xf32> to vector<128xf32>
    %7 = vector.shape_cast %6 : vector<128xf32> to vector<1x128xf32>
    %8 = tpu.iota {dimensions = array<i32: 0>} : vector<8x128xi32>
    %c0_i32 = arith.constant 0 : i32
    %9 = vector.broadcast %c0_i32 : i32 to vector<8x128xi32>
    %10 = arith.cmpi eq, %8, %9 : vector<8x128xi32>
    %c1_i32 = arith.constant 1 : i32
    %11 = vector.broadcast %c1_i32 : i32 to vector<8x128xi32>
    %12 = arith.cmpi eq, %8, %11 : vector<8x128xi32>
    %cst_5 = arith.constant 0.000000e+00 : f32
    %13 = vector.shape_cast %7 : vector<1x128xf32> to vector<1x128xf32>
    %14 = vector.broadcast %13 : vector<1x128xf32> to vector<8x128xf32>
    %15 = vector.broadcast %cst_5 : f32 to vector<8x128xf32>
    %16 = arith.select %12, %14, %15 : vector<8x128xi1>, vector<8x128xf32>
    %17 = vector.shape_cast %4 : vector<1x128xf32> to vector<1x128xf32>
    %18 = vector.broadcast %17 : vector<1x128xf32> to vector<8x128xf32>
    %19 = arith.select %10, %18, %16 : vector<8x128xi1>, vector<8x128xf32>
    %c0_6 = arith.constant 0 : index
    %c0_7 = arith.constant 0 : index
    %20 = vector.load %arg4[%c0_6, %c0_7] : memref<8x128xf32, #tpu.memory_space<vmem>>, vector<8x128xf32>
    tpu.vector_store %arg4[%c0_6, %c0_7], %19 {strides = array<i32>} : memref<8x128xf32, #tpu.memory_space<vmem>>, vector<8x128xf32>,
    %21 = arith.truncf %2 : vector<128x128xf32> to vector<128x128xbf16>
    %c0_8 = arith.constant 0 : index
    %c0_9 = arith.constant 0 : index
    %22 = vector.load %arg3[%c0_8, %c0_9] : memref<128x128xbf16, #tpu.memory_space<vmem>>, vector<128x128xbf16>
    tpu.vector_store %arg3[%c0_8, %c0_9], %21 {strides = array<i32>} : memref<128x128xbf16, #tpu.memory_space<vmem>>, vector<128x128xbf16>,
    return
  }
  func.func @transform_0(%arg0: i32) -> (i32, i32) {
    %c0_i32 = arith.constant 0 : i32
    %c0_i32_0 = arith.constant 0 : i32
    return %arg0, %c0_i32 : i32, i32
  }
  func.func @transform_1(%arg0: i32) -> (i32, i32) {
    %c0_i32 = arith.constant 0 : i32
    %c0_i32_0 = arith.constant 0 : i32
    %c0_i32_1 = arith.constant 0 : i32
    return %c0_i32, %c0_i32_0 : i32, i32
  }
  func.func @transform_2(%arg0: i32) -> (i32, i32) {
    %c0_i32 = arith.constant 0 : i32
    %c0_i32_0 = arith.constant 0 : i32
    return %arg0, %c0_i32 : i32, i32
  }
  func.func @transform_3(%arg0: i32) -> (i32, i32) {
    %c0_i32 = arith.constant 0 : i32
    %c0_i32_0 = arith.constant 0 : i32
    return %arg0, %c0_i32 : i32, i32
  }
}

module attributes {stable_mosaic.version = 11 : i64} {
  func.func @_bn_lrelu_apply_kernel(%arg0: i32, %arg1: memref<128x128xbf16, #tpu.memory_space<vmem>>, %arg2: memref<1x128xf32, #tpu.memory_space<vmem>>, %arg3: memref<1x128xf32, #tpu.memory_space<vmem>>, %arg4: memref<128x128xbf16, #tpu.memory_space<vmem>>) attributes {dimension_semantics = [#tpu.dimension_semantics<parallel>], iteration_bounds = array<i64: 1>, scalar_prefetch = 0 : i64, scratch_operands = 0 : i64, tpu.core_type = #tpu.core_type<tc>, window_params = [{transform_indices = @transform_0, window_bounds = array<i64: 128, 128>}, {pipeline_mode = #tpu.pipeline_mode<synchronous>, transform_indices = @transform_1, window_bounds = array<i64: 1, 128>}, {pipeline_mode = #tpu.pipeline_mode<synchronous>, transform_indices = @transform_2, window_bounds = array<i64: 1, 128>}, {transform_indices = @transform_3, window_bounds = array<i64: 128, 128>}]} {
    %c0 = arith.constant 0 : index
    %c0_0 = arith.constant 0 : index
    %0 = vector.load %arg1[%c0, %c0_0] : memref<128x128xbf16, #tpu.memory_space<vmem>>, vector<128x128xbf16>
    %1 = arith.extf %0 : vector<128x128xbf16> to vector<128x128xf32>
    %c0_1 = arith.constant 0 : index
    %c0_2 = arith.constant 0 : index
    %2 = vector.load %arg2[%c0_1, %c0_2] : memref<1x128xf32, #tpu.memory_space<vmem>>, vector<1x128xf32>
    %3 = vector.broadcast %2 : vector<1x128xf32> to vector<128x128xf32>
    %4 = arith.mulf %1, %3 : vector<128x128xf32>
    %c0_3 = arith.constant 0 : index
    %c0_4 = arith.constant 0 : index
    %5 = vector.load %arg3[%c0_3, %c0_4] : memref<1x128xf32, #tpu.memory_space<vmem>>, vector<1x128xf32>
    %6 = vector.broadcast %5 : vector<1x128xf32> to vector<128x128xf32>
    %7 = arith.addf %4, %6 : vector<128x128xf32>
    %cst = arith.constant 0.000000e+00 : f32
    %8 = vector.broadcast %cst : f32 to vector<128x128xf32>
    %9 = arith.cmpf ogt, %7, %8 : vector<128x128xf32>
    %cst_5 = arith.constant 2.000000e-01 : f32
    %10 = vector.broadcast %cst_5 : f32 to vector<128x128xf32>
    %11 = arith.mulf %10, %7 : vector<128x128xf32>
    %12 = arith.select %9, %7, %11 : vector<128x128xi1>, vector<128x128xf32>
    %13 = arith.truncf %12 : vector<128x128xf32> to vector<128x128xbf16>
    %c0_6 = arith.constant 0 : index
    %c0_7 = arith.constant 0 : index
    %14 = vector.load %arg4[%c0_6, %c0_7] : memref<128x128xbf16, #tpu.memory_space<vmem>>, vector<128x128xbf16>
    tpu.vector_store %arg4[%c0_6, %c0_7], %13 {strides = array<i32>} : memref<128x128xbf16, #tpu.memory_space<vmem>>, vector<128x128xbf16>,
    return
  }
  func.func @transform_0(%arg0: i32) -> (i32, i32) {
    %c0_i32 = arith.constant 0 : i32
    %c0_i32_0 = arith.constant 0 : i32
    return %arg0, %c0_i32 : i32, i32
  }
  func.func @transform_1(%arg0: i32) -> (i32, i32) {
    %c0_i32 = arith.constant 0 : i32
    %c0_i32_0 = arith.constant 0 : i32
    %c0_i32_1 = arith.constant 0 : i32
    return %c0_i32, %c0_i32_0 : i32, i32
  }
  func.func @transform_2(%arg0: i32) -> (i32, i32) {
    %c0_i32 = arith.constant 0 : i32
    %c0_i32_0 = arith.constant 0 : i32
    %c0_i32_1 = arith.constant 0 : i32
    return %c0_i32, %c0_i32_0 : i32, i32
  }
  func.func @transform_3(%arg0: i32) -> (i32, i32) {
    %c0_i32 = arith.constant 0 : i32
    %c0_i32_0 = arith.constant 0 : i32
    return %arg0, %c0_i32 : i32, i32
  }
}

module attributes {stable_mosaic.version = 11 : i64} {
  func.func @kernel(%arg0: i32, %arg1: memref<32x512xbf16, #tpu.memory_space<vmem>>, %arg2: memref<512x128xbf16, #tpu.memory_space<vmem>>, %arg3: memref<32x128xbf16, #tpu.memory_space<vmem>>, %arg4: memref<8x128xf32, #tpu.memory_space<vmem>>) attributes {dimension_semantics = [#tpu.dimension_semantics<parallel>], iteration_bounds = array<i64: 1>, scalar_prefetch = 0 : i64, scratch_operands = 0 : i64, tpu.core_type = #tpu.core_type<tc>, window_params = [{transform_indices = @transform_0, window_bounds = array<i64: 32, 512>}, {pipeline_mode = #tpu.pipeline_mode<synchronous>, transform_indices = @transform_1, window_bounds = array<i64: 512, 128>}, {transform_indices = @transform_2, window_bounds = array<i64: 32, 128>}, {transform_indices = @transform_3, window_bounds = array<i64: 8, 128>}]} {
    %c0 = arith.constant 0 : index
    %c0_0 = arith.constant 0 : index
    %0 = vector.load %arg1[%c0, %c0_0] : memref<32x512xbf16, #tpu.memory_space<vmem>>, vector<32x512xbf16>
    %c0_1 = arith.constant 0 : index
    %c0_2 = arith.constant 0 : index
    %1 = vector.load %arg2[%c0_1, %c0_2] : memref<512x128xbf16, #tpu.memory_space<vmem>>, vector<512x128xbf16>
    %cst = arith.constant dense<0.000000e+00> : vector<32x128xf32>
    %2 = tpu.matmul %0, %1, %cst {dimension_numbers = #tpu.dot_dimension_numbers<[1], [0], [0], [1], [0, 0, 1, 1], [], []>} : vector<32x512xbf16>, vector<512x128xbf16>, vector<32x128xf32> -> vector<32x128xf32>
    %cst_3 = arith.constant dense<0.000000e+00> : vector<128xf32>
    %3 = vector.multi_reduction <add>, %2, %cst_3 [0] : vector<32x128xf32> to vector<128xf32>
    %4 = vector.shape_cast %3 : vector<128xf32> to vector<1x128xf32>
    %5 = arith.mulf %2, %2 : vector<32x128xf32>
    %cst_4 = arith.constant dense<0.000000e+00> : vector<128xf32>
    %6 = vector.multi_reduction <add>, %5, %cst_4 [0] : vector<32x128xf32> to vector<128xf32>
    %7 = vector.shape_cast %6 : vector<128xf32> to vector<1x128xf32>
    %8 = tpu.iota {dimensions = array<i32: 0>} : vector<8x128xi32>
    %c0_i32 = arith.constant 0 : i32
    %9 = vector.broadcast %c0_i32 : i32 to vector<8x128xi32>
    %10 = arith.cmpi eq, %8, %9 : vector<8x128xi32>
    %c1_i32 = arith.constant 1 : i32
    %11 = vector.broadcast %c1_i32 : i32 to vector<8x128xi32>
    %12 = arith.cmpi eq, %8, %11 : vector<8x128xi32>
    %cst_5 = arith.constant 0.000000e+00 : f32
    %13 = vector.shape_cast %7 : vector<1x128xf32> to vector<1x128xf32>
    %14 = vector.broadcast %13 : vector<1x128xf32> to vector<8x128xf32>
    %15 = vector.broadcast %cst_5 : f32 to vector<8x128xf32>
    %16 = arith.select %12, %14, %15 : vector<8x128xi1>, vector<8x128xf32>
    %17 = vector.shape_cast %4 : vector<1x128xf32> to vector<1x128xf32>
    %18 = vector.broadcast %17 : vector<1x128xf32> to vector<8x128xf32>
    %19 = arith.select %10, %18, %16 : vector<8x128xi1>, vector<8x128xf32>
    %c0_6 = arith.constant 0 : index
    %c0_7 = arith.constant 0 : index
    %20 = vector.load %arg4[%c0_6, %c0_7] : memref<8x128xf32, #tpu.memory_space<vmem>>, vector<8x128xf32>
    tpu.vector_store %arg4[%c0_6, %c0_7], %19 {strides = array<i32>} : memref<8x128xf32, #tpu.memory_space<vmem>>, vector<8x128xf32>,
    %21 = arith.truncf %2 : vector<32x128xf32> to vector<32x128xbf16>
    %c0_8 = arith.constant 0 : index
    %c0_9 = arith.constant 0 : index
    %22 = vector.load %arg3[%c0_8, %c0_9] : memref<32x128xbf16, #tpu.memory_space<vmem>>, vector<32x128xbf16>
    tpu.vector_store %arg3[%c0_8, %c0_9], %21 {strides = array<i32>} : memref<32x128xbf16, #tpu.memory_space<vmem>>, vector<32x128xbf16>,
    return
  }
  func.func @transform_0(%arg0: i32) -> (i32, i32) {
    %c0_i32 = arith.constant 0 : i32
    %c0_i32_0 = arith.constant 0 : i32
    return %arg0, %c0_i32 : i32, i32
  }
  func.func @transform_1(%arg0: i32) -> (i32, i32) {
    %c0_i32 = arith.constant 0 : i32
    %c0_i32_0 = arith.constant 0 : i32
    %c0_i32_1 = arith.constant 0 : i32
    return %c0_i32, %c0_i32_0 : i32, i32
  }
  func.func @transform_2(%arg0: i32) -> (i32, i32) {
    %c0_i32 = arith.constant 0 : i32
    %c0_i32_0 = arith.constant 0 : i32
    return %arg0, %c0_i32 : i32, i32
  }
  func.func @transform_3(%arg0: i32) -> (i32, i32) {
    %c0_i32 = arith.constant 0 : i32
    %c0_i32_0 = arith.constant 0 : i32
    return %arg0, %c0_i32 : i32, i32
  }
}

module attributes {stable_mosaic.version = 11 : i64} {
  func.func @_head_kernel(%arg0: i32, %arg1: memref<16x2048xbf16, #tpu.memory_space<vmem>>, %arg2: memref<1x2048xf32, #tpu.memory_space<vmem>>, %arg3: memref<1x2048xf32, #tpu.memory_space<vmem>>, %arg4: memref<2048x128xbf16, #tpu.memory_space<vmem>>, %arg5: memref<16x128xf32, #tpu.memory_space<vmem>>) attributes {dimension_semantics = [#tpu.dimension_semantics<arbitrary>], iteration_bounds = array<i64: 1>, scalar_prefetch = 0 : i64, scratch_operands = 0 : i64, tpu.core_type = #tpu.core_type<tc>, window_params = [{pipeline_mode = #tpu.pipeline_mode<synchronous>, transform_indices = @transform_0, window_bounds = array<i64: 16, 2048>}, {pipeline_mode = #tpu.pipeline_mode<synchronous>, transform_indices = @transform_1, window_bounds = array<i64: 1, 2048>}, {pipeline_mode = #tpu.pipeline_mode<synchronous>, transform_indices = @transform_2, window_bounds = array<i64: 1, 2048>}, {pipeline_mode = #tpu.pipeline_mode<synchronous>, transform_indices = @transform_3, window_bounds = array<i64: 2048, 128>}, {pipeline_mode = #tpu.pipeline_mode<synchronous>, transform_indices = @transform_4, window_bounds = array<i64: 16, 128>}]} {
    %c0 = arith.constant 0 : index
    %c0_0 = arith.constant 0 : index
    %0 = vector.load %arg1[%c0, %c0_0] : memref<16x2048xbf16, #tpu.memory_space<vmem>>, vector<16x2048xbf16>
    %1 = arith.extf %0 : vector<16x2048xbf16> to vector<16x2048xf32>
    %c0_1 = arith.constant 0 : index
    %c0_2 = arith.constant 0 : index
    %2 = vector.load %arg2[%c0_1, %c0_2] : memref<1x2048xf32, #tpu.memory_space<vmem>>, vector<1x2048xf32>
    %3 = vector.broadcast %2 : vector<1x2048xf32> to vector<16x2048xf32>
    %4 = arith.mulf %1, %3 : vector<16x2048xf32>
    %c0_3 = arith.constant 0 : index
    %c0_4 = arith.constant 0 : index
    %5 = vector.load %arg3[%c0_3, %c0_4] : memref<1x2048xf32, #tpu.memory_space<vmem>>, vector<1x2048xf32>
    %6 = vector.broadcast %5 : vector<1x2048xf32> to vector<16x2048xf32>
    %7 = arith.addf %4, %6 : vector<16x2048xf32>
    %cst = arith.constant 0.000000e+00 : f32
    %8 = vector.broadcast %cst : f32 to vector<16x2048xf32>
    %9 = arith.cmpf ogt, %7, %8 : vector<16x2048xf32>
    %cst_5 = arith.constant 2.000000e-01 : f32
    %10 = vector.broadcast %cst_5 : f32 to vector<16x2048xf32>
    %11 = arith.mulf %10, %7 : vector<16x2048xf32>
    %12 = arith.select %9, %7, %11 : vector<16x2048xi1>, vector<16x2048xf32>
    %13 = arith.truncf %12 : vector<16x2048xf32> to vector<16x2048xbf16>
    %c0_6 = arith.constant 0 : index
    %c0_7 = arith.constant 0 : index
    %14 = vector.load %arg4[%c0_6, %c0_7] : memref<2048x128xbf16, #tpu.memory_space<vmem>>, vector<2048x128xbf16>
    %cst_8 = arith.constant dense<0.000000e+00> : vector<16x128xf32>
    %15 = tpu.matmul %13, %14, %cst_8 {dimension_numbers = #tpu.dot_dimension_numbers<[1], [0], [0], [1], [0, 0, 1, 1], [], []>} : vector<16x2048xbf16>, vector<2048x128xbf16>, vector<16x128xf32> -> vector<16x128xf32>
    %16 = arith.negf %15 : vector<16x128xf32>
    %17 = math.exp %16 : vector<16x128xf32>
    %cst_9 = arith.constant 1.000000e+00 : f32
    %18 = vector.broadcast %cst_9 : f32 to vector<16x128xf32>
    %19 = arith.addf %18, %17 : vector<16x128xf32>
    %20 = arith.divf %18, %19 : vector<16x128xf32>
    %c0_10 = arith.constant 0 : index
    %c0_11 = arith.constant 0 : index
    %21 = vector.load %arg5[%c0_10, %c0_11] : memref<16x128xf32, #tpu.memory_space<vmem>>, vector<16x128xf32>
    tpu.vector_store %arg5[%c0_10, %c0_11], %20 {strides = array<i32>} : memref<16x128xf32, #tpu.memory_space<vmem>>, vector<16x128xf32>,
    return
  }
  func.func @transform_0(%arg0: i32) -> (i32, i32) {
    %c0_i32 = arith.constant 0 : i32
    %c0_i32_0 = arith.constant 0 : i32
    %c0_i32_1 = arith.constant 0 : i32
    return %c0_i32, %c0_i32_0 : i32, i32
  }
  func.func @transform_1(%arg0: i32) -> (i32, i32) {
    %c0_i32 = arith.constant 0 : i32
    %c0_i32_0 = arith.constant 0 : i32
    %c0_i32_1 = arith.constant 0 : i32
    return %c0_i32, %c0_i32_0 : i32, i32
  }
  func.func @transform_2(%arg0: i32) -> (i32, i32) {
    %c0_i32 = arith.constant 0 : i32
    %c0_i32_0 = arith.constant 0 : i32
    %c0_i32_1 = arith.constant 0 : i32
    return %c0_i32, %c0_i32_0 : i32, i32
  }
  func.func @transform_3(%arg0: i32) -> (i32, i32) {
    %c0_i32 = arith.constant 0 : i32
    %c0_i32_0 = arith.constant 0 : i32
    %c0_i32_1 = arith.constant 0 : i32
    return %c0_i32, %c0_i32_0 : i32, i32
  }
  func.func @transform_4(%arg0: i32) -> (i32, i32) {
    %c0_i32 = arith.constant 0 : i32
    %c0_i32_0 = arith.constant 0 : i32
    %c0_i32_1 = arith.constant 0 : i32
    return %c0_i32, %c0_i32_0 : i32, i32
  }
}

</mosaic_0001>

<llo_original>
// kernel: discriminator_forward.7
$region0: #{discriminator_forward.7}
  #allocation0 [shape = 'u32[]', space=smem, size = 0x4, offset = 0x4, fixed_abs, tag = 'smem constant byte address 0x4 - core index']
  #allocation1 [shape = 'u32[144,128]{1,0:T(1,128)}', space=vmem, size = 0x12000, scoped, tag = 'internal scratch']
  %s0 = inlined_call_operand.vmem [shape: bf16[2048,128], index: 0, kind: input, shape index: {}]
  %s1 = inlined_call_operand.vmem [shape: bf16[128,128], index: 1, kind: input, shape index: {}]
  %s2 = inlined_call_operand.vmem [shape: bf16[2048,128], index: 2, kind: output, shape index: {}]
  %s3 = sld [smem:[#allocation0]]
  $region41: #{discriminator_forward.7} parent=0
    _
  %s5 = ssub.s32 1, %s3
  %s6 = scalar_select 0, %s5, %s3
  loop: start=0, step=1, limit=4
  $region2: #{discriminator_forward.7} parent=0 // loop_pre_header
    _
  $region3: #{discriminator_forward.7} parent=0 // loop_header
    %s8 = sphi 0, %s12
    %p9 = scmp.ge.s32.totalorder %s8, 4
    %s18 = sphi 0, %s20
    %s21 = sphi 0, %s18
    %s22 = sphi 0, %s21
    %s38 = sphi 0, %s22
    %s42 = sphi 0, %s42
    %s44 = sphi 0, %s42
    %s45 = sphi 0, %s44
    %s59 = sphi 0, %s45
    %s65 = sphi 0, %s67
    %s68 = sphi 0, %s65
    %s69 = sphi 0, %s68
    %s85 = sphi 0, %s69
  $region4: #{discriminator_forward.7} parent=0 // loop_header_branch
    %11 = sbr.rel (%p9) target = $region8
  $region5: #{discriminator_forward.7} parent=0 // loop_body
    %s13 = ssub.s32 %s8, 1
    %s14 = ssub.s32 %s8, 2
    %s15 = sadd.s32 %s8, 1
    %s16 = ssub.s32 %s8, %s15
    %p17 = scmp.eq.s32.totalorder %s16, 0
    %s19 = sadd.s32 %s18, 1
    %s20 = scalar_select %p17, %s18, %s19
    %p23 = pneg %p17
    %p24 = scmp.eq.s32.totalorder %s8, 1
    %p25 = por %p23, %p24
    %p26 = scmp.ne.s32.totalorder %s18, %s21
    %p27 = scmp.eq.s32.totalorder %s8, 0
    %p28 = por %p26, %p27
    %p29 = scmp.ne.s32.totalorder %s18, %s21
    %p30 = scmp.eq.s32.totalorder %s13, 1
    %p31 = por %p29, %p30
    %p32 = scmp.ne.s32.totalorder %s21, %s22
    %p33 = scmp.eq.s32.totalorder %s13, 0
    %p34 = por %p32, %p33
    %p35 = scmp.ne.s32.totalorder %s21, %s22
    %p36 = scmp.eq.s32.totalorder %s14, 1
    %p37 = por %p35, %p36
    %p39 = scmp.ne.s32.totalorder %s22, %s38
    %p40 = scmp.eq.s32.totalorder %s14, 0
    %p41 = por %p39, %p40
    %s43 = sadd.s32 %s42, 1
    %p46 = scmp.eq.s32.totalorder %s8, 1
    %p47 = scmp.ne.s32.totalorder %s42, %s44
    %p48 = scmp.eq.s32.totalorder %s8, 0
    %p49 = por %p47, %p48
    %p50 = scmp.ne.s32.totalorder %s42, %s44
    %p51 = scmp.eq.s32.totalorder %s13, 1
    %p52 = por %p50, %p51
    %p53 = scmp.ne.s32.totalorder %s44, %s45
    %p54 = scmp.eq.s32.totalorder %s13, 0
    %p55 = por %p53, %p54
    %p56 = scmp.ne.s32.totalorder %s44, %s45
    %p57 = scmp.eq.s32.totalorder %s14, 1
    %p58 = por %p56, %p57
    %p60 = scmp.ne.s32.totalorder %s45, %s59
    %p61 = scmp.eq.s32.totalorder %s14, 0
    %p62 = por %p60, %p61
    %s63 = ssub.s32 %s8, %s15
    %p64 = scmp.eq.s32.totalorder %s63, 0
    %s66 = sadd.s32 %s65, 1
    %s67 = scalar_select %p64, %s65, %s66
    %p70 = pneg %p64
    %p71 = scmp.eq.s32.totalorder %s8, 1
    %p72 = por %p70, %p71
    %p73 = scmp.ne.s32.totalorder %s65, %s68
    %p74 = scmp.eq.s32.totalorder %s8, 0
    %p75 = por %p73, %p74
    %p76 = scmp.ne.s32.totalorder %s65, %s68
    %p77 = scmp.eq.s32.totalorder %s13, 1
    %p78 = por %p76, %p77
    %p79 = scmp.ne.s32.totalorder %s68, %s69
    %p80 = scmp.eq.s32.totalorder %s13, 0
    %p81 = por %p79, %p80
    %p82 = scmp.ne.s32.totalorder %s68, %s69
    %p83 = scmp.eq.s32.totalorder %s14, 1
    %p84 = por %p82, %p83
    %p86 = scmp.ne.s32.totalorder %s69, %s85
    %p87 = scmp.eq.s32.totalorder %s14, 0
    %p88 = por %p86, %p87
    %p89 = scmp.le.s32.totalorder 1, %s8
    %p90 = scmp.lt.s32.totalorder %s8, 3
    %p91 = pnand %p89, %p90
    %p92 = pneg %p91
    // Predicated region
    $region9: #{discriminator_forward.7} parent=5 // pred_check
      _
    $region10: #{discriminator_forward.7} parent=5 // pred_check_branch
      %94 = sbr.rel (%p91) target = $region12
    $region11: #{discriminator_forward.7} parent=5 // pred_region
      %s95 = ssub.s32 %s8, 1
      // Predicated region
      $region13: #{discriminator_forward.7} parent=11 // pred_check
        %p96 = pneg %p55
      $region14: #{discriminator_forward.7} parent=11 // pred_check_branch
        %98 = sbr.rel (%p96) target = $region16
      $region15: #{discriminator_forward.7} parent=11 // pred_region
        _
      $region16: #{discriminator_forward.7} parent=11 // pred_fallthru
        _
    $region12: #{discriminator_forward.7} parent=5 // pred_fallthru
      _
    %p99 = scmp.lt.s32.totalorder %s8, 2
    // Predicated region
    $region17: #{discriminator_forward.7} parent=5 // pred_check
      %p100 = pneg %p99
    $region18: #{discriminator_forward.7} parent=5 // pred_check_branch
      %102 = sbr.rel (%p100) target = $region20
    $region19: #{discriminator_forward.7} parent=5 // pred_region
      // Predicated region
      $region21: #{discriminator_forward.7} parent=19 // pred_check
        %p103 = pneg %p28
      $region22: #{discriminator_forward.7} parent=19 // pred_check_branch
        %105 = sbr.rel (%p103) target = $region24
      $region23: #{discriminator_forward.7} parent=19 // pred_region
        %s106 = smul.u32 128, %s8
        %p107 = scmp.lt.s32.totalorder %s106, 255
        %s108 = scalar_select %p107, %s106, 255
        %s109 = smul.addr %s108, 4
        %s110 = scalar_lea.vmem %s0, %s109
        %s111 = smul.u32 128, %s8
      $region24: #{discriminator_forward.7} parent=19 // pred_fallthru
        _
    $region20: #{discriminator_forward.7} parent=5 // pred_fallthru
      _
    %p112 = scmp.le.s32.totalorder 1, %s8
    %p113 = scmp.lt.s32.totalorder %s8, 3
    %p114 = pnand %p112, %p113
    %p115 = pneg %p114
    // Predicated region
    $region25: #{discriminator_forward.7} parent=5 // pred_check
      _
    $region26: #{discriminator_forward.7} parent=5 // pred_check_branch
      %117 = sbr.rel (%p114) target = $region28
    $region27: #{discriminator_forward.7} parent=5 // pred_region
      %s118 = ssub.s32 %s8, 1
      %s119 = smul.u32 128, %s13
      %p120 = scmp.lt.s32.totalorder %s119, 255
      %s121 = scalar_select %p120, %s119, 255
      %s122 = smul.addr %s121, 4
      %s123 = scalar_lea.vmem %s0, %s122
      %p124 = pneg %p34
      %p125 = pneg %p31
      %p126 = pneg %p55
      %p127 = pneg %p52
      %p128 = pneg %p81
      %p129 = pneg %p78
      %s130 = smul.u32 128, %s13
      %p131 = scmp.lt.s32.totalorder %s130, 255
      %s132 = scalar_select %p131, %s130, 255
      %s133 = smul.addr %s132, 4
      %s134 = scalar_lea.vmem %s2, %s133
      %s135 = smul.u32 128, %s13
      %p136 = scmp.lt.s32.totalorder %s135, 255
      %s137 = scalar_select %p136, %s135, 255
      %s138 = smul.addr %s137, 4
      %s139 = scalar_lea.vmem %s0, %s138
      %s140 = smul.u32 128, %s13
      %s141 = smul.u32 128, %s13
      %p142 = scmp.lt.s32.totalorder %s141, 255
      %s143 = scalar_select %p142, %s141, 255
      %s144 = smul.addr %s143, 4
      %s145 = scalar_lea.vmem %s2, %s144
      %s146 = smul.u32 128, %s13
      %v148 = vld [vmem:[%s139] sm:$0xf]
      %v149 = vld [vmem:[%s139 + $0x4] sm:$0xf]
      %v150 = vld [vmem:[%s139 + $0x8] sm:$0xf]
      %v151 = vld [vmem:[%s139 + $0xc] sm:$0xf]
      %v152 = vld [vmem:[%s139 + $0x10] sm:$0xf]
      %v153 = vld [vmem:[%s139 + $0x14] sm:$0xf]
      %v154 = vld [vmem:[%s139 + $0x18] sm:$0xf]
      %v155 = vld [vmem:[%s139 + $0x1c] sm:$0xf]
      %v156 = vld [vmem:[%s139 + $0x20] sm:$0xf]
      %v157 = vld [vmem:[%s139 + $0x24] sm:$0xf]
      %v158 = vld [vmem:[%s139 + $0x28] sm:$0xf]
      %v159 = vld [vmem:[%s139 + $0x2c] sm:$0xf]
      %v160 = vld [vmem:[%s139 + $0x30] sm:$0xf]
      %v161 = vld [vmem:[%s139 + $0x34] sm:$0xf]
      %v162 = vld [vmem:[%s139 + $0x38] sm:$0xf]
      %v163 = vld [vmem:[%s139 + $0x3c] sm:$0xf]
      %v164 = vld [vmem:[%s139 + $0x40] sm:$0xf]
      %v165 = vld [vmem:[%s139 + $0x44] sm:$0xf]
      %v166 = vld [vmem:[%s139 + $0x48] sm:$0xf]
      %v167 = vld [vmem:[%s139 + $0x4c] sm:$0xf]
      %v168 = vld [vmem:[%s139 + $0x50] sm:$0xf]
      %v169 = vld [vmem:[%s139 + $0x54] sm:$0xf]
      %v170 = vld [vmem:[%s139 + $0x58] sm:$0xf]
      %v171 = vld [vmem:[%s139 + $0x5c] sm:$0xf]
      %v172 = vld [vmem:[%s139 + $0x60] sm:$0xf]
      %v173 = vld [vmem:[%s139 + $0x64] sm:$0xf]
      %v174 = vld [vmem:[%s139 + $0x68] sm:$0xf]
      %v175 = vld [vmem:[%s139 + $0x6c] sm:$0xf]
      %v176 = vld [vmem:[%s139 + $0x70] sm:$0xf]
      %v177 = vld [vmem:[%s139 + $0x74] sm:$0xf]
      %v178 = vld [vmem:[%s139 + $0x78] sm:$0xf]
      %v179 = vld [vmem:[%s139 + $0x7c] sm:$0xf]
      %v180 = vld [vmem:[%s139 + $0x80] sm:$0xf]
      %v181 = vld [vmem:[%s139 + $0x84] sm:$0xf]
      %v182 = vld [vmem:[%s139 + $0x88] sm:$0xf]
      %v183 = vld [vmem:[%s139 + $0x8c] sm:$0xf]
      %v184 = vld [vmem:[%s139 + $0x90] sm:$0xf]
      %v185 = vld [vmem:[%s139 + $0x94] sm:$0xf]
      %v186 = vld [vmem:[%s139 + $0x98] sm:$0xf]
      %v187 = vld [vmem:[%s139 + $0x9c] sm:$0xf]
      %v188 = vld [vmem:[%s139 + $0xa0] sm:$0xf]
      %v189 = vld [vmem:[%s139 + $0xa4] sm:$0xf]
      %v190 = vld [vmem:[%s139 + $0xa8] sm:$0xf]
      %v191 = vld [vmem:[%s139 + $0xac] sm:$0xf]
      %v192 = vld [vmem:[%s139 + $0xb0] sm:$0xf]
      %v193 = vld [vmem:[%s139 + $0xb4] sm:$0xf]
      %v194 = vld [vmem:[%s139 + $0xb8] sm:$0xf]
      %v195 = vld [vmem:[%s139 + $0xbc] sm:$0xf]
      %v196 = vld [vmem:[%s139 + $0xc0] sm:$0xf]
      %v197 = vld [vmem:[%s139 + $0xc4] sm:$0xf]
      %v198 = vld [vmem:[%s139 + $0xc8] sm:$0xf]
      %v199 = vld [vmem:[%s139 + $0xcc] sm:$0xf]
      %v200 = vld [vmem:[%s139 + $0xd0] sm:$0xf]
      %v201 = vld [vmem:[%s139 + $0xd4] sm:$0xf]
      %v202 = vld [vmem:[%s139 + $0xd8] sm:$0xf]
      %v203 = vld [vmem:[%s139 + $0xdc] sm:$0xf]
      %v204 = vld [vmem:[%s139 + $0xe0] sm:$0xf]
      %v205 = vld [vmem:[%s139 + $0xe4] sm:$0xf]
      %v206 = vld [vmem:[%s139 + $0xe8] sm:$0xf]
      %v207 = vld [vmem:[%s139 + $0xec] sm:$0xf]
      %v208 = vld [vmem:[%s139 + $0xf0] sm:$0xf]
      %v209 = vld [vmem:[%s139 + $0xf4] sm:$0xf]
      %v210 = vld [vmem:[%s139 + $0xf8] sm:$0xf]
      %v211 = vld [vmem:[%s139 + $0xfc] sm:$0xf]
      %v212 = vld [vmem:[%s139 + $0x100] sm:$0xf]
      %v213 = vld [vmem:[%s139 + $0x104] sm:$0xf]
      %v214 = vld [vmem:[%s139 + $0x108] sm:$0xf]
      %v215 = vld [vmem:[%s139 + $0x10c] sm:$0xf]
      %v216 = vld [vmem:[%s139 + $0x110] sm:$0xf]
      %v217 = vld [vmem:[%s139 + $0x114] sm:$0xf]
      %v218 = vld [vmem:[%s139 + $0x118] sm:$0xf]
      %v219 = vld [vmem:[%s139 + $0x11c] sm:$0xf]
      %v220 = vld [vmem:[%s139 + $0x120] sm:$0xf]
      %v221 = vld [vmem:[%s139 + $0x124] sm:$0xf]
      %v222 = vld [vmem:[%s139 + $0x128] sm:$0xf]
      %v223 = vld [vmem:[%s139 + $0x12c] sm:$0xf]
      %v224 = vld [vmem:[%s139 + $0x130] sm:$0xf]
      %v225 = vld [vmem:[%s139 + $0x134] sm:$0xf]
      %v226 = vld [vmem:[%s139 + $0x138] sm:$0xf]
      %v227 = vld [vmem:[%s139 + $0x13c] sm:$0xf]
      %v228 = vld [vmem:[%s139 + $0x140] sm:$0xf]
      %v229 = vld [vmem:[%s139 + $0x144] sm:$0xf]
      %v230 = vld [vmem:[%s139 + $0x148] sm:$0xf]
      %v231 = vld [vmem:[%s139 + $0x14c] sm:$0xf]
      %v232 = vld [vmem:[%s139 + $0x150] sm:$0xf]
      %v233 = vld [vmem:[%s139 + $0x154] sm:$0xf]
      %v234 = vld [vmem:[%s139 + $0x158] sm:$0xf]
      %v235 = vld [vmem:[%s139 + $0x15c] sm:$0xf]
      %v236 = vld [vmem:[%s139 + $0x160] sm:$0xf]
      %v237 = vld [vmem:[%s139 + $0x164] sm:$0xf]
      %v238 = vld [vmem:[%s139 + $0x168] sm:$0xf]
      %v239 = vld [vmem:[%s139 + $0x16c] sm:$0xf]
      %v240 = vld [vmem:[%s139 + $0x170] sm:$0xf]
      %v241 = vld [vmem:[%s139 + $0x174] sm:$0xf]
      %v242 = vld [vmem:[%s139 + $0x178] sm:$0xf]
      %v243 = vld [vmem:[%s139 + $0x17c] sm:$0xf]
      %v244 = vld [vmem:[%s139 + $0x180] sm:$0xf]
      %v245 = vld [vmem:[%s139 + $0x184] sm:$0xf]
      %v246 = vld [vmem:[%s139 + $0x188] sm:$0xf]
      %v247 = vld [vmem:[%s139 + $0x18c] sm:$0xf]
      %v248 = vld [vmem:[%s139 + $0x190] sm:$0xf]
      %v249 = vld [vmem:[%s139 + $0x194] sm:$0xf]
      %v250 = vld [vmem:[%s139 + $0x198] sm:$0xf]
      %v251 = vld [vmem:[%s139 + $0x19c] sm:$0xf]
      %v252 = vld [vmem:[%s139 + $0x1a0] sm:$0xf]
      %v253 = vld [vmem:[%s139 + $0x1a4] sm:$0xf]
      %v254 = vld [vmem:[%s139 + $0x1a8] sm:$0xf]
      %v255 = vld [vmem:[%s139 + $0x1ac] sm:$0xf]
      %v256 = vld [vmem:[%s139 + $0x1b0] sm:$0xf]
      %v257 = vld [vmem:[%s139 + $0x1b4] sm:$0xf]
      %v258 = vld [vmem:[%s139 + $0x1b8] sm:$0xf]
      %v259 = vld [vmem:[%s139 + $0x1bc] sm:$0xf]
      %v260 = vld [vmem:[%s139 + $0x1c0] sm:$0xf]
      %v261 = vld [vmem:[%s139 + $0x1c4] sm:$0xf]
      %v262 = vld [vmem:[%s139 + $0x1c8] sm:$0xf]
      %v263 = vld [vmem:[%s139 + $0x1cc] sm:$0xf]
      %v264 = vld [vmem:[%s139 + $0x1d0] sm:$0xf]
      %v265 = vld [vmem:[%s139 + $0x1d4] sm:$0xf]
      %v266 = vld [vmem:[%s139 + $0x1d8] sm:$0xf]
      %v267 = vld [vmem:[%s139 + $0x1dc] sm:$0xf]
      %v268 = vld [vmem:[%s139 + $0x1e0] sm:$0xf]
      %v269 = vld [vmem:[%s139 + $0x1e4] sm:$0xf]
      %v270 = vld [vmem:[%s139 + $0x1e8] sm:$0xf]
      %v271 = vld [vmem:[%s139 + $0x1ec] sm:$0xf]
      %v272 = vld [vmem:[%s139 + $0x1f0] sm:$0xf]
      %v273 = vld [vmem:[%s139 + $0x1f4] sm:$0xf]
      %v274 = vld [vmem:[%s139 + $0x1f8] sm:$0xf]
      %v275 = vld [vmem:[%s139 + $0x1fc] sm:$0xf]
      %v276 = vld [vmem:[%s1] sm:$0xf]
      %v277 = vld [vmem:[%s1 + $0x4] sm:$0xf]
      %v278 = vld [vmem:[%s1 + $0x8] sm:$0xf]
      %v279 = vld [vmem:[%s1 + $0xc] sm:$0xf]
      %v280 = vld [vmem:[%s1 + $0x10] sm:$0xf]
      %v281 = vld [vmem:[%s1 + $0x14] sm:$0xf]
      %v282 = vld [vmem:[%s1 + $0x18] sm:$0xf]
      %v283 = vld [vmem:[%s1 + $0x1c] sm:$0xf]
      %v284 = vld [vmem:[%s1 + $0x20] sm:$0xf]
      %v285 = vld [vmem:[%s1 + $0x24] sm:$0xf]
      %v286 = vld [vmem:[%s1 + $0x28] sm:$0xf]
      %v287 = vld [vmem:[%s1 + $0x2c] sm:$0xf]
      %v288 = vld [vmem:[%s1 + $0x30] sm:$0xf]
      %v289 = vld [vmem:[%s1 + $0x34] sm:$0xf]
      %v290 = vld [vmem:[%s1 + $0x38] sm:$0xf]
      %v291 = vld [vmem:[%s1 + $0x3c] sm:$0xf]
      %v420 = vunpack.c.l.b16 %v148
      %v421 = vunpack.c.l.b16 %v149
      %v422 = vunpack.c.l.b16 %v150
      %v423 = vunpack.c.l.b16 %v151
      %v424 = vunpack.c.l.b16 %v152
      %v425 = vunpack.c.l.b16 %v153
      %v426 = vunpack.c.l.b16 %v154
      %v427 = vunpack.c.l.b16 %v155
      %v428 = vunpack.c.l.b16 %v156
      %v429 = vunpack.c.l.b16 %v157
      %v430 = vunpack.c.l.b16 %v158
      %v431 = vunpack.c.l.b16 %v159
      %v432 = vunpack.c.l.b16 %v160
      %v433 = vunpack.c.l.b16 %v161
      %v434 = vunpack.c.l.b16 %v162
      %v435 = vunpack.c.l.b16 %v163
      %v436 = vunpack.c.l.b16 %v164
      %v437 = vunpack.c.l.b16 %v165
      %v438 = vunpack.c.l.b16 %v166
      %v439 = vunpack.c.l.b16 %v167
      %v440 = vunpack.c.l.b16 %v168
      %v441 = vunpack.c.l.b16 %v169
      %v442 = vunpack.c.l.b16 %v170
      %v443 = vunpack.c.l.b16 %v171
      %v444 = vunpack.c.l.b16 %v172
      %v445 = vunpack.c.l.b16 %v173
      %v446 = vunpack.c.l.b16 %v174
      %v447 = vunpack.c.l.b16 %v175
      %v448 = vunpack.c.l.b16 %v176
      %v449 = vunpack.c.l.b16 %v177
      %v450 = vunpack.c.l.b16 %v178
      %v451 = vunpack.c.l.b16 %v179
      %v452 = vunpack.c.l.b16 %v180
      %v453 = vunpack.c.l.b16 %v181
      %v454 = vunpack.c.l.b16 %v182
      %v455 = vunpack.c.l.b16 %v183
      %v456 = vunpack.c.l.b16 %v184
      %v457 = vunpack.c.l.b16 %v185
      %v458 = vunpack.c.l.b16 %v186
      %v459 = vunpack.c.l.b16 %v187
      %v460 = vunpack.c.l.b16 %v188
      %v461 = vunpack.c.l.b16 %v189
      %v462 = vunpack.c.l.b16 %v190
      %v463 = vunpack.c.l.b16 %v191
      %v464 = vunpack.c.l.b16 %v192
      %v465 = vunpack.c.l.b16 %v193
      %v466 = vunpack.c.l.b16 %v194
      %v467 = vunpack.c.l.b16 %v195
      %v468 = vunpack.c.l.b16 %v196
      %v469 = vunpack.c.l.b16 %v197
      %v470 = vunpack.c.l.b16 %v198
      %v471 = vunpack.c.l.b16 %v199
      %v472 = vunpack.c.l.b16 %v200
      %v473 = vunpack.c.l.b16 %v201
      %v474 = vunpack.c.l.b16 %v202
      %v475 = vunpack.c.l.b16 %v203
      %v476 = vunpack.c.l.b16 %v204
      %v477 = vunpack.c.l.b16 %v205
      %v478 = vunpack.c.l.b16 %v206
      %v479 = vunpack.c.l.b16 %v207
      %v480 = vunpack.c.l.b16 %v208
      %v481 = vunpack.c.l.b16 %v209
      %v482 = vunpack.c.l.b16 %v210
      %v483 = vunpack.c.l.b16 %v211
      %v484 = vunpack.c.l.b16 %v212
      %v485 = vunpack.c.l.b16 %v213
      %v486 = vunpack.c.l.b16 %v214
      %v487 = vunpack.c.l.b16 %v215
      %v488 = vunpack.c.l.b16 %v216
      %v489 = vunpack.c.l.b16 %v217
      %v490 = vunpack.c.l.b16 %v218
      %v491 = vunpack.c.l.b16 %v219
      %v492 = vunpack.c.l.b16 %v220
      %v493 = vunpack.c.l.b16 %v221
      %v494 = vunpack.c.l.b16 %v222
      %v495 = vunpack.c.l.b16 %v223
      %v496 = vunpack.c.l.b16 %v224
      %v497 = vunpack.c.l.b16 %v225
      %v498 = vunpack.c.l.b16 %v226
      %v499 = vunpack.c.l.b16 %v227
      %v500 = vunpack.c.l.b16 %v228
      %v501 = vunpack.c.l.b16 %v229
      %v502 = vunpack.c.l.b16 %v230
      %v503 = vunpack.c.l.b16 %v231
      %v504 = vunpack.c.l.b16 %v232
      %v505 = vunpack.c.l.b16 %v233
      %v506 = vunpack.c.l.b16 %v234
      %v507 = vunpack.c.l.b16 %v235
      %v508 = vunpack.c.l.b16 %v236
      %v509 = vunpack.c.l.b16 %v237
      %v510 = vunpack.c.l.b16 %v238
      %v511 = vunpack.c.l.b16 %v239
      %v512 = vunpack.c.l.b16 %v240
      %v513 = vunpack.c.l.b16 %v241
      %v514 = vunpack.c.l.b16 %v242
      %v515 = vunpack.c.l.b16 %v243
      %v516 = vunpack.c.l.b16 %v244
      %v517 = vunpack.c.l.b16 %v245
      %v518 = vunpack.c.l.b16 %v246
      %v519 = vunpack.c.l.b16 %v247
      %v520 = vunpack.c.l.b16 %v248
      %v521 = vunpack.c.l.b16 %v249
      %v522 = vunpack.c.l.b16 %v250
      %v523 = vunpack.c.l.b16 %v251
      %v524 = vunpack.c.l.b16 %v252
      %v525 = vunpack.c.l.b16 %v253
      %v526 = vunpack.c.l.b16 %v254
      %v527 = vunpack.c.l.b16 %v255
      %v528 = vunpack.c.l.b16 %v256
      %v529 = vunpack.c.l.b16 %v257
      %v530 = vunpack.c.l.b16 %v258
      %v531 = vunpack.c.l.b16 %v259
      %v532 = vunpack.c.l.b16 %v260
      %v533 = vunpack.c.l.b16 %v261
      %v534 = vunpack.c.l.b16 %v262
      %v535 = vunpack.c.l.b16 %v263
      %v536 = vunpack.c.l.b16 %v264
      %v537 = vunpack.c.l.b16 %v265
      %v538 = vunpack.c.l.b16 %v266
      %v539 = vunpack.c.l.b16 %v267
      %v540 = vunpack.c.l.b16 %v268
      %v541 = vunpack.c.l.b16 %v269
      %v542 = vunpack.c.l.b16 %v270
      %v543 = vunpack.c.l.b16 %v271
      %v544 = vunpack.c.l.b16 %v272
      %v545 = vunpack.c.l.b16 %v273
      %v546 = vunpack.c.l.b16 %v274
      %v547 = vunpack.c.l.b16 %v275
      %v548 = vpack.c.b16 %v421, %v420
      %v549 = vpack.c.b16 %v423, %v422
      %v550 = vpack.c.b16 %v425, %v424
      %v551 = vpack.c.b16 %v427, %v426
      %v552 = vpack.c.b16 %v429, %v428
      %v553 = vpack.c.b16 %v431, %v430
      %v554 = vpack.c.b16 %v433, %v432
      %v555 = vpack.c.b16 %v435, %v434
      %v556 = vpack.c.b16 %v437, %v436
      %v557 = vpack.c.b16 %v439, %v438
      %v558 = vpack.c.b16 %v441, %v440
      %v559 = vpack.c.b16 %v443, %v442
      %v560 = vpack.c.b16 %v445, %v444
      %v561 = vpack.c.b16 %v447, %v446
      %v562 = vpack.c.b16 %v449, %v448
      %v563 = vpack.c.b16 %v451, %v450
      %v564 = vpack.c.b16 %v453, %v452
      %v565 = vpack.c.b16 %v455, %v454
      %v566 = vpack.c.b16 %v457, %v456
      %v567 = vpack.c.b16 %v459, %v458
      %v568 = vpack.c.b16 %v461, %v460
      %v569 = vpack.c.b16 %v463, %v462
      %v570 = vpack.c.b16 %v465, %v464
      %v571 = vpack.c.b16 %v467, %v466
      %v572 = vpack.c.b16 %v469, %v468
      %v573 = vpack.c.b16 %v471, %v470
      %v574 = vpack.c.b16 %v473, %v472
      %v575 = vpack.c.b16 %v475, %v474
      %v576 = vpack.c.b16 %v477, %v476
      %v577 = vpack.c.b16 %v479, %v478
      %v578 = vpack.c.b16 %v481, %v480
      %v579 = vpack.c.b16 %v483, %v482
      %v580 = vpack.c.b16 %v485, %v484
      %v581 = vpack.c.b16 %v487, %v486
      %v582 = vpack.c.b16 %v489, %v488
      %v583 = vpack.c.b16 %v491, %v490
      %v584 = vpack.c.b16 %v493, %v492
      %v585 = vpack.c.b16 %v495, %v494
      %v586 = vpack.c.b16 %v497, %v496
      %v587 = vpack.c.b16 %v499, %v498
      %v588 = vpack.c.b16 %v501, %v500
      %v589 = vpack.c.b16 %v503, %v502
      %v590 = vpack.c.b16 %v505, %v504
      %v591 = vpack.c.b16 %v507, %v506
      %v592 = vpack.c.b16 %v509, %v508
      %v593 = vpack.c.b16 %v511, %v510
      %v594 = vpack.c.b16 %v513, %v512
      %v595 = vpack.c.b16 %v515, %v514
      %v596 = vpack.c.b16 %v517, %v516
      %v597 = vpack.c.b16 %v519, %v518
      %v598 = vpack.c.b16 %v521, %v520
      %v599 = vpack.c.b16 %v523, %v522
      %v600 = vpack.c.b16 %v525, %v524
      %v601 = vpack.c.b16 %v527, %v526
      %v602 = vpack.c.b16 %v529, %v528
      %v603 = vpack.c.b16 %v531, %v530
      %v604 = vpack.c.b16 %v533, %v532
      %v605 = vpack.c.b16 %v535, %v534
      %v606 = vpack.c.b16 %v537, %v536
      %v607 = vpack.c.b16 %v539, %v538
      %v608 = vpack.c.b16 %v541, %v540
      %v609 = vpack.c.b16 %v543, %v542
      %v610 = vpack.c.b16 %v545, %v544
      %v611 = vpack.c.b16 %v547, %v546
      %v692 = vunpack.c.l.b16 %v276
      %v693 = vunpack.c.l.b16 %v277
      %v694 = vunpack.c.l.b16 %v278
      %v695 = vunpack.c.l.b16 %v279
      %v696 = vunpack.c.l.b16 %v280
      %v697 = vunpack.c.l.b16 %v281
      %v698 = vunpack.c.l.b16 %v282
      %v699 = vunpack.c.l.b16 %v283
      %v700 = vunpack.c.l.b16 %v284
      %v701 = vunpack.c.l.b16 %v285
      %v702 = vunpack.c.l.b16 %v286
      %v703 = vunpack.c.l.b16 %v287
      %v704 = vunpack.c.l.b16 %v288
      %v705 = vunpack.c.l.b16 %v289
      %v706 = vunpack.c.l.b16 %v290
      %v707 = vunpack.c.l.b16 %v291
      %v708 = vpack.c.b16 %v693, %v692
      %v709 = vpack.c.b16 %v695, %v694
      %v710 = vpack.c.b16 %v697, %v696
      %v711 = vpack.c.b16 %v699, %v698
      %v712 = vpack.c.b16 %v701, %v700
      %v713 = vpack.c.b16 %v703, %v702
      %v714 = vpack.c.b16 %v705, %v704
      %v715 = vpack.c.b16 %v707, %v706
      %724 = vmatprep.subr.bf16.mxu0 0
      %725 = vmatpush1.bf16.msra.mxu0 %v708
      %726 = vmatprep.subr.bf16.mxu0 0
      %727 = vmatpush1.bf16.msra.mxu0 %v709
      %728 = vmatprep.subr.bf16.mxu0 0
      %729 = vmatpush1.bf16.msra.mxu0 %v710
      %730 = vmatprep.subr.bf16.mxu0 0
      %731 = vmatpush1.bf16.msra.mxu0 %v711
      %732 = vmatprep.subr.bf16.mxu0 0
      %733 = vmatpush1.bf16.msra.mxu0 %v712
      %734 = vmatprep.subr.bf16.mxu0 0
      %735 = vmatpush1.bf16.msra.mxu0 %v713
      %736 = vmatprep.subr.bf16.mxu0 0
      %737 = vmatpush1.bf16.msra.mxu0 %v714
      %738 = vmatprep.subr.bf16.mxu0 0
      %739 = vmatpush1.bf16.msra.mxu0 %v715
      %740 = vmatprep.subr.bf16.mxu0 0
      %741 = vmatpush1.bf16.msra.mxu0 0
      %742 = vmatprep.subr.bf16.mxu0 0
      %743 = vmatpush1.bf16.msra.mxu0 0
      %744 = vmatprep.subr.bf16.mxu0 0
      %745 = vmatpush1.bf16.msra.mxu0 0
      %746 = vmatprep.subr.bf16.mxu0 0
      %747 = vmatpush1.bf16.msra.mxu0 0
      %748 = vmatprep.subr.bf16.mxu0 0
      %749 = vmatpush1.bf16.msra.mxu0 0
      %750 = vmatprep.subr.bf16.mxu0 0
      %751 = vmatpush1.bf16.msra.mxu0 0
      %752 = vmatprep.subr.bf16.mxu0 0
      %753 = vmatpush1.bf16.msra.mxu0 0
      %754 = vmatprep.subr.bf16.mxu0 0
      %755 = vmatpush1.bf16.msra.mxu0 0
      %756 = vmatprep.mubr.bf16.mxu0 0
      %757 = vmatmul.mubr.bf16.gmra.mrb[0].mxu0 %v548
      %v758 = vpop.f32.mrb[0].mxu0
      %v759 = vadd.f32 0.0, %v758
      %v760 = vpop.f32.mrb[0].mxu0
      %v761 = vpop.f32.mrb[0].mxu0
      %v762 = vadd.f32 0.0, %v761
      %v763 = vpop.f32.mrb[0].mxu0
      %764 = vmatprep.mubr.bf16.mxu0 0
      %765 = vmatmul.mubr.bf16.gmra.mrb[0].mxu0 %v549
      %v766 = vpop.f32.mrb[0].mxu0
      %v767 = vadd.f32 0.0, %v766
      %v768 = vpop.f32.mrb[0].mxu0
      %v769 = vpop.f32.mrb[0].mxu0
      %v770 = vadd.f32 0.0, %v769
      %v771 = vpop.f32.mrb[0].mxu0
      %772 = vmatprep.mubr.bf16.mxu0 0
      %773 = vmatmul.mubr.bf16.gmra.mrb[0].mxu0 %v550
      %v774 = vpop.f32.mrb[0].mxu0
      %v775 = vadd.f32 0.0, %v774
      %v776 = vpop.f32.mrb[0].mxu0
      %v777 = vpop.f32.mrb[0].mxu0
      %v778 = vadd.f32 0.0, %v777
      %v779 = vpop.f32.mrb[0].mxu0
      %780 = vmatprep.mubr.bf16.mxu0 0
      %781 = vmatmul.mubr.bf16.gmra.mrb[0].mxu0 %v551
      %v782 = vpop.f32.mrb[0].mxu0
      %v783 = vadd.f32 0.0, %v782
      %v784 = vpop.f32.mrb[0].mxu0
      %v785 = vpop.f32.mrb[0].mxu0
      %v786 = vadd.f32 0.0, %v785
      %v787 = vpop.f32.mrb[0].mxu0
      %788 = vmatprep.mubr.bf16.mxu0 0
      %789 = vmatmul.mubr.bf16.gmra.mrb[0].mxu0 %v552
      %v790 = vpop.f32.mrb[0].mxu0
      %v791 = vadd.f32 0.0, %v790
      %v792 = vpop.f32.mrb[0].mxu0
      %v793 = vpop.f32.mrb[0].mxu0
      %v794 = vadd.f32 0.0, %v793
      %v795 = vpop.f32.mrb[0].mxu0
      %796 = vmatprep.mubr.bf16.mxu0 0
      %797 = vmatmul.mubr.bf16.gmra.mrb[0].mxu0 %v553
      %v798 = vpop.f32.mrb[0].mxu0
      %v799 = vadd.f32 0.0, %v798
      %v800 = vpop.f32.mrb[0].mxu0
      %v801 = vpop.f32.mrb[0].mxu0
      %v802 = vadd.f32 0.0, %v801
      %v803 = vpop.f32.mrb[0].mxu0
      %804 = vmatprep.mubr.bf16.mxu0 0
      %805 = vmatmul.mubr.bf16.gmra.mrb[0].mxu0 %v554
      %v806 = vpop.f32.mrb[0].mxu0
      %v807 = vadd.f32 0.0, %v806
      %v808 = vpop.f32.mrb[0].mxu0
      %v809 = vpop.f32.mrb[0].mxu0
      %v810 = vadd.f32 0.0, %v809
      %v811 = vpop.f32.mrb[0].mxu0
      %812 = vmatprep.mubr.bf16.mxu0 0
      %813 = vmatmul.mubr.bf16.gmra.mrb[0].mxu0 %v555
      %v814 = vpop.f32.mrb[0].mxu0
      %v815 = vadd.f32 0.0, %v814
      %v816 = vpop.f32.mrb[0].mxu0
      %v817 = vpop.f32.mrb[0].mxu0
      %v818 = vadd.f32 0.0, %v817
      %v819 = vpop.f32.mrb[0].mxu0
      %820 = vmatprep.mubr.bf16.mxu0 0
      %821 = vmatmul.mubr.bf16.gmra.mrb[0].mxu0 %v556
      %v822 = vpop.f32.mrb[0].mxu0
      %v823 = vadd.f32 0.0, %v822
      %v824 = vpop.f32.mrb[0].mxu0
      %v825 = vpop.f32.mrb[0].mxu0
      %v826 = vadd.f32 0.0, %v825
      %v827 = vpop.f32.mrb[0].mxu0
      %828 = vmatprep.mubr.bf16.mxu0 0
      %829 = vmatmul.mubr.bf16.gmra.mrb[0].mxu0 %v557
      %v830 = vpop.f32.mrb[0].mxu0
      %v831 = vadd.f32 0.0, %v830
      %v832 = vpop.f32.mrb[0].mxu0
      %v833 = vpop.f32.mrb[0].mxu0
      %v834 = vadd.f32 0.0, %v833
      %v835 = vpop.f32.mrb[0].mxu0
      %836 = vmatprep.mubr.bf16.mxu0 0
      %837 = vmatmul.mubr.bf16.gmra.mrb[0].mxu0 %v558
      %v838 = vpop.f32.mrb[0].mxu0
      %v839 = vadd.f32 0.0, %v838
      %v840 = vpop.f32.mrb[0].mxu0
      %v841 = vpop.f32.mrb[0].mxu0
      %v842 = vadd.f32 0.0, %v841
      %v843 = vpop.f32.mrb[0].mxu0
      %844 = vmatprep.mubr.bf16.mxu0 0
      %845 = vmatmul.mubr.bf16.gmra.mrb[0].mxu0 %v559
      %v846 = vpop.f32.mrb[0].mxu0
      %v847 = vadd.f32 0.0, %v846
      %v848 = vpop.f32.mrb[0].mxu0
      %v849 = vpop.f32.mrb[0].mxu0
      %v850 = vadd.f32 0.0, %v849
      %v851 = vpop.f32.mrb[0].mxu0
      %852 = vmatprep.mubr.bf16.mxu0 0
      %853 = vmatmul.mubr.bf16.gmra.mrb[0].mxu0 %v560
      %v854 = vpop.f32.mrb[0].mxu0
      %v855 = vadd.f32 0.0, %v854
      %v856 = vpop.f32.mrb[0].mxu0
      %v857 = vpop.f32.mrb[0].mxu0
      %v858 = vadd.f32 0.0, %v857
      %v859 = vpop.f32.mrb[0].mxu0
      %860 = vmatprep.mubr.bf16.mxu0 0
      %861 = vmatmul.mubr.bf16.gmra.mrb[0].mxu0 %v561
      %v862 = vpop.f32.mrb[0].mxu0
      %v863 = vadd.f32 0.0, %v862
      %v864 = vpop.f32.mrb[0].mxu0
      %v865 = vpop.f32.mrb[0].mxu0
      %v866 = vadd.f32 0.0, %v865
      %v867 = vpop.f32.mrb[0].mxu0
      %868 = vmatprep.mubr.bf16.mxu0 0
      %869 = vmatmul.mubr.bf16.gmra.mrb[0].mxu0 %v562
      %v870 = vpop.f32.mrb[0].mxu0
      %v871 = vadd.f32 0.0, %v870
      %v872 = vpop.f32.mrb[0].mxu0
      %v873 = vpop.f32.mrb[0].mxu0
      %v874 = vadd.f32 0.0, %v873
      %v875 = vpop.f32.mrb[0].mxu0
      %876 = vmatprep.mubr.bf16.mxu0 0
      %877 = vmatmul.mubr.bf16.gmra.mrb[0].mxu0 %v563
      %v878 = vpop.f32.mrb[0].mxu0
      %v879 = vadd.f32 0.0, %v878
      %v880 = vpop.f32.mrb[0].mxu0
      %v881 = vpop.f32.mrb[0].mxu0
      %v882 = vadd.f32 0.0, %v881
      %v883 = vpop.f32.mrb[0].mxu0
      %884 = vmatprep.mubr.bf16.mxu0 0
      %885 = vmatmul.mubr.bf16.gmra.mrb[0].mxu0 %v564
      %v886 = vpop.f32.mrb[0].mxu0
      %v887 = vadd.f32 0.0, %v886
      %v888 = vpop.f32.mrb[0].mxu0
      %v889 = vpop.f32.mrb[0].mxu0
      %v890 = vadd.f32 0.0, %v889
      %v891 = vpop.f32.mrb[0].mxu0
      %892 = vmatprep.mubr.bf16.mxu0 0
      %893 = vmatmul.mubr.bf16.gmra.mrb[0].mxu0 %v565
      %v894 = vpop.f32.mrb[0].mxu0
      %v895 = vadd.f32 0.0, %v894
      %v896 = vpop.f32.mrb[0].mxu0
      %v897 = vpop.f32.mrb[0].mxu0
      %v898 = vadd.f32 0.0, %v897
      %v899 = vpop.f32.mrb[0].mxu0
      %900 = vmatprep.mubr.bf16.mxu0 0
      %901 = vmatmul.mubr.bf16.gmra.mrb[0].mxu0 %v566
      %v902 = vpop.f32.mrb[0].mxu0
      %v903 = vadd.f32 0.0, %v902
      %v904 = vpop.f32.mrb[0].mxu0
      %v905 = vpop.f32.mrb[0].mxu0
      %v906 = vadd.f32 0.0, %v905
      %v907 = vpop.f32.mrb[0].mxu0
      %908 = vmatprep.mubr.bf16.mxu0 0
      %909 = vmatmul.mubr.bf16.gmra.mrb[0].mxu0 %v567
      %v910 = vpop.f32.mrb[0].mxu0
      %v911 = vadd.f32 0.0, %v910
      %v912 = vpop.f32.mrb[0].mxu0
      %v913 = vpop.f32.mrb[0].mxu0
      %v914 = vadd.f32 0.0, %v913
      %v915 = vpop.f32.mrb[0].mxu0
      %916 = vmatprep.mubr.bf16.mxu0 0
      %917 = vmatmul.mubr.bf16.gmra.mrb[0].mxu0 %v568
      %v918 = vpop.f32.mrb[0].mxu0
      %v919 = vadd.f32 0.0, %v918
      %v920 = vpop.f32.mrb[0].mxu0
      %v921 = vpop.f32.mrb[0].mxu0
      %v922 = vadd.f32 0.0, %v921
      %v923 = vpop.f32.mrb[0].mxu0
      %924 = vmatprep.mubr.bf16.mxu0 0
      %925 = vmatmul.mubr.bf16.gmra.mrb[0].mxu0 %v569
      %v926 = vpop.f32.mrb[0].mxu0
      %v927 = vadd.f32 0.0, %v926
      %v928 = vpop.f32.mrb[0].mxu0
      %v929 = vpop.f32.mrb[0].mxu0
      %v930 = vadd.f32 0.0, %v929
      %v931 = vpop.f32.mrb[0].mxu0
      %932 = vmatprep.mubr.bf16.mxu0 0
      %933 = vmatmul.mubr.bf16.gmra.mrb[0].mxu0 %v570
      %v934 = vpop.f32.mrb[0].mxu0
      %v935 = vadd.f32 0.0, %v934
      %v936 = vpop.f32.mrb[0].mxu0
      %v937 = vpop.f32.mrb[0].mxu0
      %v938 = vadd.f32 0.0, %v937
      %v939 = vpop.f32.mrb[0].mxu0
      %940 = vmatprep.mubr.bf16.mxu0 0
      %941 = vmatmul.mubr.bf16.gmra.mrb[0].mxu0 %v571
      %v942 = vpop.f32.mrb[0].mxu0
      %v943 = vadd.f32 0.0, %v942
      %v944 = vpop.f32.mrb[0].mxu0
      %v945 = vpop.f32.mrb[0].mxu0
      %v946 = vadd.f32 0.0, %v945
      %v947 = vpop.f32.mrb[0].mxu0
      %948 = vmatprep.mubr.bf16.mxu0 0
      %949 = vmatmul.mubr.bf16.gmra.mrb[0].mxu0 %v572
      %v950 = vpop.f32.mrb[0].mxu0
      %v951 = vadd.f32 0.0, %v950
      %v952 = vpop.f32.mrb[0].mxu0
      %v953 = vpop.f32.mrb[0].mxu0
      %v954 = vadd.f32 0.0, %v953
      %v955 = vpop.f32.mrb[0].mxu0
      %956 = vmatprep.mubr.bf16.mxu0 0
      %957 = vmatmul.mubr.bf16.gmra.mrb[0].mxu0 %v573
      %v958 = vpop.f32.mrb[0].mxu0
      %v959 = vadd.f32 0.0, %v958
      %v960 = vpop.f32.mrb[0].mxu0
      %v961 = vpop.f32.mrb[0].mxu0
      %v962 = vadd.f32 0.0, %v961
      %v963 = vpop.f32.mrb[0].mxu0
      %964 = vmatprep.mubr.bf16.mxu0 0
      %965 = vmatmul.mubr.bf16.gmra.mrb[0].mxu0 %v574
      %v966 = vpop.f32.mrb[0].mxu0
      %v967 = vadd.f32 0.0, %v966
      %v968 = vpop.f32.mrb[0].mxu0
      %v969 = vpop.f32.mrb[0].mxu0
      %v970 = vadd.f32 0.0, %v969
      %v971 = vpop.f32.mrb[0].mxu0
      %972 = vmatprep.mubr.bf16.mxu0 0
      %973 = vmatmul.mubr.bf16.gmra.mrb[0].mxu0 %v575
      %v974 = vpop.f32.mrb[0].mxu0
      %v975 = vadd.f32 0.0, %v974
      %v976 = vpop.f32.mrb[0].mxu0
      %v977 = vpop.f32.mrb[0].mxu0
      %v978 = vadd.f32 0.0, %v977
      %v979 = vpop.f32.mrb[0].mxu0
      %980 = vmatprep.mubr.bf16.mxu0 0
      %981 = vmatmul.mubr.bf16.gmra.mrb[0].mxu0 %v576
      %v982 = vpop.f32.mrb[0].mxu0
      %v983 = vadd.f32 0.0, %v982
      %v984 = vpop.f32.mrb[0].mxu0
      %v985 = vpop.f32.mrb[0].mxu0
      %v986 = vadd.f32 0.0, %v985
      %v987 = vpop.f32.mrb[0].mxu0
      %988 = vmatprep.mubr.bf16.mxu0 0
      %989 = vmatmul.mubr.bf16.gmra.mrb[0].mxu0 %v577
      %v990 = vpop.f32.mrb[0].mxu0
      %v991 = vadd.f32 0.0, %v990
      %v992 = vpop.f32.mrb[0].mxu0
      %v993 = vpop.f32.mrb[0].mxu0
      %v994 = vadd.f32 0.0, %v993
      %v995 = vpop.f32.mrb[0].mxu0
      %996 = vmatprep.mubr.bf16.mxu0 0
      %997 = vmatmul.mubr.bf16.gmra.mrb[0].mxu0 %v578
      %v998 = vpop.f32.mrb[0].mxu0
      %v999 = vadd.f32 0.0, %v998
      %v1000 = vpop.f32.mrb[0].mxu0
      %v1001 = vpop.f32.mrb[0].mxu0
      %v1002 = vadd.f32 0.0, %v1001
      %v1003 = vpop.f32.mrb[0].mxu0
      %1004 = vmatprep.mubr.bf16.mxu0 0
      %1005 = vmatmul.mubr.bf16.gmra.mrb[0].mxu0 %v579
      %v1006 = vpop.f32.mrb[0].mxu0
      %v1007 = vadd.f32 0.0, %v1006
      %v1008 = vpop.f32.mrb[0].mxu0
      %v1009 = vpop.f32.mrb[0].mxu0
      %v1010 = vadd.f32 0.0, %v1009
      %v1011 = vpop.f32.mrb[0].mxu0
      %1012 = vmatprep.mubr.bf16.mxu0 0
      %1013 = vmatmul.mubr.bf16.gmra.mrb[0].mxu0 %v580
      %v1014 = vpop.f32.mrb[0].mxu0
      %v1015 = vadd.f32 0.0, %v1014
      %v1016 = vpop.f32.mrb[0].mxu0
      %v1017 = vpop.f32.mrb[0].mxu0
      %v1018 = vadd.f32 0.0, %v1017
      %v1019 = vpop.f32.mrb[0].mxu0
      %1020 = vmatprep.mubr.bf16.mxu0 0
      %1021 = vmatmul.mubr.bf16.gmra.mrb[0].mxu0 %v581
      %v1022 = vpop.f32.mrb[0].mxu0
      %v1023 = vadd.f32 0.0, %v1022
      %v1024 = vpop.f32.mrb[0].mxu0
      %v1025 = vpop.f32.mrb[0].mxu0
      %v1026 = vadd.f32 0.0, %v1025
      %v1027 = vpop.f32.mrb[0].mxu0
      %1028 = vmatprep.mubr.bf16.mxu0 0
      %1029 = vmatmul.mubr.bf16.gmra.mrb[0].mxu0 %v582
      %v1030 = vpop.f32.mrb[0].mxu0
      %v1031 = vadd.f32 0.0, %v1030
      %v1032 = vpop.f32.mrb[0].mxu0
      %v1033 = vpop.f32.mrb[0].mxu0
      %v1034 = vadd.f32 0.0, %v1033
      %v1035 = vpop.f32.mrb[0].mxu0
      %1036 = vmatprep.mubr.bf16.mxu0 0
      %1037 = vmatmul.mubr.bf16.gmra.mrb[0].mxu0 %v583
      %v1038 = vpop.f32.mrb[0].mxu0
      %v1039 = vadd.f32 0.0, %v1038
      %v1040 = vpop.f32.mrb[0].mxu0
      %v1041 = vpop.f32.mrb[0].mxu0
      %v1042 = vadd.f32 0.0, %v1041
      %v1043 = vpop.f32.mrb[0].mxu0
      %1044 = vmatprep.mubr.bf16.mxu0 0
      %1045 = vmatmul.mubr.bf16.gmra.mrb[0].mxu0 %v584
      %v1046 = vpop.f32.mrb[0].mxu0
      %v1047 = vadd.f32 0.0, %v1046
      %v1048 = vpop.f32.mrb[0].mxu0
      %v1049 = vpop.f32.mrb[0].mxu0
      %v1050 = vadd.f32 0.0, %v1049
      %v1051 = vpop.f32.mrb[0].mxu0
      %1052 = vmatprep.mubr.bf16.mxu0 0
      %1053 = vmatmul.mubr.bf16.gmra.mrb[0].mxu0 %v585
      %v1054 = vpop.f32.mrb[0].mxu0
      %v1055 = vadd.f32 0.0, %v1054
      %v1056 = vpop.f32.mrb[0].mxu0
      %v1057 = vpop.f32.mrb[0].mxu0
      %v1058 = vadd.f32 0.0, %v1057
      %v1059 = vpop.f32.mrb[0].mxu0
      %1060 = vmatprep.mubr.bf16.mxu0 0
      %1061 = vmatmul.mubr.bf16.gmra.mrb[0].mxu0 %v586
      %v1062 = vpop.f32.mrb[0].mxu0
      %v1063 = vadd.f32 0.0, %v1062
      %v1064 = vpop.f32.mrb[0].mxu0
      %v1065 = vpop.f32.mrb[0].mxu0
      %v1066 = vadd.f32 0.0, %v1065
      %v1067 = vpop.f32.mrb[0].mxu0
      %1068 = vmatprep.mubr.bf16.mxu0 0
      %1069 = vmatmul.mubr.bf16.gmra.mrb[0].mxu0 %v587
      %v1070 = vpop.f32.mrb[0].mxu0
      %v1071 = vadd.f32 0.0, %v1070
      %v1072 = vpop.f32.mrb[0].mxu0
      %v1073 = vpop.f32.mrb[0].mxu0
      %v1074 = vadd.f32 0.0, %v1073
      %v1075 = vpop.f32.mrb[0].mxu0
      %1076 = vmatprep.mubr.bf16.mxu0 0
      %1077 = vmatmul.mubr.bf16.gmra.mrb[0].mxu0 %v588
      %v1078 = vpop.f32.mrb[0].mxu0
      %v1079 = vadd.f32 0.0, %v1078
      %v1080 = vpop.f32.mrb[0].mxu0
      %v1081 = vpop.f32.mrb[0].mxu0
      %v1082 = vadd.f32 0.0, %v1081
      %v1083 = vpop.f32.mrb[0].mxu0
      %1084 = vmatprep.mubr.bf16.mxu0 0
      %1085 = vmatmul.mubr.bf16.gmra.mrb[0].mxu0 %v589
      %v1086 = vpop.f32.mrb[0].mxu0
      %v1087 = vadd.f32 0.0, %v1086
      %v1088 = vpop.f32.mrb[0].mxu0
      %v1089 = vpop.f32.mrb[0].mxu0
      %v1090 = vadd.f32 0.0, %v1089
      %v1091 = vpop.f32.mrb[0].mxu0
      %1092 = vmatprep.mubr.bf16.mxu0 0
      %1093 = vmatmul.mubr.bf16.gmra.mrb[0].mxu0 %v590
      %v1094 = vpop.f32.mrb[0].mxu0
      %v1095 = vadd.f32 0.0, %v1094
      %v1096 = vpop.f32.mrb[0].mxu0
      %v1097 = vpop.f32.mrb[0].mxu0
      %v1098 = vadd.f32 0.0, %v1097
      %v1099 = vpop.f32.mrb[0].mxu0
      %1100 = vmatprep.mubr.bf16.mxu0 0
      %1101 = vmatmul.mubr.bf16.gmra.mrb[0].mxu0 %v591
      %v1102 = vpop.f32.mrb[0].mxu0
      %v1103 = vadd.f32 0.0, %v1102
      %v1104 = vpop.f32.mrb[0].mxu0
      %v1105 = vpop.f32.mrb[0].mxu0
      %v1106 = vadd.f32 0.0, %v1105
      %v1107 = vpop.f32.mrb[0].mxu0
      %1108 = vmatprep.mubr.bf16.mxu0 0
      %1109 = vmatmul.mubr.bf16.gmra.mrb[0].mxu0 %v592
      %v1110 = vpop.f32.mrb[0].mxu0
      %v1111 = vadd.f32 0.0, %v1110
      %v1112 = vpop.f32.mrb[0].mxu0
      %v1113 = vpop.f32.mrb[0].mxu0
      %v1114 = vadd.f32 0.0, %v1113
      %v1115 = vpop.f32.mrb[0].mxu0
      %1116 = vmatprep.mubr.bf16.mxu0 0
      %1117 = vmatmul.mubr.bf16.gmra.mrb[0].mxu0 %v593
      %v1118 = vpop.f32.mrb[0].mxu0
      %v1119 = vadd.f32 0.0, %v1118
      %v1120 = vpop.f32.mrb[0].mxu0
      %v1121 = vpop.f32.mrb[0].mxu0
      %v1122 = vadd.f32 0.0, %v1121
      %v1123 = vpop.f32.mrb[0].mxu0
      %1124 = vmatprep.mubr.bf16.mxu0 0
      %1125 = vmatmul.mubr.bf16.gmra.mrb[0].mxu0 %v594
      %v1126 = vpop.f32.mrb[0].mxu0
      %v1127 = vadd.f32 0.0, %v1126
      %v1128 = vpop.f32.mrb[0].mxu0
      %v1129 = vpop.f32.mrb[0].mxu0
      %v1130 = vadd.f32 0.0, %v1129
      %v1131 = vpop.f32.mrb[0].mxu0
      %1132 = vmatprep.mubr.bf16.mxu0 0
      %1133 = vmatmul.mubr.bf16.gmra.mrb[0].mxu0 %v595
      %v1134 = vpop.f32.mrb[0].mxu0
      %v1135 = vadd.f32 0.0, %v1134
      %v1136 = vpop.f32.mrb[0].mxu0
      %v1137 = vpop.f32.mrb[0].mxu0
      %v1138 = vadd.f32 0.0, %v1137
      %v1139 = vpop.f32.mrb[0].mxu0
      %1140 = vmatprep.mubr.bf16.mxu0 0
      %1141 = vmatmul.mubr.bf16.gmra.mrb[0].mxu0 %v596
      %v1142 = vpop.f32.mrb[0].mxu0
      %v1143 = vadd.f32 0.0, %v1142
      %v1144 = vpop.f32.mrb[0].mxu0
      %v1145 = vpop.f32.mrb[0].mxu0
      %v1146 = vadd.f32 0.0, %v1145
      %v1147 = vpop.f32.mrb[0].mxu0
      %1148 = vmatprep.mubr.bf16.mxu0 0
      %1149 = vmatmul.mubr.bf16.gmra.mrb[0].mxu0 %v597
      %v1150 = vpop.f32.mrb[0].mxu0
      %v1151 = vadd.f32 0.0, %v1150
      %v1152 = vpop.f32.mrb[0].mxu0
      %v1153 = vpop.f32.mrb[0].mxu0
      %v1154 = vadd.f32 0.0, %v1153
      %v1155 = vpop.f32.mrb[0].mxu0
      %1156 = vmatprep.mubr.bf16.mxu0 0
      %1157 = vmatmul.mubr.bf16.gmra.mrb[0].mxu0 %v598
      %v1158 = vpop.f32.mrb[0].mxu0
      %v1159 = vadd.f32 0.0, %v1158
      %v1160 = vpop.f32.mrb[0].mxu0
      %v1161 = vpop.f32.mrb[0].mxu0
      %v1162 = vadd.f32 0.0, %v1161
      %v1163 = vpop.f32.mrb[0].mxu0
      %1164 = vmatprep.mubr.bf16.mxu0 0
      %1165 = vmatmul.mubr.bf16.gmra.mrb[0].mxu0 %v599
      %v1166 = vpop.f32.mrb[0].mxu0
      %v1167 = vadd.f32 0.0, %v1166
      %v1168 = vpop.f32.mrb[0].mxu0
      %v1169 = vpop.f32.mrb[0].mxu0
      %v1170 = vadd.f32 0.0, %v1169
      %v1171 = vpop.f32.mrb[0].mxu0
      %1172 = vmatprep.mubr.bf16.mxu0 0
      %1173 = vmatmul.mubr.bf16.gmra.mrb[0].mxu0 %v600
      %v1174 = vpop.f32.mrb[0].mxu0
      %v1175 = vadd.f32 0.0, %v1174
      %v1176 = vpop.f32.mrb[0].mxu0
      %v1177 = vpop.f32.mrb[0].mxu0
      %v1178 = vadd.f32 0.0, %v1177
      %v1179 = vpop.f32.mrb[0].mxu0
      %1180 = vmatprep.mubr.bf16.mxu0 0
      %1181 = vmatmul.mubr.bf16.gmra.mrb[0].mxu0 %v601
      %v1182 = vpop.f32.mrb[0].mxu0
      %v1183 = vadd.f32 0.0, %v1182
      %v1184 = vpop.f32.mrb[0].mxu0
      %v1185 = vpop.f32.mrb[0].mxu0
      %v1186 = vadd.f32 0.0, %v1185
      %v1187 = vpop.f32.mrb[0].mxu0
      %1188 = vmatprep.mubr.bf16.mxu0 0
      %1189 = vmatmul.mubr.bf16.gmra.mrb[0].mxu0 %v602
      %v1190 = vpop.f32.mrb[0].mxu0
      %v1191 = vadd.f32 0.0, %v1190
      %v1192 = vpop.f32.mrb[0].mxu0
      %v1193 = vpop.f32.mrb[0].mxu0
      %v1194 = vadd.f32 0.0, %v1193
      %v1195 = vpop.f32.mrb[0].mxu0
      %1196 = vmatprep.mubr.bf16.mxu0 0
      %1197 = vmatmul.mubr.bf16.gmra.mrb[0].mxu0 %v603
      %v1198 = vpop.f32.mrb[0].mxu0
      %v1199 = vadd.f32 0.0, %v1198
      %v1200 = vpop.f32.mrb[0].mxu0
      %v1201 = vpop.f32.mrb[0].mxu0
      %v1202 = vadd.f32 0.0, %v1201
      %v1203 = vpop.f32.mrb[0].mxu0
      %1204 = vmatprep.mubr.bf16.mxu0 0
      %1205 = vmatmul.mubr.bf16.gmra.mrb[0].mxu0 %v604
      %v1206 = vpop.f32.mrb[0].mxu0
      %v1207 = vadd.f32 0.0, %v1206
      %v1208 = vpop.f32.mrb[0].mxu0
      %v1209 = vpop.f32.mrb[0].mxu0
      %v1210 = vadd.f32 0.0, %v1209
      %v1211 = vpop.f32.mrb[0].mxu0
      %1212 = vmatprep.mubr.bf16.mxu0 0
      %1213 = vmatmul.mubr.bf16.gmra.mrb[0].mxu0 %v605
      %v1214 = vpop.f32.mrb[0].mxu0
      %v1215 = vadd.f32 0.0, %v1214
      %v1216 = vpop.f32.mrb[0].mxu0
      %v1217 = vpop.f32.mrb[0].mxu0
      %v1218 = vadd.f32 0.0, %v1217
      %v1219 = vpop.f32.mrb[0].mxu0
      %1220 = vmatprep.mubr.bf16.mxu0 0
      %1221 = vmatmul.mubr.bf16.gmra.mrb[0].mxu0 %v606
      %v1222 = vpop.f32.mrb[0].mxu0
      %v1223 = vadd.f32 0.0, %v1222
      %v1224 = vpop.f32.mrb[0].mxu0
      %v1225 = vpop.f32.mrb[0].mxu0
      %v1226 = vadd.f32 0.0, %v1225
      %v1227 = vpop.f32.mrb[0].mxu0
      %1228 = vmatprep.mubr.bf16.mxu0 0
      %1229 = vmatmul.mubr.bf16.gmra.mrb[0].mxu0 %v607
      %v1230 = vpop.f32.mrb[0].mxu0
      %v1231 = vadd.f32 0.0, %v1230
      %v1232 = vpop.f32.mrb[0].mxu0
      %v1233 = vpop.f32.mrb[0].mxu0
      %v1234 = vadd.f32 0.0, %v1233
      %v1235 = vpop.f32.mrb[0].mxu0
      %1236 = vmatprep.mubr.bf16.mxu0 0
      %1237 = vmatmul.mubr.bf16.gmra.mrb[0].mxu0 %v608
      %v1238 = vpop.f32.mrb[0].mxu0
      %v1239 = vadd.f32 0.0, %v1238
      %v1240 = vpop.f32.mrb[0].mxu0
      %v1241 = vpop.f32.mrb[0].mxu0
      %v1242 = vadd.f32 0.0, %v1241
      %v1243 = vpop.f32.mrb[0].mxu0
      %1244 = vmatprep.mubr.bf16.mxu0 0
      %1245 = vmatmul.mubr.bf16.gmra.mrb[0].mxu0 %v609
      %v1246 = vpop.f32.mrb[0].mxu0
      %v1247 = vadd.f32 0.0, %v1246
      %v1248 = vpop.f32.mrb[0].mxu0
      %v1249 = vpop.f32.mrb[0].mxu0
      %v1250 = vadd.f32 0.0, %v1249
      %v1251 = vpop.f32.mrb[0].mxu0
      %1252 = vmatprep.mubr.bf16.mxu0 0
      %1253 = vmatmul.mubr.bf16.gmra.mrb[0].mxu0 %v610
      %v1254 = vpop.f32.mrb[0].mxu0
      %v1255 = vadd.f32 0.0, %v1254
      %v1256 = vpop.f32.mrb[0].mxu0
      %v1257 = vpop.f32.mrb[0].mxu0
      %v1258 = vadd.f32 0.0, %v1257
      %v1259 = vpop.f32.mrb[0].mxu0
      %1260 = vmatprep.mubr.bf16.mxu0 0
      %1261 = vmatmul.mubr.bf16.gmra.mrb[0].mxu0 %v611
      %v1262 = vpop.f32.mrb[0].mxu0
      %v1263 = vadd.f32 0.0, %v1262
      %v1264 = vpop.f32.mrb[0].mxu0
      %v1265 = vpop.f32.mrb[0].mxu0
      %v1266 = vadd.f32 0.0, %v1265
      %v1267 = vpop.f32.mrb[0].mxu0
      %1268 = vdwg.mxu0
      %vm1269 = vcmp.gt.f32.partialorder %v759, 0.0
      %vm1270 = vcmp.gt.f32.partialorder %v762, 0.0
      %vm1271 = vcmp.gt.f32.partialorder %v767, 0.0
      %vm1272 = vcmp.gt.f32.partialorder %v770, 0.0
      %vm1273 = vcmp.gt.f32.partialorder %v775, 0.0
      %vm1274 = vcmp.gt.f32.partialorder %v778, 0.0
      %vm1275 = vcmp.gt.f32.partialorder %v783, 0.0
      %vm1276 = vcmp.gt.f32.partialorder %v786, 0.0
      %vm1277 = vcmp.gt.f32.partialorder %v791, 0.0
      %vm1278 = vcmp.gt.f32.partialorder %v794, 0.0
      %vm1279 = vcmp.gt.f32.partialorder %v799, 0.0
      %vm1280 = vcmp.gt.f32.partialorder %v802, 0.0
      %vm1281 = vcmp.gt.f32.partialorder %v807, 0.0
      %vm1282 = vcmp.gt.f32.partialorder %v810, 0.0
      %vm1283 = vcmp.gt.f32.partialorder %v815, 0.0
      %vm1284 = vcmp.gt.f32.partialorder %v818, 0.0
      %vm1285 = vcmp.gt.f32.partialorder %v823, 0.0
      %vm1286 = vcmp.gt.f32.partialorder %v826, 0.0
      %vm1287 = vcmp.gt.f32.partialorder %v831, 0.0
      %vm1288 = vcmp.gt.f32.partialorder %v834, 0.0
      %vm1289 = vcmp.gt.f32.partialorder %v839, 0.0
      %vm1290 = vcmp.gt.f32.partialorder %v842, 0.0
      %vm1291 = vcmp.gt.f32.partialorder %v847, 0.0
      %vm1292 = vcmp.gt.f32.partialorder %v850, 0.0
      %vm1293 = vcmp.gt.f32.partialorder %v855, 0.0
      %vm1294 = vcmp.gt.f32.partialorder %v858, 0.0
      %vm1295 = vcmp.gt.f32.partialorder %v863, 0.0
      %vm1296 = vcmp.gt.f32.partialorder %v866, 0.0
      %vm1297 = vcmp.gt.f32.partialorder %v871, 0.0
      %vm1298 = vcmp.gt.f32.partialorder %v874, 0.0
      %vm1299 = vcmp.gt.f32.partialorder %v879, 0.0
      %vm1300 = vcmp.gt.f32.partialorder %v882, 0.0
      %vm1301 = vcmp.gt.f32.partialorder %v887, 0.0
      %vm1302 = vcmp.gt.f32.partialorder %v890, 0.0
      %vm1303 = vcmp.gt.f32.partialorder %v895, 0.0
      %vm1304 = vcmp.gt.f32.partialorder %v898, 0.0
      %vm1305 = vcmp.gt.f32.partialorder %v903, 0.0
      %vm1306 = vcmp.gt.f32.partialorder %v906, 0.0
      %vm1307 = vcmp.gt.f32.partialorder %v911, 0.0
      %vm1308 = vcmp.gt.f32.partialorder %v914, 0.0
      %vm1309 = vcmp.gt.f32.partialorder %v919, 0.0
      %vm1310 = vcmp.gt.f32.partialorder %v922, 0.0
      %vm1311 = vcmp.gt.f32.partialorder %v927, 0.0
      %vm1312 = vcmp.gt.f32.partialorder %v930, 0.0
      %vm1313 = vcmp.gt.f32.partialorder %v935, 0.0
      %vm1314 = vcmp.gt.f32.partialorder %v938, 0.0
      %vm1315 = vcmp.gt.f32.partialorder %v943, 0.0
      %vm1316 = vcmp.gt.f32.partialorder %v946, 0.0
      %vm1317 = vcmp.gt.f32.partialorder %v951, 0.0
      %vm1318 = vcmp.gt.f32.partialorder %v954, 0.0
      %vm1319 = vcmp.gt.f32.partialorder %v959, 0.0
      %vm1320 = vcmp.gt.f32.partialorder %v962, 0.0
      %vm1321 = vcmp.gt.f32.partialorder %v967, 0.0
      %vm1322 = vcmp.gt.f32.partialorder %v970, 0.0
      %vm1323 = vcmp.gt.f32.partialorder %v975, 0.0
      %vm1324 = vcmp.gt.f32.partialorder %v978, 0.0
      %vm1325 = vcmp.gt.f32.partialorder %v983, 0.0
      %vm1326 = vcmp.gt.f32.partialorder %v986, 0.0
      %vm1327 = vcmp.gt.f32.partialorder %v991, 0.0
      %vm1328 = vcmp.gt.f32.partialorder %v994, 0.0
      %vm1329 = vcmp.gt.f32.partialorder %v999, 0.0
      %vm1330 = vcmp.gt.f32.partialorder %v1002, 0.0
      %vm1331 = vcmp.gt.f32.partialorder %v1007, 0.0
      %vm1332 = vcmp.gt.f32.partialorder %v1010, 0.0
      %vm1333 = vcmp.gt.f32.partialorder %v1015, 0.0
      %vm1334 = vcmp.gt.f32.partialorder %v1018, 0.0
      %vm1335 = vcmp.gt.f32.partialorder %v1023, 0.0
      %vm1336 = vcmp.gt.f32.partialorder %v1026, 0.0
      %vm1337 = vcmp.gt.f32.partialorder %v1031, 0.0
      %vm1338 = vcmp.gt.f32.partialorder %v1034, 0.0
      %vm1339 = vcmp.gt.f32.partialorder %v1039, 0.0
      %vm1340 = vcmp.gt.f32.partialorder %v1042, 0.0
      %vm1341 = vcmp.gt.f32.partialorder %v1047, 0.0
      %vm1342 = vcmp.gt.f32.partialorder %v1050, 0.0
      %vm1343 = vcmp.gt.f32.partialorder %v1055, 0.0
      %vm1344 = vcmp.gt.f32.partialorder %v1058, 0.0
      %vm1345 = vcmp.gt.f32.partialorder %v1063, 0.0
      %vm1346 = vcmp.gt.f32.partialorder %v1066, 0.0
      %vm1347 = vcmp.gt.f32.partialorder %v1071, 0.0
      %vm1348 = vcmp.gt.f32.partialorder %v1074, 0.0
      %vm1349 = vcmp.gt.f32.partialorder %v1079, 0.0
      %vm1350 = vcmp.gt.f32.partialorder %v1082, 0.0
      %vm1351 = vcmp.gt.f32.partialorder %v1087, 0.0
      %vm1352 = vcmp.gt.f32.partialorder %v1090, 0.0
      %vm1353 = vcmp.gt.f32.partialorder %v1095, 0.0
      %vm1354 = vcmp.gt.f32.partialorder %v1098, 0.0
      %vm1355 = vcmp.gt.f32.partialorder %v1103, 0.0
      %vm1356 = vcmp.gt.f32.partialorder %v1106, 0.0
      %vm1357 = vcmp.gt.f32.partialorder %v1111, 0.0
      %vm1358 = vcmp.gt.f32.partialorder %v1114, 0.0
      %vm1359 = vcmp.gt.f32.partialorder %v1119, 0.0
      %vm1360 = vcmp.gt.f32.partialorder %v1122, 0.0
      %vm1361 = vcmp.gt.f32.partialorder %v1127, 0.0
      %vm1362 = vcmp.gt.f32.partialorder %v1130, 0.0
      %vm1363 = vcmp.gt.f32.partialorder %v1135, 0.0
      %vm1364 = vcmp.gt.f32.partialorder %v1138, 0.0
      %vm1365 = vcmp.gt.f32.partialorder %v1143, 0.0
      %vm1366 = vcmp.gt.f32.partialorder %v1146, 0.0
      %vm1367 = vcmp.gt.f32.partialorder %v1151, 0.0
      %vm1368 = vcmp.gt.f32.partialorder %v1154, 0.0
      %vm1369 = vcmp.gt.f32.partialorder %v1159, 0.0
      %vm1370 = vcmp.gt.f32.partialorder %v1162, 0.0
      %vm1371 = vcmp.gt.f32.partialorder %v1167, 0.0
      %vm1372 = vcmp.gt.f32.partialorder %v1170, 0.0
      %vm1373 = vcmp.gt.f32.partialorder %v1175, 0.0
      %vm1374 = vcmp.gt.f32.partialorder %v1178, 0.0
      %vm1375 = vcmp.gt.f32.partialorder %v1183, 0.0
      %vm1376 = vcmp.gt.f32.partialorder %v1186, 0.0
      %vm1377 = vcmp.gt.f32.partialorder %v1191, 0.0
      %vm1378 = vcmp.gt.f32.partialorder %v1194, 0.0
      %vm1379 = vcmp.gt.f32.partialorder %v1199, 0.0
      %vm1380 = vcmp.gt.f32.partialorder %v1202, 0.0
      %vm1381 = vcmp.gt.f32.partialorder %v1207, 0.0
      %vm1382 = vcmp.gt.f32.partialorder %v1210, 0.0
      %vm1383 = vcmp.gt.f32.partialorder %v1215, 0.0
      %vm1384 = vcmp.gt.f32.partialorder %v1218, 0.0
      %vm1385 = vcmp.gt.f32.partialorder %v1223, 0.0
      %vm1386 = vcmp.gt.f32.partialorder %v1226, 0.0
      %vm1387 = vcmp.gt.f32.partialorder %v1231, 0.0
      %vm1388 = vcmp.gt.f32.partialorder %v1234, 0.0
      %vm1389 = vcmp.gt.f32.partialorder %v1239, 0.0
      %vm1390 = vcmp.gt.f32.partialorder %v1242, 0.0
      %vm1391 = vcmp.gt.f32.partialorder %v1247, 0.0
      %vm1392 = vcmp.gt.f32.partialorder %v1250, 0.0
      %vm1393 = vcmp.gt.f32.partialorder %v1255, 0.0
      %vm1394 = vcmp.gt.f32.partialorder %v1258, 0.0
      %vm1395 = vcmp.gt.f32.partialorder %v1263, 0.0
      %vm1396 = vcmp.gt.f32.partialorder %v1266, 0.0
      %v1397 = vmul.f32 %v759, 0.2
      %v1398 = vmul.f32 %v762, 0.2
      %v1399 = vmul.f32 %v767, 0.2
      %v1400 = vmul.f32 %v770, 0.2
      %v1401 = vmul.f32 %v775, 0.2
      %v1402 = vmul.f32 %v778, 0.2
      %v1403 = vmul.f32 %v783, 0.2
      %v1404 = vmul.f32 %v786, 0.2
      %v1405 = vmul.f32 %v791, 0.2
      %v1406 = vmul.f32 %v794, 0.2
      %v1407 = vmul.f32 %v799, 0.2
      %v1408 = vmul.f32 %v802, 0.2
      %v1409 = vmul.f32 %v807, 0.2
      %v1410 = vmul.f32 %v810, 0.2
      %v1411 = vmul.f32 %v815, 0.2
      %v1412 = vmul.f32 %v818, 0.2
      %v1413 = vmul.f32 %v823, 0.2
      %v1414 = vmul.f32 %v826, 0.2
      %v1415 = vmul.f32 %v831, 0.2
      %v1416 = vmul.f32 %v834, 0.2
      %v1417 = vmul.f32 %v839, 0.2
      %v1418 = vmul.f32 %v842, 0.2
      %v1419 = vmul.f32 %v847, 0.2
      %v1420 = vmul.f32 %v850, 0.2
      %v1421 = vmul.f32 %v855, 0.2
      %v1422 = vmul.f32 %v858, 0.2
      %v1423 = vmul.f32 %v863, 0.2
      %v1424 = vmul.f32 %v866, 0.2
      %v1425 = vmul.f32 %v871, 0.2
      %v1426 = vmul.f32 %v874, 0.2
      %v1427 = vmul.f32 %v879, 0.2
      %v1428 = vmul.f32 %v882, 0.2
      %v1429 = vmul.f32 %v887, 0.2
      %v1430 = vmul.f32 %v890, 0.2
      %v1431 = vmul.f32 %v895, 0.2
      %v1432 = vmul.f32 %v898, 0.2
      %v1433 = vmul.f32 %v903, 0.2
      %v1434 = vmul.f32 %v906, 0.2
      %v1435 = vmul.f32 %v911, 0.2
      %v1436 = vmul.f32 %v914, 0.2
      %v1437 = vmul.f32 %v919, 0.2
      %v1438 = vmul.f32 %v922, 0.2
      %v1439 = vmul.f32 %v927, 0.2
      %v1440 = vmul.f32 %v930, 0.2
      %v1441 = vmul.f32 %v935, 0.2
      %v1442 = vmul.f32 %v938, 0.2
      %v1443 = vmul.f32 %v943, 0.2
      %v1444 = vmul.f32 %v946, 0.2
      %v1445 = vmul.f32 %v951, 0.2
      %v1446 = vmul.f32 %v954, 0.2
      %v1447 = vmul.f32 %v959, 0.2
      %v1448 = vmul.f32 %v962, 0.2
      %v1449 = vmul.f32 %v967, 0.2
      %v1450 = vmul.f32 %v970, 0.2
      %v1451 = vmul.f32 %v975, 0.2
      %v1452 = vmul.f32 %v978, 0.2
      %v1453 = vmul.f32 %v983, 0.2
      %v1454 = vmul.f32 %v986, 0.2
      %v1455 = vmul.f32 %v991, 0.2
      %v1456 = vmul.f32 %v994, 0.2
      %v1457 = vmul.f32 %v999, 0.2
      %v1458 = vmul.f32 %v1002, 0.2
      %v1459 = vmul.f32 %v1007, 0.2
      %v1460 = vmul.f32 %v1010, 0.2
      %v1461 = vmul.f32 %v1015, 0.2
      %v1462 = vmul.f32 %v1018, 0.2
      %v1463 = vmul.f32 %v1023, 0.2
      %v1464 = vmul.f32 %v1026, 0.2
      %v1465 = vmul.f32 %v1031, 0.2
      %v1466 = vmul.f32 %v1034, 0.2
      %v1467 = vmul.f32 %v1039, 0.2
      %v1468 = vmul.f32 %v1042, 0.2
      %v1469 = vmul.f32 %v1047, 0.2
      %v1470 = vmul.f32 %v1050, 0.2
      %v1471 = vmul.f32 %v1055, 0.2
      %v1472 = vmul.f32 %v1058, 0.2
      %v1473 = vmul.f32 %v1063, 0.2
      %v1474 = vmul.f32 %v1066, 0.2
      %v1475 = vmul.f32 %v1071, 0.2
      %v1476 = vmul.f32 %v1074, 0.2
      %v1477 = vmul.f32 %v1079, 0.2
      %v1478 = vmul.f32 %v1082, 0.2
      %v1479 = vmul.f32 %v1087, 0.2
      %v1480 = vmul.f32 %v1090, 0.2
      %v1481 = vmul.f32 %v1095, 0.2
      %v1482 = vmul.f32 %v1098, 0.2
      %v1483 = vmul.f32 %v1103, 0.2
      %v1484 = vmul.f32 %v1106, 0.2
      %v1485 = vmul.f32 %v1111, 0.2
      %v1486 = vmul.f32 %v1114, 0.2
      %v1487 = vmul.f32 %v1119, 0.2
      %v1488 = vmul.f32 %v1122, 0.2
      %v1489 = vmul.f32 %v1127, 0.2
      %v1490 = vmul.f32 %v1130, 0.2
      %v1491 = vmul.f32 %v1135, 0.2
      %v1492 = vmul.f32 %v1138, 0.2
      %v1493 = vmul.f32 %v1143, 0.2
      %v1494 = vmul.f32 %v1146, 0.2
      %v1495 = vmul.f32 %v1151, 0.2
      %v1496 = vmul.f32 %v1154, 0.2
      %v1497 = vmul.f32 %v1159, 0.2
      %v1498 = vmul.f32 %v1162, 0.2
      %v1499 = vmul.f32 %v1167, 0.2
      %v1500 = vmul.f32 %v1170, 0.2
      %v1501 = vmul.f32 %v1175, 0.2
      %v1502 = vmul.f32 %v1178, 0.2
      %v1503 = vmul.f32 %v1183, 0.2
      %v1504 = vmul.f32 %v1186, 0.2
      %v1505 = vmul.f32 %v1191, 0.2
      %v1506 = vmul.f32 %v1194, 0.2
      %v1507 = vmul.f32 %v1199, 0.2
      %v1508 = vmul.f32 %v1202, 0.2
      %v1509 = vmul.f32 %v1207, 0.2
      %v1510 = vmul.f32 %v1210, 0.2
      %v1511 = vmul.f32 %v1215, 0.2
      %v1512 = vmul.f32 %v1218, 0.2
      %v1513 = vmul.f32 %v1223, 0.2
      %v1514 = vmul.f32 %v1226, 0.2
      %v1515 = vmul.f32 %v1231, 0.2
      %v1516 = vmul.f32 %v1234, 0.2
      %v1517 = vmul.f32 %v1239, 0.2
      %v1518 = vmul.f32 %v1242, 0.2
      %v1519 = vmul.f32 %v1247, 0.2
      %v1520 = vmul.f32 %v1250, 0.2
      %v1521 = vmul.f32 %v1255, 0.2
      %v1522 = vmul.f32 %v1258, 0.2
      %v1523 = vmul.f32 %v1263, 0.2
      %v1524 = vmul.f32 %v1266, 0.2
      %v1525 = vsel %vm1269, %v759, %v1397
      %v1526 = vsel %vm1270, %v762, %v1398
      %v1527 = vsel %vm1271, %v767, %v1399
      %v1528 = vsel %vm1272, %v770, %v1400
      %v1529 = vsel %vm1273, %v775, %v1401
      %v1530 = vsel %vm1274, %v778, %v1402
      %v1531 = vsel %vm1275, %v783, %v1403
      %v1532 = vsel %vm1276, %v786, %v1404
      %v1533 = vsel %vm1277, %v791, %v1405
      %v1534 = vsel %vm1278, %v794, %v1406
      %v1535 = vsel %vm1279, %v799, %v1407
      %v1536 = vsel %vm1280, %v802, %v1408
      %v1537 = vsel %vm1281, %v807, %v1409
      %v1538 = vsel %vm1282, %v810, %v1410
      %v1539 = vsel %vm1283, %v815, %v1411
      %v1540 = vsel %vm1284, %v818, %v1412
      %v1541 = vsel %vm1285, %v823, %v1413
      %v1542 = vsel %vm1286, %v826, %v1414
      %v1543 = vsel %vm1287, %v831, %v1415
      %v1544 = vsel %vm1288, %v834, %v1416
      %v1545 = vsel %vm1289, %v839, %v1417
      %v1546 = vsel %vm1290, %v842, %v1418
      %v1547 = vsel %vm1291, %v847, %v1419
      %v1548 = vsel %vm1292, %v850, %v1420
      %v1549 = vsel %vm1293, %v855, %v1421
      %v1550 = vsel %vm1294, %v858, %v1422
      %v1551 = vsel %vm1295, %v863, %v1423
      %v1552 = vsel %vm1296, %v866, %v1424
      %v1553 = vsel %vm1297, %v871, %v1425
      %v1554 = vsel %vm1298, %v874, %v1426
      %v1555 = vsel %vm1299, %v879, %v1427
      %v1556 = vsel %vm1300, %v882, %v1428
      %v1557 = vsel %vm1301, %v887, %v1429
      %v1558 = vsel %vm1302, %v890, %v1430
      %v1559 = vsel %vm1303, %v895, %v1431
      %v1560 = vsel %vm1304, %v898, %v1432
      %v1561 = vsel %vm1305, %v903, %v1433
      %v1562 = vsel %vm1306, %v906, %v1434
      %v1563 = vsel %vm1307, %v911, %v1435
      %v1564 = vsel %vm1308, %v914, %v1436
      %v1565 = vsel %vm1309, %v919, %v1437
      %v1566 = vsel %vm1310, %v922, %v1438
      %v1567 = vsel %vm1311, %v927, %v1439
      %v1568 = vsel %vm1312, %v930, %v1440
      %v1569 = vsel %vm1313, %v935, %v1441
      %v1570 = vsel %vm1314, %v938, %v1442
      %v1571 = vsel %vm1315, %v943, %v1443
      %v1572 = vsel %vm1316, %v946, %v1444
      %v1573 = vsel %vm1317, %v951, %v1445
      %v1574 = vsel %vm1318, %v954, %v1446
      %v1575 = vsel %vm1319, %v959, %v1447
      %v1576 = vsel %vm1320, %v962, %v1448
      %v1577 = vsel %vm1321, %v967, %v1449
      %v1578 = vsel %vm1322, %v970, %v1450
      %v1579 = vsel %vm1323, %v975, %v1451
      %v1580 = vsel %vm1324, %v978, %v1452
      %v1581 = vsel %vm1325, %v983, %v1453
      %v1582 = vsel %vm1326, %v986, %v1454
      %v1583 = vsel %vm1327, %v991, %v1455
      %v1584 = vsel %vm1328, %v994, %v1456
      %v1585 = vsel %vm1329, %v999, %v1457
      %v1586 = vsel %vm1330, %v1002, %v1458
      %v1587 = vsel %vm1331, %v1007, %v1459
      %v1588 = vsel %vm1332, %v1010, %v1460
      %v1589 = vsel %vm1333, %v1015, %v1461
      %v1590 = vsel %vm1334, %v1018, %v1462
      %v1591 = vsel %vm1335, %v1023, %v1463
      %v1592 = vsel %vm1336, %v1026, %v1464
      %v1593 = vsel %vm1337, %v1031, %v1465
      %v1594 = vsel %vm1338, %v1034, %v1466
      %v1595 = vsel %vm1339, %v1039, %v1467
      %v1596 = vsel %vm1340, %v1042, %v1468
      %v1597 = vsel %vm1341, %v1047, %v1469
      %v1598 = vsel %vm1342, %v1050, %v1470
      %v1599 = vsel %vm1343, %v1055, %v1471
      %v1600 = vsel %vm1344, %v1058, %v1472
      %v1601 = vsel %vm1345, %v1063, %v1473
      %v1602 = vsel %vm1346, %v1066, %v1474
      %v1603 = vsel %vm1347, %v1071, %v1475
      %v1604 = vsel %vm1348, %v1074, %v1476
      %v1605 = vsel %vm1349, %v1079, %v1477
      %v1606 = vsel %vm1350, %v1082, %v1478
      %v1607 = vsel %vm1351, %v1087, %v1479
      %v1608 = vsel %vm1352, %v1090, %v1480
      %v1609 = vsel %vm1353, %v1095, %v1481
      %v1610 = vsel %vm1354, %v1098, %v1482
      %v1611 = vsel %vm1355, %v1103, %v1483
      %v1612 = vsel %vm1356, %v1106, %v1484
      %v1613 = vsel %vm1357, %v1111, %v1485
      %v1614 = vsel %vm1358, %v1114, %v1486
      %v1615 = vsel %vm1359, %v1119, %v1487
      %v1616 = vsel %vm1360, %v1122, %v1488
      %v1617 = vsel %vm1361, %v1127, %v1489
      %v1618 = vsel %vm1362, %v1130, %v1490
      %v1619 = vsel %vm1363, %v1135, %v1491
      %v1620 = vsel %vm1364, %v1138, %v1492
      %v1621 = vsel %vm1365, %v1143, %v1493
      %v1622 = vsel %vm1366, %v1146, %v1494
      %v1623 = vsel %vm1367, %v1151, %v1495
      %v1624 = vsel %vm1368, %v1154, %v1496
      %v1625 = vsel %vm1369, %v1159, %v1497
      %v1626 = vsel %vm1370, %v1162, %v1498
      %v1627 = vsel %vm1371, %v1167, %v1499
      %v1628 = vsel %vm1372, %v1170, %v1500
      %v1629 = vsel %vm1373, %v1175, %v1501
      %v1630 = vsel %vm1374, %v1178, %v1502
      %v1631 = vsel %vm1375, %v1183, %v1503
      %v1632 = vsel %vm1376, %v1186, %v1504
      %v1633 = vsel %vm1377, %v1191, %v1505
      %v1634 = vsel %vm1378, %v1194, %v1506
      %v1635 = vsel %vm1379, %v1199, %v1507
      %v1636 = vsel %vm1380, %v1202, %v1508
      %v1637 = vsel %vm1381, %v1207, %v1509
      %v1638 = vsel %vm1382, %v1210, %v1510
      %v1639 = vsel %vm1383, %v1215, %v1511
      %v1640 = vsel %vm1384, %v1218, %v1512
      %v1641 = vsel %vm1385, %v1223, %v1513
      %v1642 = vsel %vm1386, %v1226, %v1514
      %v1643 = vsel %vm1387, %v1231, %v1515
      %v1644 = vsel %vm1388, %v1234, %v1516
      %v1645 = vsel %vm1389, %v1239, %v1517
      %v1646 = vsel %vm1390, %v1242, %v1518
      %v1647 = vsel %vm1391, %v1247, %v1519
      %v1648 = vsel %vm1392, %v1250, %v1520
      %v1649 = vsel %vm1393, %v1255, %v1521
      %v1650 = vsel %vm1394, %v1258, %v1522
      %v1651 = vsel %vm1395, %v1263, %v1523
      %v1652 = vsel %vm1396, %v1266, %v1524
      %v1653 = vpack.c.bf16 %v1526, %v1525
      %v1654 = vpack.c.bf16 %v1528, %v1527
      %v1655 = vpack.c.bf16 %v1530, %v1529
      %v1656 = vpack.c.bf16 %v1532, %v1531
      %v1657 = vpack.c.bf16 %v1534, %v1533
      %v1658 = vpack.c.bf16 %v1536, %v1535
      %v1659 = vpack.c.bf16 %v1538, %v1537
      %v1660 = vpack.c.bf16 %v1540, %v1539
      %v1661 = vpack.c.bf16 %v1542, %v1541
      %v1662 = vpack.c.bf16 %v1544, %v1543
      %v1663 = vpack.c.bf16 %v1546, %v1545
      %v1664 = vpack.c.bf16 %v1548, %v1547
      %v1665 = vpack.c.bf16 %v1550, %v1549
      %v1666 = vpack.c.bf16 %v1552, %v1551
      %v1667 = vpack.c.bf16 %v1554, %v1553
      %v1668 = vpack.c.bf16 %v1556, %v1555
      %v1669 = vpack.c.bf16 %v1558, %v1557
      %v1670 = vpack.c.bf16 %v1560, %v1559
      %v1671 = vpack.c.bf16 %v1562, %v1561
      %v1672 = vpack.c.bf16 %v1564, %v1563
      %v1673 = vpack.c.bf16 %v1566, %v1565
      %v1674 = vpack.c.bf16 %v1568, %v1567
      %v1675 = vpack.c.bf16 %v1570, %v1569
      %v1676 = vpack.c.bf16 %v1572, %v1571
      %v1677 = vpack.c.bf16 %v1574, %v1573
      %v1678 = vpack.c.bf16 %v1576, %v1575
      %v1679 = vpack.c.bf16 %v1578, %v1577
      %v1680 = vpack.c.bf16 %v1580, %v1579
      %v1681 = vpack.c.bf16 %v1582, %v1581
      %v1682 = vpack.c.bf16 %v1584, %v1583
      %v1683 = vpack.c.bf16 %v1586, %v1585
      %v1684 = vpack.c.bf16 %v1588, %v1587
      %v1685 = vpack.c.bf16 %v1590, %v1589
      %v1686 = vpack.c.bf16 %v1592, %v1591
      %v1687 = vpack.c.bf16 %v1594, %v1593
      %v1688 = vpack.c.bf16 %v1596, %v1595
      %v1689 = vpack.c.bf16 %v1598, %v1597
      %v1690 = vpack.c.bf16 %v1600, %v1599
      %v1691 = vpack.c.bf16 %v1602, %v1601
      %v1692 = vpack.c.bf16 %v1604, %v1603
      %v1693 = vpack.c.bf16 %v1606, %v1605
      %v1694 = vpack.c.bf16 %v1608, %v1607
      %v1695 = vpack.c.bf16 %v1610, %v1609
      %v1696 = vpack.c.bf16 %v1612, %v1611
      %v1697 = vpack.c.bf16 %v1614, %v1613
      %v1698 = vpack.c.bf16 %v1616, %v1615
      %v1699 = vpack.c.bf16 %v1618, %v1617
      %v1700 = vpack.c.bf16 %v1620, %v1619
      %v1701 = vpack.c.bf16 %v1622, %v1621
      %v1702 = vpack.c.bf16 %v1624, %v1623
      %v1703 = vpack.c.bf16 %v1626, %v1625
      %v1704 = vpack.c.bf16 %v1628, %v1627
      %v1705 = vpack.c.bf16 %v1630, %v1629
      %v1706 = vpack.c.bf16 %v1632, %v1631
      %v1707 = vpack.c.bf16 %v1634, %v1633
      %v1708 = vpack.c.bf16 %v1636, %v1635
      %v1709 = vpack.c.bf16 %v1638, %v1637
      %v1710 = vpack.c.bf16 %v1640, %v1639
      %v1711 = vpack.c.bf16 %v1642, %v1641
      %v1712 = vpack.c.bf16 %v1644, %v1643
      %v1713 = vpack.c.bf16 %v1646, %v1645
      %v1714 = vpack.c.bf16 %v1648, %v1647
      %v1715 = vpack.c.bf16 %v1650, %v1649
      %v1716 = vpack.c.bf16 %v1652, %v1651
      %v1781 = vunpack.c.l.b16 %v1653
      %v1782 = vunpack.c.h.b16 %v1653
      %v1783 = vunpack.c.l.b16 %v1654
      %v1784 = vunpack.c.h.b16 %v1654
      %v1785 = vunpack.c.l.b16 %v1655
      %v1786 = vunpack.c.h.b16 %v1655
      %v1787 = vunpack.c.l.b16 %v1656
      %v1788 = vunpack.c.h.b16 %v1656
      %v1789 = vunpack.c.l.b16 %v1657
      %v1790 = vunpack.c.h.b16 %v1657
      %v1791 = vunpack.c.l.b16 %v1658
      %v1792 = vunpack.c.h.b16 %v1658
      %v1793 = vunpack.c.l.b16 %v1659
      %v1794 = vunpack.c.h.b16 %v1659
      %v1795 = vunpack.c.l.b16 %v1660
      %v1796 = vunpack.c.h.b16 %v1660
      %v1797 = vunpack.c.l.b16 %v1661
      %v1798 = vunpack.c.h.b16 %v1661
      %v1799 = vunpack.c.l.b16 %v1662
      %v1800 = vunpack.c.h.b16 %v1662
      %v1801 = vunpack.c.l.b16 %v1663
      %v1802 = vunpack.c.h.b16 %v1663
      %v1803 = vunpack.c.l.b16 %v1664
      %v1804 = vunpack.c.h.b16 %v1664
      %v1805 = vunpack.c.l.b16 %v1665
      %v1806 = vunpack.c.h.b16 %v1665
      %v1807 = vunpack.c.l.b16 %v1666
      %v1808 = vunpack.c.h.b16 %v1666
      %v1809 = vunpack.c.l.b16 %v1667
      %v1810 = vunpack.c.h.b16 %v1667
      %v1811 = vunpack.c.l.b16 %v1668
      %v1812 = vunpack.c.h.b16 %v1668
      %v1813 = vunpack.c.l.b16 %v1669
      %v1814 = vunpack.c.h.b16 %v1669
      %v1815 = vunpack.c.l.b16 %v1670
      %v1816 = vunpack.c.h.b16 %v1670
      %v1817 = vunpack.c.l.b16 %v1671
      %v1818 = vunpack.c.h.b16 %v1671
      %v1819 = vunpack.c.l.b16 %v1672
      %v1820 = vunpack.c.h.b16 %v1672
      %v1821 = vunpack.c.l.b16 %v1673
      %v1822 = vunpack.c.h.b16 %v1673
      %v1823 = vunpack.c.l.b16 %v1674
      %v1824 = vunpack.c.h.b16 %v1674
      %v1825 = vunpack.c.l.b16 %v1675
      %v1826 = vunpack.c.h.b16 %v1675
      %v1827 = vunpack.c.l.b16 %v1676
      %v1828 = vunpack.c.h.b16 %v1676
      %v1829 = vunpack.c.l.b16 %v1677
      %v1830 = vunpack.c.h.b16 %v1677
      %v1831 = vunpack.c.l.b16 %v1678
      %v1832 = vunpack.c.h.b16 %v1678
      %v1833 = vunpack.c.l.b16 %v1679
      %v1834 = vunpack.c.h.b16 %v1679
      %v1835 = vunpack.c.l.b16 %v1680
      %v1836 = vunpack.c.h.b16 %v1680
      %v1837 = vunpack.c.l.b16 %v1681
      %v1838 = vunpack.c.h.b16 %v1681
      %v1839 = vunpack.c.l.b16 %v1682
      %v1840 = vunpack.c.h.b16 %v1682
      %v1841 = vunpack.c.l.b16 %v1683
      %v1842 = vunpack.c.h.b16 %v1683
      %v1843 = vunpack.c.l.b16 %v1684
      %v1844 = vunpack.c.h.b16 %v1684
      %v1845 = vunpack.c.l.b16 %v1685
      %v1846 = vunpack.c.h.b16 %v1685
      %v1847 = vunpack.c.l.b16 %v1686
      %v1848 = vunpack.c.h.b16 %v1686
      %v1849 = vunpack.c.l.b16 %v1687
      %v1850 = vunpack.c.h.b16 %v1687
      %v1851 = vunpack.c.l.b16 %v1688
      %v1852 = vunpack.c.h.b16 %v1688
      %v1853 = vunpack.c.l.b16 %v1689
      %v1854 = vunpack.c.h.b16 %v1689
      %v1855 = vunpack.c.l.b16 %v1690
      %v1856 = vunpack.c.h.b16 %v1690
      %v1857 = vunpack.c.l.b16 %v1691
      %v1858 = vunpack.c.h.b16 %v1691
      %v1859 = vunpack.c.l.b16 %v1692
      %v1860 = vunpack.c.h.b16 %v1692
      %v1861 = vunpack.c.l.b16 %v1693
      %v1862 = vunpack.c.h.b16 %v1693
      %v1863 = vunpack.c.l.b16 %v1694
      %v1864 = vunpack.c.h.b16 %v1694
      %v1865 = vunpack.c.l.b16 %v1695
      %v1866 = vunpack.c.h.b16 %v1695
      %v1867 = vunpack.c.l.b16 %v1696
      %v1868 = vunpack.c.h.b16 %v1696
      %v1869 = vunpack.c.l.b16 %v1697
      %v1870 = vunpack.c.h.b16 %v1697
      %v1871 = vunpack.c.l.b16 %v1698
      %v1872 = vunpack.c.h.b16 %v1698
      %v1873 = vunpack.c.l.b16 %v1699
      %v1874 = vunpack.c.h.b16 %v1699
      %v1875 = vunpack.c.l.b16 %v1700
      %v1876 = vunpack.c.h.b16 %v1700
      %v1877 = vunpack.c.l.b16 %v1701
      %v1878 = vunpack.c.h.b16 %v1701
      %v1879 = vunpack.c.l.b16 %v1702
      %v1880 = vunpack.c.h.b16 %v1702
      %v1881 = vunpack.c.l.b16 %v1703
      %v1882 = vunpack.c.h.b16 %v1703
      %v1883 = vunpack.c.l.b16 %v1704
      %v1884 = vunpack.c.h.b16 %v1704
      %v1885 = vunpack.c.l.b16 %v1705
      %v1886 = vunpack.c.h.b16 %v1705
      %v1887 = vunpack.c.l.b16 %v1706
      %v1888 = vunpack.c.h.b16 %v1706
      %v1889 = vunpack.c.l.b16 %v1707
      %v1890 = vunpack.c.h.b16 %v1707
      %v1891 = vunpack.c.l.b16 %v1708
      %v1892 = vunpack.c.h.b16 %v1708
      %v1893 = vunpack.c.l.b16 %v1709
      %v1894 = vunpack.c.h.b16 %v1709
      %v1895 = vunpack.c.l.b16 %v1710
      %v1896 = vunpack.c.h.b16 %v1710
      %v1897 = vunpack.c.l.b16 %v1711
      %v1898 = vunpack.c.h.b16 %v1711
      %v1899 = vunpack.c.l.b16 %v1712
      %v1900 = vunpack.c.h.b16 %v1712
      %v1901 = vunpack.c.l.b16 %v1713
      %v1902 = vunpack.c.h.b16 %v1713
      %v1903 = vunpack.c.l.b16 %v1714
      %v1904 = vunpack.c.h.b16 %v1714
      %v1905 = vunpack.c.l.b16 %v1715
      %v1906 = vunpack.c.h.b16 %v1715
      %v1907 = vunpack.c.l.b16 %v1716
      %v1908 = vunpack.c.h.b16 %v1716
      %v1909 = vpack.c.b16 %v1781, %v1781
      %v1910 = vpack.c.b16 %v1782, %v1782
      %v1911 = vpack.c.b16 %v1783, %v1783
      %v1912 = vpack.c.b16 %v1784, %v1784
      %v1913 = vpack.c.b16 %v1785, %v1785
      %v1914 = vpack.c.b16 %v1786, %v1786
      %v1915 = vpack.c.b16 %v1787, %v1787
      %v1916 = vpack.c.b16 %v1788, %v1788
      %v1917 = vpack.c.b16 %v1789, %v1789
      %v1918 = vpack.c.b16 %v1790, %v1790
      %v1919 = vpack.c.b16 %v1791, %v1791
      %v1920 = vpack.c.b16 %v1792, %v1792
      %v1921 = vpack.c.b16 %v1793, %v1793
      %v1922 = vpack.c.b16 %v1794, %v1794
      %v1923 = vpack.c.b16 %v1795, %v1795
      %v1924 = vpack.c.b16 %v1796, %v1796
      %v1925 = vpack.c.b16 %v1797, %v1797
      %v1926 = vpack.c.b16 %v1798, %v1798
      %v1927 = vpack.c.b16 %v1799, %v1799
      %v1928 = vpack.c.b16 %v1800, %v1800
      %v1929 = vpack.c.b16 %v1801, %v1801
      %v1930 = vpack.c.b16 %v1802, %v1802
      %v1931 = vpack.c.b16 %v1803, %v1803
      %v1932 = vpack.c.b16 %v1804, %v1804
      %v1933 = vpack.c.b16 %v1805, %v1805
      %v1934 = vpack.c.b16 %v1806, %v1806
      %v1935 = vpack.c.b16 %v1807, %v1807
      %v1936 = vpack.c.b16 %v1808, %v1808
      %v1937 = vpack.c.b16 %v1809, %v1809
      %v1938 = vpack.c.b16 %v1810, %v1810
      %v1939 = vpack.c.b16 %v1811, %v1811
      %v1940 = vpack.c.b16 %v1812, %v1812
      %v1941 = vpack.c.b16 %v1813, %v1813
      %v1942 = vpack.c.b16 %v1814, %v1814
      %v1943 = vpack.c.b16 %v1815, %v1815
      %v1944 = vpack.c.b16 %v1816, %v1816
      %v1945 = vpack.c.b16 %v1817, %v1817
      %v1946 = vpack.c.b16 %v1818, %v1818
      %v1947 = vpack.c.b16 %v1819, %v1819
      %v1948 = vpack.c.b16 %v1820, %v1820
      %v1949 = vpack.c.b16 %v1821, %v1821
      %v1950 = vpack.c.b16 %v1822, %v1822
      %v1951 = vpack.c.b16 %v1823, %v1823
      %v1952 = vpack.c.b16 %v1824, %v1824
      %v1953 = vpack.c.b16 %v1825, %v1825
      %v1954 = vpack.c.b16 %v1826, %v1826
      %v1955 = vpack.c.b16 %v1827, %v1827
      %v1956 = vpack.c.b16 %v1828, %v1828
      %v1957 = vpack.c.b16 %v1829, %v1829
      %v1958 = vpack.c.b16 %v1830, %v1830
      %v1959 = vpack.c.b16 %v1831, %v1831
      %v1960 = vpack.c.b16 %v1832, %v1832
      %v1961 = vpack.c.b16 %v1833, %v1833
      %v1962 = vpack.c.b16 %v1834, %v1834
      %v1963 = vpack.c.b16 %v1835, %v1835
      %v1964 = vpack.c.b16 %v1836, %v1836
      %v1965 = vpack.c.b16 %v1837, %v1837
      %v1966 = vpack.c.b16 %v1838, %v1838
      %v1967 = vpack.c.b16 %v1839, %v1839
      %v1968 = vpack.c.b16 %v1840, %v1840
      %v1969 = vpack.c.b16 %v1841, %v1841
      %v1970 = vpack.c.b16 %v1842, %v1842
      %v1971 = vpack.c.b16 %v1843, %v1843
      %v1972 = vpack.c.b16 %v1844, %v1844
      %v1973 = vpack.c.b16 %v1845, %v1845
      %v1974 = vpack.c.b16 %v1846, %v1846
      %v1975 = vpack.c.b16 %v1847, %v1847
      %v1976 = vpack.c.b16 %v1848, %v1848
      %v1977 = vpack.c.b16 %v1849, %v1849
      %v1978 = vpack.c.b16 %v1850, %v1850
      %v1979 = vpack.c.b16 %v1851, %v1851
      %v1980 = vpack.c.b16 %v1852, %v1852
      %v1981 = vpack.c.b16 %v1853, %v1853
      %v1982 = vpack.c.b16 %v1854, %v1854
      %v1983 = vpack.c.b16 %v1855, %v1855
      %v1984 = vpack.c.b16 %v1856, %v1856
      %v1985 = vpack.c.b16 %v1857, %v1857
      %v1986 = vpack.c.b16 %v1858, %v1858
      %v1987 = vpack.c.b16 %v1859, %v1859
      %v1988 = vpack.c.b16 %v1860, %v1860
      %v1989 = vpack.c.b16 %v1861, %v1861
      %v1990 = vpack.c.b16 %v1862, %v1862
      %v1991 = vpack.c.b16 %v1863, %v1863
      %v1992 = vpack.c.b16 %v1864, %v1864
      %v1993 = vpack.c.b16 %v1865, %v1865
      %v1994 = vpack.c.b16 %v1866, %v1866
      %v1995 = vpack.c.b16 %v1867, %v1867
      %v1996 = vpack.c.b16 %v1868, %v1868
      %v1997 = vpack.c.b16 %v1869, %v1869
      %v1998 = vpack.c.b16 %v1870, %v1870
      %v1999 = vpack.c.b16 %v1871, %v1871
      %v2000 = vpack.c.b16 %v1872, %v1872
      %v2001 = vpack.c.b16 %v1873, %v1873
      %v2002 = vpack.c.b16 %v1874, %v1874
      %v2003 = vpack.c.b16 %v1875, %v1875
      %v2004 = vpack.c.b16 %v1876, %v1876
      %v2005 = vpack.c.b16 %v1877, %v1877
      %v2006 = vpack.c.b16 %v1878, %v1878
      %v2007 = vpack.c.b16 %v1879, %v1879
      %v2008 = vpack.c.b16 %v1880, %v1880
      %v2009 = vpack.c.b16 %v1881, %v1881
      %v2010 = vpack.c.b16 %v1882, %v1882
      %v2011 = vpack.c.b16 %v1883, %v1883
      %v2012 = vpack.c.b16 %v1884, %v1884
      %v2013 = vpack.c.b16 %v1885, %v1885
      %v2014 = vpack.c.b16 %v1886, %v1886
      %v2015 = vpack.c.b16 %v1887, %v1887
      %v2016 = vpack.c.b16 %v1888, %v1888
      %v2017 = vpack.c.b16 %v1889, %v1889
      %v2018 = vpack.c.b16 %v1890, %v1890
      %v2019 = vpack.c.b16 %v1891, %v1891
      %v2020 = vpack.c.b16 %v1892, %v1892
      %v2021 = vpack.c.b16 %v1893, %v1893
      %v2022 = vpack.c.b16 %v1894, %v1894
      %v2023 = vpack.c.b16 %v1895, %v1895
      %v2024 = vpack.c.b16 %v1896, %v1896
      %v2025 = vpack.c.b16 %v1897, %v1897
      %v2026 = vpack.c.b16 %v1898, %v1898
      %v2027 = vpack.c.b16 %v1899, %v1899
      %v2028 = vpack.c.b16 %v1900, %v1900
      %v2029 = vpack.c.b16 %v1901, %v1901
      %v2030 = vpack.c.b16 %v1902, %v1902
      %v2031 = vpack.c.b16 %v1903, %v1903
      %v2032 = vpack.c.b16 %v1904, %v1904
      %v2033 = vpack.c.b16 %v1905, %v1905
      %v2034 = vpack.c.b16 %v1906, %v1906
      %v2035 = vpack.c.b16 %v1907, %v1907
      %v2036 = vpack.c.b16 %v1908, %v1908
      %2165 = vst [vmem:[%s145] sm:$0xf] %v1909
      %2166 = vst [vmem:[%s145 + $0x4] sm:$0xf] %v1910
      %2167 = vst [vmem:[%s145 + $0x8] sm:$0xf] %v1911
      %2168 = vst [vmem:[%s145 + $0xc] sm:$0xf] %v1912
      %2169 = vst [vmem:[%s145 + $0x10] sm:$0xf] %v1913
      %2170 = vst [vmem:[%s145 + $0x14] sm:$0xf] %v1914
      %2171 = vst [vmem:[%s145 + $0x18] sm:$0xf] %v1915
      %2172 = vst [vmem:[%s145 + $0x1c] sm:$0xf] %v1916
      %2173 = vst [vmem:[%s145 + $0x20] sm:$0xf] %v1917
      %2174 = vst [vmem:[%s145 + $0x24] sm:$0xf] %v1918
      %2175 = vst [vmem:[%s145 + $0x28] sm:$0xf] %v1919
      %2176 = vst [vmem:[%s145 + $0x2c] sm:$0xf] %v1920
      %2177 = vst [vmem:[%s145 + $0x30] sm:$0xf] %v1921
      %2178 = vst [vmem:[%s145 + $0x34] sm:$0xf] %v1922
      %2179 = vst [vmem:[%s145 + $0x38] sm:$0xf] %v1923
      %2180 = vst [vmem:[%s145 + $0x3c] sm:$0xf] %v1924
      %2181 = vst [vmem:[%s145 + $0x40] sm:$0xf] %v1925
      %2182 = vst [vmem:[%s145 + $0x44] sm:$0xf] %v1926
      %2183 = vst [vmem:[%s145 + $0x48] sm:$0xf] %v1927
      %2184 = vst [vmem:[%s145 + $0x4c] sm:$0xf] %v1928
      %2185 = vst [vmem:[%s145 + $0x50] sm:$0xf] %v1929
      %2186 = vst [vmem:[%s145 + $0x54] sm:$0xf] %v1930
      %2187 = vst [vmem:[%s145 + $0x58] sm:$0xf] %v1931
      %2188 = vst [vmem:[%s145 + $0x5c] sm:$0xf] %v1932
      %2189 = vst [vmem:[%s145 + $0x60] sm:$0xf] %v1933
      %2190 = vst [vmem:[%s145 + $0x64] sm:$0xf] %v1934
      %2191 = vst [vmem:[%s145 + $0x68] sm:$0xf] %v1935
      %2192 = vst [vmem:[%s145 + $0x6c] sm:$0xf] %v1936
      %2193 = vst [vmem:[%s145 + $0x70] sm:$0xf] %v1937
      %2194 = vst [vmem:[%s145 + $0x74] sm:$0xf] %v1938
      %2195 = vst [vmem:[%s145 + $0x78] sm:$0xf] %v1939
      %2196 = vst [vmem:[%s145 + $0x7c] sm:$0xf] %v1940
      %2197 = vst [vmem:[%s145 + $0x80] sm:$0xf] %v1941
      %2198 = vst [vmem:[%s145 + $0x84] sm:$0xf] %v1942
      %2199 = vst [vmem:[%s145 + $0x88] sm:$0xf] %v1943
      %2200 = vst [vmem:[%s145 + $0x8c] sm:$0xf] %v1944
      %2201 = vst [vmem:[%s145 + $0x90] sm:$0xf] %v1945
      %2202 = vst [vmem:[%s145 + $0x94] sm:$0xf] %v1946
      %2203 = vst [vmem:[%s145 + $0x98] sm:$0xf] %v1947
      %2204 = vst [vmem:[%s145 + $0x9c] sm:$0xf] %v1948
      %2205 = vst [vmem:[%s145 + $0xa0] sm:$0xf] %v1949
      %2206 = vst [vmem:[%s145 + $0xa4] sm:$0xf] %v1950
      %2207 = vst [vmem:[%s145 + $0xa8] sm:$0xf] %v1951
      %2208 = vst [vmem:[%s145 + $0xac] sm:$0xf] %v1952
      %2209 = vst [vmem:[%s145 + $0xb0] sm:$0xf] %v1953
      %2210 = vst [vmem:[%s145 + $0xb4] sm:$0xf] %v1954
      %2211 = vst [vmem:[%s145 + $0xb8] sm:$0xf] %v1955
      %2212 = vst [vmem:[%s145 + $0xbc] sm:$0xf] %v1956
      %2213 = vst [vmem:[%s145 + $0xc0] sm:$0xf] %v1957
      %2214 = vst [vmem:[%s145 + $0xc4] sm:$0xf] %v1958
      %2215 = vst [vmem:[%s145 + $0xc8] sm:$0xf] %v1959
      %2216 = vst [vmem:[%s145 + $0xcc] sm:$0xf] %v1960
      %2217 = vst [vmem:[%s145 + $0xd0] sm:$0xf] %v1961
      %2218 = vst [vmem:[%s145 + $0xd4] sm:$0xf] %v1962
      %2219 = vst [vmem:[%s145 + $0xd8] sm:$0xf] %v1963
      %2220 = vst [vmem:[%s145 + $0xdc] sm:$0xf] %v1964
      %2221 = vst [vmem:[%s145 + $0xe0] sm:$0xf] %v1965
      %2222 = vst [vmem:[%s145 + $0xe4] sm:$0xf] %v1966
      %2223 = vst [vmem:[%s145 + $0xe8] sm:$0xf] %v1967
      %2224 = vst [vmem:[%s145 + $0xec] sm:$0xf] %v1968
      %2225 = vst [vmem:[%s145 + $0xf0] sm:$0xf] %v1969
      %2226 = vst [vmem:[%s145 + $0xf4] sm:$0xf] %v1970
      %2227 = vst [vmem:[%s145 + $0xf8] sm:$0xf] %v1971
      %2228 = vst [vmem:[%s145 + $0xfc] sm:$0xf] %v1972
      %2229 = vst [vmem:[%s145 + $0x100] sm:$0xf] %v1973
      %2230 = vst [vmem:[%s145 + $0x104] sm:$0xf] %v1974
      %2231 = vst [vmem:[%s145 + $0x108] sm:$0xf] %v1975
      %2232 = vst [vmem:[%s145 + $0x10c] sm:$0xf] %v1976
      %2233 = vst [vmem:[%s145 + $0x110] sm:$0xf] %v1977
      %2234 = vst [vmem:[%s145 + $0x114] sm:$0xf] %v1978
      %2235 = vst [vmem:[%s145 + $0x118] sm:$0xf] %v1979
      %2236 = vst [vmem:[%s145 + $0x11c] sm:$0xf] %v1980
      %2237 = vst [vmem:[%s145 + $0x120] sm:$0xf] %v1981
      %2238 = vst [vmem:[%s145 + $0x124] sm:$0xf] %v1982
      %2239 = vst [vmem:[%s145 + $0x128] sm:$0xf] %v1983
      %2240 = vst [vmem:[%s145 + $0x12c] sm:$0xf] %v1984
      %2241 = vst [vmem:[%s145 + $0x130] sm:$0xf] %v1985
      %2242 = vst [vmem:[%s145 + $0x134] sm:$0xf] %v1986
      %2243 = vst [vmem:[%s145 + $0x138] sm:$0xf] %v1987
      %2244 = vst [vmem:[%s145 + $0x13c] sm:$0xf] %v1988
      %2245 = vst [vmem:[%s145 + $0x140] sm:$0xf] %v1989
      %2246 = vst [vmem:[%s145 + $0x144] sm:$0xf] %v1990
      %2247 = vst [vmem:[%s145 + $0x148] sm:$0xf] %v1991
      %2248 = vst [vmem:[%s145 + $0x14c] sm:$0xf] %v1992
      %2249 = vst [vmem:[%s145 + $0x150] sm:$0xf] %v1993
      %2250 = vst [vmem:[%s145 + $0x154] sm:$0xf] %v1994
      %2251 = vst [vmem:[%s145 + $0x158] sm:$0xf] %v1995
      %2252 = vst [vmem:[%s145 + $0x15c] sm:$0xf] %v1996
      %2253 = vst [vmem:[%s145 + $0x160] sm:$0xf] %v1997
      %2254 = vst [vmem:[%s145 + $0x164] sm:$0xf] %v1998
      %2255 = vst [vmem:[%s145 + $0x168] sm:$0xf] %v1999
      %2256 = vst [vmem:[%s145 + $0x16c] sm:$0xf] %v2000
      %2257 = vst [vmem:[%s145 + $0x170] sm:$0xf] %v2001
      %2258 = vst [vmem:[%s145 + $0x174] sm:$0xf] %v2002
      %2259 = vst [vmem:[%s145 + $0x178] sm:$0xf] %v2003
      %2260 = vst [vmem:[%s145 + $0x17c] sm:$0xf] %v2004
      %2261 = vst [vmem:[%s145 + $0x180] sm:$0xf] %v2005
      %2262 = vst [vmem:[%s145 + $0x184] sm:$0xf] %v2006
      %2263 = vst [vmem:[%s145 + $0x188] sm:$0xf] %v2007
      %2264 = vst [vmem:[%s145 + $0x18c] sm:$0xf] %v2008
      %2265 = vst [vmem:[%s145 + $0x190] sm:$0xf] %v2009
      %2266 = vst [vmem:[%s145 + $0x194] sm:$0xf] %v2010
      %2267 = vst [vmem:[%s145 + $0x198] sm:$0xf] %v2011
      %2268 = vst [vmem:[%s145 + $0x19c] sm:$0xf] %v2012
      %2269 = vst [vmem:[%s145 + $0x1a0] sm:$0xf] %v2013
      %2270 = vst [vmem:[%s145 + $0x1a4] sm:$0xf] %v2014
      %2271 = vst [vmem:[%s145 + $0x1a8] sm:$0xf] %v2015
      %2272 = vst [vmem:[%s145 + $0x1ac] sm:$0xf] %v2016
      %2273 = vst [vmem:[%s145 + $0x1b0] sm:$0xf] %v2017
      %2274 = vst [vmem:[%s145 + $0x1b4] sm:$0xf] %v2018
      %2275 = vst [vmem:[%s145 + $0x1b8] sm:$0xf] %v2019
      %2276 = vst [vmem:[%s145 + $0x1bc] sm:$0xf] %v2020
      %2277 = vst [vmem:[%s145 + $0x1c0] sm:$0xf] %v2021
      %2278 = vst [vmem:[%s145 + $0x1c4] sm:$0xf] %v2022
      %2279 = vst [vmem:[%s145 + $0x1c8] sm:$0xf] %v2023
      %2280 = vst [vmem:[%s145 + $0x1cc] sm:$0xf] %v2024
      %2281 = vst [vmem:[%s145 + $0x1d0] sm:$0xf] %v2025
      %2282 = vst [vmem:[%s145 + $0x1d4] sm:$0xf] %v2026
      %2283 = vst [vmem:[%s145 + $0x1d8] sm:$0xf] %v2027
      %2284 = vst [vmem:[%s145 + $0x1dc] sm:$0xf] %v2028
      %2285 = vst [vmem:[%s145 + $0x1e0] sm:$0xf] %v2029
      %2286 = vst [vmem:[%s145 + $0x1e4] sm:$0xf] %v2030
      %2287 = vst [vmem:[%s145 + $0x1e8] sm:$0xf] %v2031
      %2288 = vst [vmem:[%s145 + $0x1ec] sm:$0xf] %v2032
      %2289 = vst [vmem:[%s145 + $0x1f0] sm:$0xf] %v2033
      %2290 = vst [vmem:[%s145 + $0x1f4] sm:$0xf] %v2034
      %2291 = vst [vmem:[%s145 + $0x1f8] sm:$0xf] %v2035
      %2292 = vst [vmem:[%s145 + $0x1fc] sm:$0xf] %v2036
      %s2293 = smul.u32 128, %s13
      %p2294 = scmp.lt.s32.totalorder %s2293, 255
      %s2295 = scalar_select %p2294, %s2293, 255
      %s2296 = smul.addr %s2295, 4
      %s2297 = scalar_lea.vmem %s2, %s2296
      // Predicated region
      $region29: #{discriminator_forward.7} parent=27 // pred_check
        %p2298 = pneg %p78
      $region30: #{discriminator_forward.7} parent=27 // pred_check_branch
        %2300 = sbr.rel (%p2298) target = $region32
      $region31: #{discriminator_forward.7} parent=27 // pred_region
        %s2301 = smul.u32 128, %s13
      $region32: #{discriminator_forward.7} parent=27 // pred_fallthru
        _
    $region28: #{discriminator_forward.7} parent=5 // pred_fallthru
      _
    %p2302 = scmp.le.s32.totalorder 2, %s8
    // Predicated region
    $region33: #{discriminator_forward.7} parent=5 // pred_check
      %p2303 = pneg %p2302
    $region34: #{discriminator_forward.7} parent=5 // pred_check_branch
      %2305 = sbr.rel (%p2303) target = $region36
    $region35: #{discriminator_forward.7} parent=5 // pred_region
      %s2306 = ssub.s32 %s8, 2
      // Predicated region
      $region37: #{discriminator_forward.7} parent=35 // pred_check
        %p2307 = pneg %p84
      $region38: #{discriminator_forward.7} parent=35 // pred_check_branch
        %2309 = sbr.rel (%p2307) target = $region40
      $region39: #{discriminator_forward.7} parent=35 // pred_region
        %s2310 = smul.u32 128, %s14
        %p2311 = scmp.lt.s32.totalorder %s2310, 255
        %s2312 = scalar_select %p2311, %s2310, 255
        %s2313 = smul.addr %s2312, 4
        %s2314 = scalar_lea.vmem %s2, %s2313
      $region40: #{discriminator_forward.7} parent=35 // pred_fallthru
        _
    $region36: #{discriminator_forward.7} parent=5 // pred_fallthru
      _
  $region6: #{discriminator_forward.7} parent=0 // loop_footer
    %s12 = sadd.s32 1, %s8
  $region7: #{discriminator_forward.7} parent=0 // loop_footer_branch
    %7 = sbr.rel target = $region3
  $region8: #{discriminator_forward.7} parent=0 // loop_exit
    _

// kernel: discriminator_forward.8
$region0: #{discriminator_forward.8}
  #allocation0 [shape = 'u32[]', space=smem, size = 0x4, offset = 0x4, fixed_abs, tag = 'smem constant byte address 0x4 - core index']
  #allocation1 [shape = 'u32[144,128]{1,0:T(1,128)}', space=vmem, size = 0x12000, scoped, tag = 'internal scratch']
  %s0 = inlined_call_operand.vmem [shape: bf16[512,128], index: 0, kind: input, shape index: {}]
  %s1 = inlined_call_operand.vmem [shape: bf16[128,128], index: 1, kind: input, shape index: {}]
  %s2 = inlined_call_operand.vmem [shape: bf16[512,128], index: 2, kind: output, shape index: {0}]
  %s3 = inlined_call_operand.vmem [shape: f32[16,128], index: 3, kind: output, shape index: {1}]
  %4 = xla_tuple %s2, %s3
  %s5 = sld [smem:[#allocation0]]
  $region49: #{discriminator_forward.8} parent=0
    _
  %s7 = ssub.s32 1, %s5
  %s8 = scalar_select 0, %s7, %s5
  loop: start=0, step=1, limit=4
  $region2: #{discriminator_forward.8} parent=0 // loop_pre_header
    _
  $region3: #{discriminator_forward.8} parent=0 // loop_header
    %s10 = sphi 0, %s14
    %p11 = scmp.ge.s32.totalorder %s10, 4
    %s20 = sphi 0, %s22
    %s23 = sphi 0, %s20
    %s24 = sphi 0, %s23
    %s40 = sphi 0, %s24
    %s44 = sphi 0, %s44
    %s46 = sphi 0, %s44
    %s47 = sphi 0, %s46
    %s61 = sphi 0, %s47
    %s67 = sphi 0, %s69
    %s70 = sphi 0, %s67
    %s71 = sphi 0, %s70
    %s87 = sphi 0, %s71
    %s93 = sphi 0, %s95
    %s96 = sphi 0, %s93
    %s97 = sphi 0, %s96
    %s113 = sphi 0, %s97
  $region4: #{discriminator_forward.8} parent=0 // loop_header_branch
    %13 = sbr.rel (%p11) target = $region8
  $region5: #{discriminator_forward.8} parent=0 // loop_body
    %s15 = ssub.s32 %s10, 1
    %s16 = ssub.s32 %s10, 2
    %s17 = sadd.s32 %s10, 1
    %s18 = ssub.s32 %s10, %s17
    %p19 = scmp.eq.s32.totalorder %s18, 0
    %s21 = sadd.s32 %s20, 1
    %s22 = scalar_select %p19, %s20, %s21
    %p25 = pneg %p19
    %p26 = scmp.eq.s32.totalorder %s10, 1
    %p27 = por %p25, %p26
    %p28 = scmp.ne.s32.totalorder %s20, %s23
    %p29 = scmp.eq.s32.totalorder %s10, 0
    %p30 = por %p28, %p29
    %p31 = scmp.ne.s32.totalorder %s20, %s23
    %p32 = scmp.eq.s32.totalorder %s15, 1
    %p33 = por %p31, %p32
    %p34 = scmp.ne.s32.totalorder %s23, %s24
    %p35 = scmp.eq.s32.totalorder %s15, 0
    %p36 = por %p34, %p35
    %p37 = scmp.ne.s32.totalorder %s23, %s24
    %p38 = scmp.eq.s32.totalorder %s16, 1
    %p39 = por %p37, %p38
    %p41 = scmp.ne.s32.totalorder %s24, %s40
    %p42 = scmp.eq.s32.totalorder %s16, 0
    %p43 = por %p41, %p42
    %s45 = sadd.s32 %s44, 1
    %p48 = scmp.eq.s32.totalorder %s10, 1
    %p49 = scmp.ne.s32.totalorder %s44, %s46
    %p50 = scmp.eq.s32.totalorder %s10, 0
    %p51 = por %p49, %p50
    %p52 = scmp.ne.s32.totalorder %s44, %s46
    %p53 = scmp.eq.s32.totalorder %s15, 1
    %p54 = por %p52, %p53
    %p55 = scmp.ne.s32.totalorder %s46, %s47
    %p56 = scmp.eq.s32.totalorder %s15, 0
    %p57 = por %p55, %p56
    %p58 = scmp.ne.s32.totalorder %s46, %s47
    %p59 = scmp.eq.s32.totalorder %s16, 1
    %p60 = por %p58, %p59
    %p62 = scmp.ne.s32.totalorder %s47, %s61
    %p63 = scmp.eq.s32.totalorder %s16, 0
    %p64 = por %p62, %p63
    %s65 = ssub.s32 %s10, %s17
    %p66 = scmp.eq.s32.totalorder %s65, 0
    %s68 = sadd.s32 %s67, 1
    %s69 = scalar_select %p66, %s67, %s68
    %p72 = pneg %p66
    %p73 = scmp.eq.s32.totalorder %s10, 1
    %p74 = por %p72, %p73
    %p75 = scmp.ne.s32.totalorder %s67, %s70
    %p76 = scmp.eq.s32.totalorder %s10, 0
    %p77 = por %p75, %p76
    %p78 = scmp.ne.s32.totalorder %s67, %s70
    %p79 = scmp.eq.s32.totalorder %s15, 1
    %p80 = por %p78, %p79
    %p81 = scmp.ne.s32.totalorder %s70, %s71
    %p82 = scmp.eq.s32.totalorder %s15, 0
    %p83 = por %p81, %p82
    %p84 = scmp.ne.s32.totalorder %s70, %s71
    %p85 = scmp.eq.s32.totalorder %s16, 1
    %p86 = por %p84, %p85
    %p88 = scmp.ne.s32.totalorder %s71, %s87
    %p89 = scmp.eq.s32.totalorder %s16, 0
    %p90 = por %p88, %p89
    %s91 = ssub.s32 %s10, %s17
    %p92 = scmp.eq.s32.totalorder %s91, 0
    %s94 = sadd.s32 %s93, 1
    %s95 = scalar_select %p92, %s93, %s94
    %p98 = pneg %p92
    %p99 = scmp.eq.s32.totalorder %s10, 1
    %p100 = por %p98, %p99
    %p101 = scmp.ne.s32.totalorder %s93, %s96
    %p102 = scmp.eq.s32.totalorder %s10, 0
    %p103 = por %p101, %p102
    %p104 = scmp.ne.s32.totalorder %s93, %s96
    %p105 = scmp.eq.s32.totalorder %s15, 1
    %p106 = por %p104, %p105
    %p107 = scmp.ne.s32.totalorder %s96, %s97
    %p108 = scmp.eq.s32.totalorder %s15, 0
    %p109 = por %p107, %p108
    %p110 = scmp.ne.s32.totalorder %s96, %s97
    %p111 = scmp.eq.s32.totalorder %s16, 1
    %p112 = por %p110, %p111
    %p114 = scmp.ne.s32.totalorder %s97, %s113
    %p115 = scmp.eq.s32.totalorder %s16, 0
    %p116 = por %p114, %p115
    %p117 = scmp.le.s32.totalorder 1, %s10
    %p118 = scmp.lt.s32.totalorder %s10, 3
    %p119 = pnand %p117, %p118
    %p120 = pneg %p119
    // Predicated region
    $region9: #{discriminator_forward.8} parent=5 // pred_check
      _
    $region10: #{discriminator_forward.8} parent=5 // pred_check_branch
      %122 = sbr.rel (%p119) target = $region12
    $region11: #{discriminator_forward.8} parent=5 // pred_region
      %s123 = ssub.s32 %s10, 1
      // Predicated region
      $region13: #{discriminator_forward.8} parent=11 // pred_check
        %p124 = pneg %p57
      $region14: #{discriminator_forward.8} parent=11 // pred_check_branch
        %126 = sbr.rel (%p124) target = $region16
      $region15: #{discriminator_forward.8} parent=11 // pred_region
        _
      $region16: #{discriminator_forward.8} parent=11 // pred_fallthru
        _
    $region12: #{discriminator_forward.8} parent=5 // pred_fallthru
      _
    %p127 = scmp.lt.s32.totalorder %s10, 2
    // Predicated region
    $region17: #{discriminator_forward.8} parent=5 // pred_check
      %p128 = pneg %p127
    $region18: #{discriminator_forward.8} parent=5 // pred_check_branch
      %130 = sbr.rel (%p128) target = $region20
    $region19: #{discriminator_forward.8} parent=5 // pred_region
      // Predicated region
      $region21: #{discriminator_forward.8} parent=19 // pred_check
        %p131 = pneg %p30
      $region22: #{discriminator_forward.8} parent=19 // pred_check_branch
        %133 = sbr.rel (%p131) target = $region24
      $region23: #{discriminator_forward.8} parent=19 // pred_region
        %s134 = smul.u32 32, %s10
        %p135 = scmp.lt.s32.totalorder %s134, 63
        %s136 = scalar_select %p135, %s134, 63
        %s137 = smul.addr %s136, 4
        %s138 = scalar_lea.vmem %s0, %s137
        %s139 = smul.u32 32, %s10
      $region24: #{discriminator_forward.8} parent=19 // pred_fallthru
        _
    $region20: #{discriminator_forward.8} parent=5 // pred_fallthru
      _
    %p140 = scmp.le.s32.totalorder 1, %s10
    %p141 = scmp.lt.s32.totalorder %s10, 3
    %p142 = pnand %p140, %p141
    %p143 = pneg %p142
    // Predicated region
    $region25: #{discriminator_forward.8} parent=5 // pred_check
      _
    $region26: #{discriminator_forward.8} parent=5 // pred_check_branch
      %145 = sbr.rel (%p142) target = $region28
    $region27: #{discriminator_forward.8} parent=5 // pred_region
      %s146 = ssub.s32 %s10, 1
      %s147 = smul.u32 32, %s15
      %p148 = scmp.lt.s32.totalorder %s147, 63
      %s149 = scalar_select %p148, %s147, 63
      %s150 = smul.addr %s149, 4
      %s151 = scalar_lea.vmem %s0, %s150
      %p152 = pneg %p36
      %p153 = pneg %p33
      %p154 = pneg %p57
      %p155 = pneg %p54
      %p156 = pneg %p83
      %p157 = pneg %p80
      %s158 = smul.u32 32, %s15
      %p159 = scmp.lt.s32.totalorder %s158, 63
      %s160 = scalar_select %p159, %s158, 63
      %s161 = smul.addr %s160, 4
      %s162 = scalar_lea.vmem %s2, %s161
      %p163 = pneg %p109
      %p164 = pneg %p106
      %p165 = scmp.lt.s32.totalorder %s15, 1
      %s166 = scalar_select %p165, %s15, 1
      %s167 = smul.addr %s166, 8
      %s168 = scalar_lea.vmem %s3, %s167
      %s169 = smul.u32 32, %s15
      %p170 = scmp.lt.s32.totalorder %s169, 63
      %s171 = scalar_select %p170, %s169, 63
      %s172 = smul.addr %s171, 4
      %s173 = scalar_lea.vmem %s0, %s172
      %s174 = smul.u32 32, %s15
      %s175 = smul.u32 32, %s15
      %p176 = scmp.lt.s32.totalorder %s175, 63
      %s177 = scalar_select %p176, %s175, 63
      %s178 = smul.addr %s177, 4
      %s179 = scalar_lea.vmem %s2, %s178
      %s180 = smul.u32 32, %s15
      %p181 = scmp.lt.s32.totalorder %s15, 1
      %s182 = scalar_select %p181, %s15, 1
      %s183 = smul.addr %s182, 8
      %s184 = scalar_lea.vmem %s3, %s183
      %v186 = vld [vmem:[%s173] sm:$0xf]
      %v187 = vld [vmem:[%s173 + $0x4] sm:$0xf]
      %v188 = vld [vmem:[%s173 + $0x8] sm:$0xf]
      %v189 = vld [vmem:[%s173 + $0xc] sm:$0xf]
      %v190 = vld [vmem:[%s173 + $0x10] sm:$0xf]
      %v191 = vld [vmem:[%s173 + $0x14] sm:$0xf]
      %v192 = vld [vmem:[%s173 + $0x18] sm:$0xf]
      %v193 = vld [vmem:[%s173 + $0x1c] sm:$0xf]
      %v194 = vld [vmem:[%s173 + $0x20] sm:$0xf]
      %v195 = vld [vmem:[%s173 + $0x24] sm:$0xf]
      %v196 = vld [vmem:[%s173 + $0x28] sm:$0xf]
      %v197 = vld [vmem:[%s173 + $0x2c] sm:$0xf]
      %v198 = vld [vmem:[%s173 + $0x30] sm:$0xf]
      %v199 = vld [vmem:[%s173 + $0x34] sm:$0xf]
      %v200 = vld [vmem:[%s173 + $0x38] sm:$0xf]
      %v201 = vld [vmem:[%s173 + $0x3c] sm:$0xf]
      %v202 = vld [vmem:[%s173 + $0x40] sm:$0xf]
      %v203 = vld [vmem:[%s173 + $0x44] sm:$0xf]
      %v204 = vld [vmem:[%s173 + $0x48] sm:$0xf]
      %v205 = vld [vmem:[%s173 + $0x4c] sm:$0xf]
      %v206 = vld [vmem:[%s173 + $0x50] sm:$0xf]
      %v207 = vld [vmem:[%s173 + $0x54] sm:$0xf]
      %v208 = vld [vmem:[%s173 + $0x58] sm:$0xf]
      %v209 = vld [vmem:[%s173 + $0x5c] sm:$0xf]
      %v210 = vld [vmem:[%s173 + $0x60] sm:$0xf]
      %v211 = vld [vmem:[%s173 + $0x64] sm:$0xf]
      %v212 = vld [vmem:[%s173 + $0x68] sm:$0xf]
      %v213 = vld [vmem:[%s173 + $0x6c] sm:$0xf]
      %v214 = vld [vmem:[%s173 + $0x70] sm:$0xf]
      %v215 = vld [vmem:[%s173 + $0x74] sm:$0xf]
      %v216 = vld [vmem:[%s173 + $0x78] sm:$0xf]
      %v217 = vld [vmem:[%s173 + $0x7c] sm:$0xf]
      %v218 = vld [vmem:[%s1] sm:$0xf]
      %v219 = vld [vmem:[%s1 + $0x4] sm:$0xf]
      %v220 = vld [vmem:[%s1 + $0x8] sm:$0xf]
      %v221 = vld [vmem:[%s1 + $0xc] sm:$0xf]
      %v222 = vld [vmem:[%s1 + $0x10] sm:$0xf]
      %v223 = vld [vmem:[%s1 + $0x14] sm:$0xf]
      %v224 = vld [vmem:[%s1 + $0x18] sm:$0xf]
      %v225 = vld [vmem:[%s1 + $0x1c] sm:$0xf]
      %v226 = vld [vmem:[%s1 + $0x20] sm:$0xf]
      %v227 = vld [vmem:[%s1 + $0x24] sm:$0xf]
      %v228 = vld [vmem:[%s1 + $0x28] sm:$0xf]
      %v229 = vld [vmem:[%s1 + $0x2c] sm:$0xf]
      %v230 = vld [vmem:[%s1 + $0x30] sm:$0xf]
      %v231 = vld [vmem:[%s1 + $0x34] sm:$0xf]
      %v232 = vld [vmem:[%s1 + $0x38] sm:$0xf]
      %v233 = vld [vmem:[%s1 + $0x3c] sm:$0xf]
      %v266 = vunpack.c.l.b16 %v186
      %v267 = vunpack.c.l.b16 %v187
      %v268 = vunpack.c.l.b16 %v188
      %v269 = vunpack.c.l.b16 %v189
      %v270 = vunpack.c.l.b16 %v190
      %v271 = vunpack.c.l.b16 %v191
      %v272 = vunpack.c.l.b16 %v192
      %v273 = vunpack.c.l.b16 %v193
      %v274 = vunpack.c.l.b16 %v194
      %v275 = vunpack.c.l.b16 %v195
      %v276 = vunpack.c.l.b16 %v196
      %v277 = vunpack.c.l.b16 %v197
      %v278 = vunpack.c.l.b16 %v198
      %v279 = vunpack.c.l.b16 %v199
      %v280 = vunpack.c.l.b16 %v200
      %v281 = vunpack.c.l.b16 %v201
      %v282 = vunpack.c.l.b16 %v202
      %v283 = vunpack.c.l.b16 %v203
      %v284 = vunpack.c.l.b16 %v204
      %v285 = vunpack.c.l.b16 %v205
      %v286 = vunpack.c.l.b16 %v206
      %v287 = vunpack.c.l.b16 %v207
      %v288 = vunpack.c.l.b16 %v208
      %v289 = vunpack.c.l.b16 %v209
      %v290 = vunpack.c.l.b16 %v210
      %v291 = vunpack.c.l.b16 %v211
      %v292 = vunpack.c.l.b16 %v212
      %v293 = vunpack.c.l.b16 %v213
      %v294 = vunpack.c.l.b16 %v214
      %v295 = vunpack.c.l.b16 %v215
      %v296 = vunpack.c.l.b16 %v216
      %v297 = vunpack.c.l.b16 %v217
      %v298 = vpack.c.b16 %v267, %v266
      %v299 = vpack.c.b16 %v269, %v268
      %v300 = vpack.c.b16 %v271, %v270
      %v301 = vpack.c.b16 %v273, %v272
      %v302 = vpack.c.b16 %v275, %v274
      %v303 = vpack.c.b16 %v277, %v276
      %v304 = vpack.c.b16 %v279, %v278
      %v305 = vpack.c.b16 %v281, %v280
      %v306 = vpack.c.b16 %v283, %v282
      %v307 = vpack.c.b16 %v285, %v284
      %v308 = vpack.c.b16 %v287, %v286
      %v309 = vpack.c.b16 %v289, %v288
      %v310 = vpack.c.b16 %v291, %v290
      %v311 = vpack.c.b16 %v293, %v292
      %v312 = vpack.c.b16 %v295, %v294
      %v313 = vpack.c.b16 %v297, %v296
      %v346 = vunpack.c.l.b16 %v218
      %v347 = vunpack.c.l.b16 %v219
      %v348 = vunpack.c.l.b16 %v220
      %v349 = vunpack.c.l.b16 %v221
      %v350 = vunpack.c.l.b16 %v222
      %v351 = vunpack.c.l.b16 %v223
      %v352 = vunpack.c.l.b16 %v224
      %v353 = vunpack.c.l.b16 %v225
      %v354 = vunpack.c.l.b16 %v226
      %v355 = vunpack.c.l.b16 %v227
      %v356 = vunpack.c.l.b16 %v228
      %v357 = vunpack.c.l.b16 %v229
      %v358 = vunpack.c.l.b16 %v230
      %v359 = vunpack.c.l.b16 %v231
      %v360 = vunpack.c.l.b16 %v232
      %v361 = vunpack.c.l.b16 %v233
      %v362 = vpack.c.b16 %v347, %v346
      %v363 = vpack.c.b16 %v349, %v348
      %v364 = vpack.c.b16 %v351, %v350
      %v365 = vpack.c.b16 %v353, %v352
      %v366 = vpack.c.b16 %v355, %v354
      %v367 = vpack.c.b16 %v357, %v356
      %v368 = vpack.c.b16 %v359, %v358
      %v369 = vpack.c.b16 %v361, %v360
      %378 = vmatprep.subr.bf16.mxu0 0
      %379 = vmatpush1.bf16.msra.mxu0 %v362
      %380 = vmatprep.subr.bf16.mxu0 0
      %381 = vmatpush1.bf16.msra.mxu0 %v363
      %382 = vmatprep.subr.bf16.mxu0 0
      %383 = vmatpush1.bf16.msra.mxu0 %v364
      %384 = vmatprep.subr.bf16.mxu0 0
      %385 = vmatpush1.bf16.msra.mxu0 %v365
      %386 = vmatprep.subr.bf16.mxu0 0
      %387 = vmatpush1.bf16.msra.mxu0 %v366
      %388 = vmatprep.subr.bf16.mxu0 0
      %389 = vmatpush1.bf16.msra.mxu0 %v367
      %390 = vmatprep.subr.bf16.mxu0 0
      %391 = vmatpush1.bf16.msra.mxu0 %v368
      %392 = vmatprep.subr.bf16.mxu0 0
      %393 = vmatpush1.bf16.msra.mxu0 %v369
      %394 = vmatprep.subr.bf16.mxu0 0
      %395 = vmatpush1.bf16.msra.mxu0 0
      %396 = vmatprep.subr.bf16.mxu0 0
      %397 = vmatpush1.bf16.msra.mxu0 0
      %398 = vmatprep.subr.bf16.mxu0 0
      %399 = vmatpush1.bf16.msra.mxu0 0
      %400 = vmatprep.subr.bf16.mxu0 0
      %401 = vmatpush1.bf16.msra.mxu0 0
      %402 = vmatprep.subr.bf16.mxu0 0
      %403 = vmatpush1.bf16.msra.mxu0 0
      %404 = vmatprep.subr.bf16.mxu0 0
      %405 = vmatpush1.bf16.msra.mxu0 0
      %406 = vmatprep.subr.bf16.mxu0 0
      %407 = vmatpush1.bf16.msra.mxu0 0
      %408 = vmatprep.subr.bf16.mxu0 0
      %409 = vmatpush1.bf16.msra.mxu0 0
      %410 = vmatprep.mubr.bf16.mxu0 0
      %411 = vmatmul.mubr.bf16.gmra.mrb[0].mxu0 %v298
      %v412 = vpop.f32.mrb[0].mxu0
      %v413 = vadd.f32 0.0, %v412
      %v414 = vpop.f32.mrb[0].mxu0
      %v415 = vpop.f32.mrb[0].mxu0
      %v416 = vadd.f32 0.0, %v415
      %v417 = vpop.f32.mrb[0].mxu0
      %418 = vmatprep.mubr.bf16.mxu0 0
      %419 = vmatmul.mubr.bf16.gmra.mrb[0].mxu0 %v299
      %v420 = vpop.f32.mrb[0].mxu0
      %v421 = vadd.f32 0.0, %v420
      %v422 = vpop.f32.mrb[0].mxu0
      %v423 = vpop.f32.mrb[0].mxu0
      %v424 = vadd.f32 0.0, %v423
      %v425 = vpop.f32.mrb[0].mxu0
      %426 = vmatprep.mubr.bf16.mxu0 0
      %427 = vmatmul.mubr.bf16.gmra.mrb[0].mxu0 %v300
      %v428 = vpop.f32.mrb[0].mxu0
      %v429 = vadd.f32 0.0, %v428
      %v430 = vpop.f32.mrb[0].mxu0
      %v431 = vpop.f32.mrb[0].mxu0
      %v432 = vadd.f32 0.0, %v431
      %v433 = vpop.f32.mrb[0].mxu0
      %434 = vmatprep.mubr.bf16.mxu0 0
      %435 = vmatmul.mubr.bf16.gmra.mrb[0].mxu0 %v301
      %v436 = vpop.f32.mrb[0].mxu0
      %v437 = vadd.f32 0.0, %v436
      %v438 = vpop.f32.mrb[0].mxu0
      %v439 = vpop.f32.mrb[0].mxu0
      %v440 = vadd.f32 0.0, %v439
      %v441 = vpop.f32.mrb[0].mxu0
      %442 = vmatprep.mubr.bf16.mxu0 0
      %443 = vmatmul.mubr.bf16.gmra.mrb[0].mxu0 %v302
      %v444 = vpop.f32.mrb[0].mxu0
      %v445 = vadd.f32 0.0, %v444
      %v446 = vpop.f32.mrb[0].mxu0
      %v447 = vpop.f32.mrb[0].mxu0
      %v448 = vadd.f32 0.0, %v447
      %v449 = vpop.f32.mrb[0].mxu0
      %450 = vmatprep.mubr.bf16.mxu0 0
      %451 = vmatmul.mubr.bf16.gmra.mrb[0].mxu0 %v303
      %v452 = vpop.f32.mrb[0].mxu0
      %v453 = vadd.f32 0.0, %v452
      %v454 = vpop.f32.mrb[0].mxu0
      %v455 = vpop.f32.mrb[0].mxu0
      %v456 = vadd.f32 0.0, %v455
      %v457 = vpop.f32.mrb[0].mxu0
      %458 = vmatprep.mubr.bf16.mxu0 0
      %459 = vmatmul.mubr.bf16.gmra.mrb[0].mxu0 %v304
      %v460 = vpop.f32.mrb[0].mxu0
      %v461 = vadd.f32 0.0, %v460
      %v462 = vpop.f32.mrb[0].mxu0
      %v463 = vpop.f32.mrb[0].mxu0
      %v464 = vadd.f32 0.0, %v463
      %v465 = vpop.f32.mrb[0].mxu0
      %466 = vmatprep.mubr.bf16.mxu0 0
      %467 = vmatmul.mubr.bf16.gmra.mrb[0].mxu0 %v305
      %v468 = vpop.f32.mrb[0].mxu0
      %v469 = vadd.f32 0.0, %v468
      %v470 = vpop.f32.mrb[0].mxu0
      %v471 = vpop.f32.mrb[0].mxu0
      %v472 = vadd.f32 0.0, %v471
      %v473 = vpop.f32.mrb[0].mxu0
      %474 = vmatprep.mubr.bf16.mxu0 0
      %475 = vmatmul.mubr.bf16.gmra.mrb[0].mxu0 %v306
      %v476 = vpop.f32.mrb[0].mxu0
      %v477 = vadd.f32 0.0, %v476
      %v478 = vpop.f32.mrb[0].mxu0
      %v479 = vpop.f32.mrb[0].mxu0
      %v480 = vadd.f32 0.0, %v479
      %v481 = vpop.f32.mrb[0].mxu0
      %482 = vmatprep.mubr.bf16.mxu0 0
      %483 = vmatmul.mubr.bf16.gmra.mrb[0].mxu0 %v307
      %v484 = vpop.f32.mrb[0].mxu0
      %v485 = vadd.f32 0.0, %v484
      %v486 = vpop.f32.mrb[0].mxu0
      %v487 = vpop.f32.mrb[0].mxu0
      %v488 = vadd.f32 0.0, %v487
      %v489 = vpop.f32.mrb[0].mxu0
      %490 = vmatprep.mubr.bf16.mxu0 0
      %491 = vmatmul.mubr.bf16.gmra.mrb[0].mxu0 %v308
      %v492 = vpop.f32.mrb[0].mxu0
      %v493 = vadd.f32 0.0, %v492
      %v494 = vpop.f32.mrb[0].mxu0
      %v495 = vpop.f32.mrb[0].mxu0
      %v496 = vadd.f32 0.0, %v495
      %v497 = vpop.f32.mrb[0].mxu0
      %498 = vmatprep.mubr.bf16.mxu0 0
      %499 = vmatmul.mubr.bf16.gmra.mrb[0].mxu0 %v309
      %v500 = vpop.f32.mrb[0].mxu0
      %v501 = vadd.f32 0.0, %v500
      %v502 = vpop.f32.mrb[0].mxu0
      %v503 = vpop.f32.mrb[0].mxu0
      %v504 = vadd.f32 0.0, %v503
      %v505 = vpop.f32.mrb[0].mxu0
      %506 = vmatprep.mubr.bf16.mxu0 0
      %507 = vmatmul.mubr.bf16.gmra.mrb[0].mxu0 %v310
      %v508 = vpop.f32.mrb[0].mxu0
      %v509 = vadd.f32 0.0, %v508
      %v510 = vpop.f32.mrb[0].mxu0
      %v511 = vpop.f32.mrb[0].mxu0
      %v512 = vadd.f32 0.0, %v511
      %v513 = vpop.f32.mrb[0].mxu0
      %514 = vmatprep.mubr.bf16.mxu0 0
      %515 = vmatmul.mubr.bf16.gmra.mrb[0].mxu0 %v311
      %v516 = vpop.f32.mrb[0].mxu0
      %v517 = vadd.f32 0.0, %v516
      %v518 = vpop.f32.mrb[0].mxu0
      %v519 = vpop.f32.mrb[0].mxu0
      %v520 = vadd.f32 0.0, %v519
      %v521 = vpop.f32.mrb[0].mxu0
      %522 = vmatprep.mubr.bf16.mxu0 0
      %523 = vmatmul.mubr.bf16.gmra.mrb[0].mxu0 %v312
      %v524 = vpop.f32.mrb[0].mxu0
      %v525 = vadd.f32 0.0, %v524
      %v526 = vpop.f32.mrb[0].mxu0
      %v527 = vpop.f32.mrb[0].mxu0
      %v528 = vadd.f32 0.0, %v527
      %v529 = vpop.f32.mrb[0].mxu0
      %530 = vmatprep.mubr.bf16.mxu0 0
      %531 = vmatmul.mubr.bf16.gmra.mrb[0].mxu0 %v313
      %v532 = vpop.f32.mrb[0].mxu0
      %v533 = vadd.f32 0.0, %v532
      %v534 = vpop.f32.mrb[0].mxu0
      %v535 = vpop.f32.mrb[0].mxu0
      %v536 = vadd.f32 0.0, %v535
      %v537 = vpop.f32.mrb[0].mxu0
      %538 = vdwg.mxu0
      %v539 = vadd.f32 %v413, %v416
      %v540 = vadd.f32 %v539, %v421
      %v541 = vadd.f32 %v540, %v424
      %v542 = vadd.f32 %v541, %v429
      %v543 = vadd.f32 %v542, %v432
      %v544 = vadd.f32 %v543, %v437
      %v545 = vadd.f32 %v544, %v440
      %v546 = vadd.f32 %v545, %v445
      %v547 = vadd.f32 %v546, %v448
      %v548 = vadd.f32 %v547, %v453
      %v549 = vadd.f32 %v548, %v456
      %v550 = vadd.f32 %v549, %v461
      %v551 = vadd.f32 %v550, %v464
      %v552 = vadd.f32 %v551, %v469
      %v553 = vadd.f32 %v552, %v472
      %v554 = vadd.f32 %v553, %v477
      %v555 = vadd.f32 %v554, %v480
      %v556 = vadd.f32 %v555, %v485
      %v557 = vadd.f32 %v556, %v488
      %v558 = vadd.f32 %v557, %v493
      %v559 = vadd.f32 %v558, %v496
      %v560 = vadd.f32 %v559, %v501
      %v561 = vadd.f32 %v560, %v504
      %v562 = vadd.f32 %v561, %v509
      %v563 = vadd.f32 %v562, %v512
      %v564 = vadd.f32 %v563, %v517
      %v565 = vadd.f32 %v564, %v520
      %v566 = vadd.f32 %v565, %v525
      %v567 = vadd.f32 %v566, %v528
      %v568 = vadd.f32 %v567, %v533
      %v569 = vadd.f32 %v568, %v536
      %v570 = vrot.slane %v569, 4
      %v571 = vadd.f32 %v569, %v570
      %v572 = vrot.slane %v571, 2
      %v573 = vadd.f32 %v571, %v572
      %v574 = vrot.slane %v573, 1
      %v575 = vadd.f32 %v573, %v574
      %v576 = vmul.f32 %v413, %v413
      %v577 = vmul.f32 %v416, %v416
      %v578 = vmul.f32 %v421, %v421
      %v579 = vmul.f32 %v424, %v424
      %v580 = vmul.f32 %v429, %v429
      %v581 = vmul.f32 %v432, %v432
      %v582 = vmul.f32 %v437, %v437
      %v583 = vmul.f32 %v440, %v440
      %v584 = vmul.f32 %v445, %v445
      %v585 = vmul.f32 %v448, %v448
      %v586 = vmul.f32 %v453, %v453
      %v587 = vmul.f32 %v456, %v456
      %v588 = vmul.f32 %v461, %v461
      %v589 = vmul.f32 %v464, %v464
      %v590 = vmul.f32 %v469, %v469
      %v591 = vmul.f32 %v472, %v472
      %v592 = vmul.f32 %v477, %v477
      %v593 = vmul.f32 %v480, %v480
      %v594 = vmul.f32 %v485, %v485
      %v595 = vmul.f32 %v488, %v488
      %v596 = vmul.f32 %v493, %v493
      %v597 = vmul.f32 %v496, %v496
      %v598 = vmul.f32 %v501, %v501
      %v599 = vmul.f32 %v504, %v504
      %v600 = vmul.f32 %v509, %v509
      %v601 = vmul.f32 %v512, %v512
      %v602 = vmul.f32 %v517, %v517
      %v603 = vmul.f32 %v520, %v520
      %v604 = vmul.f32 %v525, %v525
      %v605 = vmul.f32 %v528, %v528
      %v606 = vmul.f32 %v533, %v533
      %v607 = vmul.f32 %v536, %v536
      %v608 = vadd.f32 %v576, %v577
      %v609 = vadd.f32 %v608, %v578
      %v610 = vadd.f32 %v609, %v579
      %v611 = vadd.f32 %v610, %v580
      %v612 = vadd.f32 %v611, %v581
      %v613 = vadd.f32 %v612, %v582
      %v614 = vadd.f32 %v613, %v583
      %v615 = vadd.f32 %v614, %v584
      %v616 = vadd.f32 %v615, %v585
      %v617 = vadd.f32 %v616, %v586
      %v618 = vadd.f32 %v617, %v587
      %v619 = vadd.f32 %v618, %v588
      %v620 = vadd.f32 %v619, %v589
      %v621 = vadd.f32 %v620, %v590
      %v622 = vadd.f32 %v621, %v591
      %v623 = vadd.f32 %v622, %v592
      %v624 = vadd.f32 %v623, %v593
      %v625 = vadd.f32 %v624, %v594
      %v626 = vadd.f32 %v625, %v595
      %v627 = vadd.f32 %v626, %v596
      %v628 = vadd.f32 %v627, %v597
      %v629 = vadd.f32 %v628, %v598
      %v630 = vadd.f32 %v629, %v599
      %v631 = vadd.f32 %v630, %v600
      %v632 = vadd.f32 %v631, %v601
      %v633 = vadd.f32 %v632, %v602
      %v634 = vadd.f32 %v633, %v603
      %v635 = vadd.f32 %v634, %v604
      %v636 = vadd.f32 %v635, %v605
      %v637 = vadd.f32 %v636, %v606
      %v638 = vadd.f32 %v637, %v607
      %v639 = vrot.slane %v638, 4
      %v640 = vadd.f32 %v638, %v639
      %v641 = vrot.slane %v640, 2
      %v642 = vadd.f32 %v640, %v641
      %v643 = vrot.slane %v642, 1
      %v644 = vadd.f32 %v642, %v643
      %v645 = vlaneseq
      %v646 = vshrl.u32 %v645, 7
      %vm647 = vcmp.eq.s32.totalorder %v646, 0
      %vm648 = vcmp.eq.s32.totalorder %v646, 1
      %v649 = vsel %vm648, %v644, 0.0
      %v650 = vsel %vm647, %v575, %v649
      %651 = vst [vmem:[%s184] sm:$0xff] %v650
      %v652 = vpack.c.bf16 %v416, %v413
      %v653 = vpack.c.bf16 %v424, %v421
      %v654 = vpack.c.bf16 %v432, %v429
      %v655 = vpack.c.bf16 %v440, %v437
      %v656 = vpack.c.bf16 %v448, %v445
      %v657 = vpack.c.bf16 %v456, %v453
      %v658 = vpack.c.bf16 %v464, %v461
      %v659 = vpack.c.bf16 %v472, %v469
      %v660 = vpack.c.bf16 %v480, %v477
      %v661 = vpack.c.bf16 %v488, %v485
      %v662 = vpack.c.bf16 %v496, %v493
      %v663 = vpack.c.bf16 %v504, %v501
      %v664 = vpack.c.bf16 %v512, %v509
      %v665 = vpack.c.bf16 %v520, %v517
      %v666 = vpack.c.bf16 %v528, %v525
      %v667 = vpack.c.bf16 %v536, %v533
      %v684 = vunpack.c.l.b16 %v652
      %v685 = vunpack.c.h.b16 %v652
      %v686 = vunpack.c.l.b16 %v653
      %v687 = vunpack.c.h.b16 %v653
      %v688 = vunpack.c.l.b16 %v654
      %v689 = vunpack.c.h.b16 %v654
      %v690 = vunpack.c.l.b16 %v655
      %v691 = vunpack.c.h.b16 %v655
      %v692 = vunpack.c.l.b16 %v656
      %v693 = vunpack.c.h.b16 %v656
      %v694 = vunpack.c.l.b16 %v657
      %v695 = vunpack.c.h.b16 %v657
      %v696 = vunpack.c.l.b16 %v658
      %v697 = vunpack.c.h.b16 %v658
      %v698 = vunpack.c.l.b16 %v659
      %v699 = vunpack.c.h.b16 %v659
      %v700 = vunpack.c.l.b16 %v660
      %v701 = vunpack.c.h.b16 %v660
      %v702 = vunpack.c.l.b16 %v661
      %v703 = vunpack.c.h.b16 %v661
      %v704 = vunpack.c.l.b16 %v662
      %v705 = vunpack.c.h.b16 %v662
      %v706 = vunpack.c.l.b16 %v663
      %v707 = vunpack.c.h.b16 %v663
      %v708 = vunpack.c.l.b16 %v664
      %v709 = vunpack.c.h.b16 %v664
      %v710 = vunpack.c.l.b16 %v665
      %v711 = vunpack.c.h.b16 %v665
      %v712 = vunpack.c.l.b16 %v666
      %v713 = vunpack.c.h.b16 %v666
      %v714 = vunpack.c.l.b16 %v667
      %v715 = vunpack.c.h.b16 %v667
      %v716 = vpack.c.b16 %v684, %v684
      %v717 = vpack.c.b16 %v685, %v685
      %v718 = vpack.c.b16 %v686, %v686
      %v719 = vpack.c.b16 %v687, %v687
      %v720 = vpack.c.b16 %v688, %v688
      %v721 = vpack.c.b16 %v689, %v689
      %v722 = vpack.c.b16 %v690, %v690
      %v723 = vpack.c.b16 %v691, %v691
      %v724 = vpack.c.b16 %v692, %v692
      %v725 = vpack.c.b16 %v693, %v693
      %v726 = vpack.c.b16 %v694, %v694
      %v727 = vpack.c.b16 %v695, %v695
      %v728 = vpack.c.b16 %v696, %v696
      %v729 = vpack.c.b16 %v697, %v697
      %v730 = vpack.c.b16 %v698, %v698
      %v731 = vpack.c.b16 %v699, %v699
      %v732 = vpack.c.b16 %v700, %v700
      %v733 = vpack.c.b16 %v701, %v701
      %v734 = vpack.c.b16 %v702, %v702
      %v735 = vpack.c.b16 %v703, %v703
      %v736 = vpack.c.b16 %v704, %v704
      %v737 = vpack.c.b16 %v705, %v705
      %v738 = vpack.c.b16 %v706, %v706
      %v739 = vpack.c.b16 %v707, %v707
      %v740 = vpack.c.b16 %v708, %v708
      %v741 = vpack.c.b16 %v709, %v709
      %v742 = vpack.c.b16 %v710, %v710
      %v743 = vpack.c.b16 %v711, %v711
      %v744 = vpack.c.b16 %v712, %v712
      %v745 = vpack.c.b16 %v713, %v713
      %v746 = vpack.c.b16 %v714, %v714
      %v747 = vpack.c.b16 %v715, %v715
      %780 = vst [vmem:[%s179] sm:$0xf] %v716
      %781 = vst [vmem:[%s179 + $0x4] sm:$0xf] %v717
      %782 = vst [vmem:[%s179 + $0x8] sm:$0xf] %v718
      %783 = vst [vmem:[%s179 + $0xc] sm:$0xf] %v719
      %784 = vst [vmem:[%s179 + $0x10] sm:$0xf] %v720
      %785 = vst [vmem:[%s179 + $0x14] sm:$0xf] %v721
      %786 = vst [vmem:[%s179 + $0x18] sm:$0xf] %v722
      %787 = vst [vmem:[%s179 + $0x1c] sm:$0xf] %v723
      %788 = vst [vmem:[%s179 + $0x20] sm:$0xf] %v724
      %789 = vst [vmem:[%s179 + $0x24] sm:$0xf] %v725
      %790 = vst [vmem:[%s179 + $0x28] sm:$0xf] %v726
      %791 = vst [vmem:[%s179 + $0x2c] sm:$0xf] %v727
      %792 = vst [vmem:[%s179 + $0x30] sm:$0xf] %v728
      %793 = vst [vmem:[%s179 + $0x34] sm:$0xf] %v729
      %794 = vst [vmem:[%s179 + $0x38] sm:$0xf] %v730
      %795 = vst [vmem:[%s179 + $0x3c] sm:$0xf] %v731
      %796 = vst [vmem:[%s179 + $0x40] sm:$0xf] %v732
      %797 = vst [vmem:[%s179 + $0x44] sm:$0xf] %v733
      %798 = vst [vmem:[%s179 + $0x48] sm:$0xf] %v734
      %799 = vst [vmem:[%s179 + $0x4c] sm:$0xf] %v735
      %800 = vst [vmem:[%s179 + $0x50] sm:$0xf] %v736
      %801 = vst [vmem:[%s179 + $0x54] sm:$0xf] %v737
      %802 = vst [vmem:[%s179 + $0x58] sm:$0xf] %v738
      %803 = vst [vmem:[%s179 + $0x5c] sm:$0xf] %v739
      %804 = vst [vmem:[%s179 + $0x60] sm:$0xf] %v740
      %805 = vst [vmem:[%s179 + $0x64] sm:$0xf] %v741
      %806 = vst [vmem:[%s179 + $0x68] sm:$0xf] %v742
      %807 = vst [vmem:[%s179 + $0x6c] sm:$0xf] %v743
      %808 = vst [vmem:[%s179 + $0x70] sm:$0xf] %v744
      %809 = vst [vmem:[%s179 + $0x74] sm:$0xf] %v745
      %810 = vst [vmem:[%s179 + $0x78] sm:$0xf] %v746
      %811 = vst [vmem:[%s179 + $0x7c] sm:$0xf] %v747
      %s812 = smul.u32 32, %s15
      %p813 = scmp.lt.s32.totalorder %s812, 63
      %s814 = scalar_select %p813, %s812, 63
      %s815 = smul.addr %s814, 4
      %s816 = scalar_lea.vmem %s2, %s815
      %p817 = scmp.lt.s32.totalorder %s15, 1
      %s818 = scalar_select %p817, %s15, 1
      %s819 = smul.addr %s818, 8
      %s820 = scalar_lea.vmem %s3, %s819
      // Predicated region
      $region29: #{discriminator_forward.8} parent=27 // pred_check
        %p821 = pneg %p80
      $region30: #{discriminator_forward.8} parent=27 // pred_check_branch
        %823 = sbr.rel (%p821) target = $region32
      $region31: #{discriminator_forward.8} parent=27 // pred_region
        %s824 = smul.u32 32, %s15
      $region32: #{discriminator_forward.8} parent=27 // pred_fallthru
        _
      // Predicated region
      $region33: #{discriminator_forward.8} parent=27 // pred_check
        %p825 = pneg %p106
      $region34: #{discriminator_forward.8} parent=27 // pred_check_branch
        %827 = sbr.rel (%p825) target = $region36
      $region35: #{discriminator_forward.8} parent=27 // pred_region
        _
      $region36: #{discriminator_forward.8} parent=27 // pred_fallthru
        _
    $region28: #{discriminator_forward.8} parent=5 // pred_fallthru
      _
    %p828 = scmp.le.s32.totalorder 2, %s10
    // Predicated region
    $region37: #{discriminator_forward.8} parent=5 // pred_check
      %p829 = pneg %p828
    $region38: #{discriminator_forward.8} parent=5 // pred_check_branch
      %831 = sbr.rel (%p829) target = $region40
    $region39: #{discriminator_forward.8} parent=5 // pred_region
      %s832 = ssub.s32 %s10, 2
      // Predicated region
      $region41: #{discriminator_forward.8} parent=39 // pred_check
        %p833 = pneg %p86
      $region42: #{discriminator_forward.8} parent=39 // pred_check_branch
        %835 = sbr.rel (%p833) target = $region44
      $region43: #{discriminator_forward.8} parent=39 // pred_region
        %s836 = smul.u32 32, %s16
        %p837 = scmp.lt.s32.totalorder %s836, 63
        %s838 = scalar_select %p837, %s836, 63
        %s839 = smul.addr %s838, 4
        %s840 = scalar_lea.vmem %s2, %s839
      $region44: #{discriminator_forward.8} parent=39 // pred_fallthru
        _
      // Predicated region
      $region45: #{discriminator_forward.8} parent=39 // pred_check
        %p841 = pneg %p112
      $region46: #{discriminator_forward.8} parent=39 // pred_check_branch
        %843 = sbr.rel (%p841) target = $region48
      $region47: #{discriminator_forward.8} parent=39 // pred_region
        %p844 = scmp.lt.s32.totalorder %s16, 1
        %s845 = scalar_select %p844, %s16, 1
        %s846 = smul.addr %s845, 8
        %s847 = scalar_lea.vmem %s3, %s846
      $region48: #{discriminator_forward.8} parent=39 // pred_fallthru
        _
    $region40: #{discriminator_forward.8} parent=5 // pred_fallthru
      _
  $region6: #{discriminator_forward.8} parent=0 // loop_footer
    %s14 = sadd.s32 1, %s10
  $region7: #{discriminator_forward.8} parent=0 // loop_footer_branch
    %9 = sbr.rel target = $region3
  $region8: #{discriminator_forward.8} parent=0 // loop_exit
    _

// kernel: discriminator_forward.9
$region0: #{discriminator_forward.9}
  #allocation0 [shape = 'u32[]', space=smem, size = 0x4, offset = 0x4, fixed_abs, tag = 'smem constant byte address 0x4 - core index']
  #allocation1 [shape = 'u32[144,128]{1,0:T(1,128)}', space=vmem, size = 0x12000, scoped, tag = 'internal scratch']
  %s0 = inlined_call_operand.vmem [shape: bf16[512,128], index: 0, kind: input, shape index: {}]
  %s1 = inlined_call_operand.vmem [shape: f32[1,128], index: 1, kind: input, shape index: {}]
  %s2 = inlined_call_operand.vmem [shape: f32[1,128], index: 2, kind: input, shape index: {}]
  %s3 = inlined_call_operand.vmem [shape: bf16[512,128], index: 3, kind: output, shape index: {}]
  %s4 = sld [smem:[#allocation0]]
  $region45: #{discriminator_forward.9} parent=0
    _
  %s6 = ssub.s32 1, %s4
  %s7 = scalar_select 0, %s6, %s4
  loop: start=0, step=1, limit=4
  $region2: #{discriminator_forward.9} parent=0 // loop_pre_header
    _
  $region3: #{discriminator_forward.9} parent=0 // loop_header
    %s9 = sphi 0, %s13
    %p10 = scmp.ge.s32.totalorder %s9, 4
    %s19 = sphi 0, %s21
    %s22 = sphi 0, %s19
    %s23 = sphi 0, %s22
    %s39 = sphi 0, %s23
    %s43 = sphi 0, %s43
    %s45 = sphi 0, %s43
    %s46 = sphi 0, %s45
    %s60 = sphi 0, %s46
    %s64 = sphi 0, %s64
    %s66 = sphi 0, %s64
    %s67 = sphi 0, %s66
    %s81 = sphi 0, %s67
    %s87 = sphi 0, %s89
    %s90 = sphi 0, %s87
    %s91 = sphi 0, %s90
    %s107 = sphi 0, %s91
  $region4: #{discriminator_forward.9} parent=0 // loop_header_branch
    %12 = sbr.rel (%p10) target = $region8
  $region5: #{discriminator_forward.9} parent=0 // loop_body
    %s14 = ssub.s32 %s9, 1
    %s15 = ssub.s32 %s9, 2
    %s16 = sadd.s32 %s9, 1
    %s17 = ssub.s32 %s9, %s16
    %p18 = scmp.eq.s32.totalorder %s17, 0
    %s20 = sadd.s32 %s19, 1
    %s21 = scalar_select %p18, %s19, %s20
    %p24 = pneg %p18
    %p25 = scmp.eq.s32.totalorder %s9, 1
    %p26 = por %p24, %p25
    %p27 = scmp.ne.s32.totalorder %s19, %s22
    %p28 = scmp.eq.s32.totalorder %s9, 0
    %p29 = por %p27, %p28
    %p30 = scmp.ne.s32.totalorder %s19, %s22
    %p31 = scmp.eq.s32.totalorder %s14, 1
    %p32 = por %p30, %p31
    %p33 = scmp.ne.s32.totalorder %s22, %s23
    %p34 = scmp.eq.s32.totalorder %s14, 0
    %p35 = por %p33, %p34
    %p36 = scmp.ne.s32.totalorder %s22, %s23
    %p37 = scmp.eq.s32.totalorder %s15, 1
    %p38 = por %p36, %p37
    %p40 = scmp.ne.s32.totalorder %s23, %s39
    %p41 = scmp.eq.s32.totalorder %s15, 0
    %p42 = por %p40, %p41
    %s44 = sadd.s32 %s43, 1
    %p47 = scmp.eq.s32.totalorder %s9, 1
    %p48 = scmp.ne.s32.totalorder %s43, %s45
    %p49 = scmp.eq.s32.totalorder %s9, 0
    %p50 = por %p48, %p49
    %p51 = scmp.ne.s32.totalorder %s43, %s45
    %p52 = scmp.eq.s32.totalorder %s14, 1
    %p53 = por %p51, %p52
    %p54 = scmp.ne.s32.totalorder %s45, %s46
    %p55 = scmp.eq.s32.totalorder %s14, 0
    %p56 = por %p54, %p55
    %p57 = scmp.ne.s32.totalorder %s45, %s46
    %p58 = scmp.eq.s32.totalorder %s15, 1
    %p59 = por %p57, %p58
    %p61 = scmp.ne.s32.totalorder %s46, %s60
    %p62 = scmp.eq.s32.totalorder %s15, 0
    %p63 = por %p61, %p62
    %s65 = sadd.s32 %s64, 1
    %p68 = scmp.eq.s32.totalorder %s9, 1
    %p69 = scmp.ne.s32.totalorder %s64, %s66
    %p70 = scmp.eq.s32.totalorder %s9, 0
    %p71 = por %p69, %p70
    %p72 = scmp.ne.s32.totalorder %s64, %s66
    %p73 = scmp.eq.s32.totalorder %s14, 1
    %p74 = por %p72, %p73
    %p75 = scmp.ne.s32.totalorder %s66, %s67
    %p76 = scmp.eq.s32.totalorder %s14, 0
    %p77 = por %p75, %p76
    %p78 = scmp.ne.s32.totalorder %s66, %s67
    %p79 = scmp.eq.s32.totalorder %s15, 1
    %p80 = por %p78, %p79
    %p82 = scmp.ne.s32.totalorder %s67, %s81
    %p83 = scmp.eq.s32.totalorder %s15, 0
    %p84 = por %p82, %p83
    %s85 = ssub.s32 %s9, %s16
    %p86 = scmp.eq.s32.totalorder %s85, 0
    %s88 = sadd.s32 %s87, 1
    %s89 = scalar_select %p86, %s87, %s88
    %p92 = pneg %p86
    %p93 = scmp.eq.s32.totalorder %s9, 1
    %p94 = por %p92, %p93
    %p95 = scmp.ne.s32.totalorder %s87, %s90
    %p96 = scmp.eq.s32.totalorder %s9, 0
    %p97 = por %p95, %p96
    %p98 = scmp.ne.s32.totalorder %s87, %s90
    %p99 = scmp.eq.s32.totalorder %s14, 1
    %p100 = por %p98, %p99
    %p101 = scmp.ne.s32.totalorder %s90, %s91
    %p102 = scmp.eq.s32.totalorder %s14, 0
    %p103 = por %p101, %p102
    %p104 = scmp.ne.s32.totalorder %s90, %s91
    %p105 = scmp.eq.s32.totalorder %s15, 1
    %p106 = por %p104, %p105
    %p108 = scmp.ne.s32.totalorder %s91, %s107
    %p109 = scmp.eq.s32.totalorder %s15, 0
    %p110 = por %p108, %p109
    %p111 = scmp.le.s32.totalorder 1, %s9
    %p112 = scmp.lt.s32.totalorder %s9, 3
    %p113 = pnand %p111, %p112
    %p114 = pneg %p113
    // Predicated region
    $region9: #{discriminator_forward.9} parent=5 // pred_check
      _
    $region10: #{discriminator_forward.9} parent=5 // pred_check_branch
      %116 = sbr.rel (%p113) target = $region12
    $region11: #{discriminator_forward.9} parent=5 // pred_region
      %s117 = ssub.s32 %s9, 1
      // Predicated region
      $region13: #{discriminator_forward.9} parent=11 // pred_check
        %p118 = pneg %p56
      $region14: #{discriminator_forward.9} parent=11 // pred_check_branch
        %120 = sbr.rel (%p118) target = $region16
      $region15: #{discriminator_forward.9} parent=11 // pred_region
        _
      $region16: #{discriminator_forward.9} parent=11 // pred_fallthru
        _
      // Predicated region
      $region17: #{discriminator_forward.9} parent=11 // pred_check
        %p121 = pneg %p77
      $region18: #{discriminator_forward.9} parent=11 // pred_check_branch
        %123 = sbr.rel (%p121) target = $region20
      $region19: #{discriminator_forward.9} parent=11 // pred_region
        _
      $region20: #{discriminator_forward.9} parent=11 // pred_fallthru
        _
    $region12: #{discriminator_forward.9} parent=5 // pred_fallthru
      _
    %p124 = scmp.lt.s32.totalorder %s9, 2
    // Predicated region
    $region21: #{discriminator_forward.9} parent=5 // pred_check
      %p125 = pneg %p124
    $region22: #{discriminator_forward.9} parent=5 // pred_check_branch
      %127 = sbr.rel (%p125) target = $region24
    $region23: #{discriminator_forward.9} parent=5 // pred_region
      // Predicated region
      $region25: #{discriminator_forward.9} parent=23 // pred_check
        %p128 = pneg %p29
      $region26: #{discriminator_forward.9} parent=23 // pred_check_branch
        %130 = sbr.rel (%p128) target = $region28
      $region27: #{discriminator_forward.9} parent=23 // pred_region
        %s131 = smul.u32 32, %s9
        %p132 = scmp.lt.s32.totalorder %s131, 63
        %s133 = scalar_select %p132, %s131, 63
        %s134 = smul.addr %s133, 4
        %s135 = scalar_lea.vmem %s0, %s134
        %s136 = smul.u32 32, %s9
      $region28: #{discriminator_forward.9} parent=23 // pred_fallthru
        _
    $region24: #{discriminator_forward.9} parent=5 // pred_fallthru
      _
    %p137 = scmp.le.s32.totalorder 1, %s9
    %p138 = scmp.lt.s32.totalorder %s9, 3
    %p139 = pnand %p137, %p138
    %p140 = pneg %p139
    // Predicated region
    $region29: #{discriminator_forward.9} parent=5 // pred_check
      _
    $region30: #{discriminator_forward.9} parent=5 // pred_check_branch
      %142 = sbr.rel (%p139) target = $region32
    $region31: #{discriminator_forward.9} parent=5 // pred_region
      %s143 = ssub.s32 %s9, 1
      %s144 = smul.u32 32, %s14
      %p145 = scmp.lt.s32.totalorder %s144, 63
      %s146 = scalar_select %p145, %s144, 63
      %s147 = smul.addr %s146, 4
      %s148 = scalar_lea.vmem %s0, %s147
      %p149 = pneg %p35
      %p150 = pneg %p32
      %p151 = pneg %p56
      %p152 = pneg %p53
      %p153 = pneg %p77
      %p154 = pneg %p74
      %p155 = pneg %p103
      %p156 = pneg %p100
      %s157 = smul.u32 32, %s14
      %p158 = scmp.lt.s32.totalorder %s157, 63
      %s159 = scalar_select %p158, %s157, 63
      %s160 = smul.addr %s159, 4
      %s161 = scalar_lea.vmem %s3, %s160
      %s162 = smul.u32 32, %s14
      %p163 = scmp.lt.s32.totalorder %s162, 63
      %s164 = scalar_select %p163, %s162, 63
      %s165 = smul.addr %s164, 4
      %s166 = scalar_lea.vmem %s0, %s165
      %s167 = smul.u32 32, %s14
      %s168 = smul.u32 32, %s14
      %p169 = scmp.lt.s32.totalorder %s168, 63
      %s170 = scalar_select %p169, %s168, 63
      %s171 = smul.addr %s170, 4
      %s172 = scalar_lea.vmem %s3, %s171
      %s173 = smul.u32 32, %s14
      %v174 = vld [vmem:[%s166] sm:$0xf]
      %v175 = vld [vmem:[%s166 + $0x4] sm:$0xf]
      %v176 = vld [vmem:[%s166 + $0x8] sm:$0xf]
      %v177 = vld [vmem:[%s166 + $0xc] sm:$0xf]
      %v178 = vld [vmem:[%s166 + $0x10] sm:$0xf]
      %v179 = vld [vmem:[%s166 + $0x14] sm:$0xf]
      %v180 = vld [vmem:[%s166 + $0x18] sm:$0xf]
      %v181 = vld [vmem:[%s166 + $0x1c] sm:$0xf]
      %v182 = vld [vmem:[%s166 + $0x20] sm:$0xf]
      %v183 = vld [vmem:[%s166 + $0x24] sm:$0xf]
      %v184 = vld [vmem:[%s166 + $0x28] sm:$0xf]
      %v185 = vld [vmem:[%s166 + $0x2c] sm:$0xf]
      %v186 = vld [vmem:[%s166 + $0x30] sm:$0xf]
      %v187 = vld [vmem:[%s166 + $0x34] sm:$0xf]
      %v188 = vld [vmem:[%s166 + $0x38] sm:$0xf]
      %v189 = vld [vmem:[%s166 + $0x3c] sm:$0xf]
      %v190 = vld [vmem:[%s166 + $0x40] sm:$0xf]
      %v191 = vld [vmem:[%s166 + $0x44] sm:$0xf]
      %v192 = vld [vmem:[%s166 + $0x48] sm:$0xf]
      %v193 = vld [vmem:[%s166 + $0x4c] sm:$0xf]
      %v194 = vld [vmem:[%s166 + $0x50] sm:$0xf]
      %v195 = vld [vmem:[%s166 + $0x54] sm:$0xf]
      %v196 = vld [vmem:[%s166 + $0x58] sm:$0xf]
      %v197 = vld [vmem:[%s166 + $0x5c] sm:$0xf]
      %v198 = vld [vmem:[%s166 + $0x60] sm:$0xf]
      %v199 = vld [vmem:[%s166 + $0x64] sm:$0xf]
      %v200 = vld [vmem:[%s166 + $0x68] sm:$0xf]
      %v201 = vld [vmem:[%s166 + $0x6c] sm:$0xf]
      %v202 = vld [vmem:[%s166 + $0x70] sm:$0xf]
      %v203 = vld [vmem:[%s166 + $0x74] sm:$0xf]
      %v204 = vld [vmem:[%s166 + $0x78] sm:$0xf]
      %v205 = vld [vmem:[%s166 + $0x7c] sm:$0xf]
      %v206 = vunpack.c.l.bf16 %v174
      %v207 = vunpack.c.l.bf16 %v175
      %v208 = vunpack.c.l.bf16 %v176
      %v209 = vunpack.c.l.bf16 %v177
      %v210 = vunpack.c.l.bf16 %v178
      %v211 = vunpack.c.l.bf16 %v179
      %v212 = vunpack.c.l.bf16 %v180
      %v213 = vunpack.c.l.bf16 %v181
      %v214 = vunpack.c.l.bf16 %v182
      %v215 = vunpack.c.l.bf16 %v183
      %v216 = vunpack.c.l.bf16 %v184
      %v217 = vunpack.c.l.bf16 %v185
      %v218 = vunpack.c.l.bf16 %v186
      %v219 = vunpack.c.l.bf16 %v187
      %v220 = vunpack.c.l.bf16 %v188
      %v221 = vunpack.c.l.bf16 %v189
      %v222 = vunpack.c.l.bf16 %v190
      %v223 = vunpack.c.l.bf16 %v191
      %v224 = vunpack.c.l.bf16 %v192
      %v225 = vunpack.c.l.bf16 %v193
      %v226 = vunpack.c.l.bf16 %v194
      %v227 = vunpack.c.l.bf16 %v195
      %v228 = vunpack.c.l.bf16 %v196
      %v229 = vunpack.c.l.bf16 %v197
      %v230 = vunpack.c.l.bf16 %v198
      %v231 = vunpack.c.l.bf16 %v199
      %v232 = vunpack.c.l.bf16 %v200
      %v233 = vunpack.c.l.bf16 %v201
      %v234 = vunpack.c.l.bf16 %v202
      %v235 = vunpack.c.l.bf16 %v203
      %v236 = vunpack.c.l.bf16 %v204
      %v237 = vunpack.c.l.bf16 %v205
      %v238 = vld [vmem:[%s1] sm:$0x1]
      %v240 = vlaneseq
      %v241 = vshrl.u32 %v240, 7
      %v242 = vsub.s32 0, %v241
      %v243 = vrot.slane %v238, %v242
      %v245 = vmul.f32 %v206, %v243
      %v246 = vmul.f32 %v207, %v243
      %v247 = vmul.f32 %v208, %v243
      %v248 = vmul.f32 %v209, %v243
      %v249 = vmul.f32 %v210, %v243
      %v250 = vmul.f32 %v211, %v243
      %v251 = vmul.f32 %v212, %v243
      %v252 = vmul.f32 %v213, %v243
      %v253 = vmul.f32 %v214, %v243
      %v254 = vmul.f32 %v215, %v243
      %v255 = vmul.f32 %v216, %v243
      %v256 = vmul.f32 %v217, %v243
      %v257 = vmul.f32 %v218, %v243
      %v258 = vmul.f32 %v219, %v243
      %v259 = vmul.f32 %v220, %v243
      %v260 = vmul.f32 %v221, %v243
      %v261 = vmul.f32 %v222, %v243
      %v262 = vmul.f32 %v223, %v243
      %v263 = vmul.f32 %v224, %v243
      %v264 = vmul.f32 %v225, %v243
      %v265 = vmul.f32 %v226, %v243
      %v266 = vmul.f32 %v227, %v243
      %v267 = vmul.f32 %v228, %v243
      %v268 = vmul.f32 %v229, %v243
      %v269 = vmul.f32 %v230, %v243
      %v270 = vmul.f32 %v231, %v243
      %v271 = vmul.f32 %v232, %v243
      %v272 = vmul.f32 %v233, %v243
      %v273 = vmul.f32 %v234, %v243
      %v274 = vmul.f32 %v235, %v243
      %v275 = vmul.f32 %v236, %v243
      %v276 = vmul.f32 %v237, %v243
      %v277 = vld [vmem:[%s2] sm:$0x1]
      %v279 = vlaneseq
      %v280 = vshrl.u32 %v279, 7
      %v281 = vsub.s32 0, %v280
      %v282 = vrot.slane %v277, %v281
      %v284 = vadd.f32 %v245, %v282
      %v285 = vadd.f32 %v246, %v282
      %v286 = vadd.f32 %v247, %v282
      %v287 = vadd.f32 %v248, %v282
      %v288 = vadd.f32 %v249, %v282
      %v289 = vadd.f32 %v250, %v282
      %v290 = vadd.f32 %v251, %v282
      %v291 = vadd.f32 %v252, %v282
      %v292 = vadd.f32 %v253, %v282
      %v293 = vadd.f32 %v254, %v282
      %v294 = vadd.f32 %v255, %v282
      %v295 = vadd.f32 %v256, %v282
      %v296 = vadd.f32 %v257, %v282
      %v297 = vadd.f32 %v258, %v282
      %v298 = vadd.f32 %v259, %v282
      %v299 = vadd.f32 %v260, %v282
      %v300 = vadd.f32 %v261, %v282
      %v301 = vadd.f32 %v262, %v282
      %v302 = vadd.f32 %v263, %v282
      %v303 = vadd.f32 %v264, %v282
      %v304 = vadd.f32 %v265, %v282
      %v305 = vadd.f32 %v266, %v282
      %v306 = vadd.f32 %v267, %v282
      %v307 = vadd.f32 %v268, %v282
      %v308 = vadd.f32 %v269, %v282
      %v309 = vadd.f32 %v270, %v282
      %v310 = vadd.f32 %v271, %v282
      %v311 = vadd.f32 %v272, %v282
      %v312 = vadd.f32 %v273, %v282
      %v313 = vadd.f32 %v274, %v282
      %v314 = vadd.f32 %v275, %v282
      %v315 = vadd.f32 %v276, %v282
      %vm316 = vcmp.gt.f32.partialorder %v284, 0.0
      %vm317 = vcmp.gt.f32.partialorder %v285, 0.0
      %vm318 = vcmp.gt.f32.partialorder %v286, 0.0
      %vm319 = vcmp.gt.f32.partialorder %v287, 0.0
      %vm320 = vcmp.gt.f32.partialorder %v288, 0.0
      %vm321 = vcmp.gt.f32.partialorder %v289, 0.0
      %vm322 = vcmp.gt.f32.partialorder %v290, 0.0
      %vm323 = vcmp.gt.f32.partialorder %v291, 0.0
      %vm324 = vcmp.gt.f32.partialorder %v292, 0.0
      %vm325 = vcmp.gt.f32.partialorder %v293, 0.0
      %vm326 = vcmp.gt.f32.partialorder %v294, 0.0
      %vm327 = vcmp.gt.f32.partialorder %v295, 0.0
      %vm328 = vcmp.gt.f32.partialorder %v296, 0.0
      %vm329 = vcmp.gt.f32.partialorder %v297, 0.0
      %vm330 = vcmp.gt.f32.partialorder %v298, 0.0
      %vm331 = vcmp.gt.f32.partialorder %v299, 0.0
      %vm332 = vcmp.gt.f32.partialorder %v300, 0.0
      %vm333 = vcmp.gt.f32.partialorder %v301, 0.0
      %vm334 = vcmp.gt.f32.partialorder %v302, 0.0
      %vm335 = vcmp.gt.f32.partialorder %v303, 0.0
      %vm336 = vcmp.gt.f32.partialorder %v304, 0.0
      %vm337 = vcmp.gt.f32.partialorder %v305, 0.0
      %vm338 = vcmp.gt.f32.partialorder %v306, 0.0
      %vm339 = vcmp.gt.f32.partialorder %v307, 0.0
      %vm340 = vcmp.gt.f32.partialorder %v308, 0.0
      %vm341 = vcmp.gt.f32.partialorder %v309, 0.0
      %vm342 = vcmp.gt.f32.partialorder %v310, 0.0
      %vm343 = vcmp.gt.f32.partialorder %v311, 0.0
      %vm344 = vcmp.gt.f32.partialorder %v312, 0.0
      %vm345 = vcmp.gt.f32.partialorder %v313, 0.0
      %vm346 = vcmp.gt.f32.partialorder %v314, 0.0
      %vm347 = vcmp.gt.f32.partialorder %v315, 0.0
      %v348 = vmul.f32 %v284, 0.2
      %v349 = vmul.f32 %v285, 0.2
      %v350 = vmul.f32 %v286, 0.2
      %v351 = vmul.f32 %v287, 0.2
      %v352 = vmul.f32 %v288, 0.2
      %v353 = vmul.f32 %v289, 0.2
      %v354 = vmul.f32 %v290, 0.2
      %v355 = vmul.f32 %v291, 0.2
      %v356 = vmul.f32 %v292, 0.2
      %v357 = vmul.f32 %v293, 0.2
      %v358 = vmul.f32 %v294, 0.2
      %v359 = vmul.f32 %v295, 0.2
      %v360 = vmul.f32 %v296, 0.2
      %v361 = vmul.f32 %v297, 0.2
      %v362 = vmul.f32 %v298, 0.2
      %v363 = vmul.f32 %v299, 0.2
      %v364 = vmul.f32 %v300, 0.2
      %v365 = vmul.f32 %v301, 0.2
      %v366 = vmul.f32 %v302, 0.2
      %v367 = vmul.f32 %v303, 0.2
      %v368 = vmul.f32 %v304, 0.2
      %v369 = vmul.f32 %v305, 0.2
      %v370 = vmul.f32 %v306, 0.2
      %v371 = vmul.f32 %v307, 0.2
      %v372 = vmul.f32 %v308, 0.2
      %v373 = vmul.f32 %v309, 0.2
      %v374 = vmul.f32 %v310, 0.2
      %v375 = vmul.f32 %v311, 0.2
      %v376 = vmul.f32 %v312, 0.2
      %v377 = vmul.f32 %v313, 0.2
      %v378 = vmul.f32 %v314, 0.2
      %v379 = vmul.f32 %v315, 0.2
      %v380 = vsel %vm316, %v284, %v348
      %v381 = vsel %vm317, %v285, %v349
      %v382 = vsel %vm318, %v286, %v350
      %v383 = vsel %vm319, %v287, %v351
      %v384 = vsel %vm320, %v288, %v352
      %v385 = vsel %vm321, %v289, %v353
      %v386 = vsel %vm322, %v290, %v354
      %v387 = vsel %vm323, %v291, %v355
      %v388 = vsel %vm324, %v292, %v356
      %v389 = vsel %vm325, %v293, %v357
      %v390 = vsel %vm326, %v294, %v358
      %v391 = vsel %vm327, %v295, %v359
      %v392 = vsel %vm328, %v296, %v360
      %v393 = vsel %vm329, %v297, %v361
      %v394 = vsel %vm330, %v298, %v362
      %v395 = vsel %vm331, %v299, %v363
      %v396 = vsel %vm332, %v300, %v364
      %v397 = vsel %vm333, %v301, %v365
      %v398 = vsel %vm334, %v302, %v366
      %v399 = vsel %vm335, %v303, %v367
      %v400 = vsel %vm336, %v304, %v368
      %v401 = vsel %vm337, %v305, %v369
      %v402 = vsel %vm338, %v306, %v370
      %v403 = vsel %vm339, %v307, %v371
      %v404 = vsel %vm340, %v308, %v372
      %v405 = vsel %vm341, %v309, %v373
      %v406 = vsel %vm342, %v310, %v374
      %v407 = vsel %vm343, %v311, %v375
      %v408 = vsel %vm344, %v312, %v376
      %v409 = vsel %vm345, %v313, %v377
      %v410 = vsel %vm346, %v314, %v378
      %v411 = vsel %vm347, %v315, %v379
      %v412 = vpack.c.bf16 %v381, %v380
      %v413 = vpack.c.bf16 %v383, %v382
      %v414 = vpack.c.bf16 %v385, %v384
      %v415 = vpack.c.bf16 %v387, %v386
      %v416 = vpack.c.bf16 %v389, %v388
      %v417 = vpack.c.bf16 %v391, %v390
      %v418 = vpack.c.bf16 %v393, %v392
      %v419 = vpack.c.bf16 %v395, %v394
      %v420 = vpack.c.bf16 %v397, %v396
      %v421 = vpack.c.bf16 %v399, %v398
      %v422 = vpack.c.bf16 %v401, %v400
      %v423 = vpack.c.bf16 %v403, %v402
      %v424 = vpack.c.bf16 %v405, %v404
      %v425 = vpack.c.bf16 %v407, %v406
      %v426 = vpack.c.bf16 %v409, %v408
      %v427 = vpack.c.bf16 %v411, %v410
      %v444 = vunpack.c.l.b16 %v412
      %v445 = vunpack.c.h.b16 %v412
      %v446 = vunpack.c.l.b16 %v413
      %v447 = vunpack.c.h.b16 %v413
      %v448 = vunpack.c.l.b16 %v414
      %v449 = vunpack.c.h.b16 %v414
      %v450 = vunpack.c.l.b16 %v415
      %v451 = vunpack.c.h.b16 %v415
      %v452 = vunpack.c.l.b16 %v416
      %v453 = vunpack.c.h.b16 %v416
      %v454 = vunpack.c.l.b16 %v417
      %v455 = vunpack.c.h.b16 %v417
      %v456 = vunpack.c.l.b16 %v418
      %v457 = vunpack.c.h.b16 %v418
      %v458 = vunpack.c.l.b16 %v419
      %v459 = vunpack.c.h.b16 %v419
      %v460 = vunpack.c.l.b16 %v420
      %v461 = vunpack.c.h.b16 %v420
      %v462 = vunpack.c.l.b16 %v421
      %v463 = vunpack.c.h.b16 %v421
      %v464 = vunpack.c.l.b16 %v422
      %v465 = vunpack.c.h.b16 %v422
      %v466 = vunpack.c.l.b16 %v423
      %v467 = vunpack.c.h.b16 %v423
      %v468 = vunpack.c.l.b16 %v424
      %v469 = vunpack.c.h.b16 %v424
      %v470 = vunpack.c.l.b16 %v425
      %v471 = vunpack.c.h.b16 %v425
      %v472 = vunpack.c.l.b16 %v426
      %v473 = vunpack.c.h.b16 %v426
      %v474 = vunpack.c.l.b16 %v427
      %v475 = vunpack.c.h.b16 %v427
      %v476 = vpack.c.b16 %v444, %v444
      %v477 = vpack.c.b16 %v445, %v445
      %v478 = vpack.c.b16 %v446, %v446
      %v479 = vpack.c.b16 %v447, %v447
      %v480 = vpack.c.b16 %v448, %v448
      %v481 = vpack.c.b16 %v449, %v449
      %v482 = vpack.c.b16 %v450, %v450
      %v483 = vpack.c.b16 %v451, %v451
      %v484 = vpack.c.b16 %v452, %v452
      %v485 = vpack.c.b16 %v453, %v453
      %v486 = vpack.c.b16 %v454, %v454
      %v487 = vpack.c.b16 %v455, %v455
      %v488 = vpack.c.b16 %v456, %v456
      %v489 = vpack.c.b16 %v457, %v457
      %v490 = vpack.c.b16 %v458, %v458
      %v491 = vpack.c.b16 %v459, %v459
      %v492 = vpack.c.b16 %v460, %v460
      %v493 = vpack.c.b16 %v461, %v461
      %v494 = vpack.c.b16 %v462, %v462
      %v495 = vpack.c.b16 %v463, %v463
      %v496 = vpack.c.b16 %v464, %v464
      %v497 = vpack.c.b16 %v465, %v465
      %v498 = vpack.c.b16 %v466, %v466
      %v499 = vpack.c.b16 %v467, %v467
      %v500 = vpack.c.b16 %v468, %v468
      %v501 = vpack.c.b16 %v469, %v469
      %v502 = vpack.c.b16 %v470, %v470
      %v503 = vpack.c.b16 %v471, %v471
      %v504 = vpack.c.b16 %v472, %v472
      %v505 = vpack.c.b16 %v473, %v473
      %v506 = vpack.c.b16 %v474, %v474
      %v507 = vpack.c.b16 %v475, %v475
      %540 = vst [vmem:[%s172] sm:$0xf] %v476
      %541 = vst [vmem:[%s172 + $0x4] sm:$0xf] %v477
      %542 = vst [vmem:[%s172 + $0x8] sm:$0xf] %v478
      %543 = vst [vmem:[%s172 + $0xc] sm:$0xf] %v479
      %544 = vst [vmem:[%s172 + $0x10] sm:$0xf] %v480
      %545 = vst [vmem:[%s172 + $0x14] sm:$0xf] %v481
      %546 = vst [vmem:[%s172 + $0x18] sm:$0xf] %v482
      %547 = vst [vmem:[%s172 + $0x1c] sm:$0xf] %v483
      %548 = vst [vmem:[%s172 + $0x20] sm:$0xf] %v484
      %549 = vst [vmem:[%s172 + $0x24] sm:$0xf] %v485
      %550 = vst [vmem:[%s172 + $0x28] sm:$0xf] %v486
      %551 = vst [vmem:[%s172 + $0x2c] sm:$0xf] %v487
      %552 = vst [vmem:[%s172 + $0x30] sm:$0xf] %v488
      %553 = vst [vmem:[%s172 + $0x34] sm:$0xf] %v489
      %554 = vst [vmem:[%s172 + $0x38] sm:$0xf] %v490
      %555 = vst [vmem:[%s172 + $0x3c] sm:$0xf] %v491
      %556 = vst [vmem:[%s172 + $0x40] sm:$0xf] %v492
      %557 = vst [vmem:[%s172 + $0x44] sm:$0xf] %v493
      %558 = vst [vmem:[%s172 + $0x48] sm:$0xf] %v494
      %559 = vst [vmem:[%s172 + $0x4c] sm:$0xf] %v495
      %560 = vst [vmem:[%s172 + $0x50] sm:$0xf] %v496
      %561 = vst [vmem:[%s172 + $0x54] sm:$0xf] %v497
      %562 = vst [vmem:[%s172 + $0x58] sm:$0xf] %v498
      %563 = vst [vmem:[%s172 + $0x5c] sm:$0xf] %v499
      %564 = vst [vmem:[%s172 + $0x60] sm:$0xf] %v500
      %565 = vst [vmem:[%s172 + $0x64] sm:$0xf] %v501
      %566 = vst [vmem:[%s172 + $0x68] sm:$0xf] %v502
      %567 = vst [vmem:[%s172 + $0x6c] sm:$0xf] %v503
      %568 = vst [vmem:[%s172 + $0x70] sm:$0xf] %v504
      %569 = vst [vmem:[%s172 + $0x74] sm:$0xf] %v505
      %570 = vst [vmem:[%s172 + $0x78] sm:$0xf] %v506
      %571 = vst [vmem:[%s172 + $0x7c] sm:$0xf] %v507
      %s572 = smul.u32 32, %s14
      %p573 = scmp.lt.s32.totalorder %s572, 63
      %s574 = scalar_select %p573, %s572, 63
      %s575 = smul.addr %s574, 4
      %s576 = scalar_lea.vmem %s3, %s575
      // Predicated region
      $region33: #{discriminator_forward.9} parent=31 // pred_check
        %p577 = pneg %p100
      $region34: #{discriminator_forward.9} parent=31 // pred_check_branch
        %579 = sbr.rel (%p577) target = $region36
      $region35: #{discriminator_forward.9} parent=31 // pred_region
        %s580 = smul.u32 32, %s14
      $region36: #{discriminator_forward.9} parent=31 // pred_fallthru
        _
    $region32: #{discriminator_forward.9} parent=5 // pred_fallthru
      _
    %p581 = scmp.le.s32.totalorder 2, %s9
    // Predicated region
    $region37: #{discriminator_forward.9} parent=5 // pred_check
      %p582 = pneg %p581
    $region38: #{discriminator_forward.9} parent=5 // pred_check_branch
      %584 = sbr.rel (%p582) target = $region40
    $region39: #{discriminator_forward.9} parent=5 // pred_region
      %s585 = ssub.s32 %s9, 2
      // Predicated region
      $region41: #{discriminator_forward.9} parent=39 // pred_check
        %p586 = pneg %p106
      $region42: #{discriminator_forward.9} parent=39 // pred_check_branch
        %588 = sbr.rel (%p586) target = $region44
      $region43: #{discriminator_forward.9} parent=39 // pred_region
        %s589 = smul.u32 32, %s15
        %p590 = scmp.lt.s32.totalorder %s589, 63
        %s591 = scalar_select %p590, %s589, 63
        %s592 = smul.addr %s591, 4
        %s593 = scalar_lea.vmem %s3, %s592
      $region44: #{discriminator_forward.9} parent=39 // pred_fallthru
        _
    $region40: #{discriminator_forward.9} parent=5 // pred_fallthru
      _
  $region6: #{discriminator_forward.9} parent=0 // loop_footer
    %s13 = sadd.s32 1, %s9
  $region7: #{discriminator_forward.9} parent=0 // loop_footer_branch
    %8 = sbr.rel target = $region3
  $region8: #{discriminator_forward.9} parent=0 // loop_exit
    _

// kernel: discriminator_forward.10
$region0: #{discriminator_forward.10}
  #allocation0 [shape = 'u32[]', space=smem, size = 0x4, offset = 0x4, fixed_abs, tag = 'smem constant byte address 0x4 - core index']
  #allocation1 [shape = 'u32[144,128]{1,0:T(1,128)}', space=vmem, size = 0x12000, scoped, tag = 'internal scratch']
  %s0 = inlined_call_operand.vmem [shape: bf16[128,256], index: 0, kind: input, shape index: {}]
  %s1 = inlined_call_operand.vmem [shape: bf16[256,128], index: 1, kind: input, shape index: {}]
  %s2 = inlined_call_operand.vmem [shape: bf16[128,128], index: 2, kind: output, shape index: {0}]
  %s3 = inlined_call_operand.vmem [shape: f32[8,128], index: 3, kind: output, shape index: {1}]
  %4 = xla_tuple %s2, %s3
  %s5 = sld [smem:[#allocation0]]
  $region26: #{discriminator_forward.10} parent=0
    _
  %s7 = ssub.s32 1, %s5
  %s8 = scalar_select 0, %s7, %s5
  // Predicated region
  $region2: #{discriminator_forward.10} parent=0 // pred_check
    _
  $region3: #{discriminator_forward.10} parent=0 // pred_check_branch
    %10 = sbr.rel (0) target = $region5
  $region4: #{discriminator_forward.10} parent=0 // pred_region
    _
  $region5: #{discriminator_forward.10} parent=0 // pred_fallthru
    _
  // Predicated region
  $region6: #{discriminator_forward.10} parent=0 // pred_check
    _
  $region7: #{discriminator_forward.10} parent=0 // pred_check_branch
    %12 = sbr.rel (0) target = $region9
  $region8: #{discriminator_forward.10} parent=0 // pred_region
    _
  $region9: #{discriminator_forward.10} parent=0 // pred_fallthru
    _
  %v14 = vld [vmem:[%s0] sm:$0xff]
  %v15 = vld [vmem:[%s0 + $0x8] sm:$0xff]
  %v16 = vld [vmem:[%s0 + $0x10] sm:$0xff]
  %v17 = vld [vmem:[%s0 + $0x18] sm:$0xff]
  %v18 = vld [vmem:[%s0 + $0x20] sm:$0xff]
  %v19 = vld [vmem:[%s0 + $0x28] sm:$0xff]
  %v20 = vld [vmem:[%s0 + $0x30] sm:$0xff]
  %v21 = vld [vmem:[%s0 + $0x38] sm:$0xff]
  %v22 = vld [vmem:[%s0 + $0x40] sm:$0xff]
  %v23 = vld [vmem:[%s0 + $0x48] sm:$0xff]
  %v24 = vld [vmem:[%s0 + $0x50] sm:$0xff]
  %v25 = vld [vmem:[%s0 + $0x58] sm:$0xff]
  %v26 = vld [vmem:[%s0 + $0x60] sm:$0xff]
  %v27 = vld [vmem:[%s0 + $0x68] sm:$0xff]
  %v28 = vld [vmem:[%s0 + $0x70] sm:$0xff]
  %v29 = vld [vmem:[%s0 + $0x78] sm:$0xff]
  %v30 = vld [vmem:[%s1] sm:$0xf]
  %v31 = vld [vmem:[%s1 + $0x4] sm:$0xf]
  %v32 = vld [vmem:[%s1 + $0x8] sm:$0xf]
  %v33 = vld [vmem:[%s1 + $0xc] sm:$0xf]
  %v34 = vld [vmem:[%s1 + $0x10] sm:$0xf]
  %v35 = vld [vmem:[%s1 + $0x14] sm:$0xf]
  %v36 = vld [vmem:[%s1 + $0x18] sm:$0xf]
  %v37 = vld [vmem:[%s1 + $0x1c] sm:$0xf]
  %v38 = vld [vmem:[%s1 + $0x20] sm:$0xf]
  %v39 = vld [vmem:[%s1 + $0x24] sm:$0xf]
  %v40 = vld [vmem:[%s1 + $0x28] sm:$0xf]
  %v41 = vld [vmem:[%s1 + $0x2c] sm:$0xf]
  %v42 = vld [vmem:[%s1 + $0x30] sm:$0xf]
  %v43 = vld [vmem:[%s1 + $0x34] sm:$0xf]
  %v44 = vld [vmem:[%s1 + $0x38] sm:$0xf]
  %v45 = vld [vmem:[%s1 + $0x3c] sm:$0xf]
  %v46 = vld [vmem:[%s1 + $0x40] sm:$0xf]
  %v47 = vld [vmem:[%s1 + $0x44] sm:$0xf]
  %v48 = vld [vmem:[%s1 + $0x48] sm:$0xf]
  %v49 = vld [vmem:[%s1 + $0x4c] sm:$0xf]
  %v50 = vld [vmem:[%s1 + $0x50] sm:$0xf]
  %v51 = vld [vmem:[%s1 + $0x54] sm:$0xf]
  %v52 = vld [vmem:[%s1 + $0x58] sm:$0xf]
  %v53 = vld [vmem:[%s1 + $0x5c] sm:$0xf]
  %v54 = vld [vmem:[%s1 + $0x60] sm:$0xf]
  %v55 = vld [vmem:[%s1 + $0x64] sm:$0xf]
  %v56 = vld [vmem:[%s1 + $0x68] sm:$0xf]
  %v57 = vld [vmem:[%s1 + $0x6c] sm:$0xf]
  %v58 = vld [vmem:[%s1 + $0x70] sm:$0xf]
  %v59 = vld [vmem:[%s1 + $0x74] sm:$0xf]
  %v60 = vld [vmem:[%s1 + $0x78] sm:$0xf]
  %v61 = vld [vmem:[%s1 + $0x7c] sm:$0xf]
  %v78 = vunpack.c.l.b16 %v14
  %v79 = vunpack.c.h.b16 %v14
  %v80 = vunpack.c.l.b16 %v15
  %v81 = vunpack.c.h.b16 %v15
  %v82 = vunpack.c.l.b16 %v16
  %v83 = vunpack.c.h.b16 %v16
  %v84 = vunpack.c.l.b16 %v17
  %v85 = vunpack.c.h.b16 %v17
  %v86 = vunpack.c.l.b16 %v18
  %v87 = vunpack.c.h.b16 %v18
  %v88 = vunpack.c.l.b16 %v19
  %v89 = vunpack.c.h.b16 %v19
  %v90 = vunpack.c.l.b16 %v20
  %v91 = vunpack.c.h.b16 %v20
  %v92 = vunpack.c.l.b16 %v21
  %v93 = vunpack.c.h.b16 %v21
  %v94 = vunpack.c.l.b16 %v22
  %v95 = vunpack.c.h.b16 %v22
  %v96 = vunpack.c.l.b16 %v23
  %v97 = vunpack.c.h.b16 %v23
  %v98 = vunpack.c.l.b16 %v24
  %v99 = vunpack.c.h.b16 %v24
  %v100 = vunpack.c.l.b16 %v25
  %v101 = vunpack.c.h.b16 %v25
  %v102 = vunpack.c.l.b16 %v26
  %v103 = vunpack.c.h.b16 %v26
  %v104 = vunpack.c.l.b16 %v27
  %v105 = vunpack.c.h.b16 %v27
  %v106 = vunpack.c.l.b16 %v28
  %v107 = vunpack.c.h.b16 %v28
  %v108 = vunpack.c.l.b16 %v29
  %v109 = vunpack.c.h.b16 %v29
  %v110 = vpack.c.b16 %v80, %v78
  %v111 = vpack.c.b16 %v81, %v79
  %v112 = vpack.c.b16 %v84, %v82
  %v113 = vpack.c.b16 %v85, %v83
  %v114 = vpack.c.b16 %v88, %v86
  %v115 = vpack.c.b16 %v89, %v87
  %v116 = vpack.c.b16 %v92, %v90
  %v117 = vpack.c.b16 %v93, %v91
  %v118 = vpack.c.b16 %v96, %v94
  %v119 = vpack.c.b16 %v97, %v95
  %v120 = vpack.c.b16 %v100, %v98
  %v121 = vpack.c.b16 %v101, %v99
  %v122 = vpack.c.b16 %v104, %v102
  %v123 = vpack.c.b16 %v105, %v103
  %v124 = vpack.c.b16 %v108, %v106
  %v125 = vpack.c.b16 %v109, %v107
  %v174 = vunpack.c.l.b16 %v30
  %v175 = vunpack.c.l.b16 %v31
  %v176 = vunpack.c.l.b16 %v32
  %v177 = vunpack.c.l.b16 %v33
  %v178 = vunpack.c.l.b16 %v34
  %v179 = vunpack.c.l.b16 %v35
  %v180 = vunpack.c.l.b16 %v36
  %v181 = vunpack.c.l.b16 %v37
  %v182 = vunpack.c.l.b16 %v38
  %v183 = vunpack.c.l.b16 %v39
  %v184 = vunpack.c.l.b16 %v40
  %v185 = vunpack.c.l.b16 %v41
  %v186 = vunpack.c.l.b16 %v42
  %v187 = vunpack.c.l.b16 %v43
  %v188 = vunpack.c.l.b16 %v44
  %v189 = vunpack.c.l.b16 %v45
  %v190 = vunpack.c.l.b16 %v46
  %v191 = vunpack.c.l.b16 %v47
  %v192 = vunpack.c.l.b16 %v48
  %v193 = vunpack.c.l.b16 %v49
  %v194 = vunpack.c.l.b16 %v50
  %v195 = vunpack.c.l.b16 %v51
  %v196 = vunpack.c.l.b16 %v52
  %v197 = vunpack.c.l.b16 %v53
  %v198 = vunpack.c.l.b16 %v54
  %v199 = vunpack.c.l.b16 %v55
  %v200 = vunpack.c.l.b16 %v56
  %v201 = vunpack.c.l.b16 %v57
  %v202 = vunpack.c.l.b16 %v58
  %v203 = vunpack.c.l.b16 %v59
  %v204 = vunpack.c.l.b16 %v60
  %v205 = vunpack.c.l.b16 %v61
  %v206 = vpack.c.b16 %v175, %v174
  %v207 = vpack.c.b16 %v177, %v176
  %v208 = vpack.c.b16 %v179, %v178
  %v209 = vpack.c.b16 %v181, %v180
  %v210 = vpack.c.b16 %v183, %v182
  %v211 = vpack.c.b16 %v185, %v184
  %v212 = vpack.c.b16 %v187, %v186
  %v213 = vpack.c.b16 %v189, %v188
  %v214 = vpack.c.b16 %v191, %v190
  %v215 = vpack.c.b16 %v193, %v192
  %v216 = vpack.c.b16 %v195, %v194
  %v217 = vpack.c.b16 %v197, %v196
  %v218 = vpack.c.b16 %v199, %v198
  %v219 = vpack.c.b16 %v201, %v200
  %v220 = vpack.c.b16 %v203, %v202
  %v221 = vpack.c.b16 %v205, %v204
  %238 = vmatprep.subr.bf16.mxu0 0
  %239 = vmatpush1.bf16.msra.mxu0 %v206
  %240 = vmatprep.subr.bf16.mxu0 0
  %241 = vmatpush1.bf16.msra.mxu0 %v207
  %242 = vmatprep.subr.bf16.mxu0 0
  %243 = vmatpush1.bf16.msra.mxu0 %v208
  %244 = vmatprep.subr.bf16.mxu0 0
  %245 = vmatpush1.bf16.msra.mxu0 %v209
  %246 = vmatprep.subr.bf16.mxu0 0
  %247 = vmatpush1.bf16.msra.mxu0 %v210
  %248 = vmatprep.subr.bf16.mxu0 0
  %249 = vmatpush1.bf16.msra.mxu0 %v211
  %250 = vmatprep.subr.bf16.mxu0 0
  %251 = vmatpush1.bf16.msra.mxu0 %v212
  %252 = vmatprep.subr.bf16.mxu0 0
  %253 = vmatpush1.bf16.msra.mxu0 %v213
  %254 = vmatprep.subr.bf16.mxu0 0
  %255 = vmatpush1.bf16.msra.mxu0 %v214
  %256 = vmatprep.subr.bf16.mxu0 0
  %257 = vmatpush1.bf16.msra.mxu0 %v215
  %258 = vmatprep.subr.bf16.mxu0 0
  %259 = vmatpush1.bf16.msra.mxu0 %v216
  %260 = vmatprep.subr.bf16.mxu0 0
  %261 = vmatpush1.bf16.msra.mxu0 %v217
  %262 = vmatprep.subr.bf16.mxu0 0
  %263 = vmatpush1.bf16.msra.mxu0 %v218
  %264 = vmatprep.subr.bf16.mxu0 0
  %265 = vmatpush1.bf16.msra.mxu0 %v219
  %266 = vmatprep.subr.bf16.mxu0 0
  %267 = vmatpush1.bf16.msra.mxu0 %v220
  %268 = vmatprep.subr.bf16.mxu0 0
  %269 = vmatpush1.bf16.msra.mxu0 %v221
  %270 = vmatprep.mubr.bf16.mxu0 %v111
  %271 = vmatmul.mubr.bf16.gmra.mrb[0].mxu0 %v110
  %v272 = vpop.f32.mrb[0].mxu0
  %v273 = vadd.f32 0.0, %v272
  %v274 = vpop.f32.mrb[0].mxu0
  %v275 = vpop.f32.mrb[0].mxu0
  %v276 = vadd.f32 0.0, %v275
  %v277 = vpop.f32.mrb[0].mxu0
  %278 = vmatprep.mubr.bf16.mxu0 %v113
  %279 = vmatmul.mubr.bf16.gmra.mrb[0].mxu0 %v112
  %v280 = vpop.f32.mrb[0].mxu0
  %v281 = vadd.f32 0.0, %v280
  %v282 = vpop.f32.mrb[0].mxu0
  %v283 = vpop.f32.mrb[0].mxu0
  %v284 = vadd.f32 0.0, %v283
  %v285 = vpop.f32.mrb[0].mxu0
  %286 = vmatprep.mubr.bf16.mxu0 %v115
  %287 = vmatmul.mubr.bf16.gmra.mrb[0].mxu0 %v114
  %v288 = vpop.f32.mrb[0].mxu0
  %v289 = vadd.f32 0.0, %v288
  %v290 = vpop.f32.mrb[0].mxu0
  %v291 = vpop.f32.mrb[0].mxu0
  %v292 = vadd.f32 0.0, %v291
  %v293 = vpop.f32.mrb[0].mxu0
  %294 = vmatprep.mubr.bf16.mxu0 %v117
  %295 = vmatmul.mubr.bf16.gmra.mrb[0].mxu0 %v116
  %v296 = vpop.f32.mrb[0].mxu0
  %v297 = vadd.f32 0.0, %v296
  %v298 = vpop.f32.mrb[0].mxu0
  %v299 = vpop.f32.mrb[0].mxu0
  %v300 = vadd.f32 0.0, %v299
  %v301 = vpop.f32.mrb[0].mxu0
  %302 = vmatprep.mubr.bf16.mxu0 %v119
  %303 = vmatmul.mubr.bf16.gmra.mrb[0].mxu0 %v118
  %v304 = vpop.f32.mrb[0].mxu0
  %v305 = vadd.f32 0.0, %v304
  %v306 = vpop.f32.mrb[0].mxu0
  %v307 = vpop.f32.mrb[0].mxu0
  %v308 = vadd.f32 0.0, %v307
  %v309 = vpop.f32.mrb[0].mxu0
  %310 = vmatprep.mubr.bf16.mxu0 %v121
  %311 = vmatmul.mubr.bf16.gmra.mrb[0].mxu0 %v120
  %v312 = vpop.f32.mrb[0].mxu0
  %v313 = vadd.f32 0.0, %v312
  %v314 = vpop.f32.mrb[0].mxu0
  %v315 = vpop.f32.mrb[0].mxu0
  %v316 = vadd.f32 0.0, %v315
  %v317 = vpop.f32.mrb[0].mxu0
  %318 = vmatprep.mubr.bf16.mxu0 %v123
  %319 = vmatmul.mubr.bf16.gmra.mrb[0].mxu0 %v122
  %v320 = vpop.f32.mrb[0].mxu0
  %v321 = vadd.f32 0.0, %v320
  %v322 = vpop.f32.mrb[0].mxu0
  %v323 = vpop.f32.mrb[0].mxu0
  %v324 = vadd.f32 0.0, %v323
  %v325 = vpop.f32.mrb[0].mxu0
  %326 = vmatprep.mubr.bf16.mxu0 %v125
  %327 = vmatmul.mubr.bf16.gmra.mrb[0].mxu0 %v124
  %v328 = vpop.f32.mrb[0].mxu0
  %v329 = vadd.f32 0.0, %v328
  %v330 = vpop.f32.mrb[0].mxu0
  %v331 = vpop.f32.mrb[0].mxu0
  %v332 = vadd.f32 0.0, %v331
  %v333 = vpop.f32.mrb[0].mxu0
  %334 = vdwg.mxu0
  %v335 = vadd.f32 %v273, %v276
  %v336 = vadd.f32 %v335, %v281
  %v337 = vadd.f32 %v336, %v284
  %v338 = vadd.f32 %v337, %v289
  %v339 = vadd.f32 %v338, %v292
  %v340 = vadd.f32 %v339, %v297
  %v341 = vadd.f32 %v340, %v300
  %v342 = vadd.f32 %v341, %v305
  %v343 = vadd.f32 %v342, %v308
  %v344 = vadd.f32 %v343, %v313
  %v345 = vadd.f32 %v344, %v316
  %v346 = vadd.f32 %v345, %v321
  %v347 = vadd.f32 %v346, %v324
  %v348 = vadd.f32 %v347, %v329
  %v349 = vadd.f32 %v348, %v332
  %v350 = vrot.slane %v349, 4
  %v351 = vadd.f32 %v349, %v350
  %v352 = vrot.slane %v351, 2
  %v353 = vadd.f32 %v351, %v352
  %v354 = vrot.slane %v353, 1
  %v355 = vadd.f32 %v353, %v354
  %v356 = vmul.f32 %v273, %v273
  %v357 = vmul.f32 %v276, %v276
  %v358 = vmul.f32 %v281, %v281
  %v359 = vmul.f32 %v284, %v284
  %v360 = vmul.f32 %v289, %v289
  %v361 = vmul.f32 %v292, %v292
  %v362 = vmul.f32 %v297, %v297
  %v363 = vmul.f32 %v300, %v300
  %v364 = vmul.f32 %v305, %v305
  %v365 = vmul.f32 %v308, %v308
  %v366 = vmul.f32 %v313, %v313
  %v367 = vmul.f32 %v316, %v316
  %v368 = vmul.f32 %v321, %v321
  %v369 = vmul.f32 %v324, %v324
  %v370 = vmul.f32 %v329, %v329
  %v371 = vmul.f32 %v332, %v332
  %v372 = vadd.f32 %v356, %v357
  %v373 = vadd.f32 %v372, %v358
  %v374 = vadd.f32 %v373, %v359
  %v375 = vadd.f32 %v374, %v360
  %v376 = vadd.f32 %v375, %v361
  %v377 = vadd.f32 %v376, %v362
  %v378 = vadd.f32 %v377, %v363
  %v379 = vadd.f32 %v378, %v364
  %v380 = vadd.f32 %v379, %v365
  %v381 = vadd.f32 %v380, %v366
  %v382 = vadd.f32 %v381, %v367
  %v383 = vadd.f32 %v382, %v368
  %v384 = vadd.f32 %v383, %v369
  %v385 = vadd.f32 %v384, %v370
  %v386 = vadd.f32 %v385, %v371
  %v387 = vrot.slane %v386, 4
  %v388 = vadd.f32 %v386, %v387
  %v389 = vrot.slane %v388, 2
  %v390 = vadd.f32 %v388, %v389
  %v391 = vrot.slane %v390, 1
  %v392 = vadd.f32 %v390, %v391
  %v393 = vlaneseq
  %v394 = vshrl.u32 %v393, 7
  %vm395 = vcmp.eq.s32.totalorder %v394, 0
  %vm396 = vcmp.eq.s32.totalorder %v394, 1
  %v397 = vsel %vm396, %v392, 0.0
  %v398 = vsel %vm395, %v355, %v397
  %399 = vst [vmem:[%s3] sm:$0xff] %v398
  %v400 = vpack.c.bf16 %v276, %v273
  %v401 = vpack.c.bf16 %v284, %v281
  %v402 = vpack.c.bf16 %v292, %v289
  %v403 = vpack.c.bf16 %v300, %v297
  %v404 = vpack.c.bf16 %v308, %v305
  %v405 = vpack.c.bf16 %v316, %v313
  %v406 = vpack.c.bf16 %v324, %v321
  %v407 = vpack.c.bf16 %v332, %v329
  %v416 = vunpack.c.l.b16 %v400
  %v417 = vunpack.c.h.b16 %v400
  %v418 = vunpack.c.l.b16 %v401
  %v419 = vunpack.c.h.b16 %v401
  %v420 = vunpack.c.l.b16 %v402
  %v421 = vunpack.c.h.b16 %v402
  %v422 = vunpack.c.l.b16 %v403
  %v423 = vunpack.c.h.b16 %v403
  %v424 = vunpack.c.l.b16 %v404
  %v425 = vunpack.c.h.b16 %v404
  %v426 = vunpack.c.l.b16 %v405
  %v427 = vunpack.c.h.b16 %v405
  %v428 = vunpack.c.l.b16 %v406
  %v429 = vunpack.c.h.b16 %v406
  %v430 = vunpack.c.l.b16 %v407
  %v431 = vunpack.c.h.b16 %v407
  %v432 = vpack.c.b16 %v416, %v416
  %v433 = vpack.c.b16 %v417, %v417
  %v434 = vpack.c.b16 %v418, %v418
  %v435 = vpack.c.b16 %v419, %v419
  %v436 = vpack.c.b16 %v420, %v420
  %v437 = vpack.c.b16 %v421, %v421
  %v438 = vpack.c.b16 %v422, %v422
  %v439 = vpack.c.b16 %v423, %v423
  %v440 = vpack.c.b16 %v424, %v424
  %v441 = vpack.c.b16 %v425, %v425
  %v442 = vpack.c.b16 %v426, %v426
  %v443 = vpack.c.b16 %v427, %v427
  %v444 = vpack.c.b16 %v428, %v428
  %v445 = vpack.c.b16 %v429, %v429
  %v446 = vpack.c.b16 %v430, %v430
  %v447 = vpack.c.b16 %v431, %v431
  %464 = vst [vmem:[%s2] sm:$0xf] %v432
  %465 = vst [vmem:[%s2 + $0x4] sm:$0xf] %v433
  %466 = vst [vmem:[%s2 + $0x8] sm:$0xf] %v434
  %467 = vst [vmem:[%s2 + $0xc] sm:$0xf] %v435
  %468 = vst [vmem:[%s2 + $0x10] sm:$0xf] %v436
  %469 = vst [vmem:[%s2 + $0x14] sm:$0xf] %v437
  %470 = vst [vmem:[%s2 + $0x18] sm:$0xf] %v438
  %471 = vst [vmem:[%s2 + $0x1c] sm:$0xf] %v439
  %472 = vst [vmem:[%s2 + $0x20] sm:$0xf] %v440
  %473 = vst [vmem:[%s2 + $0x24] sm:$0xf] %v441
  %474 = vst [vmem:[%s2 + $0x28] sm:$0xf] %v442
  %475 = vst [vmem:[%s2 + $0x2c] sm:$0xf] %v443
  %476 = vst [vmem:[%s2 + $0x30] sm:$0xf] %v444
  %477 = vst [vmem:[%s2 + $0x34] sm:$0xf] %v445
  %478 = vst [vmem:[%s2 + $0x38] sm:$0xf] %v446
  %479 = vst [vmem:[%s2 + $0x3c] sm:$0xf] %v447
  // Predicated region
  $region10: #{discriminator_forward.10} parent=0 // pred_check
    _
  $region11: #{discriminator_forward.10} parent=0 // pred_check_branch
    %481 = sbr.rel (0) target = $region13
  $region12: #{discriminator_forward.10} parent=0 // pred_region
    _
  $region13: #{discriminator_forward.10} parent=0 // pred_fallthru
    _
  // Predicated region
  $region14: #{discriminator_forward.10} parent=0 // pred_check
    _
  $region15: #{discriminator_forward.10} parent=0 // pred_check_branch
    %483 = sbr.rel (0) target = $region17
  $region16: #{discriminator_forward.10} parent=0 // pred_region
    _
  $region17: #{discriminator_forward.10} parent=0 // pred_fallthru
    _
  // Predicated region
  $region18: #{discriminator_forward.10} parent=0 // pred_check
    _
  $region19: #{discriminator_forward.10} parent=0 // pred_check_branch
    %485 = sbr.rel (0) target = $region21
  $region20: #{discriminator_forward.10} parent=0 // pred_region
    _
  $region21: #{discriminator_forward.10} parent=0 // pred_fallthru
    _
  // Predicated region
  $region22: #{discriminator_forward.10} parent=0 // pred_check
    _
  $region23: #{discriminator_forward.10} parent=0 // pred_check_branch
    %487 = sbr.rel (0) target = $region25
  $region24: #{discriminator_forward.10} parent=0 // pred_region
    _
  $region25: #{discriminator_forward.10} parent=0 // pred_fallthru
    _

// kernel: discriminator_forward.11
$region0: #{discriminator_forward.11}
  #allocation0 [shape = 'u32[]', space=smem, size = 0x4, offset = 0x4, fixed_abs, tag = 'smem constant byte address 0x4 - core index']
  #allocation1 [shape = 'u32[144,128]{1,0:T(1,128)}', space=vmem, size = 0x12000, scoped, tag = 'internal scratch']
  %s0 = inlined_call_operand.vmem [shape: bf16[128,128], index: 0, kind: input, shape index: {}]
  %s1 = inlined_call_operand.vmem [shape: f32[1,128], index: 1, kind: input, shape index: {}]
  %s2 = inlined_call_operand.vmem [shape: f32[1,128], index: 2, kind: input, shape index: {}]
  %s3 = inlined_call_operand.vmem [shape: bf16[128,128], index: 3, kind: output, shape index: {}]
  %s4 = sld [smem:[#allocation0]]
  $region22: #{discriminator_forward.11} parent=0
    _
  %s6 = ssub.s32 1, %s4
  %s7 = scalar_select 0, %s6, %s4
  // Predicated region
  $region2: #{discriminator_forward.11} parent=0 // pred_check
    _
  $region3: #{discriminator_forward.11} parent=0 // pred_check_branch
    %9 = sbr.rel (0) target = $region5
  $region4: #{discriminator_forward.11} parent=0 // pred_region
    _
  $region5: #{discriminator_forward.11} parent=0 // pred_fallthru
    _
  // Predicated region
  $region6: #{discriminator_forward.11} parent=0 // pred_check
    _
  $region7: #{discriminator_forward.11} parent=0 // pred_check_branch
    %11 = sbr.rel (0) target = $region9
  $region8: #{discriminator_forward.11} parent=0 // pred_region
    _
  $region9: #{discriminator_forward.11} parent=0 // pred_fallthru
    _
  // Predicated region
  $region10: #{discriminator_forward.11} parent=0 // pred_check
    _
  $region11: #{discriminator_forward.11} parent=0 // pred_check_branch
    %13 = sbr.rel (0) target = $region13
  $region12: #{discriminator_forward.11} parent=0 // pred_region
    _
  $region13: #{discriminator_forward.11} parent=0 // pred_fallthru
    _
  %v14 = vld [vmem:[%s0] sm:$0xf]
  %v15 = vld [vmem:[%s0 + $0x4] sm:$0xf]
  %v16 = vld [vmem:[%s0 + $0x8] sm:$0xf]
  %v17 = vld [vmem:[%s0 + $0xc] sm:$0xf]
  %v18 = vld [vmem:[%s0 + $0x10] sm:$0xf]
  %v19 = vld [vmem:[%s0 + $0x14] sm:$0xf]
  %v20 = vld [vmem:[%s0 + $0x18] sm:$0xf]
  %v21 = vld [vmem:[%s0 + $0x1c] sm:$0xf]
  %v22 = vld [vmem:[%s0 + $0x20] sm:$0xf]
  %v23 = vld [vmem:[%s0 + $0x24] sm:$0xf]
  %v24 = vld [vmem:[%s0 + $0x28] sm:$0xf]
  %v25 = vld [vmem:[%s0 + $0x2c] sm:$0xf]
  %v26 = vld [vmem:[%s0 + $0x30] sm:$0xf]
  %v27 = vld [vmem:[%s0 + $0x34] sm:$0xf]
  %v28 = vld [vmem:[%s0 + $0x38] sm:$0xf]
  %v29 = vld [vmem:[%s0 + $0x3c] sm:$0xf]
  %v30 = vunpack.c.l.bf16 %v14
  %v31 = vunpack.c.l.bf16 %v15
  %v32 = vunpack.c.l.bf16 %v16
  %v33 = vunpack.c.l.bf16 %v17
  %v34 = vunpack.c.l.bf16 %v18
  %v35 = vunpack.c.l.bf16 %v19
  %v36 = vunpack.c.l.bf16 %v20
  %v37 = vunpack.c.l.bf16 %v21
  %v38 = vunpack.c.l.bf16 %v22
  %v39 = vunpack.c.l.bf16 %v23
  %v40 = vunpack.c.l.bf16 %v24
  %v41 = vunpack.c.l.bf16 %v25
  %v42 = vunpack.c.l.bf16 %v26
  %v43 = vunpack.c.l.bf16 %v27
  %v44 = vunpack.c.l.bf16 %v28
  %v45 = vunpack.c.l.bf16 %v29
  %v46 = vld [vmem:[%s1] sm:$0x1]
  %v48 = vlaneseq
  %v49 = vshrl.u32 %v48, 7
  %v50 = vsub.s32 0, %v49
  %v51 = vrot.slane %v46, %v50
  %v53 = vmul.f32 %v30, %v51
  %v54 = vmul.f32 %v31, %v51
  %v55 = vmul.f32 %v32, %v51
  %v56 = vmul.f32 %v33, %v51
  %v57 = vmul.f32 %v34, %v51
  %v58 = vmul.f32 %v35, %v51
  %v59 = vmul.f32 %v36, %v51
  %v60 = vmul.f32 %v37, %v51
  %v61 = vmul.f32 %v38, %v51
  %v62 = vmul.f32 %v39, %v51
  %v63 = vmul.f32 %v40, %v51
  %v64 = vmul.f32 %v41, %v51
  %v65 = vmul.f32 %v42, %v51
  %v66 = vmul.f32 %v43, %v51
  %v67 = vmul.f32 %v44, %v51
  %v68 = vmul.f32 %v45, %v51
  %v69 = vld [vmem:[%s2] sm:$0x1]
  %v71 = vlaneseq
  %v72 = vshrl.u32 %v71, 7
  %v73 = vsub.s32 0, %v72
  %v74 = vrot.slane %v69, %v73
  %v76 = vadd.f32 %v53, %v74
  %v77 = vadd.f32 %v54, %v74
  %v78 = vadd.f32 %v55, %v74
  %v79 = vadd.f32 %v56, %v74
  %v80 = vadd.f32 %v57, %v74
  %v81 = vadd.f32 %v58, %v74
  %v82 = vadd.f32 %v59, %v74
  %v83 = vadd.f32 %v60, %v74
  %v84 = vadd.f32 %v61, %v74
  %v85 = vadd.f32 %v62, %v74
  %v86 = vadd.f32 %v63, %v74
  %v87 = vadd.f32 %v64, %v74
  %v88 = vadd.f32 %v65, %v74
  %v89 = vadd.f32 %v66, %v74
  %v90 = vadd.f32 %v67, %v74
  %v91 = vadd.f32 %v68, %v74
  %vm92 = vcmp.gt.f32.partialorder %v76, 0.0
  %vm93 = vcmp.gt.f32.partialorder %v77, 0.0
  %vm94 = vcmp.gt.f32.partialorder %v78, 0.0
  %vm95 = vcmp.gt.f32.partialorder %v79, 0.0
  %vm96 = vcmp.gt.f32.partialorder %v80, 0.0
  %vm97 = vcmp.gt.f32.partialorder %v81, 0.0
  %vm98 = vcmp.gt.f32.partialorder %v82, 0.0
  %vm99 = vcmp.gt.f32.partialorder %v83, 0.0
  %vm100 = vcmp.gt.f32.partialorder %v84, 0.0
  %vm101 = vcmp.gt.f32.partialorder %v85, 0.0
  %vm102 = vcmp.gt.f32.partialorder %v86, 0.0
  %vm103 = vcmp.gt.f32.partialorder %v87, 0.0
  %vm104 = vcmp.gt.f32.partialorder %v88, 0.0
  %vm105 = vcmp.gt.f32.partialorder %v89, 0.0
  %vm106 = vcmp.gt.f32.partialorder %v90, 0.0
  %vm107 = vcmp.gt.f32.partialorder %v91, 0.0
  %v108 = vmul.f32 %v76, 0.2
  %v109 = vmul.f32 %v77, 0.2
  %v110 = vmul.f32 %v78, 0.2
  %v111 = vmul.f32 %v79, 0.2
  %v112 = vmul.f32 %v80, 0.2
  %v113 = vmul.f32 %v81, 0.2
  %v114 = vmul.f32 %v82, 0.2
  %v115 = vmul.f32 %v83, 0.2
  %v116 = vmul.f32 %v84, 0.2
  %v117 = vmul.f32 %v85, 0.2
  %v118 = vmul.f32 %v86, 0.2
  %v119 = vmul.f32 %v87, 0.2
  %v120 = vmul.f32 %v88, 0.2
  %v121 = vmul.f32 %v89, 0.2
  %v122 = vmul.f32 %v90, 0.2
  %v123 = vmul.f32 %v91, 0.2
  %v124 = vsel %vm92, %v76, %v108
  %v125 = vsel %vm93, %v77, %v109
  %v126 = vsel %vm94, %v78, %v110
  %v127 = vsel %vm95, %v79, %v111
  %v128 = vsel %vm96, %v80, %v112
  %v129 = vsel %vm97, %v81, %v113
  %v130 = vsel %vm98, %v82, %v114
  %v131 = vsel %vm99, %v83, %v115
  %v132 = vsel %vm100, %v84, %v116
  %v133 = vsel %vm101, %v85, %v117
  %v134 = vsel %vm102, %v86, %v118
  %v135 = vsel %vm103, %v87, %v119
  %v136 = vsel %vm104, %v88, %v120
  %v137 = vsel %vm105, %v89, %v121
  %v138 = vsel %vm106, %v90, %v122
  %v139 = vsel %vm107, %v91, %v123
  %v140 = vpack.c.bf16 %v125, %v124
  %v141 = vpack.c.bf16 %v127, %v126
  %v142 = vpack.c.bf16 %v129, %v128
  %v143 = vpack.c.bf16 %v131, %v130
  %v144 = vpack.c.bf16 %v133, %v132
  %v145 = vpack.c.bf16 %v135, %v134
  %v146 = vpack.c.bf16 %v137, %v136
  %v147 = vpack.c.bf16 %v139, %v138
  %v156 = vunpack.c.l.b16 %v140
  %v157 = vunpack.c.h.b16 %v140
  %v158 = vunpack.c.l.b16 %v141
  %v159 = vunpack.c.h.b16 %v141
  %v160 = vunpack.c.l.b16 %v142
  %v161 = vunpack.c.h.b16 %v142
  %v162 = vunpack.c.l.b16 %v143
  %v163 = vunpack.c.h.b16 %v143
  %v164 = vunpack.c.l.b16 %v144
  %v165 = vunpack.c.h.b16 %v144
  %v166 = vunpack.c.l.b16 %v145
  %v167 = vunpack.c.h.b16 %v145
  %v168 = vunpack.c.l.b16 %v146
  %v169 = vunpack.c.h.b16 %v146
  %v170 = vunpack.c.l.b16 %v147
  %v171 = vunpack.c.h.b16 %v147
  %v172 = vpack.c.b16 %v156, %v156
  %v173 = vpack.c.b16 %v157, %v157
  %v174 = vpack.c.b16 %v158, %v158
  %v175 = vpack.c.b16 %v159, %v159
  %v176 = vpack.c.b16 %v160, %v160
  %v177 = vpack.c.b16 %v161, %v161
  %v178 = vpack.c.b16 %v162, %v162
  %v179 = vpack.c.b16 %v163, %v163
  %v180 = vpack.c.b16 %v164, %v164
  %v181 = vpack.c.b16 %v165, %v165
  %v182 = vpack.c.b16 %v166, %v166
  %v183 = vpack.c.b16 %v167, %v167
  %v184 = vpack.c.b16 %v168, %v168
  %v185 = vpack.c.b16 %v169, %v169
  %v186 = vpack.c.b16 %v170, %v170
  %v187 = vpack.c.b16 %v171, %v171
  %204 = vst [vmem:[%s3] sm:$0xf] %v172
  %205 = vst [vmem:[%s3 + $0x4] sm:$0xf] %v173
  %206 = vst [vmem:[%s3 + $0x8] sm:$0xf] %v174
  %207 = vst [vmem:[%s3 + $0xc] sm:$0xf] %v175
  %208 = vst [vmem:[%s3 + $0x10] sm:$0xf] %v176
  %209 = vst [vmem:[%s3 + $0x14] sm:$0xf] %v177
  %210 = vst [vmem:[%s3 + $0x18] sm:$0xf] %v178
  %211 = vst [vmem:[%s3 + $0x1c] sm:$0xf] %v179
  %212 = vst [vmem:[%s3 + $0x20] sm:$0xf] %v180
  %213 = vst [vmem:[%s3 + $0x24] sm:$0xf] %v181
  %214 = vst [vmem:[%s3 + $0x28] sm:$0xf] %v182
  %215 = vst [vmem:[%s3 + $0x2c] sm:$0xf] %v183
  %216 = vst [vmem:[%s3 + $0x30] sm:$0xf] %v184
  %217 = vst [vmem:[%s3 + $0x34] sm:$0xf] %v185
  %218 = vst [vmem:[%s3 + $0x38] sm:$0xf] %v186
  %219 = vst [vmem:[%s3 + $0x3c] sm:$0xf] %v187
  // Predicated region
  $region14: #{discriminator_forward.11} parent=0 // pred_check
    _
  $region15: #{discriminator_forward.11} parent=0 // pred_check_branch
    %221 = sbr.rel (0) target = $region17
  $region16: #{discriminator_forward.11} parent=0 // pred_region
    _
  $region17: #{discriminator_forward.11} parent=0 // pred_fallthru
    _
  // Predicated region
  $region18: #{discriminator_forward.11} parent=0 // pred_check
    _
  $region19: #{discriminator_forward.11} parent=0 // pred_check_branch
    %223 = sbr.rel (0) target = $region21
  $region20: #{discriminator_forward.11} parent=0 // pred_region
    _
  $region21: #{discriminator_forward.11} parent=0 // pred_fallthru
    _

// kernel: tile.13
$region0: #{tile.13}
  #allocation0 [shape = 's32[1]{0}', space=sflag, size = 0x4, scoped, tag = 'scoped memory for tile.13']
  %s0 = inlined_call_operand.vmem [shape: f32[128], index: 0, kind: input, shape index: {}]
  %s1 = inlined_call_operand.vmem [shape: f32[16,128], index: 1, kind: output, shape index: {}]
  // Predicated region
  $region2: #{tile.13} parent=0 // pred_check
    _
  $region3: #{tile.13} parent=0 // pred_check_branch
    %3 = sbr.rel (0) target = $region5
  $region4: #{tile.13} parent=0 // pred_region
    _
  $region5: #{tile.13} parent=0 // pred_fallthru
    _
  %v4 = vld [vmem:[%s0] ss:$0 sm:$0xff]
  %5 = vst [vmem:[%s1] sm:$0xff] %v4
  %s6 = scalar_lea.vmem %s1, 8
  %7 = vst [vmem:[%s6] sm:$0xff] %v4

// kernel: discriminator_forward.12
$region0: #{discriminator_forward.12}
  #allocation0 [shape = 'u32[]', space=smem, size = 0x4, offset = 0x4, fixed_abs, tag = 'smem constant byte address 0x4 - core index']
  #allocation1 [shape = 'u32[144,128]{1,0:T(1,128)}', space=vmem, size = 0x12000, scoped, tag = 'internal scratch']
  %s0 = inlined_call_operand.vmem [shape: bf16[32,512], index: 0, kind: input, shape index: {}]
  %s1 = inlined_call_operand.vmem [shape: bf16[512,128], index: 1, kind: input, shape index: {}]
  %s2 = inlined_call_operand.vmem [shape: bf16[32,128], index: 2, kind: output, shape index: {0}]
  %s3 = inlined_call_operand.vmem [shape: f32[8,128], index: 3, kind: output, shape index: {1}]
  %4 = xla_tuple %s2, %s3
  %s5 = sld [smem:[#allocation0]]
  $region26: #{discriminator_forward.12} parent=0
    _
  %s7 = ssub.s32 1, %s5
  %s8 = scalar_select 0, %s7, %s5
  // Predicated region
  $region2: #{discriminator_forward.12} parent=0 // pred_check
    _
  $region3: #{discriminator_forward.12} parent=0 // pred_check_branch
    %10 = sbr.rel (0) target = $region5
  $region4: #{discriminator_forward.12} parent=0 // pred_region
    _
  $region5: #{discriminator_forward.12} parent=0 // pred_fallthru
    _
  // Predicated region
  $region6: #{discriminator_forward.12} parent=0 // pred_check
    _
  $region7: #{discriminator_forward.12} parent=0 // pred_check_branch
    %12 = sbr.rel (0) target = $region9
  $region8: #{discriminator_forward.12} parent=0 // pred_region
    _
  $region9: #{discriminator_forward.12} parent=0 // pred_fallthru
    _
  %v14 = vld [vmem:[%s0] sm:$0xff]
  %v15 = vld [vmem:[%s0 + $0x8] sm:$0xff]
  %v16 = vld [vmem:[%s0 + $0x10] sm:$0xff]
  %v17 = vld [vmem:[%s0 + $0x18] sm:$0xff]
  %v18 = vld [vmem:[%s0 + $0x20] sm:$0xff]
  %v19 = vld [vmem:[%s0 + $0x28] sm:$0xff]
  %v20 = vld [vmem:[%s0 + $0x30] sm:$0xff]
  %v21 = vld [vmem:[%s0 + $0x38] sm:$0xff]
  %v22 = vld [vmem:[%s1] sm:$0xf]
  %v23 = vld [vmem:[%s1 + $0x4] sm:$0xf]
  %v24 = vld [vmem:[%s1 + $0x8] sm:$0xf]
  %v25 = vld [vmem:[%s1 + $0xc] sm:$0xf]
  %v26 = vld [vmem:[%s1 + $0x10] sm:$0xf]
  %v27 = vld [vmem:[%s1 + $0x14] sm:$0xf]
  %v28 = vld [vmem:[%s1 + $0x18] sm:$0xf]
  %v29 = vld [vmem:[%s1 + $0x1c] sm:$0xf]
  %v30 = vld [vmem:[%s1 + $0x20] sm:$0xf]
  %v31 = vld [vmem:[%s1 + $0x24] sm:$0xf]
  %v32 = vld [vmem:[%s1 + $0x28] sm:$0xf]
  %v33 = vld [vmem:[%s1 + $0x2c] sm:$0xf]
  %v34 = vld [vmem:[%s1 + $0x30] sm:$0xf]
  %v35 = vld [vmem:[%s1 + $0x34] sm:$0xf]
  %v36 = vld [vmem:[%s1 + $0x38] sm:$0xf]
  %v37 = vld [vmem:[%s1 + $0x3c] sm:$0xf]
  %v38 = vld [vmem:[%s1 + $0x40] sm:$0xf]
  %v39 = vld [vmem:[%s1 + $0x44] sm:$0xf]
  %v40 = vld [vmem:[%s1 + $0x48] sm:$0xf]
  %v41 = vld [vmem:[%s1 + $0x4c] sm:$0xf]
  %v42 = vld [vmem:[%s1 + $0x50] sm:$0xf]
  %v43 = vld [vmem:[%s1 + $0x54] sm:$0xf]
  %v44 = vld [vmem:[%s1 + $0x58] sm:$0xf]
  %v45 = vld [vmem:[%s1 + $0x5c] sm:$0xf]
  %v46 = vld [vmem:[%s1 + $0x60] sm:$0xf]
  %v47 = vld [vmem:[%s1 + $0x64] sm:$0xf]
  %v48 = vld [vmem:[%s1 + $0x68] sm:$0xf]
  %v49 = vld [vmem:[%s1 + $0x6c] sm:$0xf]
  %v50 = vld [vmem:[%s1 + $0x70] sm:$0xf]
  %v51 = vld [vmem:[%s1 + $0x74] sm:$0xf]
  %v52 = vld [vmem:[%s1 + $0x78] sm:$0xf]
  %v53 = vld [vmem:[%s1 + $0x7c] sm:$0xf]
  %v54 = vld [vmem:[%s1 + $0x80] sm:$0xf]
  %v55 = vld [vmem:[%s1 + $0x84] sm:$0xf]
  %v56 = vld [vmem:[%s1 + $0x88] sm:$0xf]
  %v57 = vld [vmem:[%s1 + $0x8c] sm:$0xf]
  %v58 = vld [vmem:[%s1 + $0x90] sm:$0xf]
  %v59 = vld [vmem:[%s1 + $0x94] sm:$0xf]
  %v60 = vld [vmem:[%s1 + $0x98] sm:$0xf]
  %v61 = vld [vmem:[%s1 + $0x9c] sm:$0xf]
  %v62 = vld [vmem:[%s1 + $0xa0] sm:$0xf]
  %v63 = vld [vmem:[%s1 + $0xa4] sm:$0xf]
  %v64 = vld [vmem:[%s1 + $0xa8] sm:$0xf]
  %v65 = vld [vmem:[%s1 + $0xac] sm:$0xf]
  %v66 = vld [vmem:[%s1 + $0xb0] sm:$0xf]
  %v67 = vld [vmem:[%s1 + $0xb4] sm:$0xf]
  %v68 = vld [vmem:[%s1 + $0xb8] sm:$0xf]
  %v69 = vld [vmem:[%s1 + $0xbc] sm:$0xf]
  %v70 = vld [vmem:[%s1 + $0xc0] sm:$0xf]
  %v71 = vld [vmem:[%s1 + $0xc4] sm:$0xf]
  %v72 = vld [vmem:[%s1 + $0xc8] sm:$0xf]
  %v73 = vld [vmem:[%s1 + $0xcc] sm:$0xf]
  %v74 = vld [vmem:[%s1 + $0xd0] sm:$0xf]
  %v75 = vld [vmem:[%s1 + $0xd4] sm:$0xf]
  %v76 = vld [vmem:[%s1 + $0xd8] sm:$0xf]
  %v77 = vld [vmem:[%s1 + $0xdc] sm:$0xf]
  %v78 = vld [vmem:[%s1 + $0xe0] sm:$0xf]
  %v79 = vld [vmem:[%s1 + $0xe4] sm:$0xf]
  %v80 = vld [vmem:[%s1 + $0xe8] sm:$0xf]
  %v81 = vld [vmem:[%s1 + $0xec] sm:$0xf]
  %v82 = vld [vmem:[%s1 + $0xf0] sm:$0xf]
  %v83 = vld [vmem:[%s1 + $0xf4] sm:$0xf]
  %v84 = vld [vmem:[%s1 + $0xf8] sm:$0xf]
  %v85 = vld [vmem:[%s1 + $0xfc] sm:$0xf]
  %v94 = vunpack.c.l.b16 %v14
  %v95 = vunpack.c.h.b16 %v14
  %v96 = vunpack.c.l.b16 %v15
  %v97 = vunpack.c.h.b16 %v15
  %v98 = vunpack.c.l.b16 %v16
  %v99 = vunpack.c.h.b16 %v16
  %v100 = vunpack.c.l.b16 %v17
  %v101 = vunpack.c.h.b16 %v17
  %v102 = vunpack.c.l.b16 %v18
  %v103 = vunpack.c.h.b16 %v18
  %v104 = vunpack.c.l.b16 %v19
  %v105 = vunpack.c.h.b16 %v19
  %v106 = vunpack.c.l.b16 %v20
  %v107 = vunpack.c.h.b16 %v20
  %v108 = vunpack.c.l.b16 %v21
  %v109 = vunpack.c.h.b16 %v21
  %v110 = vpack.c.b16 %v98, %v94
  %v111 = vpack.c.b16 %v99, %v95
  %v112 = vpack.c.b16 %v100, %v96
  %v113 = vpack.c.b16 %v101, %v97
  %v114 = vpack.c.b16 %v106, %v102
  %v115 = vpack.c.b16 %v107, %v103
  %v116 = vpack.c.b16 %v108, %v104
  %v117 = vpack.c.b16 %v109, %v105
  %v190 = vunpack.c.l.b16 %v22
  %v191 = vunpack.c.l.b16 %v23
  %v192 = vunpack.c.l.b16 %v24
  %v193 = vunpack.c.l.b16 %v25
  %v194 = vunpack.c.l.b16 %v26
  %v195 = vunpack.c.l.b16 %v27
  %v196 = vunpack.c.l.b16 %v28
  %v197 = vunpack.c.l.b16 %v29
  %v198 = vunpack.c.l.b16 %v30
  %v199 = vunpack.c.l.b16 %v31
  %v200 = vunpack.c.l.b16 %v32
  %v201 = vunpack.c.l.b16 %v33
  %v202 = vunpack.c.l.b16 %v34
  %v203 = vunpack.c.l.b16 %v35
  %v204 = vunpack.c.l.b16 %v36
  %v205 = vunpack.c.l.b16 %v37
  %v206 = vunpack.c.l.b16 %v38
  %v207 = vunpack.c.l.b16 %v39
  %v208 = vunpack.c.l.b16 %v40
  %v209 = vunpack.c.l.b16 %v41
  %v210 = vunpack.c.l.b16 %v42
  %v211 = vunpack.c.l.b16 %v43
  %v212 = vunpack.c.l.b16 %v44
  %v213 = vunpack.c.l.b16 %v45
  %v214 = vunpack.c.l.b16 %v46
  %v215 = vunpack.c.l.b16 %v47
  %v216 = vunpack.c.l.b16 %v48
  %v217 = vunpack.c.l.b16 %v49
  %v218 = vunpack.c.l.b16 %v50
  %v219 = vunpack.c.l.b16 %v51
  %v220 = vunpack.c.l.b16 %v52
  %v221 = vunpack.c.l.b16 %v53
  %v222 = vunpack.c.l.b16 %v54
  %v223 = vunpack.c.l.b16 %v55
  %v224 = vunpack.c.l.b16 %v56
  %v225 = vunpack.c.l.b16 %v57
  %v226 = vunpack.c.l.b16 %v58
  %v227 = vunpack.c.l.b16 %v59
  %v228 = vunpack.c.l.b16 %v60
  %v229 = vunpack.c.l.b16 %v61
  %v230 = vunpack.c.l.b16 %v62
  %v231 = vunpack.c.l.b16 %v63
  %v232 = vunpack.c.l.b16 %v64
  %v233 = vunpack.c.l.b16 %v65
  %v234 = vunpack.c.l.b16 %v66
  %v235 = vunpack.c.l.b16 %v67
  %v236 = vunpack.c.l.b16 %v68
  %v237 = vunpack.c.l.b16 %v69
  %v238 = vunpack.c.l.b16 %v70
  %v239 = vunpack.c.l.b16 %v71
  %v240 = vunpack.c.l.b16 %v72
  %v241 = vunpack.c.l.b16 %v73
  %v242 = vunpack.c.l.b16 %v74
  %v243 = vunpack.c.l.b16 %v75
  %v244 = vunpack.c.l.b16 %v76
  %v245 = vunpack.c.l.b16 %v77
  %v246 = vunpack.c.l.b16 %v78
  %v247 = vunpack.c.l.b16 %v79
  %v248 = vunpack.c.l.b16 %v80
  %v249 = vunpack.c.l.b16 %v81
  %v250 = vunpack.c.l.b16 %v82
  %v251 = vunpack.c.l.b16 %v83
  %v252 = vunpack.c.l.b16 %v84
  %v253 = vunpack.c.l.b16 %v85
  %v254 = vpack.c.b16 %v191, %v190
  %v255 = vpack.c.b16 %v193, %v192
  %v256 = vpack.c.b16 %v195, %v194
  %v257 = vpack.c.b16 %v197, %v196
  %v258 = vpack.c.b16 %v199, %v198
  %v259 = vpack.c.b16 %v201, %v200
  %v260 = vpack.c.b16 %v203, %v202
  %v261 = vpack.c.b16 %v205, %v204
  %v262 = vpack.c.b16 %v207, %v206
  %v263 = vpack.c.b16 %v209, %v208
  %v264 = vpack.c.b16 %v211, %v210
  %v265 = vpack.c.b16 %v213, %v212
  %v266 = vpack.c.b16 %v215, %v214
  %v267 = vpack.c.b16 %v217, %v216
  %v268 = vpack.c.b16 %v219, %v218
  %v269 = vpack.c.b16 %v221, %v220
  %v270 = vpack.c.b16 %v223, %v222
  %v271 = vpack.c.b16 %v225, %v224
  %v272 = vpack.c.b16 %v227, %v226
  %v273 = vpack.c.b16 %v229, %v228
  %v274 = vpack.c.b16 %v231, %v230
  %v275 = vpack.c.b16 %v233, %v232
  %v276 = vpack.c.b16 %v235, %v234
  %v277 = vpack.c.b16 %v237, %v236
  %v278 = vpack.c.b16 %v239, %v238
  %v279 = vpack.c.b16 %v241, %v240
  %v280 = vpack.c.b16 %v243, %v242
  %v281 = vpack.c.b16 %v245, %v244
  %v282 = vpack.c.b16 %v247, %v246
  %v283 = vpack.c.b16 %v249, %v248
  %v284 = vpack.c.b16 %v251, %v250
  %v285 = vpack.c.b16 %v253, %v252
  %318 = vmatprep.subr.bf16.mxu0 0
  %319 = vmatpush1.bf16.msra.mxu0 %v254
  %320 = vmatprep.subr.bf16.mxu0 0
  %321 = vmatpush1.bf16.msra.mxu0 %v255
  %322 = vmatprep.subr.bf16.mxu0 0
  %323 = vmatpush1.bf16.msra.mxu0 %v256
  %324 = vmatprep.subr.bf16.mxu0 0
  %325 = vmatpush1.bf16.msra.mxu0 %v257
  %326 = vmatprep.subr.bf16.mxu0 0
  %327 = vmatpush1.bf16.msra.mxu0 %v258
  %328 = vmatprep.subr.bf16.mxu0 0
  %329 = vmatpush1.bf16.msra.mxu0 %v259
  %330 = vmatprep.subr.bf16.mxu0 0
  %331 = vmatpush1.bf16.msra.mxu0 %v260
  %332 = vmatprep.subr.bf16.mxu0 0
  %333 = vmatpush1.bf16.msra.mxu0 %v261
  %334 = vmatprep.subr.bf16.mxu0 0
  %335 = vmatpush1.bf16.msra.mxu0 %v262
  %336 = vmatprep.subr.bf16.mxu0 0
  %337 = vmatpush1.bf16.msra.mxu0 %v263
  %338 = vmatprep.subr.bf16.mxu0 0
  %339 = vmatpush1.bf16.msra.mxu0 %v264
  %340 = vmatprep.subr.bf16.mxu0 0
  %341 = vmatpush1.bf16.msra.mxu0 %v265
  %342 = vmatprep.subr.bf16.mxu0 0
  %343 = vmatpush1.bf16.msra.mxu0 %v266
  %344 = vmatprep.subr.bf16.mxu0 0
  %345 = vmatpush1.bf16.msra.mxu0 %v267
  %346 = vmatprep.subr.bf16.mxu0 0
  %347 = vmatpush1.bf16.msra.mxu0 %v268
  %348 = vmatprep.subr.bf16.mxu0 0
  %349 = vmatpush1.bf16.msra.mxu0 %v269
  %350 = vmatprep.mubr.bf16.mxu0 %v111
  %351 = vmatmul.mubr.bf16.gmra.mrb[0].mxu0 %v110
  %v352 = vpop.f32.mrb[0].mxu0
  %v353 = vadd.f32 0.0, %v352
  %v354 = vpop.f32.mrb[0].mxu0
  %v355 = vpop.f32.mrb[0].mxu0
  %v356 = vadd.f32 0.0, %v355
  %v357 = vpop.f32.mrb[0].mxu0
  %358 = vmatprep.mubr.bf16.mxu0 %v115
  %359 = vmatmul.mubr.bf16.gmra.mrb[0].mxu0 %v114
  %v360 = vpop.f32.mrb[0].mxu0
  %v361 = vadd.f32 0.0, %v360
  %v362 = vpop.f32.mrb[0].mxu0
  %v363 = vpop.f32.mrb[0].mxu0
  %v364 = vadd.f32 0.0, %v363
  %v365 = vpop.f32.mrb[0].mxu0
  %366 = vdwg.mxu0
  %367 = vmatprep.subr.bf16.mxu0 0
  %368 = vmatpush1.bf16.msra.mxu0 %v270
  %369 = vmatprep.subr.bf16.mxu0 0
  %370 = vmatpush1.bf16.msra.mxu0 %v271
  %371 = vmatprep.subr.bf16.mxu0 0
  %372 = vmatpush1.bf16.msra.mxu0 %v272
  %373 = vmatprep.subr.bf16.mxu0 0
  %374 = vmatpush1.bf16.msra.mxu0 %v273
  %375 = vmatprep.subr.bf16.mxu0 0
  %376 = vmatpush1.bf16.msra.mxu0 %v274
  %377 = vmatprep.subr.bf16.mxu0 0
  %378 = vmatpush1.bf16.msra.mxu0 %v275
  %379 = vmatprep.subr.bf16.mxu0 0
  %380 = vmatpush1.bf16.msra.mxu0 %v276
  %381 = vmatprep.subr.bf16.mxu0 0
  %382 = vmatpush1.bf16.msra.mxu0 %v277
  %383 = vmatprep.subr.bf16.mxu0 0
  %384 = vmatpush1.bf16.msra.mxu0 %v278
  %385 = vmatprep.subr.bf16.mxu0 0
  %386 = vmatpush1.bf16.msra.mxu0 %v279
  %387 = vmatprep.subr.bf16.mxu0 0
  %388 = vmatpush1.bf16.msra.mxu0 %v280
  %389 = vmatprep.subr.bf16.mxu0 0
  %390 = vmatpush1.bf16.msra.mxu0 %v281
  %391 = vmatprep.subr.bf16.mxu0 0
  %392 = vmatpush1.bf16.msra.mxu0 %v282
  %393 = vmatprep.subr.bf16.mxu0 0
  %394 = vmatpush1.bf16.msra.mxu0 %v283
  %395 = vmatprep.subr.bf16.mxu0 0
  %396 = vmatpush1.bf16.msra.mxu0 %v284
  %397 = vmatprep.subr.bf16.mxu0 0
  %398 = vmatpush1.bf16.msra.mxu0 %v285
  %399 = vmatprep.mubr.bf16.mxu0 %v113
  %400 = vmatmul.mubr.bf16.gmra.mrb[0].mxu0 %v112
  %v401 = vpop.f32.mrb[0].mxu0
  %v402 = vadd.f32 %v353, %v401
  %v403 = vpop.f32.mrb[0].mxu0
  %v404 = vpop.f32.mrb[0].mxu0
  %v405 = vadd.f32 %v356, %v404
  %v406 = vpop.f32.mrb[0].mxu0
  %407 = vmatprep.mubr.bf16.mxu0 %v117
  %408 = vmatmul.mubr.bf16.gmra.mrb[0].mxu0 %v116
  %v409 = vpop.f32.mrb[0].mxu0
  %v410 = vadd.f32 %v361, %v409
  %v411 = vpop.f32.mrb[0].mxu0
  %v412 = vpop.f32.mrb[0].mxu0
  %v413 = vadd.f32 %v364, %v412
  %v414 = vpop.f32.mrb[0].mxu0
  %415 = vdwg.mxu0
  %v416 = vadd.f32 %v402, %v405
  %v417 = vadd.f32 %v416, %v410
  %v418 = vadd.f32 %v417, %v413
  %v419 = vrot.slane %v418, 4
  %v420 = vadd.f32 %v418, %v419
  %v421 = vrot.slane %v420, 2
  %v422 = vadd.f32 %v420, %v421
  %v423 = vrot.slane %v422, 1
  %v424 = vadd.f32 %v422, %v423
  %v425 = vmul.f32 %v402, %v402
  %v426 = vmul.f32 %v405, %v405
  %v427 = vmul.f32 %v410, %v410
  %v428 = vmul.f32 %v413, %v413
  %v429 = vadd.f32 %v425, %v426
  %v430 = vadd.f32 %v429, %v427
  %v431 = vadd.f32 %v430, %v428
  %v432 = vrot.slane %v431, 4
  %v433 = vadd.f32 %v431, %v432
  %v434 = vrot.slane %v433, 2
  %v435 = vadd.f32 %v433, %v434
  %v436 = vrot.slane %v435, 1
  %v437 = vadd.f32 %v435, %v436
  %v438 = vlaneseq
  %v439 = vshrl.u32 %v438, 7
  %vm440 = vcmp.eq.s32.totalorder %v439, 0
  %vm441 = vcmp.eq.s32.totalorder %v439, 1
  %v442 = vsel %vm441, %v437, 0.0
  %v443 = vsel %vm440, %v424, %v442
  %444 = vst [vmem:[%s3] sm:$0xff] %v443
  %v445 = vpack.c.bf16 %v405, %v402
  %v446 = vpack.c.bf16 %v413, %v410
  %v449 = vunpack.c.l.b16 %v445
  %v450 = vunpack.c.h.b16 %v445
  %v451 = vunpack.c.l.b16 %v446
  %v452 = vunpack.c.h.b16 %v446
  %v453 = vpack.c.b16 %v449, %v449
  %v454 = vpack.c.b16 %v450, %v450
  %v455 = vpack.c.b16 %v451, %v451
  %v456 = vpack.c.b16 %v452, %v452
  %461 = vst [vmem:[%s2] sm:$0xf] %v453
  %462 = vst [vmem:[%s2 + $0x4] sm:$0xf] %v454
  %463 = vst [vmem:[%s2 + $0x8] sm:$0xf] %v455
  %464 = vst [vmem:[%s2 + $0xc] sm:$0xf] %v456
  // Predicated region
  $region10: #{discriminator_forward.12} parent=0 // pred_check
    _
  $region11: #{discriminator_forward.12} parent=0 // pred_check_branch
    %466 = sbr.rel (0) target = $region13
  $region12: #{discriminator_forward.12} parent=0 // pred_region
    _
  $region13: #{discriminator_forward.12} parent=0 // pred_fallthru
    _
  // Predicated region
  $region14: #{discriminator_forward.12} parent=0 // pred_check
    _
  $region15: #{discriminator_forward.12} parent=0 // pred_check_branch
    %468 = sbr.rel (0) target = $region17
  $region16: #{discriminator_forward.12} parent=0 // pred_region
    _
  $region17: #{discriminator_forward.12} parent=0 // pred_fallthru
    _
  // Predicated region
  $region18: #{discriminator_forward.12} parent=0 // pred_check
    _
  $region19: #{discriminator_forward.12} parent=0 // pred_check_branch
    %470 = sbr.rel (0) target = $region21
  $region20: #{discriminator_forward.12} parent=0 // pred_region
    _
  $region21: #{discriminator_forward.12} parent=0 // pred_fallthru
    _
  // Predicated region
  $region22: #{discriminator_forward.12} parent=0 // pred_check
    _
  $region23: #{discriminator_forward.12} parent=0 // pred_check_branch
    %472 = sbr.rel (0) target = $region25
  $region24: #{discriminator_forward.12} parent=0 // pred_region
    _
  $region25: #{discriminator_forward.12} parent=0 // pred_fallthru
    _

// kernel: discriminator_forward.13
$region0: #{discriminator_forward.13}
  #allocation0 [shape = 'u32[]', space=smem, size = 0x4, offset = 0x4, fixed_abs, tag = 'smem constant byte address 0x4 - core index']
  #allocation1 [shape = 'u32[144,128]{1,0:T(1,128)}', space=vmem, size = 0x12000, scoped, tag = 'internal scratch']
  %s0 = inlined_call_operand.vmem [shape: bf16[16,2048], index: 0, kind: input, shape index: {}]
  %s1 = inlined_call_operand.vmem [shape: f32[1,2048], index: 1, kind: input, shape index: {}]
  %s2 = inlined_call_operand.vmem [shape: f32[1,2048], index: 2, kind: input, shape index: {}]
  %s3 = inlined_call_operand.vmem [shape: bf16[2048,128], index: 3, kind: input, shape index: {}]
  %s4 = inlined_call_operand.vmem [shape: f32[16,128], index: 4, kind: output, shape index: {}]
  %s5 = sld [smem:[#allocation0]]
  $region26: #{discriminator_forward.13} parent=0
    _
  %s7 = ssub.s32 1, %s5
  %s8 = scalar_select 0, %s7, %s5
  // Predicated region
  $region2: #{discriminator_forward.13} parent=0 // pred_check
    _
  $region3: #{discriminator_forward.13} parent=0 // pred_check_branch
    %10 = sbr.rel (0) target = $region5
  $region4: #{discriminator_forward.13} parent=0 // pred_region
    _
  $region5: #{discriminator_forward.13} parent=0 // pred_fallthru
    _
  // Predicated region
  $region6: #{discriminator_forward.13} parent=0 // pred_check
    _
  $region7: #{discriminator_forward.13} parent=0 // pred_check_branch
    %12 = sbr.rel (0) target = $region9
  $region8: #{discriminator_forward.13} parent=0 // pred_region
    _
  $region9: #{discriminator_forward.13} parent=0 // pred_fallthru
    _
  // Predicated region
  $region10: #{discriminator_forward.13} parent=0 // pred_check
    _
  $region11: #{discriminator_forward.13} parent=0 // pred_check_branch
    %14 = sbr.rel (0) target = $region13
  $region12: #{discriminator_forward.13} parent=0 // pred_region
    _
  $region13: #{discriminator_forward.13} parent=0 // pred_fallthru
    _
  // Predicated region
  $region14: #{discriminator_forward.13} parent=0 // pred_check
    _
  $region15: #{discriminator_forward.13} parent=0 // pred_check_branch
    %16 = sbr.rel (0) target = $region17
  $region16: #{discriminator_forward.13} parent=0 // pred_region
    _
  $region17: #{discriminator_forward.13} parent=0 // pred_fallthru
    _
  %v18 = vld [vmem:[%s0] sm:$0xff]
  %v19 = vld [vmem:[%s0 + $0x8] sm:$0xff]
  %v20 = vld [vmem:[%s0 + $0x10] sm:$0xff]
  %v21 = vld [vmem:[%s0 + $0x18] sm:$0xff]
  %v22 = vld [vmem:[%s0 + $0x20] sm:$0xff]
  %v23 = vld [vmem:[%s0 + $0x28] sm:$0xff]
  %v24 = vld [vmem:[%s0 + $0x30] sm:$0xff]
  %v25 = vld [vmem:[%s0 + $0x38] sm:$0xff]
  %v26 = vld [vmem:[%s0 + $0x40] sm:$0xff]
  %v27 = vld [vmem:[%s0 + $0x48] sm:$0xff]
  %v28 = vld [vmem:[%s0 + $0x50] sm:$0xff]
  %v29 = vld [vmem:[%s0 + $0x58] sm:$0xff]
  %v30 = vld [vmem:[%s0 + $0x60] sm:$0xff]
  %v31 = vld [vmem:[%s0 + $0x68] sm:$0xff]
  %v32 = vld [vmem:[%s0 + $0x70] sm:$0xff]
  %v33 = vld [vmem:[%s0 + $0x78] sm:$0xff]
  %v34 = vunpack.c.l.bf16 %v18
  %v35 = vunpack.c.h.bf16 %v18
  %v36 = vunpack.c.l.bf16 %v19
  %v37 = vunpack.c.h.bf16 %v19
  %v38 = vunpack.c.l.bf16 %v20
  %v39 = vunpack.c.h.bf16 %v20
  %v40 = vunpack.c.l.bf16 %v21
  %v41 = vunpack.c.h.bf16 %v21
  %v42 = vunpack.c.l.bf16 %v22
  %v43 = vunpack.c.h.bf16 %v22
  %v44 = vunpack.c.l.bf16 %v23
  %v45 = vunpack.c.h.bf16 %v23
  %v46 = vunpack.c.l.bf16 %v24
  %v47 = vunpack.c.h.bf16 %v24
  %v48 = vunpack.c.l.bf16 %v25
  %v49 = vunpack.c.h.bf16 %v25
  %v50 = vunpack.c.l.bf16 %v26
  %v51 = vunpack.c.h.bf16 %v26
  %v52 = vunpack.c.l.bf16 %v27
  %v53 = vunpack.c.h.bf16 %v27
  %v54 = vunpack.c.l.bf16 %v28
  %v55 = vunpack.c.h.bf16 %v28
  %v56 = vunpack.c.l.bf16 %v29
  %v57 = vunpack.c.h.bf16 %v29
  %v58 = vunpack.c.l.bf16 %v30
  %v59 = vunpack.c.h.bf16 %v30
  %v60 = vunpack.c.l.bf16 %v31
  %v61 = vunpack.c.h.bf16 %v31
  %v62 = vunpack.c.l.bf16 %v32
  %v63 = vunpack.c.h.bf16 %v32
  %v64 = vunpack.c.l.bf16 %v33
  %v65 = vunpack.c.h.bf16 %v33
  %v66 = vld [vmem:[%s1] sm:$0xff]
  %v67 = vld [vmem:[%s1 + $0x8] sm:$0xff]
  %v70 = vlaneseq
  %v71 = vshrl.u32 %v70, 7
  %v72 = vsub.s32 0, %v71
  %v73 = vrot.slane %v66, %v72
  %v74 = vlaneseq
  %v75 = vshrl.u32 %v74, 7
  %v76 = vsub.s32 1, %v75
  %v77 = vrot.slane %v66, %v76
  %v78 = vlaneseq
  %v79 = vshrl.u32 %v78, 7
  %v80 = vsub.s32 2, %v79
  %v81 = vrot.slane %v66, %v80
  %v82 = vlaneseq
  %v83 = vshrl.u32 %v82, 7
  %v84 = vsub.s32 3, %v83
  %v85 = vrot.slane %v66, %v84
  %v86 = vlaneseq
  %v87 = vshrl.u32 %v86, 7
  %v88 = vsub.s32 4, %v87
  %v89 = vrot.slane %v66, %v88
  %v90 = vlaneseq
  %v91 = vshrl.u32 %v90, 7
  %v92 = vsub.s32 5, %v91
  %v93 = vrot.slane %v66, %v92
  %v94 = vlaneseq
  %v95 = vshrl.u32 %v94, 7
  %v96 = vsub.s32 6, %v95
  %v97 = vrot.slane %v66, %v96
  %v98 = vlaneseq
  %v99 = vshrl.u32 %v98, 7
  %v100 = vsub.s32 7, %v99
  %v101 = vrot.slane %v66, %v100
  %v102 = vlaneseq
  %v103 = vshrl.u32 %v102, 7
  %v104 = vsub.s32 0, %v103
  %v105 = vrot.slane %v67, %v104
  %v106 = vlaneseq
  %v107 = vshrl.u32 %v106, 7
  %v108 = vsub.s32 1, %v107
  %v109 = vrot.slane %v67, %v108
  %v110 = vlaneseq
  %v111 = vshrl.u32 %v110, 7
  %v112 = vsub.s32 2, %v111
  %v113 = vrot.slane %v67, %v112
  %v114 = vlaneseq
  %v115 = vshrl.u32 %v114, 7
  %v116 = vsub.s32 3, %v115
  %v117 = vrot.slane %v67, %v116
  %v118 = vlaneseq
  %v119 = vshrl.u32 %v118, 7
  %v120 = vsub.s32 4, %v119
  %v121 = vrot.slane %v67, %v120
  %v122 = vlaneseq
  %v123 = vshrl.u32 %v122, 7
  %v124 = vsub.s32 5, %v123
  %v125 = vrot.slane %v67, %v124
  %v126 = vlaneseq
  %v127 = vshrl.u32 %v126, 7
  %v128 = vsub.s32 6, %v127
  %v129 = vrot.slane %v67, %v128
  %v130 = vlaneseq
  %v131 = vshrl.u32 %v130, 7
  %v132 = vsub.s32 7, %v131
  %v133 = vrot.slane %v67, %v132
  %v150 = vmul.f32 %v34, %v73
  %v151 = vmul.f32 %v35, %v77
  %v152 = vmul.f32 %v36, %v81
  %v153 = vmul.f32 %v37, %v85
  %v154 = vmul.f32 %v38, %v89
  %v155 = vmul.f32 %v39, %v93
  %v156 = vmul.f32 %v40, %v97
  %v157 = vmul.f32 %v41, %v101
  %v158 = vmul.f32 %v42, %v105
  %v159 = vmul.f32 %v43, %v109
  %v160 = vmul.f32 %v44, %v113
  %v161 = vmul.f32 %v45, %v117
  %v162 = vmul.f32 %v46, %v121
  %v163 = vmul.f32 %v47, %v125
  %v164 = vmul.f32 %v48, %v129
  %v165 = vmul.f32 %v49, %v133
  %v166 = vmul.f32 %v50, %v73
  %v167 = vmul.f32 %v51, %v77
  %v168 = vmul.f32 %v52, %v81
  %v169 = vmul.f32 %v53, %v85
  %v170 = vmul.f32 %v54, %v89
  %v171 = vmul.f32 %v55, %v93
  %v172 = vmul.f32 %v56, %v97
  %v173 = vmul.f32 %v57, %v101
  %v174 = vmul.f32 %v58, %v105
  %v175 = vmul.f32 %v59, %v109
  %v176 = vmul.f32 %v60, %v113
  %v177 = vmul.f32 %v61, %v117
  %v178 = vmul.f32 %v62, %v121
  %v179 = vmul.f32 %v63, %v125
  %v180 = vmul.f32 %v64, %v129
  %v181 = vmul.f32 %v65, %v133
  %v182 = vld [vmem:[%s2] sm:$0xff]
  %v183 = vld [vmem:[%s2 + $0x8] sm:$0xff]
  %v186 = vlaneseq
  %v187 = vshrl.u32 %v186, 7
  %v188 = vsub.s32 0, %v187
  %v189 = vrot.slane %v182, %v188
  %v190 = vlaneseq
  %v191 = vshrl.u32 %v190, 7
  %v192 = vsub.s32 1, %v191
  %v193 = vrot.slane %v182, %v192
  %v194 = vlaneseq
  %v195 = vshrl.u32 %v194, 7
  %v196 = vsub.s32 2, %v195
  %v197 = vrot.slane %v182, %v196
  %v198 = vlaneseq
  %v199 = vshrl.u32 %v198, 7
  %v200 = vsub.s32 3, %v199
  %v201 = vrot.slane %v182, %v200
  %v202 = vlaneseq
  %v203 = vshrl.u32 %v202, 7
  %v204 = vsub.s32 4, %v203
  %v205 = vrot.slane %v182, %v204
  %v206 = vlaneseq
  %v207 = vshrl.u32 %v206, 7
  %v208 = vsub.s32 5, %v207
  %v209 = vrot.slane %v182, %v208
  %v210 = vlaneseq
  %v211 = vshrl.u32 %v210, 7
  %v212 = vsub.s32 6, %v211
  %v213 = vrot.slane %v182, %v212
  %v214 = vlaneseq
  %v215 = vshrl.u32 %v214, 7
  %v216 = vsub.s32 7, %v215
  %v217 = vrot.slane %v182, %v216
  %v218 = vlaneseq
  %v219 = vshrl.u32 %v218, 7
  %v220 = vsub.s32 0, %v219
  %v221 = vrot.slane %v183, %v220
  %v222 = vlaneseq
  %v223 = vshrl.u32 %v222, 7
  %v224 = vsub.s32 1, %v223
  %v225 = vrot.slane %v183, %v224
  %v226 = vlaneseq
  %v227 = vshrl.u32 %v226, 7
  %v228 = vsub.s32 2, %v227
  %v229 = vrot.slane %v183, %v228
  %v230 = vlaneseq
  %v231 = vshrl.u32 %v230, 7
  %v232 = vsub.s32 3, %v231
  %v233 = vrot.slane %v183, %v232
  %v234 = vlaneseq
  %v235 = vshrl.u32 %v234, 7
  %v236 = vsub.s32 4, %v235
  %v237 = vrot.slane %v183, %v236
  %v238 = vlaneseq
  %v239 = vshrl.u32 %v238, 7
  %v240 = vsub.s32 5, %v239
  %v241 = vrot.slane %v183, %v240
  %v242 = vlaneseq
  %v243 = vshrl.u32 %v242, 7
  %v244 = vsub.s32 6, %v243
  %v245 = vrot.slane %v183, %v244
  %v246 = vlaneseq
  %v247 = vshrl.u32 %v246, 7
  %v248 = vsub.s32 7, %v247
  %v249 = vrot.slane %v183, %v248
  %v266 = vadd.f32 %v150, %v189
  %v267 = vadd.f32 %v151, %v193
  %v268 = vadd.f32 %v152, %v197
  %v269 = vadd.f32 %v153, %v201
  %v270 = vadd.f32 %v154, %v205
  %v271 = vadd.f32 %v155, %v209
  %v272 = vadd.f32 %v156, %v213
  %v273 = vadd.f32 %v157, %v217
  %v274 = vadd.f32 %v158, %v221
  %v275 = vadd.f32 %v159, %v225
  %v276 = vadd.f32 %v160, %v229
  %v277 = vadd.f32 %v161, %v233
  %v278 = vadd.f32 %v162, %v237
  %v279 = vadd.f32 %v163, %v241
  %v280 = vadd.f32 %v164, %v245
  %v281 = vadd.f32 %v165, %v249
  %v282 = vadd.f32 %v166, %v189
  %v283 = vadd.f32 %v167, %v193
  %v284 = vadd.f32 %v168, %v197
  %v285 = vadd.f32 %v169, %v201
  %v286 = vadd.f32 %v170, %v205
  %v287 = vadd.f32 %v171, %v209
  %v288 = vadd.f32 %v172, %v213
  %v289 = vadd.f32 %v173, %v217
  %v290 = vadd.f32 %v174, %v221
  %v291 = vadd.f32 %v175, %v225
  %v292 = vadd.f32 %v176, %v229
  %v293 = vadd.f32 %v177, %v233
  %v294 = vadd.f32 %v178, %v237
  %v295 = vadd.f32 %v179, %v241
  %v296 = vadd.f32 %v180, %v245
  %v297 = vadd.f32 %v181, %v249
  %vm298 = vcmp.gt.f32.partialorder %v266, 0.0
  %vm299 = vcmp.gt.f32.partialorder %v267, 0.0
  %vm300 = vcmp.gt.f32.partialorder %v268, 0.0
  %vm301 = vcmp.gt.f32.partialorder %v269, 0.0
  %vm302 = vcmp.gt.f32.partialorder %v270, 0.0
  %vm303 = vcmp.gt.f32.partialorder %v271, 0.0
  %vm304 = vcmp.gt.f32.partialorder %v272, 0.0
  %vm305 = vcmp.gt.f32.partialorder %v273, 0.0
  %vm306 = vcmp.gt.f32.partialorder %v274, 0.0
  %vm307 = vcmp.gt.f32.partialorder %v275, 0.0
  %vm308 = vcmp.gt.f32.partialorder %v276, 0.0
  %vm309 = vcmp.gt.f32.partialorder %v277, 0.0
  %vm310 = vcmp.gt.f32.partialorder %v278, 0.0
  %vm311 = vcmp.gt.f32.partialorder %v279, 0.0
  %vm312 = vcmp.gt.f32.partialorder %v280, 0.0
  %vm313 = vcmp.gt.f32.partialorder %v281, 0.0
  %vm314 = vcmp.gt.f32.partialorder %v282, 0.0
  %vm315 = vcmp.gt.f32.partialorder %v283, 0.0
  %vm316 = vcmp.gt.f32.partialorder %v284, 0.0
  %vm317 = vcmp.gt.f32.partialorder %v285, 0.0
  %vm318 = vcmp.gt.f32.partialorder %v286, 0.0
  %vm319 = vcmp.gt.f32.partialorder %v287, 0.0
  %vm320 = vcmp.gt.f32.partialorder %v288, 0.0
  %vm321 = vcmp.gt.f32.partialorder %v289, 0.0
  %vm322 = vcmp.gt.f32.partialorder %v290, 0.0
  %vm323 = vcmp.gt.f32.partialorder %v291, 0.0
  %vm324 = vcmp.gt.f32.partialorder %v292, 0.0
  %vm325 = vcmp.gt.f32.partialorder %v293, 0.0
  %vm326 = vcmp.gt.f32.partialorder %v294, 0.0
  %vm327 = vcmp.gt.f32.partialorder %v295, 0.0
  %vm328 = vcmp.gt.f32.partialorder %v296, 0.0
  %vm329 = vcmp.gt.f32.partialorder %v297, 0.0
  %v330 = vmul.f32 %v266, 0.2
  %v331 = vmul.f32 %v267, 0.2
  %v332 = vmul.f32 %v268, 0.2
  %v333 = vmul.f32 %v269, 0.2
  %v334 = vmul.f32 %v270, 0.2
  %v335 = vmul.f32 %v271, 0.2
  %v336 = vmul.f32 %v272, 0.2
  %v337 = vmul.f32 %v273, 0.2
  %v338 = vmul.f32 %v274, 0.2
  %v339 = vmul.f32 %v275, 0.2
  %v340 = vmul.f32 %v276, 0.2
  %v341 = vmul.f32 %v277, 0.2
  %v342 = vmul.f32 %v278, 0.2
  %v343 = vmul.f32 %v279, 0.2
  %v344 = vmul.f32 %v280, 0.2
  %v345 = vmul.f32 %v281, 0.2
  %v346 = vmul.f32 %v282, 0.2
  %v347 = vmul.f32 %v283, 0.2
  %v348 = vmul.f32 %v284, 0.2
  %v349 = vmul.f32 %v285, 0.2
  %v350 = vmul.f32 %v286, 0.2
  %v351 = vmul.f32 %v287, 0.2
  %v352 = vmul.f32 %v288, 0.2
  %v353 = vmul.f32 %v289, 0.2
  %v354 = vmul.f32 %v290, 0.2
  %v355 = vmul.f32 %v291, 0.2
  %v356 = vmul.f32 %v292, 0.2
  %v357 = vmul.f32 %v293, 0.2
  %v358 = vmul.f32 %v294, 0.2
  %v359 = vmul.f32 %v295, 0.2
  %v360 = vmul.f32 %v296, 0.2
  %v361 = vmul.f32 %v297, 0.2
  %v362 = vsel %vm298, %v266, %v330
  %v363 = vsel %vm299, %v267, %v331
  %v364 = vsel %vm300, %v268, %v332
  %v365 = vsel %vm301, %v269, %v333
  %v366 = vsel %vm302, %v270, %v334
  %v367 = vsel %vm303, %v271, %v335
  %v368 = vsel %vm304, %v272, %v336
  %v369 = vsel %vm305, %v273, %v337
  %v370 = vsel %vm306, %v274, %v338
  %v371 = vsel %vm307, %v275, %v339
  %v372 = vsel %vm308, %v276, %v340
  %v373 = vsel %vm309, %v277, %v341
  %v374 = vsel %vm310, %v278, %v342
  %v375 = vsel %vm311, %v279, %v343
  %v376 = vsel %vm312, %v280, %v344
  %v377 = vsel %vm313, %v281, %v345
  %v378 = vsel %vm314, %v282, %v346
  %v379 = vsel %vm315, %v283, %v347
  %v380 = vsel %vm316, %v284, %v348
  %v381 = vsel %vm317, %v285, %v349
  %v382 = vsel %vm318, %v286, %v350
  %v383 = vsel %vm319, %v287, %v351
  %v384 = vsel %vm320, %v288, %v352
  %v385 = vsel %vm321, %v289, %v353
  %v386 = vsel %vm322, %v290, %v354
  %v387 = vsel %vm323, %v291, %v355
  %v388 = vsel %vm324, %v292, %v356
  %v389 = vsel %vm325, %v293, %v357
  %v390 = vsel %vm326, %v294, %v358
  %v391 = vsel %vm327, %v295, %v359
  %v392 = vsel %vm328, %v296, %v360
  %v393 = vsel %vm329, %v297, %v361
  %v394 = vpack.c.bf16 %v378, %v362
  %v395 = vpack.c.bf16 %v379, %v363
  %v396 = vpack.c.bf16 %v380, %v364
  %v397 = vpack.c.bf16 %v381, %v365
  %v398 = vpack.c.bf16 %v382, %v366
  %v399 = vpack.c.bf16 %v383, %v367
  %v400 = vpack.c.bf16 %v384, %v368
  %v401 = vpack.c.bf16 %v385, %v369
  %v402 = vpack.c.bf16 %v386, %v370
  %v403 = vpack.c.bf16 %v387, %v371
  %v404 = vpack.c.bf16 %v388, %v372
  %v405 = vpack.c.bf16 %v389, %v373
  %v406 = vpack.c.bf16 %v390, %v374
  %v407 = vpack.c.bf16 %v391, %v375
  %v408 = vpack.c.bf16 %v392, %v376
  %v409 = vpack.c.bf16 %v393, %v377
  %v410 = vld [vmem:[%s3] sm:$0xf]
  %v411 = vld [vmem:[%s3 + $0x4] sm:$0xf]
  %v412 = vld [vmem:[%s3 + $0x8] sm:$0xf]
  %v413 = vld [vmem:[%s3 + $0xc] sm:$0xf]
  %v414 = vld [vmem:[%s3 + $0x10] sm:$0xf]
  %v415 = vld [vmem:[%s3 + $0x14] sm:$0xf]
  %v416 = vld [vmem:[%s3 + $0x18] sm:$0xf]
  %v417 = vld [vmem:[%s3 + $0x1c] sm:$0xf]
  %v418 = vld [vmem:[%s3 + $0x20] sm:$0xf]
  %v419 = vld [vmem:[%s3 + $0x24] sm:$0xf]
  %v420 = vld [vmem:[%s3 + $0x28] sm:$0xf]
  %v421 = vld [vmem:[%s3 + $0x2c] sm:$0xf]
  %v422 = vld [vmem:[%s3 + $0x30] sm:$0xf]
  %v423 = vld [vmem:[%s3 + $0x34] sm:$0xf]
  %v424 = vld [vmem:[%s3 + $0x38] sm:$0xf]
  %v425 = vld [vmem:[%s3 + $0x3c] sm:$0xf]
  %v426 = vld [vmem:[%s3 + $0x40] sm:$0xf]
  %v427 = vld [vmem:[%s3 + $0x44] sm:$0xf]
  %v428 = vld [vmem:[%s3 + $0x48] sm:$0xf]
  %v429 = vld [vmem:[%s3 + $0x4c] sm:$0xf]
  %v430 = vld [vmem:[%s3 + $0x50] sm:$0xf]
  %v431 = vld [vmem:[%s3 + $0x54] sm:$0xf]
  %v432 = vld [vmem:[%s3 + $0x58] sm:$0xf]
  %v433 = vld [vmem:[%s3 + $0x5c] sm:$0xf]
  %v434 = vld [vmem:[%s3 + $0x60] sm:$0xf]
  %v435 = vld [vmem:[%s3 + $0x64] sm:$0xf]
  %v436 = vld [vmem:[%s3 + $0x68] sm:$0xf]
  %v437 = vld [vmem:[%s3 + $0x6c] sm:$0xf]
  %v438 = vld [vmem:[%s3 + $0x70] sm:$0xf]
  %v439 = vld [vmem:[%s3 + $0x74] sm:$0xf]
  %v440 = vld [vmem:[%s3 + $0x78] sm:$0xf]
  %v441 = vld [vmem:[%s3 + $0x7c] sm:$0xf]
  %v442 = vld [vmem:[%s3 + $0x80] sm:$0xf]
  %v443 = vld [vmem:[%s3 + $0x84] sm:$0xf]
  %v444 = vld [vmem:[%s3 + $0x88] sm:$0xf]
  %v445 = vld [vmem:[%s3 + $0x8c] sm:$0xf]
  %v446 = vld [vmem:[%s3 + $0x90] sm:$0xf]
  %v447 = vld [vmem:[%s3 + $0x94] sm:$0xf]
  %v448 = vld [vmem:[%s3 + $0x98] sm:$0xf]
  %v449 = vld [vmem:[%s3 + $0x9c] sm:$0xf]
  %v450 = vld [vmem:[%s3 + $0xa0] sm:$0xf]
  %v451 = vld [vmem:[%s3 + $0xa4] sm:$0xf]
  %v452 = vld [vmem:[%s3 + $0xa8] sm:$0xf]
  %v453 = vld [vmem:[%s3 + $0xac] sm:$0xf]
  %v454 = vld [vmem:[%s3 + $0xb0] sm:$0xf]
  %v455 = vld [vmem:[%s3 + $0xb4] sm:$0xf]
  %v456 = vld [vmem:[%s3 + $0xb8] sm:$0xf]
  %v457 = vld [vmem:[%s3 + $0xbc] sm:$0xf]
  %v458 = vld [vmem:[%s3 + $0xc0] sm:$0xf]
  %v459 = vld [vmem:[%s3 + $0xc4] sm:$0xf]
  %v460 = vld [vmem:[%s3 + $0xc8] sm:$0xf]
  %v461 = vld [vmem:[%s3 + $0xcc] sm:$0xf]
  %v462 = vld [vmem:[%s3 + $0xd0] sm:$0xf]
  %v463 = vld [vmem:[%s3 + $0xd4] sm:$0xf]
  %v464 = vld [vmem:[%s3 + $0xd8] sm:$0xf]
  %v465 = vld [vmem:[%s3 + $0xdc] sm:$0xf]
  %v466 = vld [vmem:[%s3 + $0xe0] sm:$0xf]
  %v467 = vld [vmem:[%s3 + $0xe4] sm:$0xf]
  %v468 = vld [vmem:[%s3 + $0xe8] sm:$0xf]
  %v469 = vld [vmem:[%s3 + $0xec] sm:$0xf]
  %v470 = vld [vmem:[%s3 + $0xf0] sm:$0xf]
  %v471 = vld [vmem:[%s3 + $0xf4] sm:$0xf]
  %v472 = vld [vmem:[%s3 + $0xf8] sm:$0xf]
  %v473 = vld [vmem:[%s3 + $0xfc] sm:$0xf]
  %v474 = vld [vmem:[%s3 + $0x100] sm:$0xf]
  %v475 = vld [vmem:[%s3 + $0x104] sm:$0xf]
  %v476 = vld [vmem:[%s3 + $0x108] sm:$0xf]
  %v477 = vld [vmem:[%s3 + $0x10c] sm:$0xf]
  %v478 = vld [vmem:[%s3 + $0x110] sm:$0xf]
  %v479 = vld [vmem:[%s3 + $0x114] sm:$0xf]
  %v480 = vld [vmem:[%s3 + $0x118] sm:$0xf]
  %v481 = vld [vmem:[%s3 + $0x11c] sm:$0xf]
  %v482 = vld [vmem:[%s3 + $0x120] sm:$0xf]
  %v483 = vld [vmem:[%s3 + $0x124] sm:$0xf]
  %v484 = vld [vmem:[%s3 + $0x128] sm:$0xf]
  %v485 = vld [vmem:[%s3 + $0x12c] sm:$0xf]
  %v486 = vld [vmem:[%s3 + $0x130] sm:$0xf]
  %v487 = vld [vmem:[%s3 + $0x134] sm:$0xf]
  %v488 = vld [vmem:[%s3 + $0x138] sm:$0xf]
  %v489 = vld [vmem:[%s3 + $0x13c] sm:$0xf]
  %v490 = vld [vmem:[%s3 + $0x140] sm:$0xf]
  %v491 = vld [vmem:[%s3 + $0x144] sm:$0xf]
  %v492 = vld [vmem:[%s3 + $0x148] sm:$0xf]
  %v493 = vld [vmem:[%s3 + $0x14c] sm:$0xf]
  %v494 = vld [vmem:[%s3 + $0x150] sm:$0xf]
  %v495 = vld [vmem:[%s3 + $0x154] sm:$0xf]
  %v496 = vld [vmem:[%s3 + $0x158] sm:$0xf]
  %v497 = vld [vmem:[%s3 + $0x15c] sm:$0xf]
  %v498 = vld [vmem:[%s3 + $0x160] sm:$0xf]
  %v499 = vld [vmem:[%s3 + $0x164] sm:$0xf]
  %v500 = vld [vmem:[%s3 + $0x168] sm:$0xf]
  %v501 = vld [vmem:[%s3 + $0x16c] sm:$0xf]
  %v502 = vld [vmem:[%s3 + $0x170] sm:$0xf]
  %v503 = vld [vmem:[%s3 + $0x174] sm:$0xf]
  %v504 = vld [vmem:[%s3 + $0x178] sm:$0xf]
  %v505 = vld [vmem:[%s3 + $0x17c] sm:$0xf]
  %v506 = vld [vmem:[%s3 + $0x180] sm:$0xf]
  %v507 = vld [vmem:[%s3 + $0x184] sm:$0xf]
  %v508 = vld [vmem:[%s3 + $0x188] sm:$0xf]
  %v509 = vld [vmem:[%s3 + $0x18c] sm:$0xf]
  %v510 = vld [vmem:[%s3 + $0x190] sm:$0xf]
  %v511 = vld [vmem:[%s3 + $0x194] sm:$0xf]
  %v512 = vld [vmem:[%s3 + $0x198] sm:$0xf]
  %v513 = vld [vmem:[%s3 + $0x19c] sm:$0xf]
  %v514 = vld [vmem:[%s3 + $0x1a0] sm:$0xf]
  %v515 = vld [vmem:[%s3 + $0x1a4] sm:$0xf]
  %v516 = vld [vmem:[%s3 + $0x1a8] sm:$0xf]
  %v517 = vld [vmem:[%s3 + $0x1ac] sm:$0xf]
  %v518 = vld [vmem:[%s3 + $0x1b0] sm:$0xf]
  %v519 = vld [vmem:[%s3 + $0x1b4] sm:$0xf]
  %v520 = vld [vmem:[%s3 + $0x1b8] sm:$0xf]
  %v521 = vld [vmem:[%s3 + $0x1bc] sm:$0xf]
  %v522 = vld [vmem:[%s3 + $0x1c0] sm:$0xf]
  %v523 = vld [vmem:[%s3 + $0x1c4] sm:$0xf]
  %v524 = vld [vmem:[%s3 + $0x1c8] sm:$0xf]
  %v525 = vld [vmem:[%s3 + $0x1cc] sm:$0xf]
  %v526 = vld [vmem:[%s3 + $0x1d0] sm:$0xf]
  %v527 = vld [vmem:[%s3 + $0x1d4] sm:$0xf]
  %v528 = vld [vmem:[%s3 + $0x1d8] sm:$0xf]
  %v529 = vld [vmem:[%s3 + $0x1dc] sm:$0xf]
  %v530 = vld [vmem:[%s3 + $0x1e0] sm:$0xf]
  %v531 = vld [vmem:[%s3 + $0x1e4] sm:$0xf]
  %v532 = vld [vmem:[%s3 + $0x1e8] sm:$0xf]
  %v533 = vld [vmem:[%s3 + $0x1ec] sm:$0xf]
  %v534 = vld [vmem:[%s3 + $0x1f0] sm:$0xf]
  %v535 = vld [vmem:[%s3 + $0x1f4] sm:$0xf]
  %v536 = vld [vmem:[%s3 + $0x1f8] sm:$0xf]
  %v537 = vld [vmem:[%s3 + $0x1fc] sm:$0xf]
  %v538 = vld [vmem:[%s3 + $0x200] sm:$0xf]
  %v539 = vld [vmem:[%s3 + $0x204] sm:$0xf]
  %v540 = vld [vmem:[%s3 + $0x208] sm:$0xf]
  %v541 = vld [vmem:[%s3 + $0x20c] sm:$0xf]
  %v542 = vld [vmem:[%s3 + $0x210] sm:$0xf]
  %v543 = vld [vmem:[%s3 + $0x214] sm:$0xf]
  %v544 = vld [vmem:[%s3 + $0x218] sm:$0xf]
  %v545 = vld [vmem:[%s3 + $0x21c] sm:$0xf]
  %v546 = vld [vmem:[%s3 + $0x220] sm:$0xf]
  %v547 = vld [vmem:[%s3 + $0x224] sm:$0xf]
  %v548 = vld [vmem:[%s3 + $0x228] sm:$0xf]
  %v549 = vld [vmem:[%s3 + $0x22c] sm:$0xf]
  %v550 = vld [vmem:[%s3 + $0x230] sm:$0xf]
  %v551 = vld [vmem:[%s3 + $0x234] sm:$0xf]
  %v552 = vld [vmem:[%s3 + $0x238] sm:$0xf]
  %v553 = vld [vmem:[%s3 + $0x23c] sm:$0xf]
  %v554 = vld [vmem:[%s3 + $0x240] sm:$0xf]
  %v555 = vld [vmem:[%s3 + $0x244] sm:$0xf]
  %v556 = vld [vmem:[%s3 + $0x248] sm:$0xf]
  %v557 = vld [vmem:[%s3 + $0x24c] sm:$0xf]
  %v558 = vld [vmem:[%s3 + $0x250] sm:$0xf]
  %v559 = vld [vmem:[%s3 + $0x254] sm:$0xf]
  %v560 = vld [vmem:[%s3 + $0x258] sm:$0xf]
  %v561 = vld [vmem:[%s3 + $0x25c] sm:$0xf]
  %v562 = vld [vmem:[%s3 + $0x260] sm:$0xf]
  %v563 = vld [vmem:[%s3 + $0x264] sm:$0xf]
  %v564 = vld [vmem:[%s3 + $0x268] sm:$0xf]
  %v565 = vld [vmem:[%s3 + $0x26c] sm:$0xf]
  %v566 = vld [vmem:[%s3 + $0x270] sm:$0xf]
  %v567 = vld [vmem:[%s3 + $0x274] sm:$0xf]
  %v568 = vld [vmem:[%s3 + $0x278] sm:$0xf]
  %v569 = vld [vmem:[%s3 + $0x27c] sm:$0xf]
  %v570 = vld [vmem:[%s3 + $0x280] sm:$0xf]
  %v571 = vld [vmem:[%s3 + $0x284] sm:$0xf]
  %v572 = vld [vmem:[%s3 + $0x288] sm:$0xf]
  %v573 = vld [vmem:[%s3 + $0x28c] sm:$0xf]
  %v574 = vld [vmem:[%s3 + $0x290] sm:$0xf]
  %v575 = vld [vmem:[%s3 + $0x294] sm:$0xf]
  %v576 = vld [vmem:[%s3 + $0x298] sm:$0xf]
  %v577 = vld [vmem:[%s3 + $0x29c] sm:$0xf]
  %v578 = vld [vmem:[%s3 + $0x2a0] sm:$0xf]
  %v579 = vld [vmem:[%s3 + $0x2a4] sm:$0xf]
  %v580 = vld [vmem:[%s3 + $0x2a8] sm:$0xf]
  %v581 = vld [vmem:[%s3 + $0x2ac] sm:$0xf]
  %v582 = vld [vmem:[%s3 + $0x2b0] sm:$0xf]
  %v583 = vld [vmem:[%s3 + $0x2b4] sm:$0xf]
  %v584 = vld [vmem:[%s3 + $0x2b8] sm:$0xf]
  %v585 = vld [vmem:[%s3 + $0x2bc] sm:$0xf]
  %v586 = vld [vmem:[%s3 + $0x2c0] sm:$0xf]
  %v587 = vld [vmem:[%s3 + $0x2c4] sm:$0xf]
  %v588 = vld [vmem:[%s3 + $0x2c8] sm:$0xf]
  %v589 = vld [vmem:[%s3 + $0x2cc] sm:$0xf]
  %v590 = vld [vmem:[%s3 + $0x2d0] sm:$0xf]
  %v591 = vld [vmem:[%s3 + $0x2d4] sm:$0xf]
  %v592 = vld [vmem:[%s3 + $0x2d8] sm:$0xf]
  %v593 = vld [vmem:[%s3 + $0x2dc] sm:$0xf]
  %v594 = vld [vmem:[%s3 + $0x2e0] sm:$0xf]
  %v595 = vld [vmem:[%s3 + $0x2e4] sm:$0xf]
  %v596 = vld [vmem:[%s3 + $0x2e8] sm:$0xf]
  %v597 = vld [vmem:[%s3 + $0x2ec] sm:$0xf]
  %v598 = vld [vmem:[%s3 + $0x2f0] sm:$0xf]
  %v599 = vld [vmem:[%s3 + $0x2f4] sm:$0xf]
  %v600 = vld [vmem:[%s3 + $0x2f8] sm:$0xf]
  %v601 = vld [vmem:[%s3 + $0x2fc] sm:$0xf]
  %v602 = vld [vmem:[%s3 + $0x300] sm:$0xf]
  %v603 = vld [vmem:[%s3 + $0x304] sm:$0xf]
  %v604 = vld [vmem:[%s3 + $0x308] sm:$0xf]
  %v605 = vld [vmem:[%s3 + $0x30c] sm:$0xf]
  %v606 = vld [vmem:[%s3 + $0x310] sm:$0xf]
  %v607 = vld [vmem:[%s3 + $0x314] sm:$0xf]
  %v608 = vld [vmem:[%s3 + $0x318] sm:$0xf]
  %v609 = vld [vmem:[%s3 + $0x31c] sm:$0xf]
  %v610 = vld [vmem:[%s3 + $0x320] sm:$0xf]
  %v611 = vld [vmem:[%s3 + $0x324] sm:$0xf]
  %v612 = vld [vmem:[%s3 + $0x328] sm:$0xf]
  %v613 = vld [vmem:[%s3 + $0x32c] sm:$0xf]
  %v614 = vld [vmem:[%s3 + $0x330] sm:$0xf]
  %v615 = vld [vmem:[%s3 + $0x334] sm:$0xf]
  %v616 = vld [vmem:[%s3 + $0x338] sm:$0xf]
  %v617 = vld [vmem:[%s3 + $0x33c] sm:$0xf]
  %v618 = vld [vmem:[%s3 + $0x340] sm:$0xf]
  %v619 = vld [vmem:[%s3 + $0x344] sm:$0xf]
  %v620 = vld [vmem:[%s3 + $0x348] sm:$0xf]
  %v621 = vld [vmem:[%s3 + $0x34c] sm:$0xf]
  %v622 = vld [vmem:[%s3 + $0x350] sm:$0xf]
  %v623 = vld [vmem:[%s3 + $0x354] sm:$0xf]
  %v624 = vld [vmem:[%s3 + $0x358] sm:$0xf]
  %v625 = vld [vmem:[%s3 + $0x35c] sm:$0xf]
  %v626 = vld [vmem:[%s3 + $0x360] sm:$0xf]
  %v627 = vld [vmem:[%s3 + $0x364] sm:$0xf]
  %v628 = vld [vmem:[%s3 + $0x368] sm:$0xf]
  %v629 = vld [vmem:[%s3 + $0x36c] sm:$0xf]
  %v630 = vld [vmem:[%s3 + $0x370] sm:$0xf]
  %v631 = vld [vmem:[%s3 + $0x374] sm:$0xf]
  %v632 = vld [vmem:[%s3 + $0x378] sm:$0xf]
  %v633 = vld [vmem:[%s3 + $0x37c] sm:$0xf]
  %v634 = vld [vmem:[%s3 + $0x380] sm:$0xf]
  %v635 = vld [vmem:[%s3 + $0x384] sm:$0xf]
  %v636 = vld [vmem:[%s3 + $0x388] sm:$0xf]
  %v637 = vld [vmem:[%s3 + $0x38c] sm:$0xf]
  %v638 = vld [vmem:[%s3 + $0x390] sm:$0xf]
  %v639 = vld [vmem:[%s3 + $0x394] sm:$0xf]
  %v640 = vld [vmem:[%s3 + $0x398] sm:$0xf]
  %v641 = vld [vmem:[%s3 + $0x39c] sm:$0xf]
  %v642 = vld [vmem:[%s3 + $0x3a0] sm:$0xf]
  %v643 = vld [vmem:[%s3 + $0x3a4] sm:$0xf]
  %v644 = vld [vmem:[%s3 + $0x3a8] sm:$0xf]
  %v645 = vld [vmem:[%s3 + $0x3ac] sm:$0xf]
  %v646 = vld [vmem:[%s3 + $0x3b0] sm:$0xf]
  %v647 = vld [vmem:[%s3 + $0x3b4] sm:$0xf]
  %v648 = vld [vmem:[%s3 + $0x3b8] sm:$0xf]
  %v649 = vld [vmem:[%s3 + $0x3bc] sm:$0xf]
  %v650 = vld [vmem:[%s3 + $0x3c0] sm:$0xf]
  %v651 = vld [vmem:[%s3 + $0x3c4] sm:$0xf]
  %v652 = vld [vmem:[%s3 + $0x3c8] sm:$0xf]
  %v653 = vld [vmem:[%s3 + $0x3cc] sm:$0xf]
  %v654 = vld [vmem:[%s3 + $0x3d0] sm:$0xf]
  %v655 = vld [vmem:[%s3 + $0x3d4] sm:$0xf]
  %v656 = vld [vmem:[%s3 + $0x3d8] sm:$0xf]
  %v657 = vld [vmem:[%s3 + $0x3dc] sm:$0xf]
  %v658 = vld [vmem:[%s3 + $0x3e0] sm:$0xf]
  %v659 = vld [vmem:[%s3 + $0x3e4] sm:$0xf]
  %v660 = vld [vmem:[%s3 + $0x3e8] sm:$0xf]
  %v661 = vld [vmem:[%s3 + $0x3ec] sm:$0xf]
  %v662 = vld [vmem:[%s3 + $0x3f0] sm:$0xf]
  %v663 = vld [vmem:[%s3 + $0x3f4] sm:$0xf]
  %v664 = vld [vmem:[%s3 + $0x3f8] sm:$0xf]
  %v665 = vld [vmem:[%s3 + $0x3fc] sm:$0xf]
  %v922 = vunpack.c.l.b16 %v410
  %v923 = vunpack.c.l.b16 %v411
  %v924 = vunpack.c.l.b16 %v412
  %v925 = vunpack.c.l.b16 %v413
  %v926 = vunpack.c.l.b16 %v414
  %v927 = vunpack.c.l.b16 %v415
  %v928 = vunpack.c.l.b16 %v416
  %v929 = vunpack.c.l.b16 %v417
  %v930 = vunpack.c.l.b16 %v418
  %v931 = vunpack.c.l.b16 %v419
  %v932 = vunpack.c.l.b16 %v420
  %v933 = vunpack.c.l.b16 %v421
  %v934 = vunpack.c.l.b16 %v422
  %v935 = vunpack.c.l.b16 %v423
  %v936 = vunpack.c.l.b16 %v424
  %v937 = vunpack.c.l.b16 %v425
  %v938 = vunpack.c.l.b16 %v426
  %v939 = vunpack.c.l.b16 %v427
  %v940 = vunpack.c.l.b16 %v428
  %v941 = vunpack.c.l.b16 %v429
  %v942 = vunpack.c.l.b16 %v430
  %v943 = vunpack.c.l.b16 %v431
  %v944 = vunpack.c.l.b16 %v432
  %v945 = vunpack.c.l.b16 %v433
  %v946 = vunpack.c.l.b16 %v434
  %v947 = vunpack.c.l.b16 %v435
  %v948 = vunpack.c.l.b16 %v436
  %v949 = vunpack.c.l.b16 %v437
  %v950 = vunpack.c.l.b16 %v438
  %v951 = vunpack.c.l.b16 %v439
  %v952 = vunpack.c.l.b16 %v440
  %v953 = vunpack.c.l.b16 %v441
  %v954 = vunpack.c.l.b16 %v442
  %v955 = vunpack.c.l.b16 %v443
  %v956 = vunpack.c.l.b16 %v444
  %v957 = vunpack.c.l.b16 %v445
  %v958 = vunpack.c.l.b16 %v446
  %v959 = vunpack.c.l.b16 %v447
  %v960 = vunpack.c.l.b16 %v448
  %v961 = vunpack.c.l.b16 %v449
  %v962 = vunpack.c.l.b16 %v450
  %v963 = vunpack.c.l.b16 %v451
  %v964 = vunpack.c.l.b16 %v452
  %v965 = vunpack.c.l.b16 %v453
  %v966 = vunpack.c.l.b16 %v454
  %v967 = vunpack.c.l.b16 %v455
  %v968 = vunpack.c.l.b16 %v456
  %v969 = vunpack.c.l.b16 %v457
  %v970 = vunpack.c.l.b16 %v458
  %v971 = vunpack.c.l.b16 %v459
  %v972 = vunpack.c.l.b16 %v460
  %v973 = vunpack.c.l.b16 %v461
  %v974 = vunpack.c.l.b16 %v462
  %v975 = vunpack.c.l.b16 %v463
  %v976 = vunpack.c.l.b16 %v464
  %v977 = vunpack.c.l.b16 %v465
  %v978 = vunpack.c.l.b16 %v466
  %v979 = vunpack.c.l.b16 %v467
  %v980 = vunpack.c.l.b16 %v468
  %v981 = vunpack.c.l.b16 %v469
  %v982 = vunpack.c.l.b16 %v470
  %v983 = vunpack.c.l.b16 %v471
  %v984 = vunpack.c.l.b16 %v472
  %v985 = vunpack.c.l.b16 %v473
  %v986 = vunpack.c.l.b16 %v474
  %v987 = vunpack.c.l.b16 %v475
  %v988 = vunpack.c.l.b16 %v476
  %v989 = vunpack.c.l.b16 %v477
  %v990 = vunpack.c.l.b16 %v478
  %v991 = vunpack.c.l.b16 %v479
  %v992 = vunpack.c.l.b16 %v480
  %v993 = vunpack.c.l.b16 %v481
  %v994 = vunpack.c.l.b16 %v482
  %v995 = vunpack.c.l.b16 %v483
  %v996 = vunpack.c.l.b16 %v484
  %v997 = vunpack.c.l.b16 %v485
  %v998 = vunpack.c.l.b16 %v486
  %v999 = vunpack.c.l.b16 %v487
  %v1000 = vunpack.c.l.b16 %v488
  %v1001 = vunpack.c.l.b16 %v489
  %v1002 = vunpack.c.l.b16 %v490
  %v1003 = vunpack.c.l.b16 %v491
  %v1004 = vunpack.c.l.b16 %v492
  %v1005 = vunpack.c.l.b16 %v493
  %v1006 = vunpack.c.l.b16 %v494
  %v1007 = vunpack.c.l.b16 %v495
  %v1008 = vunpack.c.l.b16 %v496
  %v1009 = vunpack.c.l.b16 %v497
  %v1010 = vunpack.c.l.b16 %v498
  %v1011 = vunpack.c.l.b16 %v499
  %v1012 = vunpack.c.l.b16 %v500
  %v1013 = vunpack.c.l.b16 %v501
  %v1014 = vunpack.c.l.b16 %v502
  %v1015 = vunpack.c.l.b16 %v503
  %v1016 = vunpack.c.l.b16 %v504
  %v1017 = vunpack.c.l.b16 %v505
  %v1018 = vunpack.c.l.b16 %v506
  %v1019 = vunpack.c.l.b16 %v507
  %v1020 = vunpack.c.l.b16 %v508
  %v1021 = vunpack.c.l.b16 %v509
  %v1022 = vunpack.c.l.b16 %v510
  %v1023 = vunpack.c.l.b16 %v511
  %v1024 = vunpack.c.l.b16 %v512
  %v1025 = vunpack.c.l.b16 %v513
  %v1026 = vunpack.c.l.b16 %v514
  %v1027 = vunpack.c.l.b16 %v515
  %v1028 = vunpack.c.l.b16 %v516
  %v1029 = vunpack.c.l.b16 %v517
  %v1030 = vunpack.c.l.b16 %v518
  %v1031 = vunpack.c.l.b16 %v519
  %v1032 = vunpack.c.l.b16 %v520
  %v1033 = vunpack.c.l.b16 %v521
  %v1034 = vunpack.c.l.b16 %v522
  %v1035 = vunpack.c.l.b16 %v523
  %v1036 = vunpack.c.l.b16 %v524
  %v1037 = vunpack.c.l.b16 %v525
  %v1038 = vunpack.c.l.b16 %v526
  %v1039 = vunpack.c.l.b16 %v527
  %v1040 = vunpack.c.l.b16 %v528
  %v1041 = vunpack.c.l.b16 %v529
  %v1042 = vunpack.c.l.b16 %v530
  %v1043 = vunpack.c.l.b16 %v531
  %v1044 = vunpack.c.l.b16 %v532
  %v1045 = vunpack.c.l.b16 %v533
  %v1046 = vunpack.c.l.b16 %v534
  %v1047 = vunpack.c.l.b16 %v535
  %v1048 = vunpack.c.l.b16 %v536
  %v1049 = vunpack.c.l.b16 %v537
  %v1050 = vunpack.c.l.b16 %v538
  %v1051 = vunpack.c.l.b16 %v539
  %v1052 = vunpack.c.l.b16 %v540
  %v1053 = vunpack.c.l.b16 %v541
  %v1054 = vunpack.c.l.b16 %v542
  %v1055 = vunpack.c.l.b16 %v543
  %v1056 = vunpack.c.l.b16 %v544
  %v1057 = vunpack.c.l.b16 %v545
  %v1058 = vunpack.c.l.b16 %v546
  %v1059 = vunpack.c.l.b16 %v547
  %v1060 = vunpack.c.l.b16 %v548
  %v1061 = vunpack.c.l.b16 %v549
  %v1062 = vunpack.c.l.b16 %v550
  %v1063 = vunpack.c.l.b16 %v551
  %v1064 = vunpack.c.l.b16 %v552
  %v1065 = vunpack.c.l.b16 %v553
  %v1066 = vunpack.c.l.b16 %v554
  %v1067 = vunpack.c.l.b16 %v555
  %v1068 = vunpack.c.l.b16 %v556
  %v1069 = vunpack.c.l.b16 %v557
  %v1070 = vunpack.c.l.b16 %v558
  %v1071 = vunpack.c.l.b16 %v559
  %v1072 = vunpack.c.l.b16 %v560
  %v1073 = vunpack.c.l.b16 %v561
  %v1074 = vunpack.c.l.b16 %v562
  %v1075 = vunpack.c.l.b16 %v563
  %v1076 = vunpack.c.l.b16 %v564
  %v1077 = vunpack.c.l.b16 %v565
  %v1078 = vunpack.c.l.b16 %v566
  %v1079 = vunpack.c.l.b16 %v567
  %v1080 = vunpack.c.l.b16 %v568
  %v1081 = vunpack.c.l.b16 %v569
  %v1082 = vunpack.c.l.b16 %v570
  %v1083 = vunpack.c.l.b16 %v571
  %v1084 = vunpack.c.l.b16 %v572
  %v1085 = vunpack.c.l.b16 %v573
  %v1086 = vunpack.c.l.b16 %v574
  %v1087 = vunpack.c.l.b16 %v575
  %v1088 = vunpack.c.l.b16 %v576
  %v1089 = vunpack.c.l.b16 %v577
  %v1090 = vunpack.c.l.b16 %v578
  %v1091 = vunpack.c.l.b16 %v579
  %v1092 = vunpack.c.l.b16 %v580
  %v1093 = vunpack.c.l.b16 %v581
  %v1094 = vunpack.c.l.b16 %v582
  %v1095 = vunpack.c.l.b16 %v583
  %v1096 = vunpack.c.l.b16 %v584
  %v1097 = vunpack.c.l.b16 %v585
  %v1098 = vunpack.c.l.b16 %v586
  %v1099 = vunpack.c.l.b16 %v587
  %v1100 = vunpack.c.l.b16 %v588
  %v1101 = vunpack.c.l.b16 %v589
  %v1102 = vunpack.c.l.b16 %v590
  %v1103 = vunpack.c.l.b16 %v591
  %v1104 = vunpack.c.l.b16 %v592
  %v1105 = vunpack.c.l.b16 %v593
  %v1106 = vunpack.c.l.b16 %v594
  %v1107 = vunpack.c.l.b16 %v595
  %v1108 = vunpack.c.l.b16 %v596
  %v1109 = vunpack.c.l.b16 %v597
  %v1110 = vunpack.c.l.b16 %v598
  %v1111 = vunpack.c.l.b16 %v599
  %v1112 = vunpack.c.l.b16 %v600
  %v1113 = vunpack.c.l.b16 %v601
  %v1114 = vunpack.c.l.b16 %v602
  %v1115 = vunpack.c.l.b16 %v603
  %v1116 = vunpack.c.l.b16 %v604
  %v1117 = vunpack.c.l.b16 %v605
  %v1118 = vunpack.c.l.b16 %v606
  %v1119 = vunpack.c.l.b16 %v607
  %v1120 = vunpack.c.l.b16 %v608
  %v1121 = vunpack.c.l.b16 %v609
  %v1122 = vunpack.c.l.b16 %v610
  %v1123 = vunpack.c.l.b16 %v611
  %v1124 = vunpack.c.l.b16 %v612
  %v1125 = vunpack.c.l.b16 %v613
  %v1126 = vunpack.c.l.b16 %v614
  %v1127 = vunpack.c.l.b16 %v615
  %v1128 = vunpack.c.l.b16 %v616
  %v1129 = vunpack.c.l.b16 %v617
  %v1130 = vunpack.c.l.b16 %v618
  %v1131 = vunpack.c.l.b16 %v619
  %v1132 = vunpack.c.l.b16 %v620
  %v1133 = vunpack.c.l.b16 %v621
  %v1134 = vunpack.c.l.b16 %v622
  %v1135 = vunpack.c.l.b16 %v623
  %v1136 = vunpack.c.l.b16 %v624
  %v1137 = vunpack.c.l.b16 %v625
  %v1138 = vunpack.c.l.b16 %v626
  %v1139 = vunpack.c.l.b16 %v627
  %v1140 = vunpack.c.l.b16 %v628
  %v1141 = vunpack.c.l.b16 %v629
  %v1142 = vunpack.c.l.b16 %v630
  %v1143 = vunpack.c.l.b16 %v631
  %v1144 = vunpack.c.l.b16 %v632
  %v1145 = vunpack.c.l.b16 %v633
  %v1146 = vunpack.c.l.b16 %v634
  %v1147 = vunpack.c.l.b16 %v635
  %v1148 = vunpack.c.l.b16 %v636
  %v1149 = vunpack.c.l.b16 %v637
  %v1150 = vunpack.c.l.b16 %v638
  %v1151 = vunpack.c.l.b16 %v639
  %v1152 = vunpack.c.l.b16 %v640
  %v1153 = vunpack.c.l.b16 %v641
  %v1154 = vunpack.c.l.b16 %v642
  %v1155 = vunpack.c.l.b16 %v643
  %v1156 = vunpack.c.l.b16 %v644
  %v1157 = vunpack.c.l.b16 %v645
  %v1158 = vunpack.c.l.b16 %v646
  %v1159 = vunpack.c.l.b16 %v647
  %v1160 = vunpack.c.l.b16 %v648
  %v1161 = vunpack.c.l.b16 %v649
  %v1162 = vunpack.c.l.b16 %v650
  %v1163 = vunpack.c.l.b16 %v651
  %v1164 = vunpack.c.l.b16 %v652
  %v1165 = vunpack.c.l.b16 %v653
  %v1166 = vunpack.c.l.b16 %v654
  %v1167 = vunpack.c.l.b16 %v655
  %v1168 = vunpack.c.l.b16 %v656
  %v1169 = vunpack.c.l.b16 %v657
  %v1170 = vunpack.c.l.b16 %v658
  %v1171 = vunpack.c.l.b16 %v659
  %v1172 = vunpack.c.l.b16 %v660
  %v1173 = vunpack.c.l.b16 %v661
  %v1174 = vunpack.c.l.b16 %v662
  %v1175 = vunpack.c.l.b16 %v663
  %v1176 = vunpack.c.l.b16 %v664
  %v1177 = vunpack.c.l.b16 %v665
  %v1178 = vpack.c.b16 %v923, %v922
  %v1179 = vpack.c.b16 %v925, %v924
  %v1180 = vpack.c.b16 %v927, %v926
  %v1181 = vpack.c.b16 %v929, %v928
  %v1182 = vpack.c.b16 %v931, %v930
  %v1183 = vpack.c.b16 %v933, %v932
  %v1184 = vpack.c.b16 %v935, %v934
  %v1185 = vpack.c.b16 %v937, %v936
  %v1186 = vpack.c.b16 %v939, %v938
  %v1187 = vpack.c.b16 %v941, %v940
  %v1188 = vpack.c.b16 %v943, %v942
  %v1189 = vpack.c.b16 %v945, %v944
  %v1190 = vpack.c.b16 %v947, %v946
  %v1191 = vpack.c.b16 %v949, %v948
  %v1192 = vpack.c.b16 %v951, %v950
  %v1193 = vpack.c.b16 %v953, %v952
  %v1194 = vpack.c.b16 %v955, %v954
  %v1195 = vpack.c.b16 %v957, %v956
  %v1196 = vpack.c.b16 %v959, %v958
  %v1197 = vpack.c.b16 %v961, %v960
  %v1198 = vpack.c.b16 %v963, %v962
  %v1199 = vpack.c.b16 %v965, %v964
  %v1200 = vpack.c.b16 %v967, %v966
  %v1201 = vpack.c.b16 %v969, %v968
  %v1202 = vpack.c.b16 %v971, %v970
  %v1203 = vpack.c.b16 %v973, %v972
  %v1204 = vpack.c.b16 %v975, %v974
  %v1205 = vpack.c.b16 %v977, %v976
  %v1206 = vpack.c.b16 %v979, %v978
  %v1207 = vpack.c.b16 %v981, %v980
  %v1208 = vpack.c.b16 %v983, %v982
  %v1209 = vpack.c.b16 %v985, %v984
  %v1210 = vpack.c.b16 %v987, %v986
  %v1211 = vpack.c.b16 %v989, %v988
  %v1212 = vpack.c.b16 %v991, %v990
  %v1213 = vpack.c.b16 %v993, %v992
  %v1214 = vpack.c.b16 %v995, %v994
  %v1215 = vpack.c.b16 %v997, %v996
  %v1216 = vpack.c.b16 %v999, %v998
  %v1217 = vpack.c.b16 %v1001, %v1000
  %v1218 = vpack.c.b16 %v1003, %v1002
  %v1219 = vpack.c.b16 %v1005, %v1004
  %v1220 = vpack.c.b16 %v1007, %v1006
  %v1221 = vpack.c.b16 %v1009, %v1008
  %v1222 = vpack.c.b16 %v1011, %v1010
  %v1223 = vpack.c.b16 %v1013, %v1012
  %v1224 = vpack.c.b16 %v1015, %v1014
  %v1225 = vpack.c.b16 %v1017, %v1016
  %v1226 = vpack.c.b16 %v1019, %v1018
  %v1227 = vpack.c.b16 %v1021, %v1020
  %v1228 = vpack.c.b16 %v1023, %v1022
  %v1229 = vpack.c.b16 %v1025, %v1024
  %v1230 = vpack.c.b16 %v1027, %v1026
  %v1231 = vpack.c.b16 %v1029, %v1028
  %v1232 = vpack.c.b16 %v1031, %v1030
  %v1233 = vpack.c.b16 %v1033, %v1032
  %v1234 = vpack.c.b16 %v1035, %v1034
  %v1235 = vpack.c.b16 %v1037, %v1036
  %v1236 = vpack.c.b16 %v1039, %v1038
  %v1237 = vpack.c.b16 %v1041, %v1040
  %v1238 = vpack.c.b16 %v1043, %v1042
  %v1239 = vpack.c.b16 %v1045, %v1044
  %v1240 = vpack.c.b16 %v1047, %v1046
  %v1241 = vpack.c.b16 %v1049, %v1048
  %v1242 = vpack.c.b16 %v1051, %v1050
  %v1243 = vpack.c.b16 %v1053, %v1052
  %v1244 = vpack.c.b16 %v1055, %v1054
  %v1245 = vpack.c.b16 %v1057, %v1056
  %v1246 = vpack.c.b16 %v1059, %v1058
  %v1247 = vpack.c.b16 %v1061, %v1060
  %v1248 = vpack.c.b16 %v1063, %v1062
  %v1249 = vpack.c.b16 %v1065, %v1064
  %v1250 = vpack.c.b16 %v1067, %v1066
  %v1251 = vpack.c.b16 %v1069, %v1068
  %v1252 = vpack.c.b16 %v1071, %v1070
  %v1253 = vpack.c.b16 %v1073, %v1072
  %v1254 = vpack.c.b16 %v1075, %v1074
  %v1255 = vpack.c.b16 %v1077, %v1076
  %v1256 = vpack.c.b16 %v1079, %v1078
  %v1257 = vpack.c.b16 %v1081, %v1080
  %v1258 = vpack.c.b16 %v1083, %v1082
  %v1259 = vpack.c.b16 %v1085, %v1084
  %v1260 = vpack.c.b16 %v1087, %v1086
  %v1261 = vpack.c.b16 %v1089, %v1088
  %v1262 = vpack.c.b16 %v1091, %v1090
  %v1263 = vpack.c.b16 %v1093, %v1092
  %v1264 = vpack.c.b16 %v1095, %v1094
  %v1265 = vpack.c.b16 %v1097, %v1096
  %v1266 = vpack.c.b16 %v1099, %v1098
  %v1267 = vpack.c.b16 %v1101, %v1100
  %v1268 = vpack.c.b16 %v1103, %v1102
  %v1269 = vpack.c.b16 %v1105, %v1104
  %v1270 = vpack.c.b16 %v1107, %v1106
  %v1271 = vpack.c.b16 %v1109, %v1108
  %v1272 = vpack.c.b16 %v1111, %v1110
  %v1273 = vpack.c.b16 %v1113, %v1112
  %v1274 = vpack.c.b16 %v1115, %v1114
  %v1275 = vpack.c.b16 %v1117, %v1116
  %v1276 = vpack.c.b16 %v1119, %v1118
  %v1277 = vpack.c.b16 %v1121, %v1120
  %v1278 = vpack.c.b16 %v1123, %v1122
  %v1279 = vpack.c.b16 %v1125, %v1124
  %v1280 = vpack.c.b16 %v1127, %v1126
  %v1281 = vpack.c.b16 %v1129, %v1128
  %v1282 = vpack.c.b16 %v1131, %v1130
  %v1283 = vpack.c.b16 %v1133, %v1132
  %v1284 = vpack.c.b16 %v1135, %v1134
  %v1285 = vpack.c.b16 %v1137, %v1136
  %v1286 = vpack.c.b16 %v1139, %v1138
  %v1287 = vpack.c.b16 %v1141, %v1140
  %v1288 = vpack.c.b16 %v1143, %v1142
  %v1289 = vpack.c.b16 %v1145, %v1144
  %v1290 = vpack.c.b16 %v1147, %v1146
  %v1291 = vpack.c.b16 %v1149, %v1148
  %v1292 = vpack.c.b16 %v1151, %v1150
  %v1293 = vpack.c.b16 %v1153, %v1152
  %v1294 = vpack.c.b16 %v1155, %v1154
  %v1295 = vpack.c.b16 %v1157, %v1156
  %v1296 = vpack.c.b16 %v1159, %v1158
  %v1297 = vpack.c.b16 %v1161, %v1160
  %v1298 = vpack.c.b16 %v1163, %v1162
  %v1299 = vpack.c.b16 %v1165, %v1164
  %v1300 = vpack.c.b16 %v1167, %v1166
  %v1301 = vpack.c.b16 %v1169, %v1168
  %v1302 = vpack.c.b16 %v1171, %v1170
  %v1303 = vpack.c.b16 %v1173, %v1172
  %v1304 = vpack.c.b16 %v1175, %v1174
  %v1305 = vpack.c.b16 %v1177, %v1176
  %1434 = vmatprep.subr.bf16.mxu0 0
  %1435 = vmatpush1.bf16.msra.mxu0 %v1178
  %1436 = vmatprep.subr.bf16.mxu0 0
  %1437 = vmatpush1.bf16.msra.mxu0 %v1179
  %1438 = vmatprep.subr.bf16.mxu0 0
  %1439 = vmatpush1.bf16.msra.mxu0 %v1180
  %1440 = vmatprep.subr.bf16.mxu0 0
  %1441 = vmatpush1.bf16.msra.mxu0 %v1181
  %1442 = vmatprep.subr.bf16.mxu0 0
  %1443 = vmatpush1.bf16.msra.mxu0 %v1182
  %1444 = vmatprep.subr.bf16.mxu0 0
  %1445 = vmatpush1.bf16.msra.mxu0 %v1183
  %1446 = vmatprep.subr.bf16.mxu0 0
  %1447 = vmatpush1.bf16.msra.mxu0 %v1184
  %1448 = vmatprep.subr.bf16.mxu0 0
  %1449 = vmatpush1.bf16.msra.mxu0 %v1185
  %1450 = vmatprep.subr.bf16.mxu0 0
  %1451 = vmatpush1.bf16.msra.mxu0 %v1186
  %1452 = vmatprep.subr.bf16.mxu0 0
  %1453 = vmatpush1.bf16.msra.mxu0 %v1187
  %1454 = vmatprep.subr.bf16.mxu0 0
  %1455 = vmatpush1.bf16.msra.mxu0 %v1188
  %1456 = vmatprep.subr.bf16.mxu0 0
  %1457 = vmatpush1.bf16.msra.mxu0 %v1189
  %1458 = vmatprep.subr.bf16.mxu0 0
  %1459 = vmatpush1.bf16.msra.mxu0 %v1190
  %1460 = vmatprep.subr.bf16.mxu0 0
  %1461 = vmatpush1.bf16.msra.mxu0 %v1191
  %1462 = vmatprep.subr.bf16.mxu0 0
  %1463 = vmatpush1.bf16.msra.mxu0 %v1192
  %1464 = vmatprep.subr.bf16.mxu0 0
  %1465 = vmatpush1.bf16.msra.mxu0 %v1193
  %1466 = vmatprep.mubr.bf16.mxu0 %v395
  %1467 = vmatmul.mubr.bf16.gmra.mrb[0].mxu0 %v394
  %v1468 = vpop.f32.mrb[0].mxu0
  %v1469 = vadd.f32 0.0, %v1468
  %v1470 = vpop.f32.mrb[0].mxu0
  %v1471 = vpop.f32.mrb[0].mxu0
  %v1472 = vadd.f32 0.0, %v1471
  %v1473 = vpop.f32.mrb[0].mxu0
  %1474 = vdwg.mxu0
  %1475 = vmatprep.subr.bf16.mxu0 0
  %1476 = vmatpush1.bf16.msra.mxu0 %v1194
  %1477 = vmatprep.subr.bf16.mxu0 0
  %1478 = vmatpush1.bf16.msra.mxu0 %v1195
  %1479 = vmatprep.subr.bf16.mxu0 0
  %1480 = vmatpush1.bf16.msra.mxu0 %v1196
  %1481 = vmatprep.subr.bf16.mxu0 0
  %1482 = vmatpush1.bf16.msra.mxu0 %v1197
  %1483 = vmatprep.subr.bf16.mxu0 0
  %1484 = vmatpush1.bf16.msra.mxu0 %v1198
  %1485 = vmatprep.subr.bf16.mxu0 0
  %1486 = vmatpush1.bf16.msra.mxu0 %v1199
  %1487 = vmatprep.subr.bf16.mxu0 0
  %1488 = vmatpush1.bf16.msra.mxu0 %v1200
  %1489 = vmatprep.subr.bf16.mxu0 0
  %1490 = vmatpush1.bf16.msra.mxu0 %v1201
  %1491 = vmatprep.subr.bf16.mxu0 0
  %1492 = vmatpush1.bf16.msra.mxu0 %v1202
  %1493 = vmatprep.subr.bf16.mxu0 0
  %1494 = vmatpush1.bf16.msra.mxu0 %v1203
  %1495 = vmatprep.subr.bf16.mxu0 0
  %1496 = vmatpush1.bf16.msra.mxu0 %v1204
  %1497 = vmatprep.subr.bf16.mxu0 0
  %1498 = vmatpush1.bf16.msra.mxu0 %v1205
  %1499 = vmatprep.subr.bf16.mxu0 0
  %1500 = vmatpush1.bf16.msra.mxu0 %v1206
  %1501 = vmatprep.subr.bf16.mxu0 0
  %1502 = vmatpush1.bf16.msra.mxu0 %v1207
  %1503 = vmatprep.subr.bf16.mxu0 0
  %1504 = vmatpush1.bf16.msra.mxu0 %v1208
  %1505 = vmatprep.subr.bf16.mxu0 0
  %1506 = vmatpush1.bf16.msra.mxu0 %v1209
  %1507 = vmatprep.mubr.bf16.mxu0 %v397
  %1508 = vmatmul.mubr.bf16.gmra.mrb[0].mxu0 %v396
  %v1509 = vpop.f32.mrb[0].mxu0
  %v1510 = vadd.f32 %v1469, %v1509
  %v1511 = vpop.f32.mrb[0].mxu0
  %v1512 = vpop.f32.mrb[0].mxu0
  %v1513 = vadd.f32 %v1472, %v1512
  %v1514 = vpop.f32.mrb[0].mxu0
  %1515 = vdwg.mxu0
  %1516 = vmatprep.subr.bf16.mxu0 0
  %1517 = vmatpush1.bf16.msra.mxu0 %v1210
  %1518 = vmatprep.subr.bf16.mxu0 0
  %1519 = vmatpush1.bf16.msra.mxu0 %v1211
  %1520 = vmatprep.subr.bf16.mxu0 0
  %1521 = vmatpush1.bf16.msra.mxu0 %v1212
  %1522 = vmatprep.subr.bf16.mxu0 0
  %1523 = vmatpush1.bf16.msra.mxu0 %v1213
  %1524 = vmatprep.subr.bf16.mxu0 0
  %1525 = vmatpush1.bf16.msra.mxu0 %v1214
  %1526 = vmatprep.subr.bf16.mxu0 0
  %1527 = vmatpush1.bf16.msra.mxu0 %v1215
  %1528 = vmatprep.subr.bf16.mxu0 0
  %1529 = vmatpush1.bf16.msra.mxu0 %v1216
  %1530 = vmatprep.subr.bf16.mxu0 0
  %1531 = vmatpush1.bf16.msra.mxu0 %v1217
  %1532 = vmatprep.subr.bf16.mxu0 0
  %1533 = vmatpush1.bf16.msra.mxu0 %v1218
  %1534 = vmatprep.subr.bf16.mxu0 0
  %1535 = vmatpush1.bf16.msra.mxu0 %v1219
  %1536 = vmatprep.subr.bf16.mxu0 0
  %1537 = vmatpush1.bf16.msra.mxu0 %v1220
  %1538 = vmatprep.subr.bf16.mxu0 0
  %1539 = vmatpush1.bf16.msra.mxu0 %v1221
  %1540 = vmatprep.subr.bf16.mxu0 0
  %1541 = vmatpush1.bf16.msra.mxu0 %v1222
  %1542 = vmatprep.subr.bf16.mxu0 0
  %1543 = vmatpush1.bf16.msra.mxu0 %v1223
  %1544 = vmatprep.subr.bf16.mxu0 0
  %1545 = vmatpush1.bf16.msra.mxu0 %v1224
  %1546 = vmatprep.subr.bf16.mxu0 0
  %1547 = vmatpush1.bf16.msra.mxu0 %v1225
  %1548 = vmatprep.mubr.bf16.mxu0 %v399
  %1549 = vmatmul.mubr.bf16.gmra.mrb[0].mxu0 %v398
  %v1550 = vpop.f32.mrb[0].mxu0
  %v1551 = vadd.f32 %v1510, %v1550
  %v1552 = vpop.f32.mrb[0].mxu0
  %v1553 = vpop.f32.mrb[0].mxu0
  %v1554 = vadd.f32 %v1513, %v1553
  %v1555 = vpop.f32.mrb[0].mxu0
  %1556 = vdwg.mxu0
  %1557 = vmatprep.subr.bf16.mxu0 0
  %1558 = vmatpush1.bf16.msra.mxu0 %v1226
  %1559 = vmatprep.subr.bf16.mxu0 0
  %1560 = vmatpush1.bf16.msra.mxu0 %v1227
  %1561 = vmatprep.subr.bf16.mxu0 0
  %1562 = vmatpush1.bf16.msra.mxu0 %v1228
  %1563 = vmatprep.subr.bf16.mxu0 0
  %1564 = vmatpush1.bf16.msra.mxu0 %v1229
  %1565 = vmatprep.subr.bf16.mxu0 0
  %1566 = vmatpush1.bf16.msra.mxu0 %v1230
  %1567 = vmatprep.subr.bf16.mxu0 0
  %1568 = vmatpush1.bf16.msra.mxu0 %v1231
  %1569 = vmatprep.subr.bf16.mxu0 0
  %1570 = vmatpush1.bf16.msra.mxu0 %v1232
  %1571 = vmatprep.subr.bf16.mxu0 0
  %1572 = vmatpush1.bf16.msra.mxu0 %v1233
  %1573 = vmatprep.subr.bf16.mxu0 0
  %1574 = vmatpush1.bf16.msra.mxu0 %v1234
  %1575 = vmatprep.subr.bf16.mxu0 0
  %1576 = vmatpush1.bf16.msra.mxu0 %v1235
  %1577 = vmatprep.subr.bf16.mxu0 0
  %1578 = vmatpush1.bf16.msra.mxu0 %v1236
  %1579 = vmatprep.subr.bf16.mxu0 0
  %1580 = vmatpush1.bf16.msra.mxu0 %v1237
  %1581 = vmatprep.subr.bf16.mxu0 0
  %1582 = vmatpush1.bf16.msra.mxu0 %v1238
  %1583 = vmatprep.subr.bf16.mxu0 0
  %1584 = vmatpush1.bf16.msra.mxu0 %v1239
  %1585 = vmatprep.subr.bf16.mxu0 0
  %1586 = vmatpush1.bf16.msra.mxu0 %v1240
  %1587 = vmatprep.subr.bf16.mxu0 0
  %1588 = vmatpush1.bf16.msra.mxu0 %v1241
  %1589 = vmatprep.mubr.bf16.mxu0 %v401
  %1590 = vmatmul.mubr.bf16.gmra.mrb[0].mxu0 %v400
  %v1591 = vpop.f32.mrb[0].mxu0
  %v1592 = vadd.f32 %v1551, %v1591
  %v1593 = vpop.f32.mrb[0].mxu0
  %v1594 = vpop.f32.mrb[0].mxu0
  %v1595 = vadd.f32 %v1554, %v1594
  %v1596 = vpop.f32.mrb[0].mxu0
  %1597 = vdwg.mxu0
  %1598 = vmatprep.subr.bf16.mxu0 0
  %1599 = vmatpush1.bf16.msra.mxu0 %v1242
  %1600 = vmatprep.subr.bf16.mxu0 0
  %1601 = vmatpush1.bf16.msra.mxu0 %v1243
  %1602 = vmatprep.subr.bf16.mxu0 0
  %1603 = vmatpush1.bf16.msra.mxu0 %v1244
  %1604 = vmatprep.subr.bf16.mxu0 0
  %1605 = vmatpush1.bf16.msra.mxu0 %v1245
  %1606 = vmatprep.subr.bf16.mxu0 0
  %1607 = vmatpush1.bf16.msra.mxu0 %v1246
  %1608 = vmatprep.subr.bf16.mxu0 0
  %1609 = vmatpush1.bf16.msra.mxu0 %v1247
  %1610 = vmatprep.subr.bf16.mxu0 0
  %1611 = vmatpush1.bf16.msra.mxu0 %v1248
  %1612 = vmatprep.subr.bf16.mxu0 0
  %1613 = vmatpush1.bf16.msra.mxu0 %v1249
  %1614 = vmatprep.subr.bf16.mxu0 0
  %1615 = vmatpush1.bf16.msra.mxu0 %v1250
  %1616 = vmatprep.subr.bf16.mxu0 0
  %1617 = vmatpush1.bf16.msra.mxu0 %v1251
  %1618 = vmatprep.subr.bf16.mxu0 0
  %1619 = vmatpush1.bf16.msra.mxu0 %v1252
  %1620 = vmatprep.subr.bf16.mxu0 0
  %1621 = vmatpush1.bf16.msra.mxu0 %v1253
  %1622 = vmatprep.subr.bf16.mxu0 0
  %1623 = vmatpush1.bf16.msra.mxu0 %v1254
  %1624 = vmatprep.subr.bf16.mxu0 0
  %1625 = vmatpush1.bf16.msra.mxu0 %v1255
  %1626 = vmatprep.subr.bf16.mxu0 0
  %1627 = vmatpush1.bf16.msra.mxu0 %v1256
  %1628 = vmatprep.subr.bf16.mxu0 0
  %1629 = vmatpush1.bf16.msra.mxu0 %v1257
  %1630 = vmatprep.mubr.bf16.mxu0 %v403
  %1631 = vmatmul.mubr.bf16.gmra.mrb[0].mxu0 %v402
  %v1632 = vpop.f32.mrb[0].mxu0
  %v1633 = vadd.f32 %v1592, %v1632
  %v1634 = vpop.f32.mrb[0].mxu0
  %v1635 = vpop.f32.mrb[0].mxu0
  %v1636 = vadd.f32 %v1595, %v1635
  %v1637 = vpop.f32.mrb[0].mxu0
  %1638 = vdwg.mxu0
  %1639 = vmatprep.subr.bf16.mxu0 0
  %1640 = vmatpush1.bf16.msra.mxu0 %v1258
  %1641 = vmatprep.subr.bf16.mxu0 0
  %1642 = vmatpush1.bf16.msra.mxu0 %v1259
  %1643 = vmatprep.subr.bf16.mxu0 0
  %1644 = vmatpush1.bf16.msra.mxu0 %v1260
  %1645 = vmatprep.subr.bf16.mxu0 0
  %1646 = vmatpush1.bf16.msra.mxu0 %v1261
  %1647 = vmatprep.subr.bf16.mxu0 0
  %1648 = vmatpush1.bf16.msra.mxu0 %v1262
  %1649 = vmatprep.subr.bf16.mxu0 0
  %1650 = vmatpush1.bf16.msra.mxu0 %v1263
  %1651 = vmatprep.subr.bf16.mxu0 0
  %1652 = vmatpush1.bf16.msra.mxu0 %v1264
  %1653 = vmatprep.subr.bf16.mxu0 0
  %1654 = vmatpush1.bf16.msra.mxu0 %v1265
  %1655 = vmatprep.subr.bf16.mxu0 0
  %1656 = vmatpush1.bf16.msra.mxu0 %v1266
  %1657 = vmatprep.subr.bf16.mxu0 0
  %1658 = vmatpush1.bf16.msra.mxu0 %v1267
  %1659 = vmatprep.subr.bf16.mxu0 0
  %1660 = vmatpush1.bf16.msra.mxu0 %v1268
  %1661 = vmatprep.subr.bf16.mxu0 0
  %1662 = vmatpush1.bf16.msra.mxu0 %v1269
  %1663 = vmatprep.subr.bf16.mxu0 0
  %1664 = vmatpush1.bf16.msra.mxu0 %v1270
  %1665 = vmatprep.subr.bf16.mxu0 0
  %1666 = vmatpush1.bf16.msra.mxu0 %v1271
  %1667 = vmatprep.subr.bf16.mxu0 0
  %1668 = vmatpush1.bf16.msra.mxu0 %v1272
  %1669 = vmatprep.subr.bf16.mxu0 0
  %1670 = vmatpush1.bf16.msra.mxu0 %v1273
  %1671 = vmatprep.mubr.bf16.mxu0 %v405
  %1672 = vmatmul.mubr.bf16.gmra.mrb[0].mxu0 %v404
  %v1673 = vpop.f32.mrb[0].mxu0
  %v1674 = vadd.f32 %v1633, %v1673
  %v1675 = vpop.f32.mrb[0].mxu0
  %v1676 = vpop.f32.mrb[0].mxu0
  %v1677 = vadd.f32 %v1636, %v1676
  %v1678 = vpop.f32.mrb[0].mxu0
  %1679 = vdwg.mxu0
  %1680 = vmatprep.subr.bf16.mxu0 0
  %1681 = vmatpush1.bf16.msra.mxu0 %v1274
  %1682 = vmatprep.subr.bf16.mxu0 0
  %1683 = vmatpush1.bf16.msra.mxu0 %v1275
  %1684 = vmatprep.subr.bf16.mxu0 0
  %1685 = vmatpush1.bf16.msra.mxu0 %v1276
  %1686 = vmatprep.subr.bf16.mxu0 0
  %1687 = vmatpush1.bf16.msra.mxu0 %v1277
  %1688 = vmatprep.subr.bf16.mxu0 0
  %1689 = vmatpush1.bf16.msra.mxu0 %v1278
  %1690 = vmatprep.subr.bf16.mxu0 0
  %1691 = vmatpush1.bf16.msra.mxu0 %v1279
  %1692 = vmatprep.subr.bf16.mxu0 0
  %1693 = vmatpush1.bf16.msra.mxu0 %v1280
  %1694 = vmatprep.subr.bf16.mxu0 0
  %1695 = vmatpush1.bf16.msra.mxu0 %v1281
  %1696 = vmatprep.subr.bf16.mxu0 0
  %1697 = vmatpush1.bf16.msra.mxu0 %v1282
  %1698 = vmatprep.subr.bf16.mxu0 0
  %1699 = vmatpush1.bf16.msra.mxu0 %v1283
  %1700 = vmatprep.subr.bf16.mxu0 0
  %1701 = vmatpush1.bf16.msra.mxu0 %v1284
  %1702 = vmatprep.subr.bf16.mxu0 0
  %1703 = vmatpush1.bf16.msra.mxu0 %v1285
  %1704 = vmatprep.subr.bf16.mxu0 0
  %1705 = vmatpush1.bf16.msra.mxu0 %v1286
  %1706 = vmatprep.subr.bf16.mxu0 0
  %1707 = vmatpush1.bf16.msra.mxu0 %v1287
  %1708 = vmatprep.subr.bf16.mxu0 0
  %1709 = vmatpush1.bf16.msra.mxu0 %v1288
  %1710 = vmatprep.subr.bf16.mxu0 0
  %1711 = vmatpush1.bf16.msra.mxu0 %v1289
  %1712 = vmatprep.mubr.bf16.mxu0 %v407
  %1713 = vmatmul.mubr.bf16.gmra.mrb[0].mxu0 %v406
  %v1714 = vpop.f32.mrb[0].mxu0
  %v1715 = vadd.f32 %v1674, %v1714
  %v1716 = vpop.f32.mrb[0].mxu0
  %v1717 = vpop.f32.mrb[0].mxu0
  %v1718 = vadd.f32 %v1677, %v1717
  %v1719 = vpop.f32.mrb[0].mxu0
  %1720 = vdwg.mxu0
  %1721 = vmatprep.subr.bf16.mxu0 0
  %1722 = vmatpush1.bf16.msra.mxu0 %v1290
  %1723 = vmatprep.subr.bf16.mxu0 0
  %1724 = vmatpush1.bf16.msra.mxu0 %v1291
  %1725 = vmatprep.subr.bf16.mxu0 0
  %1726 = vmatpush1.bf16.msra.mxu0 %v1292
  %1727 = vmatprep.subr.bf16.mxu0 0
  %1728 = vmatpush1.bf16.msra.mxu0 %v1293
  %1729 = vmatprep.subr.bf16.mxu0 0
  %1730 = vmatpush1.bf16.msra.mxu0 %v1294
  %1731 = vmatprep.subr.bf16.mxu0 0
  %1732 = vmatpush1.bf16.msra.mxu0 %v1295
  %1733 = vmatprep.subr.bf16.mxu0 0
  %1734 = vmatpush1.bf16.msra.mxu0 %v1296
  %1735 = vmatprep.subr.bf16.mxu0 0
  %1736 = vmatpush1.bf16.msra.mxu0 %v1297
  %1737 = vmatprep.subr.bf16.mxu0 0
  %1738 = vmatpush1.bf16.msra.mxu0 %v1298
  %1739 = vmatprep.subr.bf16.mxu0 0
  %1740 = vmatpush1.bf16.msra.mxu0 %v1299
  %1741 = vmatprep.subr.bf16.mxu0 0
  %1742 = vmatpush1.bf16.msra.mxu0 %v1300
  %1743 = vmatprep.subr.bf16.mxu0 0
  %1744 = vmatpush1.bf16.msra.mxu0 %v1301
  %1745 = vmatprep.subr.bf16.mxu0 0
  %1746 = vmatpush1.bf16.msra.mxu0 %v1302
  %1747 = vmatprep.subr.bf16.mxu0 0
  %1748 = vmatpush1.bf16.msra.mxu0 %v1303
  %1749 = vmatprep.subr.bf16.mxu0 0
  %1750 = vmatpush1.bf16.msra.mxu0 %v1304
  %1751 = vmatprep.subr.bf16.mxu0 0
  %1752 = vmatpush1.bf16.msra.mxu0 %v1305
  %1753 = vmatprep.mubr.bf16.mxu0 %v409
  %1754 = vmatmul.mubr.bf16.gmra.mrb[0].mxu0 %v408
  %v1755 = vpop.f32.mrb[0].mxu0
  %v1756 = vadd.f32 %v1715, %v1755
  %v1757 = vpop.f32.mrb[0].mxu0
  %v1758 = vpop.f32.mrb[0].mxu0
  %v1759 = vadd.f32 %v1718, %v1758
  %v1760 = vpop.f32.mrb[0].mxu0
  %1761 = vdwg.mxu0
  %v1762 = vxor.u32 %v1756, 2147483648
  %v1763 = vxor.u32 %v1759, 2147483648
  %v1764 = vmul.f32 %v1762, 1.442695
  %v1765 = vpow.pop %v1764
  %v1766 = vmul.f32 %v1763, 1.442695
  %v1767 = vpow.pop %v1766
  %v1768 = vadd.f32 %v1765, 1.0
  %v1769 = vadd.f32 %v1767, 1.0
  %v1770 = vrcp.pop %v1768
  %v1771 = vmul.f32 1.0, %v1770
  %v1772 = vrcp.pop %v1769
  %v1773 = vmul.f32 1.0, %v1772
  %1774 = vst [vmem:[%s4] sm:$0xff] %v1771
  %1775 = vst [vmem:[%s4 + $0x8] sm:$0xff] %v1773
  // Predicated region
  $region18: #{discriminator_forward.13} parent=0 // pred_check
    _
  $region19: #{discriminator_forward.13} parent=0 // pred_check_branch
    %1777 = sbr.rel (0) target = $region21
  $region20: #{discriminator_forward.13} parent=0 // pred_region
    _
  $region21: #{discriminator_forward.13} parent=0 // pred_fallthru
    _
  // Predicated region
  $region22: #{discriminator_forward.13} parent=0 // pred_check
    _
  $region23: #{discriminator_forward.13} parent=0 // pred_check_branch
    %1779 = sbr.rel (0) target = $region25
  $region24: #{discriminator_forward.13} parent=0 // pred_region
    _
  $region25: #{discriminator_forward.13} parent=0 // pred_fallthru
    _

</llo_original>
